<compile_context>
chip_gen: v7x
topology: tpu7x:2x2x1
jax: 0.10.0
libtpu: 0.0.40
codegen_flags: <defaults>
</compile_context>

<pallas_src>
import functools

import jax
import jax.numpy as jnp
from jax.experimental import pallas as pl
from jax.experimental.pallas import tpu as pltpu

# ----------------------------- configuration ------------------------------
B, C_IN, F_DIM_IN, T_DIM_IN = 2, 1, 32, 48          # input spectrogram (NCHW)
PATCH, FSTRIDE, TSTRIDE = 16, 8, 16                 # conv kernel / strides
EMBED_DIM = 64                                      # "hidden" (768 in real AST)
NUM_HEADS = 4
HEAD_DIM = EMBED_DIM // NUM_HEADS
DEPTH = 2                                           # (12 in real AST)
MLP_HIDDEN = 4 * EMBED_DIM
LABEL_DIM = 16                                      # (527 in real AST)

F_OUT = (F_DIM_IN - PATCH) // FSTRIDE + 1
T_OUT = (T_DIM_IN - PATCH) // TSTRIDE + 1
N_PATCH = F_OUT * T_OUT                             # 9
S_REAL = N_PATCH + 2                                # 11 (cls + dist + patches)
S_PAD = ((S_REAL + 7) // 8) * 8                     # 16 (sublane aligned)
TOK = B * S_PAD                                     # 32 (batch folded into rows)
LABEL_PAD = 128                                     # lane-dense head output
K_PATCH = C_IN * PATCH * PATCH                      # 256


# ------------------------------ glue: im2col ------------------------------
def extract_patches(x, patch, fstride, tstride):
    """x: (B, C, F, T) -> (B, N, C*patch*patch)."""
    b, c, f, t = x.shape
    f_dim = (f - patch) // fstride + 1
    t_dim = (t - patch) // tstride + 1
    cols = jax.lax.conv_general_dilated_patches(
        x, filter_shape=(patch, patch), window_strides=(fstride, tstride),
        padding="VALID", dimension_numbers=("NCHW", "OIHW", "NCHW"))
    # cols: (B, C*patch*patch, f_dim, t_dim)
    patches = jnp.transpose(cols, (0, 2, 3, 1)).reshape(
        b, f_dim * t_dim, c * patch * patch)
    return patches, f_dim, t_dim


# ----------------------------- kernel helpers ------------------------------
def _layernorm(v, g, b, eps):
    mu = jnp.mean(v, axis=-1, keepdims=True)
    var = jnp.mean((v - mu) ** 2, axis=-1, keepdims=True)
    return (v - mu) * jax.lax.rsqrt(var + eps) * g + b


def _gelu_erf(x):
    # nn.GELU (erf-based, matching timm 0.4.5 ViT MLP)
    return 0.5 * x * (1.0 + jax.lax.erf(x * 0.7071067811865476))


# ------------------------------ fused kernel -------------------------------
def _ast_fused_kernel(patches_ref, pw_ref, patchbias_ref, clsdist_ref, mask_ref,
                      ln1g_ref, ln1b_ref, qkvw_ref, qkvb_ref,
                      attw_ref, attb_ref, ln2g_ref, ln2b_ref,
                      fc1w_ref, fc1b_ref, fc2w_ref, fc2b_ref,
                      hg_ref, hb_ref, hw_ref, hbias_ref,
                      out_ref, x_vmem,
                      *, depth, num_heads, batch, s_pad, n_patch):
    f32 = jnp.float32
    bf16 = jnp.bfloat16
    tok_total, d = x_vmem.shape                       # (B*S_PAD, D)
    hd = d // num_heads

    # ---- patch-embed matmul + token assembly (direct slice stores) ----
    # patches (B*N, K) bf16 @ (K, D) bf16 -> (B*N, D) f32; conv bias + patch
    # pos-embed are pre-folded into patchbias, cls/dist pos into clsdist.
    tok = jnp.dot(patches_ref[...], pw_ref[...], preferred_element_type=f32)
    for b in range(batch):                            # static, B = 2
        base = b * s_pad
        x_vmem[base:base + 2, :] = clsdist_ref[...]
        x_vmem[base + 2:base + 2 + n_patch, :] = (
            tok[b * n_patch:(b + 1) * n_patch, :] + patchbias_ref[...])
        x_vmem[base + 2 + n_patch:base + s_pad, :] = jnp.zeros(
            (s_pad - 2 - n_patch, d), f32)

    x = x_vmem[...]                                   # (TOK, D) f32
    mask = mask_ref[...]                              # (TOK, TOK) f32 additive

    # ---- transformer blocks: fully unrolled, weights VMEM-resident ----
    for l in range(depth):                            # static unroll (DEPTH=2)
        # attention branch (pre-norm); 1/sqrt(hd) already folded into q w/b
        xn = _layernorm(x, ln1g_ref[l], ln1b_ref[l], 1e-6).astype(bf16)
        qkvw = qkvw_ref[l]                            # (3, D, D) bf16
        qkvb = qkvb_ref[l]                            # (3, 1, D) f32
        q = jnp.dot(xn, qkvw[0], preferred_element_type=f32) + qkvb[0]
        k = jnp.dot(xn, qkvw[1], preferred_element_type=f32) + qkvb[1]
        v = jnp.dot(xn, qkvw[2], preferred_element_type=f32) + qkvb[2]

        qh = jnp.transpose(q.reshape(tok_total, num_heads, hd), (1, 0, 2))
        kh = jnp.transpose(k.reshape(tok_total, num_heads, hd), (1, 0, 2))
        vh = jnp.transpose(v.reshape(tok_total, num_heads, hd), (1, 0, 2))

        s = jnp.einsum("hqd,hkd->hqk", qh.astype(bf16), kh.astype(bf16),
                       preferred_element_type=f32) + mask    # (H, TOK, TOK)
        m = jnp.max(s, axis=-1, keepdims=True)
        e = jnp.exp(s - m)
        p = e * pl.reciprocal(jnp.sum(e, axis=-1, keepdims=True), approx=True)
        ctx = jnp.einsum("hqk,hkd->hqd", p.astype(bf16), vh.astype(bf16),
                         preferred_element_type=f32)         # (H, TOK, hd)
        # per-head output projection (proj weight packed as (H, hd, D)) then
        # a cheap major-axis sum -- avoids the (H,TOK,hd)->(TOK,D) un-transpose.
        att = jnp.einsum("hqd,hde->hqe", ctx.astype(bf16), attw_ref[l],
                         preferred_element_type=f32)         # (H, TOK, D)
        x = x + jnp.sum(att, axis=0) + attb_ref[l]           # residual 1

        # MLP branch (pre-norm)
        xn2 = _layernorm(x, ln2g_ref[l], ln2b_ref[l], 1e-6).astype(bf16)
        h1 = jnp.dot(xn2, fc1w_ref[l], preferred_element_type=f32) + fc1b_ref[l]
        h1 = _gelu_erf(h1)
        x = x + jnp.dot(h1.astype(bf16), fc2w_ref[l],
                        preferred_element_type=f32) + fc2b_ref[l]   # residual 2

    # ---- (cls+dist)/2 pooling + head LayerNorm + Linear (lane-dense store) ----
    pooled = jnp.concatenate(
        [(x[b * s_pad:b * s_pad + 1, :] + x[b * s_pad + 1:b * s_pad + 2, :]) * 0.5
         for b in range(batch)], axis=0)                      # (B, D)
    pn = _layernorm(pooled, hg_ref[...], hb_ref[...], 1e-5)
    logits = (jnp.dot(pn.astype(bf16), hw_ref[...],
                      preferred_element_type=f32) + hbias_ref[...])  # (B, 128)
    out_ref[...] = logits.astype(out_ref.dtype)


# ------------------------------ kernel wrapper ------------------------------
def _fused_forward(patches, pp):
    kernel = functools.partial(
        _ast_fused_kernel, depth=DEPTH, num_heads=NUM_HEADS, batch=B,
        s_pad=S_PAD, n_patch=N_PATCH)
    # Gridless call: every array (weights ~120 KB, patches ~9 KB, mask 4 KB)
    # is VMEM-resident for one invocation; the only HBM store is the padded
    # (B, 128) head output.  No per-grid-step overhead, no weight re-DMA.
    return pl.pallas_call(
        kernel,
        out_shape=jax.ShapeDtypeStruct((B, LABEL_PAD), jnp.float32),
        scratch_shapes=[pltpu.VMEM((TOK, EMBED_DIM), jnp.float32)],
    )(patches,
      pp["proj_w"], pp["patch_bias"], pp["clsdist_pos"], pp["attn_mask"],
      pp["ln1_g"], pp["ln1_b"], pp["qkv_w"], pp["qkv_b"],
      pp["att_w"], pp["att_b"], pp["ln2_g"], pp["ln2_b"],
      pp["fc1_w"], pp["fc1_b"], pp["fc2_w"], pp["fc2_b"],
      pp["head_ln_g"], pp["head_ln_b"], pp["head_w"], pp["head_b"])


# ------------------------------- full forward ------------------------------
def ast_bias_forward(x, packed):
    patches, _, _ = extract_patches(x, PATCH, FSTRIDE, TSTRIDE)
    bsz, n, k = patches.shape
    # flatten batch into rows and cast to bf16 in the wrapper (halves DMA)
    patches = patches.reshape(bsz * n, k).astype(jnp.bfloat16)
    out = _fused_forward(patches, packed)
    return out[:, :LABEL_DIM]


# --------------------------- parameter preparation --------------------------
def init_params(key):
    """PyTorch-shaped synthetic parameters (same roles as the timm ViT)."""
    keys = iter(jax.random.split(key, 200))

    def nrm(shape, std=0.02):
        return (std * jax.random.normal(next(keys), shape)).astype(jnp.float32)

    blocks = []
    for _ in range(DEPTH):
        blocks.append((
            jnp.ones((1, EMBED_DIM), jnp.float32),       # 0  ln1 gamma
            nrm((1, EMBED_DIM)),                         # 1  ln1 beta
            nrm((EMBED_DIM, 3 * EMBED_DIM)),             # 2  qkv weight (in, 3D)
            nrm((1, 3 * EMBED_DIM)),                     # 3  qkv bias
            nrm((EMBED_DIM, EMBED_DIM)),                 # 4  attn proj weight
            nrm((1, EMBED_DIM)),                         # 5  attn proj bias
            jnp.ones((1, EMBED_DIM), jnp.float32),       # 6  ln2 gamma
            nrm((1, EMBED_DIM)),                         # 7  ln2 beta
            nrm((EMBED_DIM, MLP_HIDDEN)),                # 8  mlp fc1 weight
            nrm((1, MLP_HIDDEN)),                        # 9  mlp fc1 bias
            nrm((MLP_HIDDEN, EMBED_DIM)),                # 10 mlp fc2 weight
            nrm((1, EMBED_DIM)),                         # 11 mlp fc2 bias
        ))

    return {
        # conv weight (D, C, 16, 16) pre-reshaped to (C*16*16, D) matmul form
        "proj_w": nrm((K_PATCH, EMBED_DIM)),
        "proj_b": nrm((1, EMBED_DIM)),
        "cls_token": nrm((1, 1, EMBED_DIM)),
        "dist_token": nrm((1, 1, EMBED_DIM)),
        "pos_embed": nrm((1, S_REAL, EMBED_DIM)),
        "blocks": blocks,
        "head_ln_g": jnp.ones((1, EMBED_DIM), jnp.float32),
        "head_ln_b": nrm((1, EMBED_DIM)),
        "head_w": nrm((EMBED_DIM, LABEL_DIM)),
        "head_b": nrm((1, LABEL_DIM)),
    }


def pack_params(params):
    """One-time surgery into kernel-friendly layout:
       * stack layers along a depth axis, split fused qkv into (L, 3, D, D)
       * fold 1/sqrt(head_dim) into the q weight/bias (before bf16 cast)
       * fold conv bias + pos-embed into (2,D)/(N,D) additive constants
       * reshape the attn proj weight to (L, H, hd, D) for per-head projection
       * build the combined batch-isolation + padded-key additive mask once
       * pad the head to a lane-dense 128-wide output; matmul operands -> bf16."""
    d, hd = EMBED_DIM, HEAD_DIM
    blocks = params["blocks"]
    depth = len(blocks)
    stk = lambda i: jnp.stack([blk[i] for blk in blocks], axis=0)

    qkv_w = stk(2).reshape(depth, d, 3, d).transpose(0, 2, 1, 3)   # (L,3,D,D)
    qkv_b = stk(3).reshape(depth, 1, 3, d).transpose(0, 2, 1, 3)   # (L,3,1,D)
    scale = hd ** -0.5
    qkv_w = qkv_w.at[:, 0].multiply(scale)                         # fold qk scale
    qkv_b = qkv_b.at[:, 0].multiply(scale)

    pos = params["pos_embed"][0]                                   # (S_REAL, D)
    clsdist = jnp.concatenate(
        [params["cls_token"][0], params["dist_token"][0]], axis=0)  # (2, D)
    clsdist_pos = (clsdist + pos[:2]).astype(jnp.float32)           # (2, D)
    patch_bias = (params["proj_b"] + pos[2:2 + N_PATCH]).astype(jnp.float32)

    att_w = stk(4).reshape(depth, NUM_HEADS, hd, d)                # (L,H,hd,D)

    head_w = jnp.pad(params["head_w"], ((0, 0), (0, LABEL_PAD - LABEL_DIM)))
    head_b = jnp.pad(params["head_b"], ((0, 0), (0, LABEL_PAD - LABEL_DIM)))

    # additive attention mask over the batch-folded token axis:
    # allow key j for query i iff same batch element AND j is a real token.
    rows = jnp.arange(TOK)
    same_batch = (rows[:, None] // S_PAD) == (rows[None, :] // S_PAD)
    real_key = (rows % S_PAD) < S_REAL
    attn_mask = jnp.where(same_batch & real_key[None, :],
                          0.0, -1e30).astype(jnp.float32)          # (TOK, TOK)

    bf16 = jnp.bfloat16
    return {
        "proj_w": params["proj_w"].astype(bf16),
        "patch_bias": patch_bias, "clsdist_pos": clsdist_pos,
        "attn_mask": attn_mask,
        "ln1_g": stk(0), "ln1_b": stk(1),
        "qkv_w": qkv_w.astype(bf16), "qkv_b": qkv_b.astype(jnp.float32),
        "att_w": att_w.astype(bf16), "att_b": stk(5),
        "ln2_g": stk(6), "ln2_b": stk(7),
        "fc1_w": stk(8).astype(bf16), "fc1_b": stk(9),
        "fc2_w": stk(10).astype(bf16), "fc2_b": stk(11),
        "head_ln_g": params["head_ln_g"], "head_ln_b": params["head_ln_b"],
        "head_w": head_w.astype(bf16), "head_b": head_b,
    }


if __name__ == "__main__":
    key = jax.random.PRNGKey(0)
    pkey, xkey = jax.random.split(key)
    params = init_params(pkey)
    packed = pack_params(params)
    x = jax.random.normal(xkey, (B, C_IN, F_DIM_IN, T_DIM_IN), dtype=jnp.float32)

    out = jax.jit(ast_bias_forward)(x, packed)
    out = jax.block_until_ready(out)
    assert out.shape == (B, LABEL_DIM), out.shape
    assert bool(jnp.all(jnp.isfinite(out)))
    print("KERNEL_OK")
</pallas_src>

<mosaic_0001>
module attributes {stable_mosaic.version = 11 : i64} {
  func.func @_ast_fused_kernel(%arg0: memref<18x256xbf16, #tpu.memory_space<vmem>>, %arg1: memref<256x64xbf16, #tpu.memory_space<vmem>>, %arg2: memref<9x64xf32, #tpu.memory_space<vmem>>, %arg3: memref<2x64xf32, #tpu.memory_space<vmem>>, %arg4: memref<32x32xf32, #tpu.memory_space<vmem>>, %arg5: memref<2x1x64xf32, #tpu.memory_space<vmem>>, %arg6: memref<2x1x64xf32, #tpu.memory_space<vmem>>, %arg7: memref<2x3x64x64xbf16, #tpu.memory_space<vmem>>, %arg8: memref<2x3x1x64xf32, #tpu.memory_space<vmem>>, %arg9: memref<2x4x16x64xbf16, #tpu.memory_space<vmem>>, %arg10: memref<2x1x64xf32, #tpu.memory_space<vmem>>, %arg11: memref<2x1x64xf32, #tpu.memory_space<vmem>>, %arg12: memref<2x1x64xf32, #tpu.memory_space<vmem>>, %arg13: memref<2x64x256xbf16, #tpu.memory_space<vmem>>, %arg14: memref<2x1x256xf32, #tpu.memory_space<vmem>>, %arg15: memref<2x256x64xbf16, #tpu.memory_space<vmem>>, %arg16: memref<2x1x64xf32, #tpu.memory_space<vmem>>, %arg17: memref<1x64xf32, #tpu.memory_space<vmem>>, %arg18: memref<1x64xf32, #tpu.memory_space<vmem>>, %arg19: memref<64x128xbf16, #tpu.memory_space<vmem>>, %arg20: memref<1x128xf32, #tpu.memory_space<vmem>>, %arg21: memref<2x128xf32, #tpu.memory_space<vmem>>, %arg22: memref<32x64xf32, #tpu.memory_space<vmem>>) attributes {dimension_semantics = [], scalar_prefetch = 0 : i64, scratch_operands = 1 : i64, tpu.core_type = #tpu.core_type<tc>} {
    %c0 = arith.constant 0 : index
    %c0_0 = arith.constant 0 : index
    %0 = vector.load %arg0[%c0, %c0_0] : memref<18x256xbf16, #tpu.memory_space<vmem>>, vector<18x256xbf16>
    %c0_1 = arith.constant 0 : index
    %c0_2 = arith.constant 0 : index
    %1 = vector.load %arg1[%c0_1, %c0_2] : memref<256x64xbf16, #tpu.memory_space<vmem>>, vector<256x64xbf16>
    %cst = arith.constant dense<0.000000e+00> : vector<18x64xf32>
    %2 = tpu.matmul %0, %1, %cst {dimension_numbers = #tpu.dot_dimension_numbers<[1], [0], [0], [1], [0, 0, 1, 1], [], []>} : vector<18x256xbf16>, vector<256x64xbf16>, vector<18x64xf32> -> vector<18x64xf32>
    %c0_3 = arith.constant 0 : index
    %c0_4 = arith.constant 0 : index
    %3 = vector.load %arg3[%c0_3, %c0_4] : memref<2x64xf32, #tpu.memory_space<vmem>>, vector<2x64xf32>
    %c0_5 = arith.constant 0 : index
    %c0_6 = arith.constant 0 : index
    %4 = vector.load %arg22[%c0_5, %c0_6] : memref<32x64xf32, #tpu.memory_space<vmem>>, vector<2x64xf32>
    tpu.vector_store %arg22[%c0_5, %c0_6], %3 {strides = array<i32>} : memref<32x64xf32, #tpu.memory_space<vmem>>, vector<2x64xf32>,
    %5 = vector.extract_strided_slice %2 {offsets = [0, 0], sizes = [9, 64], strides = [1, 1]} : vector<18x64xf32> to vector<9x64xf32>
    %c0_7 = arith.constant 0 : index
    %c0_8 = arith.constant 0 : index
    %6 = vector.load %arg2[%c0_7, %c0_8] : memref<9x64xf32, #tpu.memory_space<vmem>>, vector<9x64xf32>
    %7 = arith.addf %5, %6 : vector<9x64xf32>
    %c2 = arith.constant 2 : index
    %c0_9 = arith.constant 0 : index
    %8 = vector.load %arg22[%c2, %c0_9] : memref<32x64xf32, #tpu.memory_space<vmem>>, vector<9x64xf32>
    tpu.vector_store %arg22[%c2, %c0_9], %7 {strides = array<i32>} : memref<32x64xf32, #tpu.memory_space<vmem>>, vector<9x64xf32>,
    %cst_10 = arith.constant 0.000000e+00 : f32
    %9 = vector.broadcast %cst_10 : f32 to vector<5x64xf32>
    %c11 = arith.constant 11 : index
    %c0_11 = arith.constant 0 : index
    %10 = vector.load %arg22[%c11, %c0_11] : memref<32x64xf32, #tpu.memory_space<vmem>>, vector<5x64xf32>
    tpu.vector_store %arg22[%c11, %c0_11], %9 {strides = array<i32>} : memref<32x64xf32, #tpu.memory_space<vmem>>, vector<5x64xf32>,
    %c0_12 = arith.constant 0 : index
    %c0_13 = arith.constant 0 : index
    %11 = vector.load %arg3[%c0_12, %c0_13] : memref<2x64xf32, #tpu.memory_space<vmem>>, vector<2x64xf32>
    %c16 = arith.constant 16 : index
    %c0_14 = arith.constant 0 : index
    %12 = vector.load %arg22[%c16, %c0_14] : memref<32x64xf32, #tpu.memory_space<vmem>>, vector<2x64xf32>
    tpu.vector_store %arg22[%c16, %c0_14], %11 {strides = array<i32>} : memref<32x64xf32, #tpu.memory_space<vmem>>, vector<2x64xf32>,
    %13 = vector.extract_strided_slice %2 {offsets = [9, 0], sizes = [9, 64], strides = [1, 1]} : vector<18x64xf32> to vector<9x64xf32>
    %c0_15 = arith.constant 0 : index
    %c0_16 = arith.constant 0 : index
    %14 = vector.load %arg2[%c0_15, %c0_16] : memref<9x64xf32, #tpu.memory_space<vmem>>, vector<9x64xf32>
    %15 = arith.addf %13, %14 : vector<9x64xf32>
    %c18 = arith.constant 18 : index
    %c0_17 = arith.constant 0 : index
    %16 = vector.load %arg22[%c18, %c0_17] : memref<32x64xf32, #tpu.memory_space<vmem>>, vector<9x64xf32>
    tpu.vector_store %arg22[%c18, %c0_17], %15 {strides = array<i32>} : memref<32x64xf32, #tpu.memory_space<vmem>>, vector<9x64xf32>,
    %cst_18 = arith.constant 0.000000e+00 : f32
    %17 = vector.broadcast %cst_18 : f32 to vector<5x64xf32>
    %c27 = arith.constant 27 : index
    %c0_19 = arith.constant 0 : index
    %18 = vector.load %arg22[%c27, %c0_19] : memref<32x64xf32, #tpu.memory_space<vmem>>, vector<5x64xf32>
    tpu.vector_store %arg22[%c27, %c0_19], %17 {strides = array<i32>} : memref<32x64xf32, #tpu.memory_space<vmem>>, vector<5x64xf32>,
    %c0_20 = arith.constant 0 : index
    %c0_21 = arith.constant 0 : index
    %19 = vector.load %arg22[%c0_20, %c0_21] : memref<32x64xf32, #tpu.memory_space<vmem>>, vector<32x64xf32>
    %c0_22 = arith.constant 0 : index
    %c0_23 = arith.constant 0 : index
    %20 = vector.load %arg4[%c0_22, %c0_23] : memref<32x32xf32, #tpu.memory_space<vmem>>, vector<32x32xf32>
    %c0_24 = arith.constant 0 : index
    %c0_25 = arith.constant 0 : index
    %c0_26 = arith.constant 0 : index
    %21 = vector.load %arg5[%c0_24, %c0_25, %c0_26] : memref<2x1x64xf32, #tpu.memory_space<vmem>>, vector<1x1x64xf32>
    %22 = vector.shape_cast %21 : vector<1x1x64xf32> to vector<1x64xf32>
    %c0_27 = arith.constant 0 : index
    %c0_28 = arith.constant 0 : index
    %c0_29 = arith.constant 0 : index
    %23 = vector.load %arg6[%c0_27, %c0_28, %c0_29] : memref<2x1x64xf32, #tpu.memory_space<vmem>>, vector<1x1x64xf32>
    %24 = vector.shape_cast %23 : vector<1x1x64xf32> to vector<1x64xf32>
    %cst_30 = arith.constant dense<0.000000e+00> : vector<32xf32>
    %25 = vector.multi_reduction <add>, %19, %cst_30 [1] : vector<32x64xf32> to vector<32xf32>
    %26 = vector.shape_cast %25 : vector<32xf32> to vector<32x1xf32>
    %cst_31 = arith.constant 6.400000e+01 : f32
    %27 = vector.broadcast %cst_31 : f32 to vector<32x1xf32>
    %28 = arith.divf %26, %27 : vector<32x1xf32>
    %29 = vector.broadcast %28 : vector<32x1xf32> to vector<32x64xf32>
    %30 = arith.subf %19, %29 : vector<32x64xf32>
    %31 = arith.mulf %30, %30 : vector<32x64xf32>
    %cst_32 = arith.constant dense<0.000000e+00> : vector<32xf32>
    %32 = vector.multi_reduction <add>, %31, %cst_32 [1] : vector<32x64xf32> to vector<32xf32>
    %33 = vector.shape_cast %32 : vector<32xf32> to vector<32x1xf32>
    %cst_33 = arith.constant 6.400000e+01 : f32
    %34 = vector.broadcast %cst_33 : f32 to vector<32x1xf32>
    %35 = arith.divf %33, %34 : vector<32x1xf32>
    %36 = vector.broadcast %28 : vector<32x1xf32> to vector<32x64xf32>
    %37 = arith.subf %19, %36 : vector<32x64xf32>
    %cst_34 = arith.constant 9.99999997E-7 : f32
    %38 = vector.broadcast %cst_34 : f32 to vector<32x1xf32>
    %39 = arith.addf %35, %38 : vector<32x1xf32>
    %40 = math.rsqrt %39 : vector<32x1xf32>
    %41 = vector.broadcast %40 : vector<32x1xf32> to vector<32x64xf32>
    %42 = arith.mulf %37, %41 : vector<32x64xf32>
    %43 = vector.broadcast %22 : vector<1x64xf32> to vector<32x64xf32>
    %44 = arith.mulf %42, %43 : vector<32x64xf32>
    %45 = vector.broadcast %24 : vector<1x64xf32> to vector<32x64xf32>
    %46 = arith.addf %44, %45 : vector<32x64xf32>
    %47 = arith.truncf %46 : vector<32x64xf32> to vector<32x64xbf16>
    %c0_35 = arith.constant 0 : index
    %c0_36 = arith.constant 0 : index
    %c0_37 = arith.constant 0 : index
    %c0_38 = arith.constant 0 : index
    %48 = vector.load %arg7[%c0_35, %c0_36, %c0_37, %c0_38] : memref<2x3x64x64xbf16, #tpu.memory_space<vmem>>, vector<1x3x64x64xbf16>
    %49 = vector.shape_cast %48 : vector<1x3x64x64xbf16> to vector<3x64x64xbf16>
    %c0_39 = arith.constant 0 : index
    %c0_40 = arith.constant 0 : index
    %c0_41 = arith.constant 0 : index
    %c0_42 = arith.constant 0 : index
    %50 = vector.load %arg8[%c0_39, %c0_40, %c0_41, %c0_42] : memref<2x3x1x64xf32, #tpu.memory_space<vmem>>, vector<1x3x1x64xf32>
    %51 = vector.shape_cast %50 : vector<1x3x1x64xf32> to vector<3x1x64xf32>
    %52 = vector.extract_strided_slice %49 {offsets = [0, 0, 0], sizes = [1, 64, 64], strides = [1, 1, 1]} : vector<3x64x64xbf16> to vector<1x64x64xbf16>
    %53 = vector.shape_cast %52 : vector<1x64x64xbf16> to vector<64x64xbf16>
    %cst_43 = arith.constant dense<0.000000e+00> : vector<32x64xf32>
    %54 = tpu.matmul %47, %53, %cst_43 {dimension_numbers = #tpu.dot_dimension_numbers<[1], [0], [0], [1], [0, 0, 1, 1], [], []>} : vector<32x64xbf16>, vector<64x64xbf16>, vector<32x64xf32> -> vector<32x64xf32>
    %55 = vector.extract_strided_slice %51 {offsets = [0, 0, 0], sizes = [1, 1, 64], strides = [1, 1, 1]} : vector<3x1x64xf32> to vector<1x1x64xf32>
    %56 = vector.shape_cast %55 : vector<1x1x64xf32> to vector<1x64xf32>
    %57 = vector.broadcast %56 : vector<1x64xf32> to vector<32x64xf32>
    %58 = arith.addf %54, %57 : vector<32x64xf32>
    %59 = vector.extract_strided_slice %49 {offsets = [1, 0, 0], sizes = [1, 64, 64], strides = [1, 1, 1]} : vector<3x64x64xbf16> to vector<1x64x64xbf16>
    %60 = vector.shape_cast %59 : vector<1x64x64xbf16> to vector<64x64xbf16>
    %cst_44 = arith.constant dense<0.000000e+00> : vector<32x64xf32>
    %61 = tpu.matmul %47, %60, %cst_44 {dimension_numbers = #tpu.dot_dimension_numbers<[1], [0], [0], [1], [0, 0, 1, 1], [], []>} : vector<32x64xbf16>, vector<64x64xbf16>, vector<32x64xf32> -> vector<32x64xf32>
    %62 = vector.extract_strided_slice %51 {offsets = [1, 0, 0], sizes = [1, 1, 64], strides = [1, 1, 1]} : vector<3x1x64xf32> to vector<1x1x64xf32>
    %63 = vector.shape_cast %62 : vector<1x1x64xf32> to vector<1x64xf32>
    %64 = vector.broadcast %63 : vector<1x64xf32> to vector<32x64xf32>
    %65 = arith.addf %61, %64 : vector<32x64xf32>
    %66 = vector.extract_strided_slice %49 {offsets = [2, 0, 0], sizes = [1, 64, 64], strides = [1, 1, 1]} : vector<3x64x64xbf16> to vector<1x64x64xbf16>
    %67 = vector.shape_cast %66 : vector<1x64x64xbf16> to vector<64x64xbf16>
    %cst_45 = arith.constant dense<0.000000e+00> : vector<32x64xf32>
    %68 = tpu.matmul %47, %67, %cst_45 {dimension_numbers = #tpu.dot_dimension_numbers<[1], [0], [0], [1], [0, 0, 1, 1], [], []>} : vector<32x64xbf16>, vector<64x64xbf16>, vector<32x64xf32> -> vector<32x64xf32>
    %69 = vector.extract_strided_slice %51 {offsets = [2, 0, 0], sizes = [1, 1, 64], strides = [1, 1, 1]} : vector<3x1x64xf32> to vector<1x1x64xf32>
    %70 = vector.shape_cast %69 : vector<1x1x64xf32> to vector<1x64xf32>
    %71 = vector.broadcast %70 : vector<1x64xf32> to vector<32x64xf32>
    %72 = arith.addf %68, %71 : vector<32x64xf32>
    %73 = vector.shape_cast %58 : vector<32x64xf32> to vector<32x4x16xf32>
    %74 = tpu.transpose %73, [1, 0, 2] : vector<32x4x16xf32> -> vector<4x32x16xf32>
    %75 = vector.shape_cast %65 : vector<32x64xf32> to vector<32x4x16xf32>
    %76 = tpu.transpose %75, [1, 0, 2] : vector<32x4x16xf32> -> vector<4x32x16xf32>
    %77 = vector.shape_cast %72 : vector<32x64xf32> to vector<32x4x16xf32>
    %78 = tpu.transpose %77, [1, 0, 2] : vector<32x4x16xf32> -> vector<4x32x16xf32>
    %79 = arith.truncf %74 : vector<4x32x16xf32> to vector<4x32x16xbf16>
    %80 = arith.truncf %76 : vector<4x32x16xf32> to vector<4x32x16xbf16>
    "tpu.trace_start"() <{level = 10 : i32, message = "hqd,hkd->hqk"}> : () -> ()
    %cst_46 = arith.constant dense<0.000000e+00> : vector<4x32x32xf32>
    %81 = tpu.matmul %79, %80, %cst_46 {dimension_numbers = #tpu.dot_dimension_numbers<[2], [2], [1], [1], [0, 0, 0, 1, 1, 1], [0], [0]>} : vector<4x32x16xbf16>, vector<4x32x16xbf16>, vector<4x32x32xf32> -> vector<4x32x32xf32>
    "tpu.trace_stop"() : () -> ()
    %82 = vector.shape_cast %20 : vector<32x32xf32> to vector<1x32x32xf32>
    %83 = vector.broadcast %82 : vector<1x32x32xf32> to vector<4x32x32xf32>
    %84 = arith.addf %81, %83 : vector<4x32x32xf32>
    %cst_47 = arith.constant dense<0xFF800000> : vector<4x32xf32>
    %85 = vector.multi_reduction <maximumf>, %84, %cst_47 [2] : vector<4x32x32xf32> to vector<4x32xf32>
    %86 = vector.shape_cast %85 : vector<4x32xf32> to vector<4x32x1xf32>
    %87 = vector.broadcast %86 : vector<4x32x1xf32> to vector<4x32x32xf32>
    %88 = arith.subf %84, %87 : vector<4x32x32xf32>
    %89 = math.exp %88 : vector<4x32x32xf32>
    %cst_48 = arith.constant dense<0.000000e+00> : vector<4x32xf32>
    %90 = vector.multi_reduction <add>, %89, %cst_48 [2] : vector<4x32x32xf32> to vector<4x32xf32>
    %91 = vector.shape_cast %90 : vector<4x32xf32> to vector<4x32x1xf32>
    %92 = tpu.reciprocal %91 {approx = true} : vector<4x32x1xf32> -> vector<4x32x1xf32>
    %93 = vector.broadcast %92 : vector<4x32x1xf32> to vector<4x32x32xf32>
    %94 = arith.mulf %89, %93 : vector<4x32x32xf32>
    %95 = arith.truncf %94 : vector<4x32x32xf32> to vector<4x32x32xbf16>
    %96 = arith.truncf %78 : vector<4x32x16xf32> to vector<4x32x16xbf16>
    "tpu.trace_start"() <{level = 10 : i32, message = "hqk,hkd->hqd"}> : () -> ()
    %cst_49 = arith.constant dense<0.000000e+00> : vector<4x32x16xf32>
    %97 = tpu.matmul %95, %96, %cst_49 {dimension_numbers = #tpu.dot_dimension_numbers<[2], [1], [1], [2], [0, 0, 0, 1, 1, 2], [0], [0]>} : vector<4x32x32xbf16>, vector<4x32x16xbf16>, vector<4x32x16xf32> -> vector<4x32x16xf32>
    "tpu.trace_stop"() : () -> ()
    %98 = arith.truncf %97 : vector<4x32x16xf32> to vector<4x32x16xbf16>
    %c0_50 = arith.constant 0 : index
    %c0_51 = arith.constant 0 : index
    %c0_52 = arith.constant 0 : index
    %c0_53 = arith.constant 0 : index
    %99 = vector.load %arg9[%c0_50, %c0_51, %c0_52, %c0_53] : memref<2x4x16x64xbf16, #tpu.memory_space<vmem>>, vector<1x4x16x64xbf16>
    %100 = vector.shape_cast %99 : vector<1x4x16x64xbf16> to vector<4x16x64xbf16>
    "tpu.trace_start"() <{level = 10 : i32, message = "hqd,hde->hqe"}> : () -> ()
    %cst_54 = arith.constant dense<0.000000e+00> : vector<4x32x64xf32>
    %101 = tpu.matmul %98, %100, %cst_54 {dimension_numbers = #tpu.dot_dimension_numbers<[2], [1], [1], [2], [0, 0, 0, 1, 1, 2], [0], [0]>} : vector<4x32x16xbf16>, vector<4x16x64xbf16>, vector<4x32x64xf32> -> vector<4x32x64xf32>
    "tpu.trace_stop"() : () -> ()
    %cst_55 = arith.constant dense<0.000000e+00> : vector<32x64xf32>
    %102 = vector.multi_reduction <add>, %101, %cst_55 [0] : vector<4x32x64xf32> to vector<32x64xf32>
    %103 = arith.addf %19, %102 : vector<32x64xf32>
    %c0_56 = arith.constant 0 : index
    %c0_57 = arith.constant 0 : index
    %c0_58 = arith.constant 0 : index
    %104 = vector.load %arg10[%c0_56, %c0_57, %c0_58] : memref<2x1x64xf32, #tpu.memory_space<vmem>>, vector<1x1x64xf32>
    %105 = vector.shape_cast %104 : vector<1x1x64xf32> to vector<1x64xf32>
    %106 = vector.broadcast %105 : vector<1x64xf32> to vector<32x64xf32>
    %107 = arith.addf %103, %106 : vector<32x64xf32>
    %c0_59 = arith.constant 0 : index
    %c0_60 = arith.constant 0 : index
    %c0_61 = arith.constant 0 : index
    %108 = vector.load %arg11[%c0_59, %c0_60, %c0_61] : memref<2x1x64xf32, #tpu.memory_space<vmem>>, vector<1x1x64xf32>
    %109 = vector.shape_cast %108 : vector<1x1x64xf32> to vector<1x64xf32>
    %c0_62 = arith.constant 0 : index
    %c0_63 = arith.constant 0 : index
    %c0_64 = arith.constant 0 : index
    %110 = vector.load %arg12[%c0_62, %c0_63, %c0_64] : memref<2x1x64xf32, #tpu.memory_space<vmem>>, vector<1x1x64xf32>
    %111 = vector.shape_cast %110 : vector<1x1x64xf32> to vector<1x64xf32>
    %cst_65 = arith.constant dense<0.000000e+00> : vector<32xf32>
    %112 = vector.multi_reduction <add>, %107, %cst_65 [1] : vector<32x64xf32> to vector<32xf32>
    %113 = vector.shape_cast %112 : vector<32xf32> to vector<32x1xf32>
    %cst_66 = arith.constant 6.400000e+01 : f32
    %114 = vector.broadcast %cst_66 : f32 to vector<32x1xf32>
    %115 = arith.divf %113, %114 : vector<32x1xf32>
    %116 = vector.broadcast %115 : vector<32x1xf32> to vector<32x64xf32>
    %117 = arith.subf %107, %116 : vector<32x64xf32>
    %118 = arith.mulf %117, %117 : vector<32x64xf32>
    %cst_67 = arith.constant dense<0.000000e+00> : vector<32xf32>
    %119 = vector.multi_reduction <add>, %118, %cst_67 [1] : vector<32x64xf32> to vector<32xf32>
    %120 = vector.shape_cast %119 : vector<32xf32> to vector<32x1xf32>
    %cst_68 = arith.constant 6.400000e+01 : f32
    %121 = vector.broadcast %cst_68 : f32 to vector<32x1xf32>
    %122 = arith.divf %120, %121 : vector<32x1xf32>
    %123 = vector.broadcast %115 : vector<32x1xf32> to vector<32x64xf32>
    %124 = arith.subf %107, %123 : vector<32x64xf32>
    %cst_69 = arith.constant 9.99999997E-7 : f32
    %125 = vector.broadcast %cst_69 : f32 to vector<32x1xf32>
    %126 = arith.addf %122, %125 : vector<32x1xf32>
    %127 = math.rsqrt %126 : vector<32x1xf32>
    %128 = vector.broadcast %127 : vector<32x1xf32> to vector<32x64xf32>
    %129 = arith.mulf %124, %128 : vector<32x64xf32>
    %130 = vector.broadcast %109 : vector<1x64xf32> to vector<32x64xf32>
    %131 = arith.mulf %129, %130 : vector<32x64xf32>
    %132 = vector.broadcast %111 : vector<1x64xf32> to vector<32x64xf32>
    %133 = arith.addf %131, %132 : vector<32x64xf32>
    %134 = arith.truncf %133 : vector<32x64xf32> to vector<32x64xbf16>
    %c0_70 = arith.constant 0 : index
    %c0_71 = arith.constant 0 : index
    %c0_72 = arith.constant 0 : index
    %135 = vector.load %arg13[%c0_70, %c0_71, %c0_72] : memref<2x64x256xbf16, #tpu.memory_space<vmem>>, vector<1x64x256xbf16>
    %136 = vector.shape_cast %135 : vector<1x64x256xbf16> to vector<64x256xbf16>
    %cst_73 = arith.constant dense<0.000000e+00> : vector<32x256xf32>
    %137 = tpu.matmul %134, %136, %cst_73 {dimension_numbers = #tpu.dot_dimension_numbers<[1], [0], [0], [1], [0, 0, 1, 1], [], []>} : vector<32x64xbf16>, vector<64x256xbf16>, vector<32x256xf32> -> vector<32x256xf32>
    %c0_74 = arith.constant 0 : index
    %c0_75 = arith.constant 0 : index
    %c0_76 = arith.constant 0 : index
    %138 = vector.load %arg14[%c0_74, %c0_75, %c0_76] : memref<2x1x256xf32, #tpu.memory_space<vmem>>, vector<1x1x256xf32>
    %139 = vector.shape_cast %138 : vector<1x1x256xf32> to vector<1x256xf32>
    %140 = vector.broadcast %139 : vector<1x256xf32> to vector<32x256xf32>
    %141 = arith.addf %137, %140 : vector<32x256xf32>
    %cst_77 = arith.constant 5.000000e-01 : f32
    %142 = vector.broadcast %cst_77 : f32 to vector<32x256xf32>
    %143 = arith.mulf %142, %141 : vector<32x256xf32>
    %cst_78 = arith.constant 0.707106769 : f32
    %144 = vector.broadcast %cst_78 : f32 to vector<32x256xf32>
    %145 = arith.mulf %141, %144 : vector<32x256xf32>
    %146 = math.erf %145 : vector<32x256xf32>
    %cst_79 = arith.constant 1.000000e+00 : f32
    %147 = vector.broadcast %cst_79 : f32 to vector<32x256xf32>
    %148 = arith.addf %147, %146 : vector<32x256xf32>
    %149 = arith.mulf %143, %148 : vector<32x256xf32>
    %150 = arith.truncf %149 : vector<32x256xf32> to vector<32x256xbf16>
    %c0_80 = arith.constant 0 : index
    %c0_81 = arith.constant 0 : index
    %c0_82 = arith.constant 0 : index
    %151 = vector.load %arg15[%c0_80, %c0_81, %c0_82] : memref<2x256x64xbf16, #tpu.memory_space<vmem>>, vector<1x256x64xbf16>
    %152 = vector.shape_cast %151 : vector<1x256x64xbf16> to vector<256x64xbf16>
    %cst_83 = arith.constant dense<0.000000e+00> : vector<32x64xf32>
    %153 = tpu.matmul %150, %152, %cst_83 {dimension_numbers = #tpu.dot_dimension_numbers<[1], [0], [0], [1], [0, 0, 1, 1], [], []>} : vector<32x256xbf16>, vector<256x64xbf16>, vector<32x64xf32> -> vector<32x64xf32>
    %154 = arith.addf %107, %153 : vector<32x64xf32>
    %c0_84 = arith.constant 0 : index
    %c0_85 = arith.constant 0 : index
    %c0_86 = arith.constant 0 : index
    %155 = vector.load %arg16[%c0_84, %c0_85, %c0_86] : memref<2x1x64xf32, #tpu.memory_space<vmem>>, vector<1x1x64xf32>
    %156 = vector.shape_cast %155 : vector<1x1x64xf32> to vector<1x64xf32>
    %157 = vector.broadcast %156 : vector<1x64xf32> to vector<32x64xf32>
    %158 = arith.addf %154, %157 : vector<32x64xf32>
    %c1 = arith.constant 1 : index
    %c0_87 = arith.constant 0 : index
    %c0_88 = arith.constant 0 : index
    %159 = vector.load %arg5[%c1, %c0_87, %c0_88] : memref<2x1x64xf32, #tpu.memory_space<vmem>>, vector<1x1x64xf32>
    %160 = vector.shape_cast %159 : vector<1x1x64xf32> to vector<1x64xf32>
    %c1_89 = arith.constant 1 : index
    %c0_90 = arith.constant 0 : index
    %c0_91 = arith.constant 0 : index
    %161 = vector.load %arg6[%c1_89, %c0_90, %c0_91] : memref<2x1x64xf32, #tpu.memory_space<vmem>>, vector<1x1x64xf32>
    %162 = vector.shape_cast %161 : vector<1x1x64xf32> to vector<1x64xf32>
    %cst_92 = arith.constant dense<0.000000e+00> : vector<32xf32>
    %163 = vector.multi_reduction <add>, %158, %cst_92 [1] : vector<32x64xf32> to vector<32xf32>
    %164 = vector.shape_cast %163 : vector<32xf32> to vector<32x1xf32>
    %cst_93 = arith.constant 6.400000e+01 : f32
    %165 = vector.broadcast %cst_93 : f32 to vector<32x1xf32>
    %166 = arith.divf %164, %165 : vector<32x1xf32>
    %167 = vector.broadcast %166 : vector<32x1xf32> to vector<32x64xf32>
    %168 = arith.subf %158, %167 : vector<32x64xf32>
    %169 = arith.mulf %168, %168 : vector<32x64xf32>
    %cst_94 = arith.constant dense<0.000000e+00> : vector<32xf32>
    %170 = vector.multi_reduction <add>, %169, %cst_94 [1] : vector<32x64xf32> to vector<32xf32>
    %171 = vector.shape_cast %170 : vector<32xf32> to vector<32x1xf32>
    %cst_95 = arith.constant 6.400000e+01 : f32
    %172 = vector.broadcast %cst_95 : f32 to vector<32x1xf32>
    %173 = arith.divf %171, %172 : vector<32x1xf32>
    %174 = vector.broadcast %166 : vector<32x1xf32> to vector<32x64xf32>
    %175 = arith.subf %158, %174 : vector<32x64xf32>
    %cst_96 = arith.constant 9.99999997E-7 : f32
    %176 = vector.broadcast %cst_96 : f32 to vector<32x1xf32>
    %177 = arith.addf %173, %176 : vector<32x1xf32>
    %178 = math.rsqrt %177 : vector<32x1xf32>
    %179 = vector.broadcast %178 : vector<32x1xf32> to vector<32x64xf32>
    %180 = arith.mulf %175, %179 : vector<32x64xf32>
    %181 = vector.broadcast %160 : vector<1x64xf32> to vector<32x64xf32>
    %182 = arith.mulf %180, %181 : vector<32x64xf32>
    %183 = vector.broadcast %162 : vector<1x64xf32> to vector<32x64xf32>
    %184 = arith.addf %182, %183 : vector<32x64xf32>
    %185 = arith.truncf %184 : vector<32x64xf32> to vector<32x64xbf16>
    %c1_97 = arith.constant 1 : index
    %c0_98 = arith.constant 0 : index
    %c0_99 = arith.constant 0 : index
    %c0_100 = arith.constant 0 : index
    %186 = vector.load %arg7[%c1_97, %c0_98, %c0_99, %c0_100] : memref<2x3x64x64xbf16, #tpu.memory_space<vmem>>, vector<1x3x64x64xbf16>
    %187 = vector.shape_cast %186 : vector<1x3x64x64xbf16> to vector<3x64x64xbf16>
    %c1_101 = arith.constant 1 : index
    %c0_102 = arith.constant 0 : index
    %c0_103 = arith.constant 0 : index
    %c0_104 = arith.constant 0 : index
    %188 = vector.load %arg8[%c1_101, %c0_102, %c0_103, %c0_104] : memref<2x3x1x64xf32, #tpu.memory_space<vmem>>, vector<1x3x1x64xf32>
    %189 = vector.shape_cast %188 : vector<1x3x1x64xf32> to vector<3x1x64xf32>
    %190 = vector.extract_strided_slice %187 {offsets = [0, 0, 0], sizes = [1, 64, 64], strides = [1, 1, 1]} : vector<3x64x64xbf16> to vector<1x64x64xbf16>
    %191 = vector.shape_cast %190 : vector<1x64x64xbf16> to vector<64x64xbf16>
    %cst_105 = arith.constant dense<0.000000e+00> : vector<32x64xf32>
    %192 = tpu.matmul %185, %191, %cst_105 {dimension_numbers = #tpu.dot_dimension_numbers<[1], [0], [0], [1], [0, 0, 1, 1], [], []>} : vector<32x64xbf16>, vector<64x64xbf16>, vector<32x64xf32> -> vector<32x64xf32>
    %193 = vector.extract_strided_slice %189 {offsets = [0, 0, 0], sizes = [1, 1, 64], strides = [1, 1, 1]} : vector<3x1x64xf32> to vector<1x1x64xf32>
    %194 = vector.shape_cast %193 : vector<1x1x64xf32> to vector<1x64xf32>
    %195 = vector.broadcast %194 : vector<1x64xf32> to vector<32x64xf32>
    %196 = arith.addf %192, %195 : vector<32x64xf32>
    %197 = vector.extract_strided_slice %187 {offsets = [1, 0, 0], sizes = [1, 64, 64], strides = [1, 1, 1]} : vector<3x64x64xbf16> to vector<1x64x64xbf16>
    %198 = vector.shape_cast %197 : vector<1x64x64xbf16> to vector<64x64xbf16>
    %cst_106 = arith.constant dense<0.000000e+00> : vector<32x64xf32>
    %199 = tpu.matmul %185, %198, %cst_106 {dimension_numbers = #tpu.dot_dimension_numbers<[1], [0], [0], [1], [0, 0, 1, 1], [], []>} : vector<32x64xbf16>, vector<64x64xbf16>, vector<32x64xf32> -> vector<32x64xf32>
    %200 = vector.extract_strided_slice %189 {offsets = [1, 0, 0], sizes = [1, 1, 64], strides = [1, 1, 1]} : vector<3x1x64xf32> to vector<1x1x64xf32>
    %201 = vector.shape_cast %200 : vector<1x1x64xf32> to vector<1x64xf32>
    %202 = vector.broadcast %201 : vector<1x64xf32> to vector<32x64xf32>
    %203 = arith.addf %199, %202 : vector<32x64xf32>
    %204 = vector.extract_strided_slice %187 {offsets = [2, 0, 0], sizes = [1, 64, 64], strides = [1, 1, 1]} : vector<3x64x64xbf16> to vector<1x64x64xbf16>
    %205 = vector.shape_cast %204 : vector<1x64x64xbf16> to vector<64x64xbf16>
    %cst_107 = arith.constant dense<0.000000e+00> : vector<32x64xf32>
    %206 = tpu.matmul %185, %205, %cst_107 {dimension_numbers = #tpu.dot_dimension_numbers<[1], [0], [0], [1], [0, 0, 1, 1], [], []>} : vector<32x64xbf16>, vector<64x64xbf16>, vector<32x64xf32> -> vector<32x64xf32>
    %207 = vector.extract_strided_slice %189 {offsets = [2, 0, 0], sizes = [1, 1, 64], strides = [1, 1, 1]} : vector<3x1x64xf32> to vector<1x1x64xf32>
    %208 = vector.shape_cast %207 : vector<1x1x64xf32> to vector<1x64xf32>
    %209 = vector.broadcast %208 : vector<1x64xf32> to vector<32x64xf32>
    %210 = arith.addf %206, %209 : vector<32x64xf32>
    %211 = vector.shape_cast %196 : vector<32x64xf32> to vector<32x4x16xf32>
    %212 = tpu.transpose %211, [1, 0, 2] : vector<32x4x16xf32> -> vector<4x32x16xf32>
    %213 = vector.shape_cast %203 : vector<32x64xf32> to vector<32x4x16xf32>
    %214 = tpu.transpose %213, [1, 0, 2] : vector<32x4x16xf32> -> vector<4x32x16xf32>
    %215 = vector.shape_cast %210 : vector<32x64xf32> to vector<32x4x16xf32>
    %216 = tpu.transpose %215, [1, 0, 2] : vector<32x4x16xf32> -> vector<4x32x16xf32>
    %217 = arith.truncf %212 : vector<4x32x16xf32> to vector<4x32x16xbf16>
    %218 = arith.truncf %214 : vector<4x32x16xf32> to vector<4x32x16xbf16>
    "tpu.trace_start"() <{level = 10 : i32, message = "hqd,hkd->hqk"}> : () -> ()
    %cst_108 = arith.constant dense<0.000000e+00> : vector<4x32x32xf32>
    %219 = tpu.matmul %217, %218, %cst_108 {dimension_numbers = #tpu.dot_dimension_numbers<[2], [2], [1], [1], [0, 0, 0, 1, 1, 1], [0], [0]>} : vector<4x32x16xbf16>, vector<4x32x16xbf16>, vector<4x32x32xf32> -> vector<4x32x32xf32>
    "tpu.trace_stop"() : () -> ()
    %220 = vector.shape_cast %20 : vector<32x32xf32> to vector<1x32x32xf32>
    %221 = vector.broadcast %220 : vector<1x32x32xf32> to vector<4x32x32xf32>
    %222 = arith.addf %219, %221 : vector<4x32x32xf32>
    %cst_109 = arith.constant dense<0xFF800000> : vector<4x32xf32>
    %223 = vector.multi_reduction <maximumf>, %222, %cst_109 [2] : vector<4x32x32xf32> to vector<4x32xf32>
    %224 = vector.shape_cast %223 : vector<4x32xf32> to vector<4x32x1xf32>
    %225 = vector.broadcast %224 : vector<4x32x1xf32> to vector<4x32x32xf32>
    %226 = arith.subf %222, %225 : vector<4x32x32xf32>
    %227 = math.exp %226 : vector<4x32x32xf32>
    %cst_110 = arith.constant dense<0.000000e+00> : vector<4x32xf32>
    %228 = vector.multi_reduction <add>, %227, %cst_110 [2] : vector<4x32x32xf32> to vector<4x32xf32>
    %229 = vector.shape_cast %228 : vector<4x32xf32> to vector<4x32x1xf32>
    %230 = tpu.reciprocal %229 {approx = true} : vector<4x32x1xf32> -> vector<4x32x1xf32>
    %231 = vector.broadcast %230 : vector<4x32x1xf32> to vector<4x32x32xf32>
    %232 = arith.mulf %227, %231 : vector<4x32x32xf32>
    %233 = arith.truncf %232 : vector<4x32x32xf32> to vector<4x32x32xbf16>
    %234 = arith.truncf %216 : vector<4x32x16xf32> to vector<4x32x16xbf16>
    "tpu.trace_start"() <{level = 10 : i32, message = "hqk,hkd->hqd"}> : () -> ()
    %cst_111 = arith.constant dense<0.000000e+00> : vector<4x32x16xf32>
    %235 = tpu.matmul %233, %234, %cst_111 {dimension_numbers = #tpu.dot_dimension_numbers<[2], [1], [1], [2], [0, 0, 0, 1, 1, 2], [0], [0]>} : vector<4x32x32xbf16>, vector<4x32x16xbf16>, vector<4x32x16xf32> -> vector<4x32x16xf32>
    "tpu.trace_stop"() : () -> ()
    %236 = arith.truncf %235 : vector<4x32x16xf32> to vector<4x32x16xbf16>
    %c1_112 = arith.constant 1 : index
    %c0_113 = arith.constant 0 : index
    %c0_114 = arith.constant 0 : index
    %c0_115 = arith.constant 0 : index
    %237 = vector.load %arg9[%c1_112, %c0_113, %c0_114, %c0_115] : memref<2x4x16x64xbf16, #tpu.memory_space<vmem>>, vector<1x4x16x64xbf16>
    %238 = vector.shape_cast %237 : vector<1x4x16x64xbf16> to vector<4x16x64xbf16>
    "tpu.trace_start"() <{level = 10 : i32, message = "hqd,hde->hqe"}> : () -> ()
    %cst_116 = arith.constant dense<0.000000e+00> : vector<4x32x64xf32>
    %239 = tpu.matmul %236, %238, %cst_116 {dimension_numbers = #tpu.dot_dimension_numbers<[2], [1], [1], [2], [0, 0, 0, 1, 1, 2], [0], [0]>} : vector<4x32x16xbf16>, vector<4x16x64xbf16>, vector<4x32x64xf32> -> vector<4x32x64xf32>
    "tpu.trace_stop"() : () -> ()
    %cst_117 = arith.constant dense<0.000000e+00> : vector<32x64xf32>
    %240 = vector.multi_reduction <add>, %239, %cst_117 [0] : vector<4x32x64xf32> to vector<32x64xf32>
    %241 = arith.addf %158, %240 : vector<32x64xf32>
    %c1_118 = arith.constant 1 : index
    %c0_119 = arith.constant 0 : index
    %c0_120 = arith.constant 0 : index
    %242 = vector.load %arg10[%c1_118, %c0_119, %c0_120] : memref<2x1x64xf32, #tpu.memory_space<vmem>>, vector<1x1x64xf32>
    %243 = vector.shape_cast %242 : vector<1x1x64xf32> to vector<1x64xf32>
    %244 = vector.broadcast %243 : vector<1x64xf32> to vector<32x64xf32>
    %245 = arith.addf %241, %244 : vector<32x64xf32>
    %c1_121 = arith.constant 1 : index
    %c0_122 = arith.constant 0 : index
    %c0_123 = arith.constant 0 : index
    %246 = vector.load %arg11[%c1_121, %c0_122, %c0_123] : memref<2x1x64xf32, #tpu.memory_space<vmem>>, vector<1x1x64xf32>
    %247 = vector.shape_cast %246 : vector<1x1x64xf32> to vector<1x64xf32>
    %c1_124 = arith.constant 1 : index
    %c0_125 = arith.constant 0 : index
    %c0_126 = arith.constant 0 : index
    %248 = vector.load %arg12[%c1_124, %c0_125, %c0_126] : memref<2x1x64xf32, #tpu.memory_space<vmem>>, vector<1x1x64xf32>
    %249 = vector.shape_cast %248 : vector<1x1x64xf32> to vector<1x64xf32>
    %cst_127 = arith.constant dense<0.000000e+00> : vector<32xf32>
    %250 = vector.multi_reduction <add>, %245, %cst_127 [1] : vector<32x64xf32> to vector<32xf32>
    %251 = vector.shape_cast %250 : vector<32xf32> to vector<32x1xf32>
    %cst_128 = arith.constant 6.400000e+01 : f32
    %252 = vector.broadcast %cst_128 : f32 to vector<32x1xf32>
    %253 = arith.divf %251, %252 : vector<32x1xf32>
    %254 = vector.broadcast %253 : vector<32x1xf32> to vector<32x64xf32>
    %255 = arith.subf %245, %254 : vector<32x64xf32>
    %256 = arith.mulf %255, %255 : vector<32x64xf32>
    %cst_129 = arith.constant dense<0.000000e+00> : vector<32xf32>
    %257 = vector.multi_reduction <add>, %256, %cst_129 [1] : vector<32x64xf32> to vector<32xf32>
    %258 = vector.shape_cast %257 : vector<32xf32> to vector<32x1xf32>
    %cst_130 = arith.constant 6.400000e+01 : f32
    %259 = vector.broadcast %cst_130 : f32 to vector<32x1xf32>
    %260 = arith.divf %258, %259 : vector<32x1xf32>
    %261 = vector.broadcast %253 : vector<32x1xf32> to vector<32x64xf32>
    %262 = arith.subf %245, %261 : vector<32x64xf32>
    %cst_131 = arith.constant 9.99999997E-7 : f32
    %263 = vector.broadcast %cst_131 : f32 to vector<32x1xf32>
    %264 = arith.addf %260, %263 : vector<32x1xf32>
    %265 = math.rsqrt %264 : vector<32x1xf32>
    %266 = vector.broadcast %265 : vector<32x1xf32> to vector<32x64xf32>
    %267 = arith.mulf %262, %266 : vector<32x64xf32>
    %268 = vector.broadcast %247 : vector<1x64xf32> to vector<32x64xf32>
    %269 = arith.mulf %267, %268 : vector<32x64xf32>
    %270 = vector.broadcast %249 : vector<1x64xf32> to vector<32x64xf32>
    %271 = arith.addf %269, %270 : vector<32x64xf32>
    %272 = arith.truncf %271 : vector<32x64xf32> to vector<32x64xbf16>
    %c1_132 = arith.constant 1 : index
    %c0_133 = arith.constant 0 : index
    %c0_134 = arith.constant 0 : index
    %273 = vector.load %arg13[%c1_132, %c0_133, %c0_134] : memref<2x64x256xbf16, #tpu.memory_space<vmem>>, vector<1x64x256xbf16>
    %274 = vector.shape_cast %273 : vector<1x64x256xbf16> to vector<64x256xbf16>
    %cst_135 = arith.constant dense<0.000000e+00> : vector<32x256xf32>
    %275 = tpu.matmul %272, %274, %cst_135 {dimension_numbers = #tpu.dot_dimension_numbers<[1], [0], [0], [1], [0, 0, 1, 1], [], []>} : vector<32x64xbf16>, vector<64x256xbf16>, vector<32x256xf32> -> vector<32x256xf32>
    %c1_136 = arith.constant 1 : index
    %c0_137 = arith.constant 0 : index
    %c0_138 = arith.constant 0 : index
    %276 = vector.load %arg14[%c1_136, %c0_137, %c0_138] : memref<2x1x256xf32, #tpu.memory_space<vmem>>, vector<1x1x256xf32>
    %277 = vector.shape_cast %276 : vector<1x1x256xf32> to vector<1x256xf32>
    %278 = vector.broadcast %277 : vector<1x256xf32> to vector<32x256xf32>
    %279 = arith.addf %275, %278 : vector<32x256xf32>
    %cst_139 = arith.constant 5.000000e-01 : f32
    %280 = vector.broadcast %cst_139 : f32 to vector<32x256xf32>
    %281 = arith.mulf %280, %279 : vector<32x256xf32>
    %cst_140 = arith.constant 0.707106769 : f32
    %282 = vector.broadcast %cst_140 : f32 to vector<32x256xf32>
    %283 = arith.mulf %279, %282 : vector<32x256xf32>
    %284 = math.erf %283 : vector<32x256xf32>
    %cst_141 = arith.constant 1.000000e+00 : f32
    %285 = vector.broadcast %cst_141 : f32 to vector<32x256xf32>
    %286 = arith.addf %285, %284 : vector<32x256xf32>
    %287 = arith.mulf %281, %286 : vector<32x256xf32>
    %288 = arith.truncf %287 : vector<32x256xf32> to vector<32x256xbf16>
    %c1_142 = arith.constant 1 : index
    %c0_143 = arith.constant 0 : index
    %c0_144 = arith.constant 0 : index
    %289 = vector.load %arg15[%c1_142, %c0_143, %c0_144] : memref<2x256x64xbf16, #tpu.memory_space<vmem>>, vector<1x256x64xbf16>
    %290 = vector.shape_cast %289 : vector<1x256x64xbf16> to vector<256x64xbf16>
    %cst_145 = arith.constant dense<0.000000e+00> : vector<32x64xf32>
    %291 = tpu.matmul %288, %290, %cst_145 {dimension_numbers = #tpu.dot_dimension_numbers<[1], [0], [0], [1], [0, 0, 1, 1], [], []>} : vector<32x256xbf16>, vector<256x64xbf16>, vector<32x64xf32> -> vector<32x64xf32>
    %292 = arith.addf %245, %291 : vector<32x64xf32>
    %c1_146 = arith.constant 1 : index
    %c0_147 = arith.constant 0 : index
    %c0_148 = arith.constant 0 : index
    %293 = vector.load %arg16[%c1_146, %c0_147, %c0_148] : memref<2x1x64xf32, #tpu.memory_space<vmem>>, vector<1x1x64xf32>
    %294 = vector.shape_cast %293 : vector<1x1x64xf32> to vector<1x64xf32>
    %295 = vector.broadcast %294 : vector<1x64xf32> to vector<32x64xf32>
    %296 = arith.addf %292, %295 : vector<32x64xf32>
    %297 = vector.extract_strided_slice %296 {offsets = [0, 0], sizes = [1, 64], strides = [1, 1]} : vector<32x64xf32> to vector<1x64xf32>
    %298 = vector.extract_strided_slice %296 {offsets = [1, 0], sizes = [1, 64], strides = [1, 1]} : vector<32x64xf32> to vector<1x64xf32>
    %299 = arith.addf %297, %298 : vector<1x64xf32>
    %cst_149 = arith.constant 5.000000e-01 : f32
    %300 = vector.broadcast %cst_149 : f32 to vector<1x64xf32>
    %301 = arith.mulf %299, %300 : vector<1x64xf32>
    %302 = vector.extract_strided_slice %296 {offsets = [16, 0], sizes = [1, 64], strides = [1, 1]} : vector<32x64xf32> to vector<1x64xf32>
    %303 = vector.extract_strided_slice %296 {offsets = [17, 0], sizes = [1, 64], strides = [1, 1]} : vector<32x64xf32> to vector<1x64xf32>
    %304 = arith.addf %302, %303 : vector<1x64xf32>
    %cst_150 = arith.constant 5.000000e-01 : f32
    %305 = vector.broadcast %cst_150 : f32 to vector<1x64xf32>
    %306 = arith.mulf %304, %305 : vector<1x64xf32>
    %307 = tpu.concatenate %301, %306 in 0 : vector<1x64xf32>, vector<1x64xf32> -> vector<2x64xf32>
    %c0_151 = arith.constant 0 : index
    %c0_152 = arith.constant 0 : index
    %308 = vector.load %arg17[%c0_151, %c0_152] : memref<1x64xf32, #tpu.memory_space<vmem>>, vector<1x64xf32>
    %c0_153 = arith.constant 0 : index
    %c0_154 = arith.constant 0 : index
    %309 = vector.load %arg18[%c0_153, %c0_154] : memref<1x64xf32, #tpu.memory_space<vmem>>, vector<1x64xf32>
    %cst_155 = arith.constant dense<0.000000e+00> : vector<2xf32>
    %310 = vector.multi_reduction <add>, %307, %cst_155 [1] : vector<2x64xf32> to vector<2xf32>
    %311 = vector.shape_cast %310 : vector<2xf32> to vector<2x1xf32>
    %cst_156 = arith.constant 6.400000e+01 : f32
    %312 = vector.broadcast %cst_156 : f32 to vector<2x1xf32>
    %313 = arith.divf %311, %312 : vector<2x1xf32>
    %314 = vector.broadcast %313 : vector<2x1xf32> to vector<2x64xf32>
    %315 = arith.subf %307, %314 : vector<2x64xf32>
    %316 = arith.mulf %315, %315 : vector<2x64xf32>
    %cst_157 = arith.constant dense<0.000000e+00> : vector<2xf32>
    %317 = vector.multi_reduction <add>, %316, %cst_157 [1] : vector<2x64xf32> to vector<2xf32>
    %318 = vector.shape_cast %317 : vector<2xf32> to vector<2x1xf32>
    %cst_158 = arith.constant 6.400000e+01 : f32
    %319 = vector.broadcast %cst_158 : f32 to vector<2x1xf32>
    %320 = arith.divf %318, %319 : vector<2x1xf32>
    %321 = vector.broadcast %313 : vector<2x1xf32> to vector<2x64xf32>
    %322 = arith.subf %307, %321 : vector<2x64xf32>
    %cst_159 = arith.constant 9.99999974E-6 : f32
    %323 = vector.broadcast %cst_159 : f32 to vector<2x1xf32>
    %324 = arith.addf %320, %323 : vector<2x1xf32>
    %325 = math.rsqrt %324 : vector<2x1xf32>
    %326 = vector.broadcast %325 : vector<2x1xf32> to vector<2x64xf32>
    %327 = arith.mulf %322, %326 : vector<2x64xf32>
    %328 = vector.broadcast %308 : vector<1x64xf32> to vector<2x64xf32>
    %329 = arith.mulf %327, %328 : vector<2x64xf32>
    %330 = vector.broadcast %309 : vector<1x64xf32> to vector<2x64xf32>
    %331 = arith.addf %329, %330 : vector<2x64xf32>
    %332 = arith.truncf %331 : vector<2x64xf32> to vector<2x64xbf16>
    %c0_160 = arith.constant 0 : index
    %c0_161 = arith.constant 0 : index
    %333 = vector.load %arg19[%c0_160, %c0_161] : memref<64x128xbf16, #tpu.memory_space<vmem>>, vector<64x128xbf16>
    %cst_162 = arith.constant dense<0.000000e+00> : vector<2x128xf32>
    %334 = tpu.matmul %332, %333, %cst_162 {dimension_numbers = #tpu.dot_dimension_numbers<[1], [0], [0], [1], [0, 0, 1, 1], [], []>} : vector<2x64xbf16>, vector<64x128xbf16>, vector<2x128xf32> -> vector<2x128xf32>
    %c0_163 = arith.constant 0 : index
    %c0_164 = arith.constant 0 : index
    %335 = vector.load %arg20[%c0_163, %c0_164] : memref<1x128xf32, #tpu.memory_space<vmem>>, vector<1x128xf32>
    %336 = vector.broadcast %335 : vector<1x128xf32> to vector<2x128xf32>
    %337 = arith.addf %334, %336 : vector<2x128xf32>
    %c0_165 = arith.constant 0 : index
    %c0_166 = arith.constant 0 : index
    %338 = vector.load %arg21[%c0_165, %c0_166] : memref<2x128xf32, #tpu.memory_space<vmem>>, vector<2x128xf32>
    tpu.vector_store %arg21[%c0_165, %c0_166], %337 {strides = array<i32>} : memref<2x128xf32, #tpu.memory_space<vmem>>, vector<2x128xf32>,
    return
  }
}

</mosaic_0001>

<llo_original>
// kernel: ast_bias_forward.1
$region0: #{ast_bias_forward.1}
  #allocation0 [shape = 'u32[]', space=smem, size = 0x4, offset = 0x4, fixed_abs, tag = 'smem constant byte address 0x4 - core index']
  #allocation1 [shape = 'u32[144,128]{1,0:T(1,128)}', space=vmem, size = 0x12000, scoped, tag = 'internal scratch']
  #allocation2 [shape = 'f32[32,64]{1,0:T(8,128)}', space=vmem, size = 0x4000, scoped, tag = 'scratch operand']
  %s0 = inlined_call_operand.vmem [shape: bf16[18,256], index: 0, kind: input, shape index: {}]
  %s1 = inlined_call_operand.vmem [shape: bf16[256,64], index: 1, kind: input, shape index: {}]
  %s2 = inlined_call_operand.vmem [shape: f32[9,64], index: 2, kind: input, shape index: {}]
  %s3 = inlined_call_operand.vmem [shape: f32[2,64], index: 3, kind: input, shape index: {}]
  %s4 = inlined_call_operand.vmem [shape: f32[32,32], index: 4, kind: input, shape index: {}]
  %s5 = inlined_call_operand.vmem [shape: f32[2,1,64], index: 5, kind: input, shape index: {}]
  %s6 = inlined_call_operand.vmem [shape: f32[2,1,64], index: 6, kind: input, shape index: {}]
  %s7 = inlined_call_operand.vmem [shape: bf16[2,3,64,64], index: 7, kind: input, shape index: {}]
  %s8 = inlined_call_operand.vmem [shape: f32[2,3,1,64], index: 8, kind: input, shape index: {}]
  %s9 = inlined_call_operand.vmem [shape: bf16[2,4,16,64], index: 9, kind: input, shape index: {}]
  %s10 = inlined_call_operand.vmem [shape: f32[2,1,64], index: 10, kind: input, shape index: {}]
  %s11 = inlined_call_operand.vmem [shape: f32[2,1,64], index: 11, kind: input, shape index: {}]
  %s12 = inlined_call_operand.vmem [shape: f32[2,1,64], index: 12, kind: input, shape index: {}]
  %s13 = inlined_call_operand.vmem [shape: bf16[2,64,256], index: 13, kind: input, shape index: {}]
  %s14 = inlined_call_operand.vmem [shape: f32[2,1,256], index: 14, kind: input, shape index: {}]
  %s15 = inlined_call_operand.vmem [shape: bf16[2,256,64], index: 15, kind: input, shape index: {}]
  %s16 = inlined_call_operand.vmem [shape: f32[2,1,64], index: 16, kind: input, shape index: {}]
  %s17 = inlined_call_operand.vmem [shape: f32[1,64], index: 17, kind: input, shape index: {}]
  %s18 = inlined_call_operand.vmem [shape: f32[1,64], index: 18, kind: input, shape index: {}]
  %s19 = inlined_call_operand.vmem [shape: bf16[64,128], index: 19, kind: input, shape index: {}]
  %s20 = inlined_call_operand.vmem [shape: f32[1,128], index: 20, kind: input, shape index: {}]
  %s21 = inlined_call_operand.hbm [shape: f32[2,128], index: 21, kind: output, shape index: {}]
  %s22 = sld [smem:[#allocation0]]
  $region94: #{ast_bias_forward.1} parent=0
    _
  %s24 = ssub.s32 1, %s22
  %s25 = scalar_select 0, %s24, %s22
  $region1: #{ast_bias_forward.1} parent=0
    #allocation3 [shape = 'u8[1024]{0}', space=vmem, size = 0x400, scoped, tag = 'output window, operand 0, single buffered']
    #allocation4 [shape = 's32[1]{0}', space=sflag, size = 0x4, scoped, tag = 'scoped memory for ast_bias_forward.1']
    %26 = vsyncpa [#allocation4], 0
    // Predicated region
    $region2: #{ast_bias_forward.1} parent=1 // pred_check
      _
    $region3: #{ast_bias_forward.1} parent=1 // pred_check_branch
      %28 = sbr.rel (0) target = $region5
    $region4: #{ast_bias_forward.1} parent=1 // pred_region
      _
    $region5: #{ast_bias_forward.1} parent=1 // pred_fallthru
      _
    // Predicated region
    $region6: #{ast_bias_forward.1} parent=1 // pred_check
      _
    $region7: #{ast_bias_forward.1} parent=1 // pred_check_branch
      %30 = sbr.rel (0) target = $region9
    $region8: #{ast_bias_forward.1} parent=1 // pred_region
      _
    $region9: #{ast_bias_forward.1} parent=1 // pred_fallthru
      _
    // Predicated region
    $region10: #{ast_bias_forward.1} parent=1 // pred_check
      _
    $region11: #{ast_bias_forward.1} parent=1 // pred_check_branch
      %32 = sbr.rel (0) target = $region13
    $region12: #{ast_bias_forward.1} parent=1 // pred_region
      _
    $region13: #{ast_bias_forward.1} parent=1 // pred_fallthru
      _
    // Predicated region
    $region14: #{ast_bias_forward.1} parent=1 // pred_check
      _
    $region15: #{ast_bias_forward.1} parent=1 // pred_check_branch
      %34 = sbr.rel (0) target = $region17
    $region16: #{ast_bias_forward.1} parent=1 // pred_region
      _
    $region17: #{ast_bias_forward.1} parent=1 // pred_fallthru
      _
    // Predicated region
    $region18: #{ast_bias_forward.1} parent=1 // pred_check
      _
    $region19: #{ast_bias_forward.1} parent=1 // pred_check_branch
      %36 = sbr.rel (0) target = $region21
    $region20: #{ast_bias_forward.1} parent=1 // pred_region
      _
    $region21: #{ast_bias_forward.1} parent=1 // pred_fallthru
      _
    // Predicated region
    $region22: #{ast_bias_forward.1} parent=1 // pred_check
      _
    $region23: #{ast_bias_forward.1} parent=1 // pred_check_branch
      %38 = sbr.rel (0) target = $region25
    $region24: #{ast_bias_forward.1} parent=1 // pred_region
      _
    $region25: #{ast_bias_forward.1} parent=1 // pred_fallthru
      _
    // Predicated region
    $region26: #{ast_bias_forward.1} parent=1 // pred_check
      _
    $region27: #{ast_bias_forward.1} parent=1 // pred_check_branch
      %40 = sbr.rel (0) target = $region29
    $region28: #{ast_bias_forward.1} parent=1 // pred_region
      _
    $region29: #{ast_bias_forward.1} parent=1 // pred_fallthru
      _
    // Predicated region
    $region30: #{ast_bias_forward.1} parent=1 // pred_check
      _
    $region31: #{ast_bias_forward.1} parent=1 // pred_check_branch
      %42 = sbr.rel (0) target = $region33
    $region32: #{ast_bias_forward.1} parent=1 // pred_region
      _
    $region33: #{ast_bias_forward.1} parent=1 // pred_fallthru
      _
    // Predicated region
    $region34: #{ast_bias_forward.1} parent=1 // pred_check
      _
    $region35: #{ast_bias_forward.1} parent=1 // pred_check_branch
      %44 = sbr.rel (0) target = $region37
    $region36: #{ast_bias_forward.1} parent=1 // pred_region
      _
    $region37: #{ast_bias_forward.1} parent=1 // pred_fallthru
      _
    // Predicated region
    $region38: #{ast_bias_forward.1} parent=1 // pred_check
      _
    $region39: #{ast_bias_forward.1} parent=1 // pred_check_branch
      %46 = sbr.rel (0) target = $region41
    $region40: #{ast_bias_forward.1} parent=1 // pred_region
      _
    $region41: #{ast_bias_forward.1} parent=1 // pred_fallthru
      _
    // Predicated region
    $region42: #{ast_bias_forward.1} parent=1 // pred_check
      _
    $region43: #{ast_bias_forward.1} parent=1 // pred_check_branch
      %48 = sbr.rel (0) target = $region45
    $region44: #{ast_bias_forward.1} parent=1 // pred_region
      _
    $region45: #{ast_bias_forward.1} parent=1 // pred_fallthru
      _
    // Predicated region
    $region46: #{ast_bias_forward.1} parent=1 // pred_check
      _
    $region47: #{ast_bias_forward.1} parent=1 // pred_check_branch
      %50 = sbr.rel (0) target = $region49
    $region48: #{ast_bias_forward.1} parent=1 // pred_region
      _
    $region49: #{ast_bias_forward.1} parent=1 // pred_fallthru
      _
    // Predicated region
    $region50: #{ast_bias_forward.1} parent=1 // pred_check
      _
    $region51: #{ast_bias_forward.1} parent=1 // pred_check_branch
      %52 = sbr.rel (0) target = $region53
    $region52: #{ast_bias_forward.1} parent=1 // pred_region
      _
    $region53: #{ast_bias_forward.1} parent=1 // pred_fallthru
      _
    // Predicated region
    $region54: #{ast_bias_forward.1} parent=1 // pred_check
      _
    $region55: #{ast_bias_forward.1} parent=1 // pred_check_branch
      %54 = sbr.rel (0) target = $region57
    $region56: #{ast_bias_forward.1} parent=1 // pred_region
      _
    $region57: #{ast_bias_forward.1} parent=1 // pred_fallthru
      _
    // Predicated region
    $region58: #{ast_bias_forward.1} parent=1 // pred_check
      _
    $region59: #{ast_bias_forward.1} parent=1 // pred_check_branch
      %56 = sbr.rel (0) target = $region61
    $region60: #{ast_bias_forward.1} parent=1 // pred_region
      _
    $region61: #{ast_bias_forward.1} parent=1 // pred_fallthru
      _
    // Predicated region
    $region62: #{ast_bias_forward.1} parent=1 // pred_check
      _
    $region63: #{ast_bias_forward.1} parent=1 // pred_check_branch
      %58 = sbr.rel (0) target = $region65
    $region64: #{ast_bias_forward.1} parent=1 // pred_region
      _
    $region65: #{ast_bias_forward.1} parent=1 // pred_fallthru
      _
    // Predicated region
    $region66: #{ast_bias_forward.1} parent=1 // pred_check
      _
    $region67: #{ast_bias_forward.1} parent=1 // pred_check_branch
      %60 = sbr.rel (0) target = $region69
    $region68: #{ast_bias_forward.1} parent=1 // pred_region
      _
    $region69: #{ast_bias_forward.1} parent=1 // pred_fallthru
      _
    // Predicated region
    $region70: #{ast_bias_forward.1} parent=1 // pred_check
      _
    $region71: #{ast_bias_forward.1} parent=1 // pred_check_branch
      %62 = sbr.rel (0) target = $region73
    $region72: #{ast_bias_forward.1} parent=1 // pred_region
      _
    $region73: #{ast_bias_forward.1} parent=1 // pred_fallthru
      _
    // Predicated region
    $region74: #{ast_bias_forward.1} parent=1 // pred_check
      _
    $region75: #{ast_bias_forward.1} parent=1 // pred_check_branch
      %64 = sbr.rel (0) target = $region77
    $region76: #{ast_bias_forward.1} parent=1 // pred_region
      _
    $region77: #{ast_bias_forward.1} parent=1 // pred_fallthru
      _
    // Predicated region
    $region78: #{ast_bias_forward.1} parent=1 // pred_check
      _
    $region79: #{ast_bias_forward.1} parent=1 // pred_check_branch
      %66 = sbr.rel (0) target = $region81
    $region80: #{ast_bias_forward.1} parent=1 // pred_region
      _
    $region81: #{ast_bias_forward.1} parent=1 // pred_fallthru
      _
    // Predicated region
    $region82: #{ast_bias_forward.1} parent=1 // pred_check
      _
    $region83: #{ast_bias_forward.1} parent=1 // pred_check_branch
      %68 = sbr.rel (0) target = $region85
    $region84: #{ast_bias_forward.1} parent=1 // pred_region
      _
    $region85: #{ast_bias_forward.1} parent=1 // pred_fallthru
      _
    %v70 = vld [vmem:[%s0] sm:$0xff]
    %v71 = vld [vmem:[%s0 + $0x8] sm:$0xff]
    %v72 = vld [vmem:[%s0 + $0x10] sm:$0x11]
    %v73 = vld [vmem:[%s1] sm:$0xf]
    %v74 = vld [vmem:[%s1 + $0x4] sm:$0xf]
    %v75 = vld [vmem:[%s1 + $0x8] sm:$0xf]
    %v76 = vld [vmem:[%s1 + $0xc] sm:$0xf]
    %v77 = vld [vmem:[%s1 + $0x10] sm:$0xf]
    %v78 = vld [vmem:[%s1 + $0x14] sm:$0xf]
    %v79 = vld [vmem:[%s1 + $0x18] sm:$0xf]
    %v80 = vld [vmem:[%s1 + $0x1c] sm:$0xf]
    %v81 = vld [vmem:[%s1 + $0x20] sm:$0xf]
    %v82 = vld [vmem:[%s1 + $0x24] sm:$0xf]
    %v83 = vld [vmem:[%s1 + $0x28] sm:$0xf]
    %v84 = vld [vmem:[%s1 + $0x2c] sm:$0xf]
    %v85 = vld [vmem:[%s1 + $0x30] sm:$0xf]
    %v86 = vld [vmem:[%s1 + $0x34] sm:$0xf]
    %v87 = vld [vmem:[%s1 + $0x38] sm:$0xf]
    %v88 = vld [vmem:[%s1 + $0x3c] sm:$0xf]
    %v89 = vld [vmem:[%s1 + $0x40] sm:$0xf]
    %v90 = vld [vmem:[%s1 + $0x44] sm:$0xf]
    %v91 = vld [vmem:[%s1 + $0x48] sm:$0xf]
    %v92 = vld [vmem:[%s1 + $0x4c] sm:$0xf]
    %v93 = vld [vmem:[%s1 + $0x50] sm:$0xf]
    %v94 = vld [vmem:[%s1 + $0x54] sm:$0xf]
    %v95 = vld [vmem:[%s1 + $0x58] sm:$0xf]
    %v96 = vld [vmem:[%s1 + $0x5c] sm:$0xf]
    %v97 = vld [vmem:[%s1 + $0x60] sm:$0xf]
    %v98 = vld [vmem:[%s1 + $0x64] sm:$0xf]
    %v99 = vld [vmem:[%s1 + $0x68] sm:$0xf]
    %v100 = vld [vmem:[%s1 + $0x6c] sm:$0xf]
    %v101 = vld [vmem:[%s1 + $0x70] sm:$0xf]
    %v102 = vld [vmem:[%s1 + $0x74] sm:$0xf]
    %v103 = vld [vmem:[%s1 + $0x78] sm:$0xf]
    %v104 = vld [vmem:[%s1 + $0x7c] sm:$0xf]
    %v108 = vunpack.c.l.b16 %v70
    %v109 = vunpack.c.h.b16 %v70
    %v110 = vunpack.c.l.b16 %v71
    %v111 = vunpack.c.h.b16 %v71
    %v112 = vunpack.c.l.b16 %v72
    %v113 = vunpack.c.h.b16 %v72
    %v114 = vpack.c.b16 %v110, %v108
    %v115 = vpack.c.b16 %v111, %v109
    %v116 = vpack.c.b16 %v112, %v112
    %v117 = vpack.c.b16 %v113, %v113
    %v154 = vunpack.c.l.b16 %v73
    %v155 = vunpack.c.l.b16 %v74
    %v156 = vunpack.c.l.b16 %v75
    %v157 = vunpack.c.l.b16 %v76
    %v158 = vunpack.c.l.b16 %v77
    %v159 = vunpack.c.l.b16 %v78
    %v160 = vunpack.c.l.b16 %v79
    %v161 = vunpack.c.l.b16 %v80
    %v162 = vunpack.c.l.b16 %v81
    %v163 = vunpack.c.l.b16 %v82
    %v164 = vunpack.c.l.b16 %v83
    %v165 = vunpack.c.l.b16 %v84
    %v166 = vunpack.c.l.b16 %v85
    %v167 = vunpack.c.l.b16 %v86
    %v168 = vunpack.c.l.b16 %v87
    %v169 = vunpack.c.l.b16 %v88
    %v170 = vunpack.c.l.b16 %v89
    %v171 = vunpack.c.l.b16 %v90
    %v172 = vunpack.c.l.b16 %v91
    %v173 = vunpack.c.l.b16 %v92
    %v174 = vunpack.c.l.b16 %v93
    %v175 = vunpack.c.l.b16 %v94
    %v176 = vunpack.c.l.b16 %v95
    %v177 = vunpack.c.l.b16 %v96
    %v178 = vunpack.c.l.b16 %v97
    %v179 = vunpack.c.l.b16 %v98
    %v180 = vunpack.c.l.b16 %v99
    %v181 = vunpack.c.l.b16 %v100
    %v182 = vunpack.c.l.b16 %v101
    %v183 = vunpack.c.l.b16 %v102
    %v184 = vunpack.c.l.b16 %v103
    %v185 = vunpack.c.l.b16 %v104
    %v186 = vpack.c.b16 %v155, %v154
    %v187 = vpack.c.b16 %v157, %v156
    %v188 = vpack.c.b16 %v159, %v158
    %v189 = vpack.c.b16 %v161, %v160
    %v190 = vpack.c.b16 %v163, %v162
    %v191 = vpack.c.b16 %v165, %v164
    %v192 = vpack.c.b16 %v167, %v166
    %v193 = vpack.c.b16 %v169, %v168
    %v194 = vpack.c.b16 %v171, %v170
    %v195 = vpack.c.b16 %v173, %v172
    %v196 = vpack.c.b16 %v175, %v174
    %v197 = vpack.c.b16 %v177, %v176
    %v198 = vpack.c.b16 %v179, %v178
    %v199 = vpack.c.b16 %v181, %v180
    %v200 = vpack.c.b16 %v183, %v182
    %v201 = vpack.c.b16 %v185, %v184
    %218 = vmatprep.subr.bf16.mxu0 0
    %219 = vmatpush1.bf16.msra.mxu0 %v186
    %220 = vmatprep.subr.bf16.mxu0 0
    %221 = vmatpush1.bf16.msra.mxu0 %v187
    %222 = vmatprep.subr.bf16.mxu0 0
    %223 = vmatpush1.bf16.msra.mxu0 %v188
    %224 = vmatprep.subr.bf16.mxu0 0
    %225 = vmatpush1.bf16.msra.mxu0 %v189
    %226 = vmatprep.subr.bf16.mxu0 0
    %227 = vmatpush1.bf16.msra.mxu0 %v190
    %228 = vmatprep.subr.bf16.mxu0 0
    %229 = vmatpush1.bf16.msra.mxu0 %v191
    %230 = vmatprep.subr.bf16.mxu0 0
    %231 = vmatpush1.bf16.msra.mxu0 %v192
    %232 = vmatprep.subr.bf16.mxu0 0
    %233 = vmatpush1.bf16.msra.mxu0 %v193
    %234 = vmatprep.subr.bf16.mxu0 0
    %235 = vmatpush1.bf16.msra.mxu0 %v194
    %236 = vmatprep.subr.bf16.mxu0 0
    %237 = vmatpush1.bf16.msra.mxu0 %v195
    %238 = vmatprep.subr.bf16.mxu0 0
    %239 = vmatpush1.bf16.msra.mxu0 %v196
    %240 = vmatprep.subr.bf16.mxu0 0
    %241 = vmatpush1.bf16.msra.mxu0 %v197
    %242 = vmatprep.subr.bf16.mxu0 0
    %243 = vmatpush1.bf16.msra.mxu0 %v198
    %244 = vmatprep.subr.bf16.mxu0 0
    %245 = vmatpush1.bf16.msra.mxu0 %v199
    %246 = vmatprep.subr.bf16.mxu0 0
    %247 = vmatpush1.bf16.msra.mxu0 %v200
    %248 = vmatprep.subr.bf16.mxu0 0
    %249 = vmatpush1.bf16.msra.mxu0 %v201
    %250 = vmatprep.mubr.bf16.mxu0 %v115
    %251 = vmatmul.mubr.bf16.gmra.mrb[0].mxu0 %v114
    %v252 = vpop.f32.mrb[0].mxu0
    %v253 = vadd.f32 0.0, %v252
    %v254 = vpop.f32.mrb[0].mxu0
    %v255 = vpop.f32.mrb[0].mxu0
    %v256 = vadd.f32 0.0, %v255
    %v257 = vpop.f32.mrb[0].mxu0
    %258 = vmatprep.mubr.bf16.mxu0 %v117
    %259 = vmatmul.mubr.bf16.gmra.mrb[0].mxu0 %v116
    %v260 = vpop.f32.mrb[0].mxu0
    %v261 = vadd.f32 0.0, %v260
    %v262 = vpop.f32.mrb[0].mxu0
    %v263 = vpop.f32.mrb[0].mxu0
    %v264 = vpop.f32.mrb[0].mxu0
    %265 = vdwg.mxu0
    %v266 = vld [vmem:[%s3] sm:$0x3]
    %vm267 = vcmask 517120
    %268 = vst.msk [vmem:[#allocation2] sm:$0x3] %vm267, %v266
    %v269 = vld [vmem:[%s2] sm:$0xff]
    %v270 = vld [vmem:[%s2 + $0x8] sm:$0x1]
    %v271 = vadd.f32 %v253, %v269
    %v272 = vadd.f32 %v256, %v270
    %vm273 = vcmask 523264
    %274 = vst.msk [vmem:[#allocation2 + $0x2] sm:$0xff] %vm273, %v271
    %vm275 = vcmask 516096
    %276 = vst.msk [vmem:[#allocation2 + $0xa] sm:$0x1] %vm275, %v272
    %vm277 = vcmask 520192
    %278 = vst.msk [vmem:[#allocation2 + $0xb] sm:$0x1f] %vm277, 0.0
    %v279 = vld [vmem:[%s3] sm:$0x3]
    %280 = vst.msk [vmem:[#allocation2 + $0x10] sm:$0x3] %vm267, %v279
    %v281 = vld [vmem:[%s2] sm:$0xff]
    %v282 = vld [vmem:[%s2 + $0x8] sm:$0x1]
    %vm285 = vcmask 1040384
    %v286 = vrot.slane %v281, 7
    %v287 = vrot.slane %v282, 7
    %v288 = vsel %vm285, %v286, %v287
    %v291 = vadd.f32 %v256, %v286
    %v292 = vadd.f32 %v261, %v288
    %vm293 = vcmask 523265
    %294 = vst.msk [vmem:[#allocation2 + $0x11] sm:$0xfe] %vm293, %v291
    %295 = vst.msk [vmem:[#allocation2 + $0x19] sm:$0x3] %vm267, %v292
    %296 = vst.msk [vmem:[#allocation2 + $0x1b] sm:$0x1f] %vm277, 0.0
    %v297 = vld [vmem:[#allocation2] sm:$0xff]
    %v298 = vld [vmem:[#allocation2 + $0x8] sm:$0xff]
    %v299 = vld [vmem:[#allocation2 + $0x10] sm:$0xff]
    %v300 = vld [vmem:[#allocation2 + $0x18] sm:$0xff]
    %v301 = vld [vmem:[%s4] sm:$0xff]
    %v302 = vld [vmem:[%s4 + $0x8] sm:$0xff]
    %v303 = vld [vmem:[%s4 + $0x10] sm:$0xff]
    %v304 = vld [vmem:[%s4 + $0x18] sm:$0xff]
    %v305 = vld [vmem:[%s5] sm:$0x1]
    %v306 = vld [vmem:[%s6] sm:$0x1]
    %v307 = vsel %vm273, %v297, 0.0
    %308 = vadd.xlane.f32.xlu0 %v307
    %v309 = vpop.xlane.xlu0 %308
    %v310 = vsel %vm273, %v298, 0.0
    %311 = vadd.xlane.f32.xlu0 %v310
    %v312 = vpop.xlane.xlu0 %311
    %v313 = vsel %vm273, %v299, 0.0
    %314 = vadd.xlane.f32.xlu0 %v313
    %v315 = vpop.xlane.xlu0 %314
    %v316 = vsel %vm273, %v300, 0.0
    %317 = vadd.xlane.f32.xlu0 %v316
    %v318 = vpop.xlane.xlu0 %317
    %v319 = vrcp.pop 64.0
    %v320 = vmul.f32 %v309, %v319
    %v321 = vmul.f32 %v312, %v319
    %v322 = vmul.f32 %v315, %v319
    %v323 = vmul.f32 %v318, %v319
    %v324 = vsub.f32 %v297, %v320
    %v325 = vsub.f32 %v298, %v321
    %v326 = vsub.f32 %v299, %v322
    %v327 = vsub.f32 %v300, %v323
    %v328 = vmul.f32 %v324, %v324
    %v329 = vmul.f32 %v325, %v325
    %v330 = vmul.f32 %v326, %v326
    %v331 = vmul.f32 %v327, %v327
    %v332 = vsel %vm273, %v328, 0.0
    %333 = vadd.xlane.f32.xlu0 %v332
    %v334 = vpop.xlane.xlu0 %333
    %v335 = vsel %vm273, %v329, 0.0
    %336 = vadd.xlane.f32.xlu0 %v335
    %v337 = vpop.xlane.xlu0 %336
    %v338 = vsel %vm273, %v330, 0.0
    %339 = vadd.xlane.f32.xlu0 %v338
    %v340 = vpop.xlane.xlu0 %339
    %v341 = vsel %vm273, %v331, 0.0
    %342 = vadd.xlane.f32.xlu0 %v341
    %v343 = vpop.xlane.xlu0 %342
    %v344 = vmul.f32 %v334, %v319
    %v345 = vmul.f32 %v337, %v319
    %v346 = vmul.f32 %v340, %v319
    %v347 = vmul.f32 %v343, %v319
    %v348 = vadd.f32 %v344, 1e-06
    %v349 = vadd.f32 %v345, 1e-06
    %v350 = vadd.f32 %v346, 1e-06
    %v351 = vadd.f32 %v347, 1e-06
    %v352 = vrsqrt.pop %v348
    %v353 = vrsqrt.pop %v349
    %v354 = vrsqrt.pop %v350
    %v355 = vrsqrt.pop %v351
    %v356 = vmul.f32 %v324, %v352
    %v357 = vmul.f32 %v325, %v353
    %v358 = vmul.f32 %v326, %v354
    %v359 = vmul.f32 %v327, %v355
    %v361 = vlaneseq
    %v362 = vshrl.u32 %v361, 7
    %v363 = vsub.s32 0, %v362
    %v364 = vrot.slane %v305, %v363
    %v366 = vmul.f32 %v356, %v364
    %v367 = vmul.f32 %v357, %v364
    %v368 = vmul.f32 %v358, %v364
    %v369 = vmul.f32 %v359, %v364
    %v371 = vlaneseq
    %v372 = vshrl.u32 %v371, 7
    %v373 = vsub.s32 0, %v372
    %v374 = vrot.slane %v306, %v373
    %v376 = vadd.f32 %v366, %v374
    %v377 = vadd.f32 %v367, %v374
    %v378 = vadd.f32 %v368, %v374
    %v379 = vadd.f32 %v369, %v374
    %v380 = vpack.c.bf16 %v377, %v376
    %v381 = vpack.c.bf16 %v379, %v378
    %v382 = vld [vmem:[%s7] sm:$0xf]
    %v383 = vld [vmem:[%s7 + $0x4] sm:$0xf]
    %v384 = vld [vmem:[%s7 + $0x8] sm:$0xf]
    %v385 = vld [vmem:[%s7 + $0xc] sm:$0xf]
    %v386 = vld [vmem:[%s7 + $0x10] sm:$0xf]
    %v387 = vld [vmem:[%s7 + $0x14] sm:$0xf]
    %v388 = vld [vmem:[%s7 + $0x18] sm:$0xf]
    %v389 = vld [vmem:[%s7 + $0x1c] sm:$0xf]
    %v390 = vld [vmem:[%s7 + $0x20] sm:$0xf]
    %v391 = vld [vmem:[%s7 + $0x24] sm:$0xf]
    %v392 = vld [vmem:[%s7 + $0x28] sm:$0xf]
    %v393 = vld [vmem:[%s7 + $0x2c] sm:$0xf]
    %v394 = vld [vmem:[%s7 + $0x30] sm:$0xf]
    %v395 = vld [vmem:[%s7 + $0x34] sm:$0xf]
    %v396 = vld [vmem:[%s7 + $0x38] sm:$0xf]
    %v397 = vld [vmem:[%s7 + $0x3c] sm:$0xf]
    %v398 = vld [vmem:[%s7 + $0x40] sm:$0xf]
    %v399 = vld [vmem:[%s7 + $0x44] sm:$0xf]
    %v400 = vld [vmem:[%s7 + $0x48] sm:$0xf]
    %v401 = vld [vmem:[%s7 + $0x4c] sm:$0xf]
    %v402 = vld [vmem:[%s7 + $0x50] sm:$0xf]
    %v403 = vld [vmem:[%s7 + $0x54] sm:$0xf]
    %v404 = vld [vmem:[%s7 + $0x58] sm:$0xf]
    %v405 = vld [vmem:[%s7 + $0x5c] sm:$0xf]
    %v406 = vld [vmem:[%s8] sm:$0x1]
    %v407 = vld [vmem:[%s8 + $0x1] sm:$0x1]
    %v408 = vld [vmem:[%s8 + $0x2] sm:$0x1]
    %v410 = vlaneseq
    %v411 = vshrl.u32 %v410, 7
    %v412 = vsub.s32 0, %v411
    %v413 = vrot.slane %v406, %v412
    %v423 = vunpack.c.l.b16 %v382
    %v424 = vunpack.c.l.b16 %v383
    %v425 = vunpack.c.l.b16 %v384
    %v426 = vunpack.c.l.b16 %v385
    %v427 = vunpack.c.l.b16 %v386
    %v428 = vunpack.c.l.b16 %v387
    %v429 = vunpack.c.l.b16 %v388
    %v430 = vunpack.c.l.b16 %v389
    %v431 = vpack.c.b16 %v424, %v423
    %v432 = vpack.c.b16 %v426, %v425
    %v433 = vpack.c.b16 %v428, %v427
    %v434 = vpack.c.b16 %v430, %v429
    %v440 = vsel %vm273, %v380, 0
    %v443 = vsel %vm273, %v381, 0
    %445 = vmatprep.subr.bf16.mxu0 0
    %446 = vmatpush1.bf16.msra.mxu0 %v431
    %447 = vmatprep.subr.bf16.mxu0 0
    %448 = vmatpush1.bf16.msra.mxu0 %v432
    %449 = vmatprep.subr.bf16.mxu0 0
    %450 = vmatpush1.bf16.msra.mxu0 %v433
    %451 = vmatprep.subr.bf16.mxu0 0
    %452 = vmatpush1.bf16.msra.mxu0 %v434
    %453 = vmatprep.subr.bf16.mxu0 0
    %454 = vmatpush1.bf16.msra.mxu0 0
    %455 = vmatprep.subr.bf16.mxu0 0
    %456 = vmatpush1.bf16.msra.mxu0 0
    %457 = vmatprep.subr.bf16.mxu0 0
    %458 = vmatpush1.bf16.msra.mxu0 0
    %459 = vmatprep.subr.bf16.mxu0 0
    %460 = vmatpush1.bf16.msra.mxu0 0
    %461 = vmatprep.subr.bf16.mxu0 0
    %462 = vmatpush1.bf16.msra.mxu0 0
    %463 = vmatprep.subr.bf16.mxu0 0
    %464 = vmatpush1.bf16.msra.mxu0 0
    %465 = vmatprep.subr.bf16.mxu0 0
    %466 = vmatpush1.bf16.msra.mxu0 0
    %467 = vmatprep.subr.bf16.mxu0 0
    %468 = vmatpush1.bf16.msra.mxu0 0
    %469 = vmatprep.subr.bf16.mxu0 0
    %470 = vmatpush1.bf16.msra.mxu0 0
    %471 = vmatprep.subr.bf16.mxu0 0
    %472 = vmatpush1.bf16.msra.mxu0 0
    %473 = vmatprep.subr.bf16.mxu0 0
    %474 = vmatpush1.bf16.msra.mxu0 0
    %475 = vmatprep.subr.bf16.mxu0 0
    %476 = vmatpush1.bf16.msra.mxu0 0
    %477 = vmatprep.mubr.bf16.mxu0 0
    %478 = vmatmul.mubr.bf16.gmra.mrb[0].mxu0 %v440
    %v479 = vpop.f32.mrb[0].mxu0
    %v480 = vadd.f32 %v413, %v479
    %v481 = vpop.f32.mrb[0].mxu0
    %v482 = vpop.f32.mrb[0].mxu0
    %v483 = vadd.f32 %v413, %v482
    %v484 = vpop.f32.mrb[0].mxu0
    %485 = vmatprep.mubr.bf16.mxu0 0
    %486 = vmatmul.mubr.bf16.gmra.mrb[0].mxu0 %v443
    %v487 = vpop.f32.mrb[0].mxu0
    %v488 = vadd.f32 %v413, %v487
    %v489 = vpop.f32.mrb[0].mxu0
    %v490 = vpop.f32.mrb[0].mxu0
    %v491 = vadd.f32 %v413, %v490
    %v492 = vpop.f32.mrb[0].mxu0
    %493 = vdwg.mxu0
    %v495 = vlaneseq
    %v496 = vshrl.u32 %v495, 7
    %v497 = vsub.s32 0, %v496
    %v498 = vrot.slane %v407, %v497
    %v508 = vunpack.c.l.b16 %v390
    %v509 = vunpack.c.l.b16 %v391
    %v510 = vunpack.c.l.b16 %v392
    %v511 = vunpack.c.l.b16 %v393
    %v512 = vunpack.c.l.b16 %v394
    %v513 = vunpack.c.l.b16 %v395
    %v514 = vunpack.c.l.b16 %v396
    %v515 = vunpack.c.l.b16 %v397
    %v516 = vpack.c.b16 %v509, %v508
    %v517 = vpack.c.b16 %v511, %v510
    %v518 = vpack.c.b16 %v513, %v512
    %v519 = vpack.c.b16 %v515, %v514
    %524 = vmatprep.subr.bf16.mxu0 0
    %525 = vmatpush1.bf16.msra.mxu0 %v516
    %526 = vmatprep.subr.bf16.mxu0 0
    %527 = vmatpush1.bf16.msra.mxu0 %v517
    %528 = vmatprep.subr.bf16.mxu0 0
    %529 = vmatpush1.bf16.msra.mxu0 %v518
    %530 = vmatprep.subr.bf16.mxu0 0
    %531 = vmatpush1.bf16.msra.mxu0 %v519
    %532 = vmatprep.subr.bf16.mxu0 0
    %533 = vmatpush1.bf16.msra.mxu0 0
    %534 = vmatprep.subr.bf16.mxu0 0
    %535 = vmatpush1.bf16.msra.mxu0 0
    %536 = vmatprep.subr.bf16.mxu0 0
    %537 = vmatpush1.bf16.msra.mxu0 0
    %538 = vmatprep.subr.bf16.mxu0 0
    %539 = vmatpush1.bf16.msra.mxu0 0
    %540 = vmatprep.subr.bf16.mxu0 0
    %541 = vmatpush1.bf16.msra.mxu0 0
    %542 = vmatprep.subr.bf16.mxu0 0
    %543 = vmatpush1.bf16.msra.mxu0 0
    %544 = vmatprep.subr.bf16.mxu0 0
    %545 = vmatpush1.bf16.msra.mxu0 0
    %546 = vmatprep.subr.bf16.mxu0 0
    %547 = vmatpush1.bf16.msra.mxu0 0
    %548 = vmatprep.subr.bf16.mxu0 0
    %549 = vmatpush1.bf16.msra.mxu0 0
    %550 = vmatprep.subr.bf16.mxu0 0
    %551 = vmatpush1.bf16.msra.mxu0 0
    %552 = vmatprep.subr.bf16.mxu0 0
    %553 = vmatpush1.bf16.msra.mxu0 0
    %554 = vmatprep.subr.bf16.mxu0 0
    %555 = vmatpush1.bf16.msra.mxu0 0
    %556 = vmatprep.mubr.bf16.mxu0 0
    %557 = vmatmul.mubr.bf16.gmra.mrb[0].mxu0 %v440
    %v558 = vpop.f32.mrb[0].mxu0
    %v559 = vadd.f32 %v498, %v558
    %v560 = vpop.f32.mrb[0].mxu0
    %v561 = vpop.f32.mrb[0].mxu0
    %v562 = vadd.f32 %v498, %v561
    %v563 = vpop.f32.mrb[0].mxu0
    %564 = vmatprep.mubr.bf16.mxu0 0
    %565 = vmatmul.mubr.bf16.gmra.mrb[0].mxu0 %v443
    %v566 = vpop.f32.mrb[0].mxu0
    %v567 = vadd.f32 %v498, %v566
    %v568 = vpop.f32.mrb[0].mxu0
    %v569 = vpop.f32.mrb[0].mxu0
    %v570 = vadd.f32 %v498, %v569
    %v571 = vpop.f32.mrb[0].mxu0
    %572 = vdwg.mxu0
    %v574 = vlaneseq
    %v575 = vshrl.u32 %v574, 7
    %v576 = vsub.s32 0, %v575
    %v577 = vrot.slane %v408, %v576
    %v587 = vunpack.c.l.b16 %v398
    %v588 = vunpack.c.l.b16 %v399
    %v589 = vunpack.c.l.b16 %v400
    %v590 = vunpack.c.l.b16 %v401
    %v591 = vunpack.c.l.b16 %v402
    %v592 = vunpack.c.l.b16 %v403
    %v593 = vunpack.c.l.b16 %v404
    %v594 = vunpack.c.l.b16 %v405
    %v595 = vpack.c.b16 %v588, %v587
    %v596 = vpack.c.b16 %v590, %v589
    %v597 = vpack.c.b16 %v592, %v591
    %v598 = vpack.c.b16 %v594, %v593
    %603 = vmatprep.subr.bf16.mxu0 0
    %604 = vmatpush1.bf16.msra.mxu0 %v595
    %605 = vmatprep.subr.bf16.mxu0 0
    %606 = vmatpush1.bf16.msra.mxu0 %v596
    %607 = vmatprep.subr.bf16.mxu0 0
    %608 = vmatpush1.bf16.msra.mxu0 %v597
    %609 = vmatprep.subr.bf16.mxu0 0
    %610 = vmatpush1.bf16.msra.mxu0 %v598
    %611 = vmatprep.subr.bf16.mxu0 0
    %612 = vmatpush1.bf16.msra.mxu0 0
    %613 = vmatprep.subr.bf16.mxu0 0
    %614 = vmatpush1.bf16.msra.mxu0 0
    %615 = vmatprep.subr.bf16.mxu0 0
    %616 = vmatpush1.bf16.msra.mxu0 0
    %617 = vmatprep.subr.bf16.mxu0 0
    %618 = vmatpush1.bf16.msra.mxu0 0
    %619 = vmatprep.subr.bf16.mxu0 0
    %620 = vmatpush1.bf16.msra.mxu0 0
    %621 = vmatprep.subr.bf16.mxu0 0
    %622 = vmatpush1.bf16.msra.mxu0 0
    %623 = vmatprep.subr.bf16.mxu0 0
    %624 = vmatpush1.bf16.msra.mxu0 0
    %625 = vmatprep.subr.bf16.mxu0 0
    %626 = vmatpush1.bf16.msra.mxu0 0
    %627 = vmatprep.subr.bf16.mxu0 0
    %628 = vmatpush1.bf16.msra.mxu0 0
    %629 = vmatprep.subr.bf16.mxu0 0
    %630 = vmatpush1.bf16.msra.mxu0 0
    %631 = vmatprep.subr.bf16.mxu0 0
    %632 = vmatpush1.bf16.msra.mxu0 0
    %633 = vmatprep.subr.bf16.mxu0 0
    %634 = vmatpush1.bf16.msra.mxu0 0
    %635 = vmatprep.mubr.bf16.mxu0 0
    %636 = vmatmul.mubr.bf16.gmra.mrb[0].mxu0 %v440
    %v637 = vpop.f32.mrb[0].mxu0
    %v638 = vadd.f32 %v577, %v637
    %v639 = vpop.f32.mrb[0].mxu0
    %v640 = vpop.f32.mrb[0].mxu0
    %v641 = vadd.f32 %v577, %v640
    %v642 = vpop.f32.mrb[0].mxu0
    %643 = vmatprep.mubr.bf16.mxu0 0
    %644 = vmatmul.mubr.bf16.gmra.mrb[0].mxu0 %v443
    %v645 = vpop.f32.mrb[0].mxu0
    %v646 = vadd.f32 %v577, %v645
    %v647 = vpop.f32.mrb[0].mxu0
    %v648 = vpop.f32.mrb[0].mxu0
    %v649 = vadd.f32 %v577, %v648
    %v650 = vpop.f32.mrb[0].mxu0
    %651 = vdwg.mxu0
    %656 = vrot.lane.b32.xlu0 %v480, 112
    %v657 = vpop.permute.xlu0 %656
    %658 = vrot.lane.b32.xlu0 %v483, 112
    %v659 = vpop.permute.xlu0 %658
    %660 = vrot.lane.b32.xlu0 %v488, 112
    %v661 = vpop.permute.xlu0 %660
    %662 = vrot.lane.b32.xlu0 %v491, 112
    %v663 = vpop.permute.xlu0 %662
    %668 = vrot.lane.b32.xlu0 %v480, 96
    %v669 = vpop.permute.xlu0 %668
    %670 = vrot.lane.b32.xlu0 %v483, 96
    %v671 = vpop.permute.xlu0 %670
    %672 = vrot.lane.b32.xlu0 %v488, 96
    %v673 = vpop.permute.xlu0 %672
    %674 = vrot.lane.b32.xlu0 %v491, 96
    %v675 = vpop.permute.xlu0 %674
    %680 = vrot.lane.b32.xlu0 %v480, 80
    %v681 = vpop.permute.xlu0 %680
    %682 = vrot.lane.b32.xlu0 %v483, 80
    %v683 = vpop.permute.xlu0 %682
    %684 = vrot.lane.b32.xlu0 %v488, 80
    %v685 = vpop.permute.xlu0 %684
    %686 = vrot.lane.b32.xlu0 %v491, 80
    %v687 = vpop.permute.xlu0 %686
    %v692 = vcombine.low %v480, %v669
    %v693 = vcombine.high %v480, %v669
    %v695 = vunpack.c.l.s4 1983009808
    %v696 = vunpack.c.0.s8 %v695
    %v697 = vlaneseq
    %v698 = vshrl.u32 %v697, 7
    %v699 = vsub.s32 %v696, %v698
    %v700 = vrot.slane %v692, %v699
    %v702 = vunpack.c.l.s4 1983009808
    %v703 = vunpack.c.0.s8 %v702
    %v704 = vlaneseq
    %v705 = vshrl.u32 %v704, 7
    %v706 = vsub.s32 %v703, %v705
    %v707 = vrot.slane %v693, %v706
    %v708 = vcombine.low %v657, %v681
    %v709 = vcombine.high %v657, %v681
    %v711 = vunpack.c.l.s4 1983009808
    %v712 = vunpack.c.0.s8 %v711
    %v713 = vlaneseq
    %v714 = vshrl.u32 %v713, 7
    %v715 = vsub.s32 %v712, %v714
    %v716 = vrot.slane %v708, %v715
    %v718 = vunpack.c.l.s4 1983009808
    %v719 = vunpack.c.0.s8 %v718
    %v720 = vlaneseq
    %v721 = vshrl.u32 %v720, 7
    %v722 = vsub.s32 %v719, %v721
    %v723 = vrot.slane %v709, %v722
    %v724 = vcombine.low %v700, %v716
    %v725 = vcombine.high %v700, %v716
    %v727 = vunpack.c.l.s4 1934713408
    %v728 = vunpack.c.0.s8 %v727
    %v729 = vlaneseq
    %v730 = vshrl.u32 %v729, 7
    %v731 = vsub.s32 %v728, %v730
    %v732 = vrot.slane %v724, %v731
    %v734 = vunpack.c.l.s4 1934713408
    %v735 = vunpack.c.0.s8 %v734
    %v736 = vlaneseq
    %v737 = vshrl.u32 %v736, 7
    %v738 = vsub.s32 %v735, %v737
    %v739 = vrot.slane %v725, %v738
    %v740 = vcombine.low %v707, %v723
    %v741 = vcombine.high %v707, %v723
    %v743 = vunpack.c.l.s4 1934713408
    %v744 = vunpack.c.0.s8 %v743
    %v745 = vlaneseq
    %v746 = vshrl.u32 %v745, 7
    %v747 = vsub.s32 %v744, %v746
    %v748 = vrot.slane %v740, %v747
    %v750 = vunpack.c.l.s4 1934713408
    %v751 = vunpack.c.0.s8 %v750
    %v752 = vlaneseq
    %v753 = vshrl.u32 %v752, 7
    %v754 = vsub.s32 %v751, %v753
    %v755 = vrot.slane %v741, %v754
    %v756 = vcombine.high %v732, 0.0
    %v757 = vcombine.high %v739, 0.0
    %v758 = vcombine.high %v748, 0.0
    %v759 = vcombine.high %v755, 0.0
    %v760 = vcombine.low %v483, %v671
    %v761 = vcombine.high %v483, %v671
    %v763 = vunpack.c.l.s4 1983009808
    %v764 = vunpack.c.0.s8 %v763
    %v765 = vlaneseq
    %v766 = vshrl.u32 %v765, 7
    %v767 = vsub.s32 %v764, %v766
    %v768 = vrot.slane %v760, %v767
    %v770 = vunpack.c.l.s4 1983009808
    %v771 = vunpack.c.0.s8 %v770
    %v772 = vlaneseq
    %v773 = vshrl.u32 %v772, 7
    %v774 = vsub.s32 %v771, %v773
    %v775 = vrot.slane %v761, %v774
    %v776 = vcombine.low %v659, %v683
    %v777 = vcombine.high %v659, %v683
    %v779 = vunpack.c.l.s4 1983009808
    %v780 = vunpack.c.0.s8 %v779
    %v781 = vlaneseq
    %v782 = vshrl.u32 %v781, 7
    %v783 = vsub.s32 %v780, %v782
    %v784 = vrot.slane %v776, %v783
    %v786 = vunpack.c.l.s4 1983009808
    %v787 = vunpack.c.0.s8 %v786
    %v788 = vlaneseq
    %v789 = vshrl.u32 %v788, 7
    %v790 = vsub.s32 %v787, %v789
    %v791 = vrot.slane %v777, %v790
    %v792 = vcombine.low %v768, %v784
    %v793 = vcombine.high %v768, %v784
    %v795 = vunpack.c.l.s4 1934713408
    %v796 = vunpack.c.0.s8 %v795
    %v797 = vlaneseq
    %v798 = vshrl.u32 %v797, 7
    %v799 = vsub.s32 %v796, %v798
    %v800 = vrot.slane %v792, %v799
    %v802 = vunpack.c.l.s4 1934713408
    %v803 = vunpack.c.0.s8 %v802
    %v804 = vlaneseq
    %v805 = vshrl.u32 %v804, 7
    %v806 = vsub.s32 %v803, %v805
    %v807 = vrot.slane %v793, %v806
    %v808 = vcombine.low %v775, %v791
    %v809 = vcombine.high %v775, %v791
    %v811 = vunpack.c.l.s4 1934713408
    %v812 = vunpack.c.0.s8 %v811
    %v813 = vlaneseq
    %v814 = vshrl.u32 %v813, 7
    %v815 = vsub.s32 %v812, %v814
    %v816 = vrot.slane %v808, %v815
    %v818 = vunpack.c.l.s4 1934713408
    %v819 = vunpack.c.0.s8 %v818
    %v820 = vlaneseq
    %v821 = vshrl.u32 %v820, 7
    %v822 = vsub.s32 %v819, %v821
    %v823 = vrot.slane %v809, %v822
    %v824 = vcombine.high %v800, 0.0
    %v825 = vcombine.high %v807, 0.0
    %v826 = vcombine.high %v816, 0.0
    %v827 = vcombine.high %v823, 0.0
    %v828 = vcombine.low %v488, %v673
    %v829 = vcombine.high %v488, %v673
    %v831 = vunpack.c.l.s4 1983009808
    %v832 = vunpack.c.0.s8 %v831
    %v833 = vlaneseq
    %v834 = vshrl.u32 %v833, 7
    %v835 = vsub.s32 %v832, %v834
    %v836 = vrot.slane %v828, %v835
    %v838 = vunpack.c.l.s4 1983009808
    %v839 = vunpack.c.0.s8 %v838
    %v840 = vlaneseq
    %v841 = vshrl.u32 %v840, 7
    %v842 = vsub.s32 %v839, %v841
    %v843 = vrot.slane %v829, %v842
    %v844 = vcombine.low %v661, %v685
    %v845 = vcombine.high %v661, %v685
    %v847 = vunpack.c.l.s4 1983009808
    %v848 = vunpack.c.0.s8 %v847
    %v849 = vlaneseq
    %v850 = vshrl.u32 %v849, 7
    %v851 = vsub.s32 %v848, %v850
    %v852 = vrot.slane %v844, %v851
    %v854 = vunpack.c.l.s4 1983009808
    %v855 = vunpack.c.0.s8 %v854
    %v856 = vlaneseq
    %v857 = vshrl.u32 %v856, 7
    %v858 = vsub.s32 %v855, %v857
    %v859 = vrot.slane %v845, %v858
    %v860 = vcombine.low %v836, %v852
    %v861 = vcombine.high %v836, %v852
    %v863 = vunpack.c.l.s4 1934713408
    %v864 = vunpack.c.0.s8 %v863
    %v865 = vlaneseq
    %v866 = vshrl.u32 %v865, 7
    %v867 = vsub.s32 %v864, %v866
    %v868 = vrot.slane %v860, %v867
    %v870 = vunpack.c.l.s4 1934713408
    %v871 = vunpack.c.0.s8 %v870
    %v872 = vlaneseq
    %v873 = vshrl.u32 %v872, 7
    %v874 = vsub.s32 %v871, %v873
    %v875 = vrot.slane %v861, %v874
    %v876 = vcombine.low %v843, %v859
    %v877 = vcombine.high %v843, %v859
    %v879 = vunpack.c.l.s4 1934713408
    %v880 = vunpack.c.0.s8 %v879
    %v881 = vlaneseq
    %v882 = vshrl.u32 %v881, 7
    %v883 = vsub.s32 %v880, %v882
    %v884 = vrot.slane %v876, %v883
    %v886 = vunpack.c.l.s4 1934713408
    %v887 = vunpack.c.0.s8 %v886
    %v888 = vlaneseq
    %v889 = vshrl.u32 %v888, 7
    %v890 = vsub.s32 %v887, %v889
    %v891 = vrot.slane %v877, %v890
    %v892 = vcombine.high %v868, 0.0
    %v893 = vcombine.high %v875, 0.0
    %v894 = vcombine.high %v884, 0.0
    %v895 = vcombine.high %v891, 0.0
    %v896 = vcombine.low %v491, %v675
    %v897 = vcombine.high %v491, %v675
    %v899 = vunpack.c.l.s4 1983009808
    %v900 = vunpack.c.0.s8 %v899
    %v901 = vlaneseq
    %v902 = vshrl.u32 %v901, 7
    %v903 = vsub.s32 %v900, %v902
    %v904 = vrot.slane %v896, %v903
    %v906 = vunpack.c.l.s4 1983009808
    %v907 = vunpack.c.0.s8 %v906
    %v908 = vlaneseq
    %v909 = vshrl.u32 %v908, 7
    %v910 = vsub.s32 %v907, %v909
    %v911 = vrot.slane %v897, %v910
    %v912 = vcombine.low %v663, %v687
    %v913 = vcombine.high %v663, %v687
    %v915 = vunpack.c.l.s4 1983009808
    %v916 = vunpack.c.0.s8 %v915
    %v917 = vlaneseq
    %v918 = vshrl.u32 %v917, 7
    %v919 = vsub.s32 %v916, %v918
    %v920 = vrot.slane %v912, %v919
    %v922 = vunpack.c.l.s4 1983009808
    %v923 = vunpack.c.0.s8 %v922
    %v924 = vlaneseq
    %v925 = vshrl.u32 %v924, 7
    %v926 = vsub.s32 %v923, %v925
    %v927 = vrot.slane %v913, %v926
    %v928 = vcombine.low %v904, %v920
    %v929 = vcombine.high %v904, %v920
    %v931 = vunpack.c.l.s4 1934713408
    %v932 = vunpack.c.0.s8 %v931
    %v933 = vlaneseq
    %v934 = vshrl.u32 %v933, 7
    %v935 = vsub.s32 %v932, %v934
    %v936 = vrot.slane %v928, %v935
    %v938 = vunpack.c.l.s4 1934713408
    %v939 = vunpack.c.0.s8 %v938
    %v940 = vlaneseq
    %v941 = vshrl.u32 %v940, 7
    %v942 = vsub.s32 %v939, %v941
    %v943 = vrot.slane %v929, %v942
    %v944 = vcombine.low %v911, %v927
    %v945 = vcombine.high %v911, %v927
    %v947 = vunpack.c.l.s4 1934713408
    %v948 = vunpack.c.0.s8 %v947
    %v949 = vlaneseq
    %v950 = vshrl.u32 %v949, 7
    %v951 = vsub.s32 %v948, %v950
    %v952 = vrot.slane %v944, %v951
    %v954 = vunpack.c.l.s4 1934713408
    %v955 = vunpack.c.0.s8 %v954
    %v956 = vlaneseq
    %v957 = vshrl.u32 %v956, 7
    %v958 = vsub.s32 %v955, %v957
    %v959 = vrot.slane %v945, %v958
    %v960 = vcombine.high %v936, 0.0
    %v961 = vcombine.high %v943, 0.0
    %v962 = vcombine.high %v952, 0.0
    %v963 = vcombine.high %v959, 0.0
    %v964 = vcombine.low %v732, %v739
    %v966 = vunpack.c.l.s4 1983009808
    %v967 = vunpack.c.0.s8 %v966
    %v968 = vlaneseq
    %v969 = vshrl.u32 %v968, 7
    %v970 = vsub.s32 %v967, %v969
    %v971 = vrot.slane %v964, %v970
    %v972 = vcombine.low %v756, %v757
    %v974 = vunpack.c.l.s4 1983009808
    %v975 = vunpack.c.0.s8 %v974
    %v976 = vlaneseq
    %v977 = vshrl.u32 %v976, 7
    %v978 = vsub.s32 %v975, %v977
    %v979 = vrot.slane %v972, %v978
    %v980 = vcombine.low %v748, %v755
    %v982 = vunpack.c.l.s4 1983009808
    %v983 = vunpack.c.0.s8 %v982
    %v984 = vlaneseq
    %v985 = vshrl.u32 %v984, 7
    %v986 = vsub.s32 %v983, %v985
    %v987 = vrot.slane %v980, %v986
    %v988 = vcombine.low %v758, %v759
    %v990 = vunpack.c.l.s4 1983009808
    %v991 = vunpack.c.0.s8 %v990
    %v992 = vlaneseq
    %v993 = vshrl.u32 %v992, 7
    %v994 = vsub.s32 %v991, %v993
    %v995 = vrot.slane %v988, %v994
    %v996 = vcombine.low %v971, %v979
    %v997 = vcombine.high %v971, %v979
    %v999 = vunpack.c.l.s4 1934713408
    %v1000 = vunpack.c.0.s8 %v999
    %v1001 = vlaneseq
    %v1002 = vshrl.u32 %v1001, 7
    %v1003 = vsub.s32 %v1000, %v1002
    %v1004 = vrot.slane %v996, %v1003
    %v1006 = vunpack.c.l.s4 1934713408
    %v1007 = vunpack.c.0.s8 %v1006
    %v1008 = vlaneseq
    %v1009 = vshrl.u32 %v1008, 7
    %v1010 = vsub.s32 %v1007, %v1009
    %v1011 = vrot.slane %v997, %v1010
    %v1012 = vcombine.low %v987, %v995
    %v1013 = vcombine.high %v987, %v995
    %v1015 = vunpack.c.l.s4 1934713408
    %v1016 = vunpack.c.0.s8 %v1015
    %v1017 = vlaneseq
    %v1018 = vshrl.u32 %v1017, 7
    %v1019 = vsub.s32 %v1016, %v1018
    %v1020 = vrot.slane %v1012, %v1019
    %v1022 = vunpack.c.l.s4 1934713408
    %v1023 = vunpack.c.0.s8 %v1022
    %v1024 = vlaneseq
    %v1025 = vshrl.u32 %v1024, 7
    %v1026 = vsub.s32 %v1023, %v1025
    %v1027 = vrot.slane %v1013, %v1026
    %v1028 = vcombine.low %v1004, %v1020
    %v1029 = vcombine.high %v1004, %v1020
    %v1030 = vcombine.low %v1011, %v1027
    %v1031 = vcombine.high %v1011, %v1027
    %v1032 = vcombine.low %v800, %v807
    %v1034 = vunpack.c.l.s4 1983009808
    %v1035 = vunpack.c.0.s8 %v1034
    %v1036 = vlaneseq
    %v1037 = vshrl.u32 %v1036, 7
    %v1038 = vsub.s32 %v1035, %v1037
    %v1039 = vrot.slane %v1032, %v1038
    %v1040 = vcombine.low %v824, %v825
    %v1042 = vunpack.c.l.s4 1983009808
    %v1043 = vunpack.c.0.s8 %v1042
    %v1044 = vlaneseq
    %v1045 = vshrl.u32 %v1044, 7
    %v1046 = vsub.s32 %v1043, %v1045
    %v1047 = vrot.slane %v1040, %v1046
    %v1048 = vcombine.low %v816, %v823
    %v1050 = vunpack.c.l.s4 1983009808
    %v1051 = vunpack.c.0.s8 %v1050
    %v1052 = vlaneseq
    %v1053 = vshrl.u32 %v1052, 7
    %v1054 = vsub.s32 %v1051, %v1053
    %v1055 = vrot.slane %v1048, %v1054
    %v1056 = vcombine.low %v826, %v827
    %v1058 = vunpack.c.l.s4 1983009808
    %v1059 = vunpack.c.0.s8 %v1058
    %v1060 = vlaneseq
    %v1061 = vshrl.u32 %v1060, 7
    %v1062 = vsub.s32 %v1059, %v1061
    %v1063 = vrot.slane %v1056, %v1062
    %v1064 = vcombine.low %v1039, %v1047
    %v1065 = vcombine.high %v1039, %v1047
    %v1067 = vunpack.c.l.s4 1934713408
    %v1068 = vunpack.c.0.s8 %v1067
    %v1069 = vlaneseq
    %v1070 = vshrl.u32 %v1069, 7
    %v1071 = vsub.s32 %v1068, %v1070
    %v1072 = vrot.slane %v1064, %v1071
    %v1074 = vunpack.c.l.s4 1934713408
    %v1075 = vunpack.c.0.s8 %v1074
    %v1076 = vlaneseq
    %v1077 = vshrl.u32 %v1076, 7
    %v1078 = vsub.s32 %v1075, %v1077
    %v1079 = vrot.slane %v1065, %v1078
    %v1080 = vcombine.low %v1055, %v1063
    %v1081 = vcombine.high %v1055, %v1063
    %v1083 = vunpack.c.l.s4 1934713408
    %v1084 = vunpack.c.0.s8 %v1083
    %v1085 = vlaneseq
    %v1086 = vshrl.u32 %v1085, 7
    %v1087 = vsub.s32 %v1084, %v1086
    %v1088 = vrot.slane %v1080, %v1087
    %v1090 = vunpack.c.l.s4 1934713408
    %v1091 = vunpack.c.0.s8 %v1090
    %v1092 = vlaneseq
    %v1093 = vshrl.u32 %v1092, 7
    %v1094 = vsub.s32 %v1091, %v1093
    %v1095 = vrot.slane %v1081, %v1094
    %v1096 = vcombine.low %v1072, %v1088
    %v1097 = vcombine.high %v1072, %v1088
    %v1098 = vcombine.low %v1079, %v1095
    %v1099 = vcombine.high %v1079, %v1095
    %v1100 = vcombine.low %v868, %v875
    %v1102 = vunpack.c.l.s4 1983009808
    %v1103 = vunpack.c.0.s8 %v1102
    %v1104 = vlaneseq
    %v1105 = vshrl.u32 %v1104, 7
    %v1106 = vsub.s32 %v1103, %v1105
    %v1107 = vrot.slane %v1100, %v1106
    %v1108 = vcombine.low %v892, %v893
    %v1110 = vunpack.c.l.s4 1983009808
    %v1111 = vunpack.c.0.s8 %v1110
    %v1112 = vlaneseq
    %v1113 = vshrl.u32 %v1112, 7
    %v1114 = vsub.s32 %v1111, %v1113
    %v1115 = vrot.slane %v1108, %v1114
    %v1116 = vcombine.low %v884, %v891
    %v1118 = vunpack.c.l.s4 1983009808
    %v1119 = vunpack.c.0.s8 %v1118
    %v1120 = vlaneseq
    %v1121 = vshrl.u32 %v1120, 7
    %v1122 = vsub.s32 %v1119, %v1121
    %v1123 = vrot.slane %v1116, %v1122
    %v1124 = vcombine.low %v894, %v895
    %v1126 = vunpack.c.l.s4 1983009808
    %v1127 = vunpack.c.0.s8 %v1126
    %v1128 = vlaneseq
    %v1129 = vshrl.u32 %v1128, 7
    %v1130 = vsub.s32 %v1127, %v1129
    %v1131 = vrot.slane %v1124, %v1130
    %v1132 = vcombine.low %v1107, %v1115
    %v1133 = vcombine.high %v1107, %v1115
    %v1135 = vunpack.c.l.s4 1934713408
    %v1136 = vunpack.c.0.s8 %v1135
    %v1137 = vlaneseq
    %v1138 = vshrl.u32 %v1137, 7
    %v1139 = vsub.s32 %v1136, %v1138
    %v1140 = vrot.slane %v1132, %v1139
    %v1142 = vunpack.c.l.s4 1934713408
    %v1143 = vunpack.c.0.s8 %v1142
    %v1144 = vlaneseq
    %v1145 = vshrl.u32 %v1144, 7
    %v1146 = vsub.s32 %v1143, %v1145
    %v1147 = vrot.slane %v1133, %v1146
    %v1148 = vcombine.low %v1123, %v1131
    %v1149 = vcombine.high %v1123, %v1131
    %v1151 = vunpack.c.l.s4 1934713408
    %v1152 = vunpack.c.0.s8 %v1151
    %v1153 = vlaneseq
    %v1154 = vshrl.u32 %v1153, 7
    %v1155 = vsub.s32 %v1152, %v1154
    %v1156 = vrot.slane %v1148, %v1155
    %v1158 = vunpack.c.l.s4 1934713408
    %v1159 = vunpack.c.0.s8 %v1158
    %v1160 = vlaneseq
    %v1161 = vshrl.u32 %v1160, 7
    %v1162 = vsub.s32 %v1159, %v1161
    %v1163 = vrot.slane %v1149, %v1162
    %v1164 = vcombine.low %v1140, %v1156
    %v1165 = vcombine.high %v1140, %v1156
    %v1166 = vcombine.low %v1147, %v1163
    %v1167 = vcombine.high %v1147, %v1163
    %v1168 = vcombine.low %v936, %v943
    %v1170 = vunpack.c.l.s4 1983009808
    %v1171 = vunpack.c.0.s8 %v1170
    %v1172 = vlaneseq
    %v1173 = vshrl.u32 %v1172, 7
    %v1174 = vsub.s32 %v1171, %v1173
    %v1175 = vrot.slane %v1168, %v1174
    %v1176 = vcombine.low %v960, %v961
    %v1178 = vunpack.c.l.s4 1983009808
    %v1179 = vunpack.c.0.s8 %v1178
    %v1180 = vlaneseq
    %v1181 = vshrl.u32 %v1180, 7
    %v1182 = vsub.s32 %v1179, %v1181
    %v1183 = vrot.slane %v1176, %v1182
    %v1184 = vcombine.low %v952, %v959
    %v1186 = vunpack.c.l.s4 1983009808
    %v1187 = vunpack.c.0.s8 %v1186
    %v1188 = vlaneseq
    %v1189 = vshrl.u32 %v1188, 7
    %v1190 = vsub.s32 %v1187, %v1189
    %v1191 = vrot.slane %v1184, %v1190
    %v1192 = vcombine.low %v962, %v963
    %v1194 = vunpack.c.l.s4 1983009808
    %v1195 = vunpack.c.0.s8 %v1194
    %v1196 = vlaneseq
    %v1197 = vshrl.u32 %v1196, 7
    %v1198 = vsub.s32 %v1195, %v1197
    %v1199 = vrot.slane %v1192, %v1198
    %v1200 = vcombine.low %v1175, %v1183
    %v1201 = vcombine.high %v1175, %v1183
    %v1203 = vunpack.c.l.s4 1934713408
    %v1204 = vunpack.c.0.s8 %v1203
    %v1205 = vlaneseq
    %v1206 = vshrl.u32 %v1205, 7
    %v1207 = vsub.s32 %v1204, %v1206
    %v1208 = vrot.slane %v1200, %v1207
    %v1210 = vunpack.c.l.s4 1934713408
    %v1211 = vunpack.c.0.s8 %v1210
    %v1212 = vlaneseq
    %v1213 = vshrl.u32 %v1212, 7
    %v1214 = vsub.s32 %v1211, %v1213
    %v1215 = vrot.slane %v1201, %v1214
    %v1216 = vcombine.low %v1191, %v1199
    %v1217 = vcombine.high %v1191, %v1199
    %v1219 = vunpack.c.l.s4 1934713408
    %v1220 = vunpack.c.0.s8 %v1219
    %v1221 = vlaneseq
    %v1222 = vshrl.u32 %v1221, 7
    %v1223 = vsub.s32 %v1220, %v1222
    %v1224 = vrot.slane %v1216, %v1223
    %v1226 = vunpack.c.l.s4 1934713408
    %v1227 = vunpack.c.0.s8 %v1226
    %v1228 = vlaneseq
    %v1229 = vshrl.u32 %v1228, 7
    %v1230 = vsub.s32 %v1227, %v1229
    %v1231 = vrot.slane %v1217, %v1230
    %v1232 = vcombine.low %v1208, %v1224
    %v1233 = vcombine.high %v1208, %v1224
    %v1234 = vcombine.low %v1215, %v1231
    %v1235 = vcombine.high %v1215, %v1231
    %1240 = vrot.lane.b32.xlu0 %v559, 112
    %v1241 = vpop.permute.xlu0 %1240
    %1242 = vrot.lane.b32.xlu0 %v562, 112
    %v1243 = vpop.permute.xlu0 %1242
    %1244 = vrot.lane.b32.xlu0 %v567, 112
    %v1245 = vpop.permute.xlu0 %1244
    %1246 = vrot.lane.b32.xlu0 %v570, 112
    %v1247 = vpop.permute.xlu0 %1246
    %1252 = vrot.lane.b32.xlu0 %v559, 96
    %v1253 = vpop.permute.xlu0 %1252
    %1254 = vrot.lane.b32.xlu0 %v562, 96
    %v1255 = vpop.permute.xlu0 %1254
    %1256 = vrot.lane.b32.xlu0 %v567, 96
    %v1257 = vpop.permute.xlu0 %1256
    %1258 = vrot.lane.b32.xlu0 %v570, 96
    %v1259 = vpop.permute.xlu0 %1258
    %1264 = vrot.lane.b32.xlu0 %v559, 80
    %v1265 = vpop.permute.xlu0 %1264
    %1266 = vrot.lane.b32.xlu0 %v562, 80
    %v1267 = vpop.permute.xlu0 %1266
    %1268 = vrot.lane.b32.xlu0 %v567, 80
    %v1269 = vpop.permute.xlu0 %1268
    %1270 = vrot.lane.b32.xlu0 %v570, 80
    %v1271 = vpop.permute.xlu0 %1270
    %v1276 = vcombine.low %v559, %v1253
    %v1277 = vcombine.high %v559, %v1253
    %v1279 = vunpack.c.l.s4 1983009808
    %v1280 = vunpack.c.0.s8 %v1279
    %v1281 = vlaneseq
    %v1282 = vshrl.u32 %v1281, 7
    %v1283 = vsub.s32 %v1280, %v1282
    %v1284 = vrot.slane %v1276, %v1283
    %v1286 = vunpack.c.l.s4 1983009808
    %v1287 = vunpack.c.0.s8 %v1286
    %v1288 = vlaneseq
    %v1289 = vshrl.u32 %v1288, 7
    %v1290 = vsub.s32 %v1287, %v1289
    %v1291 = vrot.slane %v1277, %v1290
    %v1292 = vcombine.low %v1241, %v1265
    %v1293 = vcombine.high %v1241, %v1265
    %v1295 = vunpack.c.l.s4 1983009808
    %v1296 = vunpack.c.0.s8 %v1295
    %v1297 = vlaneseq
    %v1298 = vshrl.u32 %v1297, 7
    %v1299 = vsub.s32 %v1296, %v1298
    %v1300 = vrot.slane %v1292, %v1299
    %v1302 = vunpack.c.l.s4 1983009808
    %v1303 = vunpack.c.0.s8 %v1302
    %v1304 = vlaneseq
    %v1305 = vshrl.u32 %v1304, 7
    %v1306 = vsub.s32 %v1303, %v1305
    %v1307 = vrot.slane %v1293, %v1306
    %v1308 = vcombine.low %v1284, %v1300
    %v1309 = vcombine.high %v1284, %v1300
    %v1311 = vunpack.c.l.s4 1934713408
    %v1312 = vunpack.c.0.s8 %v1311
    %v1313 = vlaneseq
    %v1314 = vshrl.u32 %v1313, 7
    %v1315 = vsub.s32 %v1312, %v1314
    %v1316 = vrot.slane %v1308, %v1315
    %v1318 = vunpack.c.l.s4 1934713408
    %v1319 = vunpack.c.0.s8 %v1318
    %v1320 = vlaneseq
    %v1321 = vshrl.u32 %v1320, 7
    %v1322 = vsub.s32 %v1319, %v1321
    %v1323 = vrot.slane %v1309, %v1322
    %v1324 = vcombine.low %v1291, %v1307
    %v1325 = vcombine.high %v1291, %v1307
    %v1327 = vunpack.c.l.s4 1934713408
    %v1328 = vunpack.c.0.s8 %v1327
    %v1329 = vlaneseq
    %v1330 = vshrl.u32 %v1329, 7
    %v1331 = vsub.s32 %v1328, %v1330
    %v1332 = vrot.slane %v1324, %v1331
    %v1334 = vunpack.c.l.s4 1934713408
    %v1335 = vunpack.c.0.s8 %v1334
    %v1336 = vlaneseq
    %v1337 = vshrl.u32 %v1336, 7
    %v1338 = vsub.s32 %v1335, %v1337
    %v1339 = vrot.slane %v1325, %v1338
    %v1340 = vcombine.high %v1316, 0.0
    %v1341 = vcombine.high %v1323, 0.0
    %v1342 = vcombine.high %v1332, 0.0
    %v1343 = vcombine.high %v1339, 0.0
    %v1344 = vcombine.low %v562, %v1255
    %v1345 = vcombine.high %v562, %v1255
    %v1347 = vunpack.c.l.s4 1983009808
    %v1348 = vunpack.c.0.s8 %v1347
    %v1349 = vlaneseq
    %v1350 = vshrl.u32 %v1349, 7
    %v1351 = vsub.s32 %v1348, %v1350
    %v1352 = vrot.slane %v1344, %v1351
    %v1354 = vunpack.c.l.s4 1983009808
    %v1355 = vunpack.c.0.s8 %v1354
    %v1356 = vlaneseq
    %v1357 = vshrl.u32 %v1356, 7
    %v1358 = vsub.s32 %v1355, %v1357
    %v1359 = vrot.slane %v1345, %v1358
    %v1360 = vcombine.low %v1243, %v1267
    %v1361 = vcombine.high %v1243, %v1267
    %v1363 = vunpack.c.l.s4 1983009808
    %v1364 = vunpack.c.0.s8 %v1363
    %v1365 = vlaneseq
    %v1366 = vshrl.u32 %v1365, 7
    %v1367 = vsub.s32 %v1364, %v1366
    %v1368 = vrot.slane %v1360, %v1367
    %v1370 = vunpack.c.l.s4 1983009808
    %v1371 = vunpack.c.0.s8 %v1370
    %v1372 = vlaneseq
    %v1373 = vshrl.u32 %v1372, 7
    %v1374 = vsub.s32 %v1371, %v1373
    %v1375 = vrot.slane %v1361, %v1374
    %v1376 = vcombine.low %v1352, %v1368
    %v1377 = vcombine.high %v1352, %v1368
    %v1379 = vunpack.c.l.s4 1934713408
    %v1380 = vunpack.c.0.s8 %v1379
    %v1381 = vlaneseq
    %v1382 = vshrl.u32 %v1381, 7
    %v1383 = vsub.s32 %v1380, %v1382
    %v1384 = vrot.slane %v1376, %v1383
    %v1386 = vunpack.c.l.s4 1934713408
    %v1387 = vunpack.c.0.s8 %v1386
    %v1388 = vlaneseq
    %v1389 = vshrl.u32 %v1388, 7
    %v1390 = vsub.s32 %v1387, %v1389
    %v1391 = vrot.slane %v1377, %v1390
    %v1392 = vcombine.low %v1359, %v1375
    %v1393 = vcombine.high %v1359, %v1375
    %v1395 = vunpack.c.l.s4 1934713408
    %v1396 = vunpack.c.0.s8 %v1395
    %v1397 = vlaneseq
    %v1398 = vshrl.u32 %v1397, 7
    %v1399 = vsub.s32 %v1396, %v1398
    %v1400 = vrot.slane %v1392, %v1399
    %v1402 = vunpack.c.l.s4 1934713408
    %v1403 = vunpack.c.0.s8 %v1402
    %v1404 = vlaneseq
    %v1405 = vshrl.u32 %v1404, 7
    %v1406 = vsub.s32 %v1403, %v1405
    %v1407 = vrot.slane %v1393, %v1406
    %v1408 = vcombine.high %v1384, 0.0
    %v1409 = vcombine.high %v1391, 0.0
    %v1410 = vcombine.high %v1400, 0.0
    %v1411 = vcombine.high %v1407, 0.0
    %v1412 = vcombine.low %v567, %v1257
    %v1413 = vcombine.high %v567, %v1257
    %v1415 = vunpack.c.l.s4 1983009808
    %v1416 = vunpack.c.0.s8 %v1415
    %v1417 = vlaneseq
    %v1418 = vshrl.u32 %v1417, 7
    %v1419 = vsub.s32 %v1416, %v1418
    %v1420 = vrot.slane %v1412, %v1419
    %v1422 = vunpack.c.l.s4 1983009808
    %v1423 = vunpack.c.0.s8 %v1422
    %v1424 = vlaneseq
    %v1425 = vshrl.u32 %v1424, 7
    %v1426 = vsub.s32 %v1423, %v1425
    %v1427 = vrot.slane %v1413, %v1426
    %v1428 = vcombine.low %v1245, %v1269
    %v1429 = vcombine.high %v1245, %v1269
    %v1431 = vunpack.c.l.s4 1983009808
    %v1432 = vunpack.c.0.s8 %v1431
    %v1433 = vlaneseq
    %v1434 = vshrl.u32 %v1433, 7
    %v1435 = vsub.s32 %v1432, %v1434
    %v1436 = vrot.slane %v1428, %v1435
    %v1438 = vunpack.c.l.s4 1983009808
    %v1439 = vunpack.c.0.s8 %v1438
    %v1440 = vlaneseq
    %v1441 = vshrl.u32 %v1440, 7
    %v1442 = vsub.s32 %v1439, %v1441
    %v1443 = vrot.slane %v1429, %v1442
    %v1444 = vcombine.low %v1420, %v1436
    %v1445 = vcombine.high %v1420, %v1436
    %v1447 = vunpack.c.l.s4 1934713408
    %v1448 = vunpack.c.0.s8 %v1447
    %v1449 = vlaneseq
    %v1450 = vshrl.u32 %v1449, 7
    %v1451 = vsub.s32 %v1448, %v1450
    %v1452 = vrot.slane %v1444, %v1451
    %v1454 = vunpack.c.l.s4 1934713408
    %v1455 = vunpack.c.0.s8 %v1454
    %v1456 = vlaneseq
    %v1457 = vshrl.u32 %v1456, 7
    %v1458 = vsub.s32 %v1455, %v1457
    %v1459 = vrot.slane %v1445, %v1458
    %v1460 = vcombine.low %v1427, %v1443
    %v1461 = vcombine.high %v1427, %v1443
    %v1463 = vunpack.c.l.s4 1934713408
    %v1464 = vunpack.c.0.s8 %v1463
    %v1465 = vlaneseq
    %v1466 = vshrl.u32 %v1465, 7
    %v1467 = vsub.s32 %v1464, %v1466
    %v1468 = vrot.slane %v1460, %v1467
    %v1470 = vunpack.c.l.s4 1934713408
    %v1471 = vunpack.c.0.s8 %v1470
    %v1472 = vlaneseq
    %v1473 = vshrl.u32 %v1472, 7
    %v1474 = vsub.s32 %v1471, %v1473
    %v1475 = vrot.slane %v1461, %v1474
    %v1476 = vcombine.high %v1452, 0.0
    %v1477 = vcombine.high %v1459, 0.0
    %v1478 = vcombine.high %v1468, 0.0
    %v1479 = vcombine.high %v1475, 0.0
    %v1480 = vcombine.low %v570, %v1259
    %v1481 = vcombine.high %v570, %v1259
    %v1483 = vunpack.c.l.s4 1983009808
    %v1484 = vunpack.c.0.s8 %v1483
    %v1485 = vlaneseq
    %v1486 = vshrl.u32 %v1485, 7
    %v1487 = vsub.s32 %v1484, %v1486
    %v1488 = vrot.slane %v1480, %v1487
    %v1490 = vunpack.c.l.s4 1983009808
    %v1491 = vunpack.c.0.s8 %v1490
    %v1492 = vlaneseq
    %v1493 = vshrl.u32 %v1492, 7
    %v1494 = vsub.s32 %v1491, %v1493
    %v1495 = vrot.slane %v1481, %v1494
    %v1496 = vcombine.low %v1247, %v1271
    %v1497 = vcombine.high %v1247, %v1271
    %v1499 = vunpack.c.l.s4 1983009808
    %v1500 = vunpack.c.0.s8 %v1499
    %v1501 = vlaneseq
    %v1502 = vshrl.u32 %v1501, 7
    %v1503 = vsub.s32 %v1500, %v1502
    %v1504 = vrot.slane %v1496, %v1503
    %v1506 = vunpack.c.l.s4 1983009808
    %v1507 = vunpack.c.0.s8 %v1506
    %v1508 = vlaneseq
    %v1509 = vshrl.u32 %v1508, 7
    %v1510 = vsub.s32 %v1507, %v1509
    %v1511 = vrot.slane %v1497, %v1510
    %v1512 = vcombine.low %v1488, %v1504
    %v1513 = vcombine.high %v1488, %v1504
    %v1515 = vunpack.c.l.s4 1934713408
    %v1516 = vunpack.c.0.s8 %v1515
    %v1517 = vlaneseq
    %v1518 = vshrl.u32 %v1517, 7
    %v1519 = vsub.s32 %v1516, %v1518
    %v1520 = vrot.slane %v1512, %v1519
    %v1522 = vunpack.c.l.s4 1934713408
    %v1523 = vunpack.c.0.s8 %v1522
    %v1524 = vlaneseq
    %v1525 = vshrl.u32 %v1524, 7
    %v1526 = vsub.s32 %v1523, %v1525
    %v1527 = vrot.slane %v1513, %v1526
    %v1528 = vcombine.low %v1495, %v1511
    %v1529 = vcombine.high %v1495, %v1511
    %v1531 = vunpack.c.l.s4 1934713408
    %v1532 = vunpack.c.0.s8 %v1531
    %v1533 = vlaneseq
    %v1534 = vshrl.u32 %v1533, 7
    %v1535 = vsub.s32 %v1532, %v1534
    %v1536 = vrot.slane %v1528, %v1535
    %v1538 = vunpack.c.l.s4 1934713408
    %v1539 = vunpack.c.0.s8 %v1538
    %v1540 = vlaneseq
    %v1541 = vshrl.u32 %v1540, 7
    %v1542 = vsub.s32 %v1539, %v1541
    %v1543 = vrot.slane %v1529, %v1542
    %v1544 = vcombine.high %v1520, 0.0
    %v1545 = vcombine.high %v1527, 0.0
    %v1546 = vcombine.high %v1536, 0.0
    %v1547 = vcombine.high %v1543, 0.0
    %v1548 = vcombine.low %v1316, %v1323
    %v1550 = vunpack.c.l.s4 1983009808
    %v1551 = vunpack.c.0.s8 %v1550
    %v1552 = vlaneseq
    %v1553 = vshrl.u32 %v1552, 7
    %v1554 = vsub.s32 %v1551, %v1553
    %v1555 = vrot.slane %v1548, %v1554
    %v1556 = vcombine.low %v1340, %v1341
    %v1558 = vunpack.c.l.s4 1983009808
    %v1559 = vunpack.c.0.s8 %v1558
    %v1560 = vlaneseq
    %v1561 = vshrl.u32 %v1560, 7
    %v1562 = vsub.s32 %v1559, %v1561
    %v1563 = vrot.slane %v1556, %v1562
    %v1564 = vcombine.low %v1332, %v1339
    %v1566 = vunpack.c.l.s4 1983009808
    %v1567 = vunpack.c.0.s8 %v1566
    %v1568 = vlaneseq
    %v1569 = vshrl.u32 %v1568, 7
    %v1570 = vsub.s32 %v1567, %v1569
    %v1571 = vrot.slane %v1564, %v1570
    %v1572 = vcombine.low %v1342, %v1343
    %v1574 = vunpack.c.l.s4 1983009808
    %v1575 = vunpack.c.0.s8 %v1574
    %v1576 = vlaneseq
    %v1577 = vshrl.u32 %v1576, 7
    %v1578 = vsub.s32 %v1575, %v1577
    %v1579 = vrot.slane %v1572, %v1578
    %v1580 = vcombine.low %v1555, %v1563
    %v1581 = vcombine.high %v1555, %v1563
    %v1583 = vunpack.c.l.s4 1934713408
    %v1584 = vunpack.c.0.s8 %v1583
    %v1585 = vlaneseq
    %v1586 = vshrl.u32 %v1585, 7
    %v1587 = vsub.s32 %v1584, %v1586
    %v1588 = vrot.slane %v1580, %v1587
    %v1590 = vunpack.c.l.s4 1934713408
    %v1591 = vunpack.c.0.s8 %v1590
    %v1592 = vlaneseq
    %v1593 = vshrl.u32 %v1592, 7
    %v1594 = vsub.s32 %v1591, %v1593
    %v1595 = vrot.slane %v1581, %v1594
    %v1596 = vcombine.low %v1571, %v1579
    %v1597 = vcombine.high %v1571, %v1579
    %v1599 = vunpack.c.l.s4 1934713408
    %v1600 = vunpack.c.0.s8 %v1599
    %v1601 = vlaneseq
    %v1602 = vshrl.u32 %v1601, 7
    %v1603 = vsub.s32 %v1600, %v1602
    %v1604 = vrot.slane %v1596, %v1603
    %v1606 = vunpack.c.l.s4 1934713408
    %v1607 = vunpack.c.0.s8 %v1606
    %v1608 = vlaneseq
    %v1609 = vshrl.u32 %v1608, 7
    %v1610 = vsub.s32 %v1607, %v1609
    %v1611 = vrot.slane %v1597, %v1610
    %v1612 = vcombine.low %v1588, %v1604
    %v1613 = vcombine.high %v1588, %v1604
    %v1614 = vcombine.low %v1595, %v1611
    %v1615 = vcombine.high %v1595, %v1611
    %v1616 = vcombine.low %v1384, %v1391
    %v1618 = vunpack.c.l.s4 1983009808
    %v1619 = vunpack.c.0.s8 %v1618
    %v1620 = vlaneseq
    %v1621 = vshrl.u32 %v1620, 7
    %v1622 = vsub.s32 %v1619, %v1621
    %v1623 = vrot.slane %v1616, %v1622
    %v1624 = vcombine.low %v1408, %v1409
    %v1626 = vunpack.c.l.s4 1983009808
    %v1627 = vunpack.c.0.s8 %v1626
    %v1628 = vlaneseq
    %v1629 = vshrl.u32 %v1628, 7
    %v1630 = vsub.s32 %v1627, %v1629
    %v1631 = vrot.slane %v1624, %v1630
    %v1632 = vcombine.low %v1400, %v1407
    %v1634 = vunpack.c.l.s4 1983009808
    %v1635 = vunpack.c.0.s8 %v1634
    %v1636 = vlaneseq
    %v1637 = vshrl.u32 %v1636, 7
    %v1638 = vsub.s32 %v1635, %v1637
    %v1639 = vrot.slane %v1632, %v1638
    %v1640 = vcombine.low %v1410, %v1411
    %v1642 = vunpack.c.l.s4 1983009808
    %v1643 = vunpack.c.0.s8 %v1642
    %v1644 = vlaneseq
    %v1645 = vshrl.u32 %v1644, 7
    %v1646 = vsub.s32 %v1643, %v1645
    %v1647 = vrot.slane %v1640, %v1646
    %v1648 = vcombine.low %v1623, %v1631
    %v1649 = vcombine.high %v1623, %v1631
    %v1651 = vunpack.c.l.s4 1934713408
    %v1652 = vunpack.c.0.s8 %v1651
    %v1653 = vlaneseq
    %v1654 = vshrl.u32 %v1653, 7
    %v1655 = vsub.s32 %v1652, %v1654
    %v1656 = vrot.slane %v1648, %v1655
    %v1658 = vunpack.c.l.s4 1934713408
    %v1659 = vunpack.c.0.s8 %v1658
    %v1660 = vlaneseq
    %v1661 = vshrl.u32 %v1660, 7
    %v1662 = vsub.s32 %v1659, %v1661
    %v1663 = vrot.slane %v1649, %v1662
    %v1664 = vcombine.low %v1639, %v1647
    %v1665 = vcombine.high %v1639, %v1647
    %v1667 = vunpack.c.l.s4 1934713408
    %v1668 = vunpack.c.0.s8 %v1667
    %v1669 = vlaneseq
    %v1670 = vshrl.u32 %v1669, 7
    %v1671 = vsub.s32 %v1668, %v1670
    %v1672 = vrot.slane %v1664, %v1671
    %v1674 = vunpack.c.l.s4 1934713408
    %v1675 = vunpack.c.0.s8 %v1674
    %v1676 = vlaneseq
    %v1677 = vshrl.u32 %v1676, 7
    %v1678 = vsub.s32 %v1675, %v1677
    %v1679 = vrot.slane %v1665, %v1678
    %v1680 = vcombine.low %v1656, %v1672
    %v1681 = vcombine.high %v1656, %v1672
    %v1682 = vcombine.low %v1663, %v1679
    %v1683 = vcombine.high %v1663, %v1679
    %v1684 = vcombine.low %v1452, %v1459
    %v1686 = vunpack.c.l.s4 1983009808
    %v1687 = vunpack.c.0.s8 %v1686
    %v1688 = vlaneseq
    %v1689 = vshrl.u32 %v1688, 7
    %v1690 = vsub.s32 %v1687, %v1689
    %v1691 = vrot.slane %v1684, %v1690
    %v1692 = vcombine.low %v1476, %v1477
    %v1694 = vunpack.c.l.s4 1983009808
    %v1695 = vunpack.c.0.s8 %v1694
    %v1696 = vlaneseq
    %v1697 = vshrl.u32 %v1696, 7
    %v1698 = vsub.s32 %v1695, %v1697
    %v1699 = vrot.slane %v1692, %v1698
    %v1700 = vcombine.low %v1468, %v1475
    %v1702 = vunpack.c.l.s4 1983009808
    %v1703 = vunpack.c.0.s8 %v1702
    %v1704 = vlaneseq
    %v1705 = vshrl.u32 %v1704, 7
    %v1706 = vsub.s32 %v1703, %v1705
    %v1707 = vrot.slane %v1700, %v1706
    %v1708 = vcombine.low %v1478, %v1479
    %v1710 = vunpack.c.l.s4 1983009808
    %v1711 = vunpack.c.0.s8 %v1710
    %v1712 = vlaneseq
    %v1713 = vshrl.u32 %v1712, 7
    %v1714 = vsub.s32 %v1711, %v1713
    %v1715 = vrot.slane %v1708, %v1714
    %v1716 = vcombine.low %v1691, %v1699
    %v1717 = vcombine.high %v1691, %v1699
    %v1719 = vunpack.c.l.s4 1934713408
    %v1720 = vunpack.c.0.s8 %v1719
    %v1721 = vlaneseq
    %v1722 = vshrl.u32 %v1721, 7
    %v1723 = vsub.s32 %v1720, %v1722
    %v1724 = vrot.slane %v1716, %v1723
    %v1726 = vunpack.c.l.s4 1934713408
    %v1727 = vunpack.c.0.s8 %v1726
    %v1728 = vlaneseq
    %v1729 = vshrl.u32 %v1728, 7
    %v1730 = vsub.s32 %v1727, %v1729
    %v1731 = vrot.slane %v1717, %v1730
    %v1732 = vcombine.low %v1707, %v1715
    %v1733 = vcombine.high %v1707, %v1715
    %v1735 = vunpack.c.l.s4 1934713408
    %v1736 = vunpack.c.0.s8 %v1735
    %v1737 = vlaneseq
    %v1738 = vshrl.u32 %v1737, 7
    %v1739 = vsub.s32 %v1736, %v1738
    %v1740 = vrot.slane %v1732, %v1739
    %v1742 = vunpack.c.l.s4 1934713408
    %v1743 = vunpack.c.0.s8 %v1742
    %v1744 = vlaneseq
    %v1745 = vshrl.u32 %v1744, 7
    %v1746 = vsub.s32 %v1743, %v1745
    %v1747 = vrot.slane %v1733, %v1746
    %v1748 = vcombine.low %v1724, %v1740
    %v1749 = vcombine.high %v1724, %v1740
    %v1750 = vcombine.low %v1731, %v1747
    %v1751 = vcombine.high %v1731, %v1747
    %v1752 = vcombine.low %v1520, %v1527
    %v1754 = vunpack.c.l.s4 1983009808
    %v1755 = vunpack.c.0.s8 %v1754
    %v1756 = vlaneseq
    %v1757 = vshrl.u32 %v1756, 7
    %v1758 = vsub.s32 %v1755, %v1757
    %v1759 = vrot.slane %v1752, %v1758
    %v1760 = vcombine.low %v1544, %v1545
    %v1762 = vunpack.c.l.s4 1983009808
    %v1763 = vunpack.c.0.s8 %v1762
    %v1764 = vlaneseq
    %v1765 = vshrl.u32 %v1764, 7
    %v1766 = vsub.s32 %v1763, %v1765
    %v1767 = vrot.slane %v1760, %v1766
    %v1768 = vcombine.low %v1536, %v1543
    %v1770 = vunpack.c.l.s4 1983009808
    %v1771 = vunpack.c.0.s8 %v1770
    %v1772 = vlaneseq
    %v1773 = vshrl.u32 %v1772, 7
    %v1774 = vsub.s32 %v1771, %v1773
    %v1775 = vrot.slane %v1768, %v1774
    %v1776 = vcombine.low %v1546, %v1547
    %v1778 = vunpack.c.l.s4 1983009808
    %v1779 = vunpack.c.0.s8 %v1778
    %v1780 = vlaneseq
    %v1781 = vshrl.u32 %v1780, 7
    %v1782 = vsub.s32 %v1779, %v1781
    %v1783 = vrot.slane %v1776, %v1782
    %v1784 = vcombine.low %v1759, %v1767
    %v1785 = vcombine.high %v1759, %v1767
    %v1787 = vunpack.c.l.s4 1934713408
    %v1788 = vunpack.c.0.s8 %v1787
    %v1789 = vlaneseq
    %v1790 = vshrl.u32 %v1789, 7
    %v1791 = vsub.s32 %v1788, %v1790
    %v1792 = vrot.slane %v1784, %v1791
    %v1794 = vunpack.c.l.s4 1934713408
    %v1795 = vunpack.c.0.s8 %v1794
    %v1796 = vlaneseq
    %v1797 = vshrl.u32 %v1796, 7
    %v1798 = vsub.s32 %v1795, %v1797
    %v1799 = vrot.slane %v1785, %v1798
    %v1800 = vcombine.low %v1775, %v1783
    %v1801 = vcombine.high %v1775, %v1783
    %v1803 = vunpack.c.l.s4 1934713408
    %v1804 = vunpack.c.0.s8 %v1803
    %v1805 = vlaneseq
    %v1806 = vshrl.u32 %v1805, 7
    %v1807 = vsub.s32 %v1804, %v1806
    %v1808 = vrot.slane %v1800, %v1807
    %v1810 = vunpack.c.l.s4 1934713408
    %v1811 = vunpack.c.0.s8 %v1810
    %v1812 = vlaneseq
    %v1813 = vshrl.u32 %v1812, 7
    %v1814 = vsub.s32 %v1811, %v1813
    %v1815 = vrot.slane %v1801, %v1814
    %v1816 = vcombine.low %v1792, %v1808
    %v1817 = vcombine.high %v1792, %v1808
    %v1818 = vcombine.low %v1799, %v1815
    %v1819 = vcombine.high %v1799, %v1815
    %1824 = vrot.lane.b32.xlu0 %v638, 112
    %v1825 = vpop.permute.xlu0 %1824
    %1826 = vrot.lane.b32.xlu0 %v641, 112
    %v1827 = vpop.permute.xlu0 %1826
    %1828 = vrot.lane.b32.xlu0 %v646, 112
    %v1829 = vpop.permute.xlu0 %1828
    %1830 = vrot.lane.b32.xlu0 %v649, 112
    %v1831 = vpop.permute.xlu0 %1830
    %1836 = vrot.lane.b32.xlu0 %v638, 96
    %v1837 = vpop.permute.xlu0 %1836
    %1838 = vrot.lane.b32.xlu0 %v641, 96
    %v1839 = vpop.permute.xlu0 %1838
    %1840 = vrot.lane.b32.xlu0 %v646, 96
    %v1841 = vpop.permute.xlu0 %1840
    %1842 = vrot.lane.b32.xlu0 %v649, 96
    %v1843 = vpop.permute.xlu0 %1842
    %1848 = vrot.lane.b32.xlu0 %v638, 80
    %v1849 = vpop.permute.xlu0 %1848
    %1850 = vrot.lane.b32.xlu0 %v641, 80
    %v1851 = vpop.permute.xlu0 %1850
    %1852 = vrot.lane.b32.xlu0 %v646, 80
    %v1853 = vpop.permute.xlu0 %1852
    %1854 = vrot.lane.b32.xlu0 %v649, 80
    %v1855 = vpop.permute.xlu0 %1854
    %v1860 = vcombine.low %v638, %v1837
    %v1861 = vcombine.high %v638, %v1837
    %v1863 = vunpack.c.l.s4 1983009808
    %v1864 = vunpack.c.0.s8 %v1863
    %v1865 = vlaneseq
    %v1866 = vshrl.u32 %v1865, 7
    %v1867 = vsub.s32 %v1864, %v1866
    %v1868 = vrot.slane %v1860, %v1867
    %v1870 = vunpack.c.l.s4 1983009808
    %v1871 = vunpack.c.0.s8 %v1870
    %v1872 = vlaneseq
    %v1873 = vshrl.u32 %v1872, 7
    %v1874 = vsub.s32 %v1871, %v1873
    %v1875 = vrot.slane %v1861, %v1874
    %v1876 = vcombine.low %v1825, %v1849
    %v1877 = vcombine.high %v1825, %v1849
    %v1879 = vunpack.c.l.s4 1983009808
    %v1880 = vunpack.c.0.s8 %v1879
    %v1881 = vlaneseq
    %v1882 = vshrl.u32 %v1881, 7
    %v1883 = vsub.s32 %v1880, %v1882
    %v1884 = vrot.slane %v1876, %v1883
    %v1886 = vunpack.c.l.s4 1983009808
    %v1887 = vunpack.c.0.s8 %v1886
    %v1888 = vlaneseq
    %v1889 = vshrl.u32 %v1888, 7
    %v1890 = vsub.s32 %v1887, %v1889
    %v1891 = vrot.slane %v1877, %v1890
    %v1892 = vcombine.low %v1868, %v1884
    %v1893 = vcombine.high %v1868, %v1884
    %v1895 = vunpack.c.l.s4 1934713408
    %v1896 = vunpack.c.0.s8 %v1895
    %v1897 = vlaneseq
    %v1898 = vshrl.u32 %v1897, 7
    %v1899 = vsub.s32 %v1896, %v1898
    %v1900 = vrot.slane %v1892, %v1899
    %v1902 = vunpack.c.l.s4 1934713408
    %v1903 = vunpack.c.0.s8 %v1902
    %v1904 = vlaneseq
    %v1905 = vshrl.u32 %v1904, 7
    %v1906 = vsub.s32 %v1903, %v1905
    %v1907 = vrot.slane %v1893, %v1906
    %v1908 = vcombine.low %v1875, %v1891
    %v1909 = vcombine.high %v1875, %v1891
    %v1911 = vunpack.c.l.s4 1934713408
    %v1912 = vunpack.c.0.s8 %v1911
    %v1913 = vlaneseq
    %v1914 = vshrl.u32 %v1913, 7
    %v1915 = vsub.s32 %v1912, %v1914
    %v1916 = vrot.slane %v1908, %v1915
    %v1918 = vunpack.c.l.s4 1934713408
    %v1919 = vunpack.c.0.s8 %v1918
    %v1920 = vlaneseq
    %v1921 = vshrl.u32 %v1920, 7
    %v1922 = vsub.s32 %v1919, %v1921
    %v1923 = vrot.slane %v1909, %v1922
    %v1924 = vcombine.high %v1900, 0.0
    %v1925 = vcombine.high %v1907, 0.0
    %v1926 = vcombine.high %v1916, 0.0
    %v1927 = vcombine.high %v1923, 0.0
    %v1928 = vcombine.low %v641, %v1839
    %v1929 = vcombine.high %v641, %v1839
    %v1931 = vunpack.c.l.s4 1983009808
    %v1932 = vunpack.c.0.s8 %v1931
    %v1933 = vlaneseq
    %v1934 = vshrl.u32 %v1933, 7
    %v1935 = vsub.s32 %v1932, %v1934
    %v1936 = vrot.slane %v1928, %v1935
    %v1938 = vunpack.c.l.s4 1983009808
    %v1939 = vunpack.c.0.s8 %v1938
    %v1940 = vlaneseq
    %v1941 = vshrl.u32 %v1940, 7
    %v1942 = vsub.s32 %v1939, %v1941
    %v1943 = vrot.slane %v1929, %v1942
    %v1944 = vcombine.low %v1827, %v1851
    %v1945 = vcombine.high %v1827, %v1851
    %v1947 = vunpack.c.l.s4 1983009808
    %v1948 = vunpack.c.0.s8 %v1947
    %v1949 = vlaneseq
    %v1950 = vshrl.u32 %v1949, 7
    %v1951 = vsub.s32 %v1948, %v1950
    %v1952 = vrot.slane %v1944, %v1951
    %v1954 = vunpack.c.l.s4 1983009808
    %v1955 = vunpack.c.0.s8 %v1954
    %v1956 = vlaneseq
    %v1957 = vshrl.u32 %v1956, 7
    %v1958 = vsub.s32 %v1955, %v1957
    %v1959 = vrot.slane %v1945, %v1958
    %v1960 = vcombine.low %v1936, %v1952
    %v1961 = vcombine.high %v1936, %v1952
    %v1963 = vunpack.c.l.s4 1934713408
    %v1964 = vunpack.c.0.s8 %v1963
    %v1965 = vlaneseq
    %v1966 = vshrl.u32 %v1965, 7
    %v1967 = vsub.s32 %v1964, %v1966
    %v1968 = vrot.slane %v1960, %v1967
    %v1970 = vunpack.c.l.s4 1934713408
    %v1971 = vunpack.c.0.s8 %v1970
    %v1972 = vlaneseq
    %v1973 = vshrl.u32 %v1972, 7
    %v1974 = vsub.s32 %v1971, %v1973
    %v1975 = vrot.slane %v1961, %v1974
    %v1976 = vcombine.low %v1943, %v1959
    %v1977 = vcombine.high %v1943, %v1959
    %v1979 = vunpack.c.l.s4 1934713408
    %v1980 = vunpack.c.0.s8 %v1979
    %v1981 = vlaneseq
    %v1982 = vshrl.u32 %v1981, 7
    %v1983 = vsub.s32 %v1980, %v1982
    %v1984 = vrot.slane %v1976, %v1983
    %v1986 = vunpack.c.l.s4 1934713408
    %v1987 = vunpack.c.0.s8 %v1986
    %v1988 = vlaneseq
    %v1989 = vshrl.u32 %v1988, 7
    %v1990 = vsub.s32 %v1987, %v1989
    %v1991 = vrot.slane %v1977, %v1990
    %v1992 = vcombine.high %v1968, 0.0
    %v1993 = vcombine.high %v1975, 0.0
    %v1994 = vcombine.high %v1984, 0.0
    %v1995 = vcombine.high %v1991, 0.0
    %v1996 = vcombine.low %v646, %v1841
    %v1997 = vcombine.high %v646, %v1841
    %v1999 = vunpack.c.l.s4 1983009808
    %v2000 = vunpack.c.0.s8 %v1999
    %v2001 = vlaneseq
    %v2002 = vshrl.u32 %v2001, 7
    %v2003 = vsub.s32 %v2000, %v2002
    %v2004 = vrot.slane %v1996, %v2003
    %v2006 = vunpack.c.l.s4 1983009808
    %v2007 = vunpack.c.0.s8 %v2006
    %v2008 = vlaneseq
    %v2009 = vshrl.u32 %v2008, 7
    %v2010 = vsub.s32 %v2007, %v2009
    %v2011 = vrot.slane %v1997, %v2010
    %v2012 = vcombine.low %v1829, %v1853
    %v2013 = vcombine.high %v1829, %v1853
    %v2015 = vunpack.c.l.s4 1983009808
    %v2016 = vunpack.c.0.s8 %v2015
    %v2017 = vlaneseq
    %v2018 = vshrl.u32 %v2017, 7
    %v2019 = vsub.s32 %v2016, %v2018
    %v2020 = vrot.slane %v2012, %v2019
    %v2022 = vunpack.c.l.s4 1983009808
    %v2023 = vunpack.c.0.s8 %v2022
    %v2024 = vlaneseq
    %v2025 = vshrl.u32 %v2024, 7
    %v2026 = vsub.s32 %v2023, %v2025
    %v2027 = vrot.slane %v2013, %v2026
    %v2028 = vcombine.low %v2004, %v2020
    %v2029 = vcombine.high %v2004, %v2020
    %v2031 = vunpack.c.l.s4 1934713408
    %v2032 = vunpack.c.0.s8 %v2031
    %v2033 = vlaneseq
    %v2034 = vshrl.u32 %v2033, 7
    %v2035 = vsub.s32 %v2032, %v2034
    %v2036 = vrot.slane %v2028, %v2035
    %v2038 = vunpack.c.l.s4 1934713408
    %v2039 = vunpack.c.0.s8 %v2038
    %v2040 = vlaneseq
    %v2041 = vshrl.u32 %v2040, 7
    %v2042 = vsub.s32 %v2039, %v2041
    %v2043 = vrot.slane %v2029, %v2042
    %v2044 = vcombine.low %v2011, %v2027
    %v2045 = vcombine.high %v2011, %v2027
    %v2047 = vunpack.c.l.s4 1934713408
    %v2048 = vunpack.c.0.s8 %v2047
    %v2049 = vlaneseq
    %v2050 = vshrl.u32 %v2049, 7
    %v2051 = vsub.s32 %v2048, %v2050
    %v2052 = vrot.slane %v2044, %v2051
    %v2054 = vunpack.c.l.s4 1934713408
    %v2055 = vunpack.c.0.s8 %v2054
    %v2056 = vlaneseq
    %v2057 = vshrl.u32 %v2056, 7
    %v2058 = vsub.s32 %v2055, %v2057
    %v2059 = vrot.slane %v2045, %v2058
    %v2060 = vcombine.high %v2036, 0.0
    %v2061 = vcombine.high %v2043, 0.0
    %v2062 = vcombine.high %v2052, 0.0
    %v2063 = vcombine.high %v2059, 0.0
    %v2064 = vcombine.low %v649, %v1843
    %v2065 = vcombine.high %v649, %v1843
    %v2067 = vunpack.c.l.s4 1983009808
    %v2068 = vunpack.c.0.s8 %v2067
    %v2069 = vlaneseq
    %v2070 = vshrl.u32 %v2069, 7
    %v2071 = vsub.s32 %v2068, %v2070
    %v2072 = vrot.slane %v2064, %v2071
    %v2074 = vunpack.c.l.s4 1983009808
    %v2075 = vunpack.c.0.s8 %v2074
    %v2076 = vlaneseq
    %v2077 = vshrl.u32 %v2076, 7
    %v2078 = vsub.s32 %v2075, %v2077
    %v2079 = vrot.slane %v2065, %v2078
    %v2080 = vcombine.low %v1831, %v1855
    %v2081 = vcombine.high %v1831, %v1855
    %v2083 = vunpack.c.l.s4 1983009808
    %v2084 = vunpack.c.0.s8 %v2083
    %v2085 = vlaneseq
    %v2086 = vshrl.u32 %v2085, 7
    %v2087 = vsub.s32 %v2084, %v2086
    %v2088 = vrot.slane %v2080, %v2087
    %v2090 = vunpack.c.l.s4 1983009808
    %v2091 = vunpack.c.0.s8 %v2090
    %v2092 = vlaneseq
    %v2093 = vshrl.u32 %v2092, 7
    %v2094 = vsub.s32 %v2091, %v2093
    %v2095 = vrot.slane %v2081, %v2094
    %v2096 = vcombine.low %v2072, %v2088
    %v2097 = vcombine.high %v2072, %v2088
    %v2099 = vunpack.c.l.s4 1934713408
    %v2100 = vunpack.c.0.s8 %v2099
    %v2101 = vlaneseq
    %v2102 = vshrl.u32 %v2101, 7
    %v2103 = vsub.s32 %v2100, %v2102
    %v2104 = vrot.slane %v2096, %v2103
    %v2106 = vunpack.c.l.s4 1934713408
    %v2107 = vunpack.c.0.s8 %v2106
    %v2108 = vlaneseq
    %v2109 = vshrl.u32 %v2108, 7
    %v2110 = vsub.s32 %v2107, %v2109
    %v2111 = vrot.slane %v2097, %v2110
    %v2112 = vcombine.low %v2079, %v2095
    %v2113 = vcombine.high %v2079, %v2095
    %v2115 = vunpack.c.l.s4 1934713408
    %v2116 = vunpack.c.0.s8 %v2115
    %v2117 = vlaneseq
    %v2118 = vshrl.u32 %v2117, 7
    %v2119 = vsub.s32 %v2116, %v2118
    %v2120 = vrot.slane %v2112, %v2119
    %v2122 = vunpack.c.l.s4 1934713408
    %v2123 = vunpack.c.0.s8 %v2122
    %v2124 = vlaneseq
    %v2125 = vshrl.u32 %v2124, 7
    %v2126 = vsub.s32 %v2123, %v2125
    %v2127 = vrot.slane %v2113, %v2126
    %v2128 = vcombine.high %v2104, 0.0
    %v2129 = vcombine.high %v2111, 0.0
    %v2130 = vcombine.high %v2120, 0.0
    %v2131 = vcombine.high %v2127, 0.0
    %v2132 = vcombine.low %v1900, %v1907
    %v2134 = vunpack.c.l.s4 1983009808
    %v2135 = vunpack.c.0.s8 %v2134
    %v2136 = vlaneseq
    %v2137 = vshrl.u32 %v2136, 7
    %v2138 = vsub.s32 %v2135, %v2137
    %v2139 = vrot.slane %v2132, %v2138
    %v2140 = vcombine.low %v1924, %v1925
    %v2142 = vunpack.c.l.s4 1983009808
    %v2143 = vunpack.c.0.s8 %v2142
    %v2144 = vlaneseq
    %v2145 = vshrl.u32 %v2144, 7
    %v2146 = vsub.s32 %v2143, %v2145
    %v2147 = vrot.slane %v2140, %v2146
    %v2148 = vcombine.low %v1916, %v1923
    %v2150 = vunpack.c.l.s4 1983009808
    %v2151 = vunpack.c.0.s8 %v2150
    %v2152 = vlaneseq
    %v2153 = vshrl.u32 %v2152, 7
    %v2154 = vsub.s32 %v2151, %v2153
    %v2155 = vrot.slane %v2148, %v2154
    %v2156 = vcombine.low %v1926, %v1927
    %v2158 = vunpack.c.l.s4 1983009808
    %v2159 = vunpack.c.0.s8 %v2158
    %v2160 = vlaneseq
    %v2161 = vshrl.u32 %v2160, 7
    %v2162 = vsub.s32 %v2159, %v2161
    %v2163 = vrot.slane %v2156, %v2162
    %v2164 = vcombine.low %v2139, %v2147
    %v2165 = vcombine.high %v2139, %v2147
    %v2167 = vunpack.c.l.s4 1934713408
    %v2168 = vunpack.c.0.s8 %v2167
    %v2169 = vlaneseq
    %v2170 = vshrl.u32 %v2169, 7
    %v2171 = vsub.s32 %v2168, %v2170
    %v2172 = vrot.slane %v2164, %v2171
    %v2174 = vunpack.c.l.s4 1934713408
    %v2175 = vunpack.c.0.s8 %v2174
    %v2176 = vlaneseq
    %v2177 = vshrl.u32 %v2176, 7
    %v2178 = vsub.s32 %v2175, %v2177
    %v2179 = vrot.slane %v2165, %v2178
    %v2180 = vcombine.low %v2155, %v2163
    %v2181 = vcombine.high %v2155, %v2163
    %v2183 = vunpack.c.l.s4 1934713408
    %v2184 = vunpack.c.0.s8 %v2183
    %v2185 = vlaneseq
    %v2186 = vshrl.u32 %v2185, 7
    %v2187 = vsub.s32 %v2184, %v2186
    %v2188 = vrot.slane %v2180, %v2187
    %v2190 = vunpack.c.l.s4 1934713408
    %v2191 = vunpack.c.0.s8 %v2190
    %v2192 = vlaneseq
    %v2193 = vshrl.u32 %v2192, 7
    %v2194 = vsub.s32 %v2191, %v2193
    %v2195 = vrot.slane %v2181, %v2194
    %v2196 = vcombine.low %v2172, %v2188
    %v2197 = vcombine.high %v2172, %v2188
    %v2198 = vcombine.low %v2179, %v2195
    %v2199 = vcombine.high %v2179, %v2195
    %v2200 = vcombine.low %v1968, %v1975
    %v2202 = vunpack.c.l.s4 1983009808
    %v2203 = vunpack.c.0.s8 %v2202
    %v2204 = vlaneseq
    %v2205 = vshrl.u32 %v2204, 7
    %v2206 = vsub.s32 %v2203, %v2205
    %v2207 = vrot.slane %v2200, %v2206
    %v2208 = vcombine.low %v1992, %v1993
    %v2210 = vunpack.c.l.s4 1983009808
    %v2211 = vunpack.c.0.s8 %v2210
    %v2212 = vlaneseq
    %v2213 = vshrl.u32 %v2212, 7
    %v2214 = vsub.s32 %v2211, %v2213
    %v2215 = vrot.slane %v2208, %v2214
    %v2216 = vcombine.low %v1984, %v1991
    %v2218 = vunpack.c.l.s4 1983009808
    %v2219 = vunpack.c.0.s8 %v2218
    %v2220 = vlaneseq
    %v2221 = vshrl.u32 %v2220, 7
    %v2222 = vsub.s32 %v2219, %v2221
    %v2223 = vrot.slane %v2216, %v2222
    %v2224 = vcombine.low %v1994, %v1995
    %v2226 = vunpack.c.l.s4 1983009808
    %v2227 = vunpack.c.0.s8 %v2226
    %v2228 = vlaneseq
    %v2229 = vshrl.u32 %v2228, 7
    %v2230 = vsub.s32 %v2227, %v2229
    %v2231 = vrot.slane %v2224, %v2230
    %v2232 = vcombine.low %v2207, %v2215
    %v2233 = vcombine.high %v2207, %v2215
    %v2235 = vunpack.c.l.s4 1934713408
    %v2236 = vunpack.c.0.s8 %v2235
    %v2237 = vlaneseq
    %v2238 = vshrl.u32 %v2237, 7
    %v2239 = vsub.s32 %v2236, %v2238
    %v2240 = vrot.slane %v2232, %v2239
    %v2242 = vunpack.c.l.s4 1934713408
    %v2243 = vunpack.c.0.s8 %v2242
    %v2244 = vlaneseq
    %v2245 = vshrl.u32 %v2244, 7
    %v2246 = vsub.s32 %v2243, %v2245
    %v2247 = vrot.slane %v2233, %v2246
    %v2248 = vcombine.low %v2223, %v2231
    %v2249 = vcombine.high %v2223, %v2231
    %v2251 = vunpack.c.l.s4 1934713408
    %v2252 = vunpack.c.0.s8 %v2251
    %v2253 = vlaneseq
    %v2254 = vshrl.u32 %v2253, 7
    %v2255 = vsub.s32 %v2252, %v2254
    %v2256 = vrot.slane %v2248, %v2255
    %v2258 = vunpack.c.l.s4 1934713408
    %v2259 = vunpack.c.0.s8 %v2258
    %v2260 = vlaneseq
    %v2261 = vshrl.u32 %v2260, 7
    %v2262 = vsub.s32 %v2259, %v2261
    %v2263 = vrot.slane %v2249, %v2262
    %v2264 = vcombine.low %v2240, %v2256
    %v2265 = vcombine.high %v2240, %v2256
    %v2266 = vcombine.low %v2247, %v2263
    %v2267 = vcombine.high %v2247, %v2263
    %v2268 = vcombine.low %v2036, %v2043
    %v2270 = vunpack.c.l.s4 1983009808
    %v2271 = vunpack.c.0.s8 %v2270
    %v2272 = vlaneseq
    %v2273 = vshrl.u32 %v2272, 7
    %v2274 = vsub.s32 %v2271, %v2273
    %v2275 = vrot.slane %v2268, %v2274
    %v2276 = vcombine.low %v2060, %v2061
    %v2278 = vunpack.c.l.s4 1983009808
    %v2279 = vunpack.c.0.s8 %v2278
    %v2280 = vlaneseq
    %v2281 = vshrl.u32 %v2280, 7
    %v2282 = vsub.s32 %v2279, %v2281
    %v2283 = vrot.slane %v2276, %v2282
    %v2284 = vcombine.low %v2052, %v2059
    %v2286 = vunpack.c.l.s4 1983009808
    %v2287 = vunpack.c.0.s8 %v2286
    %v2288 = vlaneseq
    %v2289 = vshrl.u32 %v2288, 7
    %v2290 = vsub.s32 %v2287, %v2289
    %v2291 = vrot.slane %v2284, %v2290
    %v2292 = vcombine.low %v2062, %v2063
    %v2294 = vunpack.c.l.s4 1983009808
    %v2295 = vunpack.c.0.s8 %v2294
    %v2296 = vlaneseq
    %v2297 = vshrl.u32 %v2296, 7
    %v2298 = vsub.s32 %v2295, %v2297
    %v2299 = vrot.slane %v2292, %v2298
    %v2300 = vcombine.low %v2275, %v2283
    %v2301 = vcombine.high %v2275, %v2283
    %v2303 = vunpack.c.l.s4 1934713408
    %v2304 = vunpack.c.0.s8 %v2303
    %v2305 = vlaneseq
    %v2306 = vshrl.u32 %v2305, 7
    %v2307 = vsub.s32 %v2304, %v2306
    %v2308 = vrot.slane %v2300, %v2307
    %v2310 = vunpack.c.l.s4 1934713408
    %v2311 = vunpack.c.0.s8 %v2310
    %v2312 = vlaneseq
    %v2313 = vshrl.u32 %v2312, 7
    %v2314 = vsub.s32 %v2311, %v2313
    %v2315 = vrot.slane %v2301, %v2314
    %v2316 = vcombine.low %v2291, %v2299
    %v2317 = vcombine.high %v2291, %v2299
    %v2319 = vunpack.c.l.s4 1934713408
    %v2320 = vunpack.c.0.s8 %v2319
    %v2321 = vlaneseq
    %v2322 = vshrl.u32 %v2321, 7
    %v2323 = vsub.s32 %v2320, %v2322
    %v2324 = vrot.slane %v2316, %v2323
    %v2326 = vunpack.c.l.s4 1934713408
    %v2327 = vunpack.c.0.s8 %v2326
    %v2328 = vlaneseq
    %v2329 = vshrl.u32 %v2328, 7
    %v2330 = vsub.s32 %v2327, %v2329
    %v2331 = vrot.slane %v2317, %v2330
    %v2332 = vcombine.low %v2308, %v2324
    %v2333 = vcombine.high %v2308, %v2324
    %v2334 = vcombine.low %v2315, %v2331
    %v2335 = vcombine.high %v2315, %v2331
    %v2336 = vcombine.low %v2104, %v2111
    %v2338 = vunpack.c.l.s4 1983009808
    %v2339 = vunpack.c.0.s8 %v2338
    %v2340 = vlaneseq
    %v2341 = vshrl.u32 %v2340, 7
    %v2342 = vsub.s32 %v2339, %v2341
    %v2343 = vrot.slane %v2336, %v2342
    %v2344 = vcombine.low %v2128, %v2129
    %v2346 = vunpack.c.l.s4 1983009808
    %v2347 = vunpack.c.0.s8 %v2346
    %v2348 = vlaneseq
    %v2349 = vshrl.u32 %v2348, 7
    %v2350 = vsub.s32 %v2347, %v2349
    %v2351 = vrot.slane %v2344, %v2350
    %v2352 = vcombine.low %v2120, %v2127
    %v2354 = vunpack.c.l.s4 1983009808
    %v2355 = vunpack.c.0.s8 %v2354
    %v2356 = vlaneseq
    %v2357 = vshrl.u32 %v2356, 7
    %v2358 = vsub.s32 %v2355, %v2357
    %v2359 = vrot.slane %v2352, %v2358
    %v2360 = vcombine.low %v2130, %v2131
    %v2362 = vunpack.c.l.s4 1983009808
    %v2363 = vunpack.c.0.s8 %v2362
    %v2364 = vlaneseq
    %v2365 = vshrl.u32 %v2364, 7
    %v2366 = vsub.s32 %v2363, %v2365
    %v2367 = vrot.slane %v2360, %v2366
    %v2368 = vcombine.low %v2343, %v2351
    %v2369 = vcombine.high %v2343, %v2351
    %v2371 = vunpack.c.l.s4 1934713408
    %v2372 = vunpack.c.0.s8 %v2371
    %v2373 = vlaneseq
    %v2374 = vshrl.u32 %v2373, 7
    %v2375 = vsub.s32 %v2372, %v2374
    %v2376 = vrot.slane %v2368, %v2375
    %v2378 = vunpack.c.l.s4 1934713408
    %v2379 = vunpack.c.0.s8 %v2378
    %v2380 = vlaneseq
    %v2381 = vshrl.u32 %v2380, 7
    %v2382 = vsub.s32 %v2379, %v2381
    %v2383 = vrot.slane %v2369, %v2382
    %v2384 = vcombine.low %v2359, %v2367
    %v2385 = vcombine.high %v2359, %v2367
    %v2387 = vunpack.c.l.s4 1934713408
    %v2388 = vunpack.c.0.s8 %v2387
    %v2389 = vlaneseq
    %v2390 = vshrl.u32 %v2389, 7
    %v2391 = vsub.s32 %v2388, %v2390
    %v2392 = vrot.slane %v2384, %v2391
    %v2394 = vunpack.c.l.s4 1934713408
    %v2395 = vunpack.c.0.s8 %v2394
    %v2396 = vlaneseq
    %v2397 = vshrl.u32 %v2396, 7
    %v2398 = vsub.s32 %v2395, %v2397
    %v2399 = vrot.slane %v2385, %v2398
    %v2400 = vcombine.low %v2376, %v2392
    %v2401 = vcombine.high %v2376, %v2392
    %v2402 = vcombine.low %v2383, %v2399
    %v2403 = vcombine.high %v2383, %v2399
    %v2404 = vpack.c.bf16 %v1096, %v1028
    %v2405 = vpack.c.bf16 %v1232, %v1164
    %v2406 = vpack.c.bf16 %v1097, %v1029
    %v2407 = vpack.c.bf16 %v1233, %v1165
    %v2408 = vpack.c.bf16 %v1098, %v1030
    %v2409 = vpack.c.bf16 %v1234, %v1166
    %v2410 = vpack.c.bf16 %v1099, %v1031
    %v2411 = vpack.c.bf16 %v1235, %v1167
    %v2412 = vpack.c.bf16 %v1680, %v1612
    %v2413 = vpack.c.bf16 %v1816, %v1748
    %v2414 = vpack.c.bf16 %v1681, %v1613
    %v2415 = vpack.c.bf16 %v1817, %v1749
    %v2416 = vpack.c.bf16 %v1682, %v1614
    %v2417 = vpack.c.bf16 %v1818, %v1750
    %v2418 = vpack.c.bf16 %v1683, %v1615
    %v2419 = vpack.c.bf16 %v1819, %v1751
    %vm2420 = vcmask 130048
    %v2422 = vsel %vm2420, %v2404, 0
    %v2425 = vsel %vm2420, %v2405, 0
    %v2428 = vsel %vm2420, %v2412, 0
    %v2431 = vsel %vm2420, %v2413, 0
    %2433 = vmatprep.subr.bf16.mxu0 0
    %2434 = vmatpush1.bf16.xpose.msra.mxu0 %v2428
    %2435 = vmatprep.subr.bf16.mxu0 0
    %2436 = vmatpush1.bf16.xpose.msra.mxu0 %v2431
    %2437 = vmatprep.subr.bf16.mxu0 0
    %2438 = vmatpush1.bf16.xpose.msra.mxu0 0
    %2439 = vmatprep.subr.bf16.mxu0 0
    %2440 = vmatpush1.bf16.xpose.msra.mxu0 0
    %2441 = vmatprep.subr.bf16.mxu0 0
    %2442 = vmatpush1.bf16.xpose.msra.mxu0 0
    %2443 = vmatprep.subr.bf16.mxu0 0
    %2444 = vmatpush1.bf16.xpose.msra.mxu0 0
    %2445 = vmatprep.subr.bf16.mxu0 0
    %2446 = vmatpush1.bf16.xpose.msra.mxu0 0
    %2447 = vmatprep.subr.bf16.mxu0 0
    %2448 = vmatpush1.bf16.xpose.msra.mxu0 0
    %2449 = vmatprep.subr.bf16.mxu0 0
    %2450 = vmatpush1.bf16.xpose.msra.mxu0 0
    %2451 = vmatprep.subr.bf16.mxu0 0
    %2452 = vmatpush1.bf16.xpose.msra.mxu0 0
    %2453 = vmatprep.subr.bf16.mxu0 0
    %2454 = vmatpush1.bf16.xpose.msra.mxu0 0
    %2455 = vmatprep.subr.bf16.mxu0 0
    %2456 = vmatpush1.bf16.xpose.msra.mxu0 0
    %2457 = vmatprep.subr.bf16.mxu0 0
    %2458 = vmatpush1.bf16.xpose.msra.mxu0 0
    %2459 = vmatprep.subr.bf16.mxu0 0
    %2460 = vmatpush1.bf16.xpose.msra.mxu0 0
    %2461 = vmatprep.subr.bf16.mxu0 0
    %2462 = vmatpush1.bf16.xpose.msra.mxu0 0
    %2463 = vmatprep.subr.bf16.mxu0 0
    %2464 = vmatpush1.bf16.xpose.msra.mxu0 0
    %2465 = vmatprep.mubr.bf16.mxu0 0
    %2466 = vmatmul.mubr.bf16.gmra.mrb[0].mxu0 %v2422
    %v2467 = vpop.f32.mrb[0].mxu0
    %v2468 = vadd.f32 %v301, %v2467
    %v2469 = vpop.f32.mrb[0].mxu0
    %v2470 = vpop.f32.mrb[0].mxu0
    %v2471 = vadd.f32 %v302, %v2470
    %v2472 = vpop.f32.mrb[0].mxu0
    %2473 = vmatprep.mubr.bf16.mxu0 0
    %2474 = vmatmul.mubr.bf16.gmra.mrb[0].mxu0 %v2425
    %v2475 = vpop.f32.mrb[0].mxu0
    %v2476 = vadd.f32 %v303, %v2475
    %v2477 = vpop.f32.mrb[0].mxu0
    %v2478 = vpop.f32.mrb[0].mxu0
    %v2479 = vadd.f32 %v304, %v2478
    %v2480 = vpop.f32.mrb[0].mxu0
    %2481 = vdwg.mxu0
    %v2483 = vsel %vm2420, %v2406, 0
    %v2486 = vsel %vm2420, %v2407, 0
    %v2489 = vsel %vm2420, %v2414, 0
    %v2492 = vsel %vm2420, %v2415, 0
    %2494 = vmatprep.subr.bf16.mxu0 0
    %2495 = vmatpush1.bf16.xpose.msra.mxu0 %v2489
    %2496 = vmatprep.subr.bf16.mxu0 0
    %2497 = vmatpush1.bf16.xpose.msra.mxu0 %v2492
    %2498 = vmatprep.subr.bf16.mxu0 0
    %2499 = vmatpush1.bf16.xpose.msra.mxu0 0
    %2500 = vmatprep.subr.bf16.mxu0 0
    %2501 = vmatpush1.bf16.xpose.msra.mxu0 0
    %2502 = vmatprep.subr.bf16.mxu0 0
    %2503 = vmatpush1.bf16.xpose.msra.mxu0 0
    %2504 = vmatprep.subr.bf16.mxu0 0
    %2505 = vmatpush1.bf16.xpose.msra.mxu0 0
    %2506 = vmatprep.subr.bf16.mxu0 0
    %2507 = vmatpush1.bf16.xpose.msra.mxu0 0
    %2508 = vmatprep.subr.bf16.mxu0 0
    %2509 = vmatpush1.bf16.xpose.msra.mxu0 0
    %2510 = vmatprep.subr.bf16.mxu0 0
    %2511 = vmatpush1.bf16.xpose.msra.mxu0 0
    %2512 = vmatprep.subr.bf16.mxu0 0
    %2513 = vmatpush1.bf16.xpose.msra.mxu0 0
    %2514 = vmatprep.subr.bf16.mxu0 0
    %2515 = vmatpush1.bf16.xpose.msra.mxu0 0
    %2516 = vmatprep.subr.bf16.mxu0 0
    %2517 = vmatpush1.bf16.xpose.msra.mxu0 0
    %2518 = vmatprep.subr.bf16.mxu0 0
    %2519 = vmatpush1.bf16.xpose.msra.mxu0 0
    %2520 = vmatprep.subr.bf16.mxu0 0
    %2521 = vmatpush1.bf16.xpose.msra.mxu0 0
    %2522 = vmatprep.subr.bf16.mxu0 0
    %2523 = vmatpush1.bf16.xpose.msra.mxu0 0
    %2524 = vmatprep.subr.bf16.mxu0 0
    %2525 = vmatpush1.bf16.xpose.msra.mxu0 0
    %2526 = vmatprep.mubr.bf16.mxu0 0
    %2527 = vmatmul.mubr.bf16.gmra.mrb[0].mxu0 %v2483
    %v2528 = vpop.f32.mrb[0].mxu0
    %v2529 = vadd.f32 %v301, %v2528
    %v2530 = vpop.f32.mrb[0].mxu0
    %v2531 = vpop.f32.mrb[0].mxu0
    %v2532 = vadd.f32 %v302, %v2531
    %v2533 = vpop.f32.mrb[0].mxu0
    %2534 = vmatprep.mubr.bf16.mxu0 0
    %2535 = vmatmul.mubr.bf16.gmra.mrb[0].mxu0 %v2486
    %v2536 = vpop.f32.mrb[0].mxu0
    %v2537 = vadd.f32 %v303, %v2536
    %v2538 = vpop.f32.mrb[0].mxu0
    %v2539 = vpop.f32.mrb[0].mxu0
    %v2540 = vadd.f32 %v304, %v2539
    %v2541 = vpop.f32.mrb[0].mxu0
    %2542 = vdwg.mxu0
    %v2544 = vsel %vm2420, %v2408, 0
    %v2547 = vsel %vm2420, %v2409, 0
    %v2550 = vsel %vm2420, %v2416, 0
    %v2553 = vsel %vm2420, %v2417, 0
    %2555 = vmatprep.subr.bf16.mxu0 0
    %2556 = vmatpush1.bf16.xpose.msra.mxu0 %v2550
    %2557 = vmatprep.subr.bf16.mxu0 0
    %2558 = vmatpush1.bf16.xpose.msra.mxu0 %v2553
    %2559 = vmatprep.subr.bf16.mxu0 0
    %2560 = vmatpush1.bf16.xpose.msra.mxu0 0
    %2561 = vmatprep.subr.bf16.mxu0 0
    %2562 = vmatpush1.bf16.xpose.msra.mxu0 0
    %2563 = vmatprep.subr.bf16.mxu0 0
    %2564 = vmatpush1.bf16.xpose.msra.mxu0 0
    %2565 = vmatprep.subr.bf16.mxu0 0
    %2566 = vmatpush1.bf16.xpose.msra.mxu0 0
    %2567 = vmatprep.subr.bf16.mxu0 0
    %2568 = vmatpush1.bf16.xpose.msra.mxu0 0
    %2569 = vmatprep.subr.bf16.mxu0 0
    %2570 = vmatpush1.bf16.xpose.msra.mxu0 0
    %2571 = vmatprep.subr.bf16.mxu0 0
    %2572 = vmatpush1.bf16.xpose.msra.mxu0 0
    %2573 = vmatprep.subr.bf16.mxu0 0
    %2574 = vmatpush1.bf16.xpose.msra.mxu0 0
    %2575 = vmatprep.subr.bf16.mxu0 0
    %2576 = vmatpush1.bf16.xpose.msra.mxu0 0
    %2577 = vmatprep.subr.bf16.mxu0 0
    %2578 = vmatpush1.bf16.xpose.msra.mxu0 0
    %2579 = vmatprep.subr.bf16.mxu0 0
    %2580 = vmatpush1.bf16.xpose.msra.mxu0 0
    %2581 = vmatprep.subr.bf16.mxu0 0
    %2582 = vmatpush1.bf16.xpose.msra.mxu0 0
    %2583 = vmatprep.subr.bf16.mxu0 0
    %2584 = vmatpush1.bf16.xpose.msra.mxu0 0
    %2585 = vmatprep.subr.bf16.mxu0 0
    %2586 = vmatpush1.bf16.xpose.msra.mxu0 0
    %2587 = vmatprep.mubr.bf16.mxu0 0
    %2588 = vmatmul.mubr.bf16.gmra.mrb[0].mxu0 %v2544
    %v2589 = vpop.f32.mrb[0].mxu0
    %v2590 = vadd.f32 %v301, %v2589
    %v2591 = vpop.f32.mrb[0].mxu0
    %v2592 = vpop.f32.mrb[0].mxu0
    %v2593 = vadd.f32 %v302, %v2592
    %v2594 = vpop.f32.mrb[0].mxu0
    %2595 = vmatprep.mubr.bf16.mxu0 0
    %2596 = vmatmul.mubr.bf16.gmra.mrb[0].mxu0 %v2547
    %v2597 = vpop.f32.mrb[0].mxu0
    %v2598 = vadd.f32 %v303, %v2597
    %v2599 = vpop.f32.mrb[0].mxu0
    %v2600 = vpop.f32.mrb[0].mxu0
    %v2601 = vadd.f32 %v304, %v2600
    %v2602 = vpop.f32.mrb[0].mxu0
    %2603 = vdwg.mxu0
    %v2605 = vsel %vm2420, %v2410, 0
    %v2608 = vsel %vm2420, %v2411, 0
    %v2611 = vsel %vm2420, %v2418, 0
    %v2614 = vsel %vm2420, %v2419, 0
    %2616 = vmatprep.subr.bf16.mxu0 0
    %2617 = vmatpush1.bf16.xpose.msra.mxu0 %v2611
    %2618 = vmatprep.subr.bf16.mxu0 0
    %2619 = vmatpush1.bf16.xpose.msra.mxu0 %v2614
    %2620 = vmatprep.subr.bf16.mxu0 0
    %2621 = vmatpush1.bf16.xpose.msra.mxu0 0
    %2622 = vmatprep.subr.bf16.mxu0 0
    %2623 = vmatpush1.bf16.xpose.msra.mxu0 0
    %2624 = vmatprep.subr.bf16.mxu0 0
    %2625 = vmatpush1.bf16.xpose.msra.mxu0 0
    %2626 = vmatprep.subr.bf16.mxu0 0
    %2627 = vmatpush1.bf16.xpose.msra.mxu0 0
    %2628 = vmatprep.subr.bf16.mxu0 0
    %2629 = vmatpush1.bf16.xpose.msra.mxu0 0
    %2630 = vmatprep.subr.bf16.mxu0 0
    %2631 = vmatpush1.bf16.xpose.msra.mxu0 0
    %2632 = vmatprep.subr.bf16.mxu0 0
    %2633 = vmatpush1.bf16.xpose.msra.mxu0 0
    %2634 = vmatprep.subr.bf16.mxu0 0
    %2635 = vmatpush1.bf16.xpose.msra.mxu0 0
    %2636 = vmatprep.subr.bf16.mxu0 0
    %2637 = vmatpush1.bf16.xpose.msra.mxu0 0
    %2638 = vmatprep.subr.bf16.mxu0 0
    %2639 = vmatpush1.bf16.xpose.msra.mxu0 0
    %2640 = vmatprep.subr.bf16.mxu0 0
    %2641 = vmatpush1.bf16.xpose.msra.mxu0 0
    %2642 = vmatprep.subr.bf16.mxu0 0
    %2643 = vmatpush1.bf16.xpose.msra.mxu0 0
    %2644 = vmatprep.subr.bf16.mxu0 0
    %2645 = vmatpush1.bf16.xpose.msra.mxu0 0
    %2646 = vmatprep.subr.bf16.mxu0 0
    %2647 = vmatpush1.bf16.xpose.msra.mxu0 0
    %2648 = vmatprep.mubr.bf16.mxu0 0
    %2649 = vmatmul.mubr.bf16.gmra.mrb[0].mxu0 %v2605
    %v2650 = vpop.f32.mrb[0].mxu0
    %v2651 = vadd.f32 %v301, %v2650
    %v2652 = vpop.f32.mrb[0].mxu0
    %v2653 = vpop.f32.mrb[0].mxu0
    %v2654 = vadd.f32 %v302, %v2653
    %v2655 = vpop.f32.mrb[0].mxu0
    %2656 = vmatprep.mubr.bf16.mxu0 0
    %2657 = vmatmul.mubr.bf16.gmra.mrb[0].mxu0 %v2608
    %v2658 = vpop.f32.mrb[0].mxu0
    %v2659 = vadd.f32 %v303, %v2658
    %v2660 = vpop.f32.mrb[0].mxu0
    %v2661 = vpop.f32.mrb[0].mxu0
    %v2662 = vadd.f32 %v304, %v2661
    %v2663 = vpop.f32.mrb[0].mxu0
    %2664 = vdwg.mxu0
    %vm2665 = vcmask 261120
    %v2666 = vsel %vm2665, %v2468, -inf
    %2667 = vmax.xlane.f32.xlu0 %v2666
    %v2668 = vpop.xlane.xlu0 %2667
    %v2669 = vsel %vm2665, %v2471, -inf
    %2670 = vmax.xlane.f32.xlu0 %v2669
    %v2671 = vpop.xlane.xlu0 %2670
    %v2672 = vsel %vm2665, %v2476, -inf
    %2673 = vmax.xlane.f32.xlu0 %v2672
    %v2674 = vpop.xlane.xlu0 %2673
    %v2675 = vsel %vm2665, %v2479, -inf
    %2676 = vmax.xlane.f32.xlu0 %v2675
    %v2677 = vpop.xlane.xlu0 %2676
    %v2678 = vsel %vm2665, %v2529, -inf
    %2679 = vmax.xlane.f32.xlu0 %v2678
    %v2680 = vpop.xlane.xlu0 %2679
    %v2681 = vsel %vm2665, %v2532, -inf
    %2682 = vmax.xlane.f32.xlu0 %v2681
    %v2683 = vpop.xlane.xlu0 %2682
    %v2684 = vsel %vm2665, %v2537, -inf
    %2685 = vmax.xlane.f32.xlu0 %v2684
    %v2686 = vpop.xlane.xlu0 %2685
    %v2687 = vsel %vm2665, %v2540, -inf
    %2688 = vmax.xlane.f32.xlu0 %v2687
    %v2689 = vpop.xlane.xlu0 %2688
    %v2690 = vsel %vm2665, %v2590, -inf
    %2691 = vmax.xlane.f32.xlu0 %v2690
    %v2692 = vpop.xlane.xlu0 %2691
    %v2693 = vsel %vm2665, %v2593, -inf
    %2694 = vmax.xlane.f32.xlu0 %v2693
    %v2695 = vpop.xlane.xlu0 %2694
    %v2696 = vsel %vm2665, %v2598, -inf
    %2697 = vmax.xlane.f32.xlu0 %v2696
    %v2698 = vpop.xlane.xlu0 %2697
    %v2699 = vsel %vm2665, %v2601, -inf
    %2700 = vmax.xlane.f32.xlu0 %v2699
    %v2701 = vpop.xlane.xlu0 %2700
    %v2702 = vsel %vm2665, %v2651, -inf
    %2703 = vmax.xlane.f32.xlu0 %v2702
    %v2704 = vpop.xlane.xlu0 %2703
    %v2705 = vsel %vm2665, %v2654, -inf
    %2706 = vmax.xlane.f32.xlu0 %v2705
    %v2707 = vpop.xlane.xlu0 %2706
    %v2708 = vsel %vm2665, %v2659, -inf
    %2709 = vmax.xlane.f32.xlu0 %v2708
    %v2710 = vpop.xlane.xlu0 %2709
    %v2711 = vsel %vm2665, %v2662, -inf
    %2712 = vmax.xlane.f32.xlu0 %v2711
    %v2713 = vpop.xlane.xlu0 %2712
    %v2714 = vsub.f32 %v2468, %v2668
    %v2715 = vsub.f32 %v2471, %v2671
    %v2716 = vsub.f32 %v2476, %v2674
    %v2717 = vsub.f32 %v2479, %v2677
    %v2718 = vsub.f32 %v2529, %v2680
    %v2719 = vsub.f32 %v2532, %v2683
    %v2720 = vsub.f32 %v2537, %v2686
    %v2721 = vsub.f32 %v2540, %v2689
    %v2722 = vsub.f32 %v2590, %v2692
    %v2723 = vsub.f32 %v2593, %v2695
    %v2724 = vsub.f32 %v2598, %v2698
    %v2725 = vsub.f32 %v2601, %v2701
    %v2726 = vsub.f32 %v2651, %v2704
    %v2727 = vsub.f32 %v2654, %v2707
    %v2728 = vsub.f32 %v2659, %v2710
    %v2729 = vsub.f32 %v2662, %v2713
    %v2730 = vmul.f32 %v2714, 1.442695
    %v2731 = vpow.pop %v2730
    %v2732 = vmul.f32 %v2715, 1.442695
    %v2733 = vpow.pop %v2732
    %v2734 = vmul.f32 %v2716, 1.442695
    %v2735 = vpow.pop %v2734
    %v2736 = vmul.f32 %v2717, 1.442695
    %v2737 = vpow.pop %v2736
    %v2738 = vmul.f32 %v2718, 1.442695
    %v2739 = vpow.pop %v2738
    %v2740 = vmul.f32 %v2719, 1.442695
    %v2741 = vpow.pop %v2740
    %v2742 = vmul.f32 %v2720, 1.442695
    %v2743 = vpow.pop %v2742
    %v2744 = vmul.f32 %v2721, 1.442695
    %v2745 = vpow.pop %v2744
    %v2746 = vmul.f32 %v2722, 1.442695
    %v2747 = vpow.pop %v2746
    %v2748 = vmul.f32 %v2723, 1.442695
    %v2749 = vpow.pop %v2748
    %v2750 = vmul.f32 %v2724, 1.442695
    %v2751 = vpow.pop %v2750
    %v2752 = vmul.f32 %v2725, 1.442695
    %v2753 = vpow.pop %v2752
    %v2754 = vmul.f32 %v2726, 1.442695
    %v2755 = vpow.pop %v2754
    %v2756 = vmul.f32 %v2727, 1.442695
    %v2757 = vpow.pop %v2756
    %v2758 = vmul.f32 %v2728, 1.442695
    %v2759 = vpow.pop %v2758
    %v2760 = vmul.f32 %v2729, 1.442695
    %v2761 = vpow.pop %v2760
    %v2762 = vsel %vm2665, %v2731, 0.0
    %2763 = vadd.xlane.f32.xlu0 %v2762
    %v2764 = vpop.xlane.xlu0 %2763
    %v2765 = vsel %vm2665, %v2733, 0.0
    %2766 = vadd.xlane.f32.xlu0 %v2765
    %v2767 = vpop.xlane.xlu0 %2766
    %v2768 = vsel %vm2665, %v2735, 0.0
    %2769 = vadd.xlane.f32.xlu0 %v2768
    %v2770 = vpop.xlane.xlu0 %2769
    %v2771 = vsel %vm2665, %v2737, 0.0
    %2772 = vadd.xlane.f32.xlu0 %v2771
    %v2773 = vpop.xlane.xlu0 %2772
    %v2774 = vsel %vm2665, %v2739, 0.0
    %2775 = vadd.xlane.f32.xlu0 %v2774
    %v2776 = vpop.xlane.xlu0 %2775
    %v2777 = vsel %vm2665, %v2741, 0.0
    %2778 = vadd.xlane.f32.xlu0 %v2777
    %v2779 = vpop.xlane.xlu0 %2778
    %v2780 = vsel %vm2665, %v2743, 0.0
    %2781 = vadd.xlane.f32.xlu0 %v2780
    %v2782 = vpop.xlane.xlu0 %2781
    %v2783 = vsel %vm2665, %v2745, 0.0
    %2784 = vadd.xlane.f32.xlu0 %v2783
    %v2785 = vpop.xlane.xlu0 %2784
    %v2786 = vsel %vm2665, %v2747, 0.0
    %2787 = vadd.xlane.f32.xlu0 %v2786
    %v2788 = vpop.xlane.xlu0 %2787
    %v2789 = vsel %vm2665, %v2749, 0.0
    %2790 = vadd.xlane.f32.xlu0 %v2789
    %v2791 = vpop.xlane.xlu0 %2790
    %v2792 = vsel %vm2665, %v2751, 0.0
    %2793 = vadd.xlane.f32.xlu0 %v2792
    %v2794 = vpop.xlane.xlu0 %2793
    %v2795 = vsel %vm2665, %v2753, 0.0
    %2796 = vadd.xlane.f32.xlu0 %v2795
    %v2797 = vpop.xlane.xlu0 %2796
    %v2798 = vsel %vm2665, %v2755, 0.0
    %2799 = vadd.xlane.f32.xlu0 %v2798
    %v2800 = vpop.xlane.xlu0 %2799
    %v2801 = vsel %vm2665, %v2757, 0.0
    %2802 = vadd.xlane.f32.xlu0 %v2801
    %v2803 = vpop.xlane.xlu0 %2802
    %v2804 = vsel %vm2665, %v2759, 0.0
    %2805 = vadd.xlane.f32.xlu0 %v2804
    %v2806 = vpop.xlane.xlu0 %2805
    %v2807 = vsel %vm2665, %v2761, 0.0
    %2808 = vadd.xlane.f32.xlu0 %v2807
    %v2809 = vpop.xlane.xlu0 %2808
    %v2810 = vrcp.pop %v2764
    %v2811 = vrcp.pop %v2767
    %v2812 = vrcp.pop %v2770
    %v2813 = vrcp.pop %v2773
    %v2814 = vrcp.pop %v2776
    %v2815 = vrcp.pop %v2779
    %v2816 = vrcp.pop %v2782
    %v2817 = vrcp.pop %v2785
    %v2818 = vrcp.pop %v2788
    %v2819 = vrcp.pop %v2791
    %v2820 = vrcp.pop %v2794
    %v2821 = vrcp.pop %v2797
    %v2822 = vrcp.pop %v2800
    %v2823 = vrcp.pop %v2803
    %v2824 = vrcp.pop %v2806
    %v2825 = vrcp.pop %v2809
    %v2826 = vmul.f32 %v2731, %v2810
    %v2827 = vmul.f32 %v2733, %v2811
    %v2828 = vmul.f32 %v2735, %v2812
    %v2829 = vmul.f32 %v2737, %v2813
    %v2830 = vmul.f32 %v2739, %v2814
    %v2831 = vmul.f32 %v2741, %v2815
    %v2832 = vmul.f32 %v2743, %v2816
    %v2833 = vmul.f32 %v2745, %v2817
    %v2834 = vmul.f32 %v2747, %v2818
    %v2835 = vmul.f32 %v2749, %v2819
    %v2836 = vmul.f32 %v2751, %v2820
    %v2837 = vmul.f32 %v2753, %v2821
    %v2838 = vmul.f32 %v2755, %v2822
    %v2839 = vmul.f32 %v2757, %v2823
    %v2840 = vmul.f32 %v2759, %v2824
    %v2841 = vmul.f32 %v2761, %v2825
    %v2842 = vpack.c.bf16 %v2827, %v2826
    %v2843 = vpack.c.bf16 %v2829, %v2828
    %v2844 = vpack.c.bf16 %v2831, %v2830
    %v2845 = vpack.c.bf16 %v2833, %v2832
    %v2846 = vpack.c.bf16 %v2835, %v2834
    %v2847 = vpack.c.bf16 %v2837, %v2836
    %v2848 = vpack.c.bf16 %v2839, %v2838
    %v2849 = vpack.c.bf16 %v2841, %v2840
    %v2850 = vpack.c.bf16 %v2264, %v2196
    %v2851 = vpack.c.bf16 %v2400, %v2332
    %v2852 = vpack.c.bf16 %v2265, %v2197
    %v2853 = vpack.c.bf16 %v2401, %v2333
    %v2854 = vpack.c.bf16 %v2266, %v2198
    %v2855 = vpack.c.bf16 %v2402, %v2334
    %v2856 = vpack.c.bf16 %v2267, %v2199
    %v2857 = vpack.c.bf16 %v2403, %v2335
    %v2859 = vsel %vm2665, %v2842, 0
    %v2862 = vsel %vm2665, %v2843, 0
    %2864 = vmatprep.subr.bf16.mxu0 0
    %2865 = vmatpush1.bf16.msra.mxu0 %v2850
    %2866 = vmatprep.subr.bf16.mxu0 0
    %2867 = vmatpush1.bf16.msra.mxu0 %v2851
    %2868 = vmatprep.subr.bf16.mxu0 0
    %2869 = vmatpush1.bf16.msra.mxu0 0
    %2870 = vmatprep.subr.bf16.mxu0 0
    %2871 = vmatpush1.bf16.msra.mxu0 0
    %2872 = vmatprep.subr.bf16.mxu0 0
    %2873 = vmatpush1.bf16.msra.mxu0 0
    %2874 = vmatprep.subr.bf16.mxu0 0
    %2875 = vmatpush1.bf16.msra.mxu0 0
    %2876 = vmatprep.subr.bf16.mxu0 0
    %2877 = vmatpush1.bf16.msra.mxu0 0
    %2878 = vmatprep.subr.bf16.mxu0 0
    %2879 = vmatpush1.bf16.msra.mxu0 0
    %2880 = vmatprep.subr.bf16.mxu0 0
    %2881 = vmatpush1.bf16.msra.mxu0 0
    %2882 = vmatprep.subr.bf16.mxu0 0
    %2883 = vmatpush1.bf16.msra.mxu0 0
    %2884 = vmatprep.subr.bf16.mxu0 0
    %2885 = vmatpush1.bf16.msra.mxu0 0
    %2886 = vmatprep.subr.bf16.mxu0 0
    %2887 = vmatpush1.bf16.msra.mxu0 0
    %2888 = vmatprep.subr.bf16.mxu0 0
    %2889 = vmatpush1.bf16.msra.mxu0 0
    %2890 = vmatprep.subr.bf16.mxu0 0
    %2891 = vmatpush1.bf16.msra.mxu0 0
    %2892 = vmatprep.subr.bf16.mxu0 0
    %2893 = vmatpush1.bf16.msra.mxu0 0
    %2894 = vmatprep.subr.bf16.mxu0 0
    %2895 = vmatpush1.bf16.msra.mxu0 0
    %2896 = vmatprep.mubr.bf16.mxu0 0
    %2897 = vmatmul.mubr.bf16.gmra.mrb[0].mxu0 %v2859
    %v2898 = vpop.f32.mrb[0].mxu0
    %v2899 = vadd.f32 0.0, %v2898
    %v2900 = vpop.f32.mrb[0].mxu0
    %v2901 = vpop.f32.mrb[0].mxu0
    %v2902 = vadd.f32 0.0, %v2901
    %v2903 = vpop.f32.mrb[0].mxu0
    %2904 = vmatprep.mubr.bf16.mxu0 0
    %2905 = vmatmul.mubr.bf16.gmra.mrb[0].mxu0 %v2862
    %v2906 = vpop.f32.mrb[0].mxu0
    %v2907 = vadd.f32 0.0, %v2906
    %v2908 = vpop.f32.mrb[0].mxu0
    %v2909 = vpop.f32.mrb[0].mxu0
    %v2910 = vadd.f32 0.0, %v2909
    %v2911 = vpop.f32.mrb[0].mxu0
    %2912 = vdwg.mxu0
    %v2914 = vsel %vm2665, %v2844, 0
    %v2917 = vsel %vm2665, %v2845, 0
    %2919 = vmatprep.subr.bf16.mxu0 0
    %2920 = vmatpush1.bf16.msra.mxu0 %v2852
    %2921 = vmatprep.subr.bf16.mxu0 0
    %2922 = vmatpush1.bf16.msra.mxu0 %v2853
    %2923 = vmatprep.subr.bf16.mxu0 0
    %2924 = vmatpush1.bf16.msra.mxu0 0
    %2925 = vmatprep.subr.bf16.mxu0 0
    %2926 = vmatpush1.bf16.msra.mxu0 0
    %2927 = vmatprep.subr.bf16.mxu0 0
    %2928 = vmatpush1.bf16.msra.mxu0 0
    %2929 = vmatprep.subr.bf16.mxu0 0
    %2930 = vmatpush1.bf16.msra.mxu0 0
    %2931 = vmatprep.subr.bf16.mxu0 0
    %2932 = vmatpush1.bf16.msra.mxu0 0
    %2933 = vmatprep.subr.bf16.mxu0 0
    %2934 = vmatpush1.bf16.msra.mxu0 0
    %2935 = vmatprep.subr.bf16.mxu0 0
    %2936 = vmatpush1.bf16.msra.mxu0 0
    %2937 = vmatprep.subr.bf16.mxu0 0
    %2938 = vmatpush1.bf16.msra.mxu0 0
    %2939 = vmatprep.subr.bf16.mxu0 0
    %2940 = vmatpush1.bf16.msra.mxu0 0
    %2941 = vmatprep.subr.bf16.mxu0 0
    %2942 = vmatpush1.bf16.msra.mxu0 0
    %2943 = vmatprep.subr.bf16.mxu0 0
    %2944 = vmatpush1.bf16.msra.mxu0 0
    %2945 = vmatprep.subr.bf16.mxu0 0
    %2946 = vmatpush1.bf16.msra.mxu0 0
    %2947 = vmatprep.subr.bf16.mxu0 0
    %2948 = vmatpush1.bf16.msra.mxu0 0
    %2949 = vmatprep.subr.bf16.mxu0 0
    %2950 = vmatpush1.bf16.msra.mxu0 0
    %2951 = vmatprep.mubr.bf16.mxu0 0
    %2952 = vmatmul.mubr.bf16.gmra.mrb[0].mxu0 %v2914
    %v2953 = vpop.f32.mrb[0].mxu0
    %v2954 = vadd.f32 0.0, %v2953
    %v2955 = vpop.f32.mrb[0].mxu0
    %v2956 = vpop.f32.mrb[0].mxu0
    %v2957 = vadd.f32 0.0, %v2956
    %v2958 = vpop.f32.mrb[0].mxu0
    %2959 = vmatprep.mubr.bf16.mxu0 0
    %2960 = vmatmul.mubr.bf16.gmra.mrb[0].mxu0 %v2917
    %v2961 = vpop.f32.mrb[0].mxu0
    %v2962 = vadd.f32 0.0, %v2961
    %v2963 = vpop.f32.mrb[0].mxu0
    %v2964 = vpop.f32.mrb[0].mxu0
    %v2965 = vadd.f32 0.0, %v2964
    %v2966 = vpop.f32.mrb[0].mxu0
    %2967 = vdwg.mxu0
    %v2969 = vsel %vm2665, %v2846, 0
    %v2972 = vsel %vm2665, %v2847, 0
    %2974 = vmatprep.subr.bf16.mxu0 0
    %2975 = vmatpush1.bf16.msra.mxu0 %v2854
    %2976 = vmatprep.subr.bf16.mxu0 0
    %2977 = vmatpush1.bf16.msra.mxu0 %v2855
    %2978 = vmatprep.subr.bf16.mxu0 0
    %2979 = vmatpush1.bf16.msra.mxu0 0
    %2980 = vmatprep.subr.bf16.mxu0 0
    %2981 = vmatpush1.bf16.msra.mxu0 0
    %2982 = vmatprep.subr.bf16.mxu0 0
    %2983 = vmatpush1.bf16.msra.mxu0 0
    %2984 = vmatprep.subr.bf16.mxu0 0
    %2985 = vmatpush1.bf16.msra.mxu0 0
    %2986 = vmatprep.subr.bf16.mxu0 0
    %2987 = vmatpush1.bf16.msra.mxu0 0
    %2988 = vmatprep.subr.bf16.mxu0 0
    %2989 = vmatpush1.bf16.msra.mxu0 0
    %2990 = vmatprep.subr.bf16.mxu0 0
    %2991 = vmatpush1.bf16.msra.mxu0 0
    %2992 = vmatprep.subr.bf16.mxu0 0
    %2993 = vmatpush1.bf16.msra.mxu0 0
    %2994 = vmatprep.subr.bf16.mxu0 0
    %2995 = vmatpush1.bf16.msra.mxu0 0
    %2996 = vmatprep.subr.bf16.mxu0 0
    %2997 = vmatpush1.bf16.msra.mxu0 0
    %2998 = vmatprep.subr.bf16.mxu0 0
    %2999 = vmatpush1.bf16.msra.mxu0 0
    %3000 = vmatprep.subr.bf16.mxu0 0
    %3001 = vmatpush1.bf16.msra.mxu0 0
    %3002 = vmatprep.subr.bf16.mxu0 0
    %3003 = vmatpush1.bf16.msra.mxu0 0
    %3004 = vmatprep.subr.bf16.mxu0 0
    %3005 = vmatpush1.bf16.msra.mxu0 0
    %3006 = vmatprep.mubr.bf16.mxu0 0
    %3007 = vmatmul.mubr.bf16.gmra.mrb[0].mxu0 %v2969
    %v3008 = vpop.f32.mrb[0].mxu0
    %v3009 = vadd.f32 0.0, %v3008
    %v3010 = vpop.f32.mrb[0].mxu0
    %v3011 = vpop.f32.mrb[0].mxu0
    %v3012 = vadd.f32 0.0, %v3011
    %v3013 = vpop.f32.mrb[0].mxu0
    %3014 = vmatprep.mubr.bf16.mxu0 0
    %3015 = vmatmul.mubr.bf16.gmra.mrb[0].mxu0 %v2972
    %v3016 = vpop.f32.mrb[0].mxu0
    %v3017 = vadd.f32 0.0, %v3016
    %v3018 = vpop.f32.mrb[0].mxu0
    %v3019 = vpop.f32.mrb[0].mxu0
    %v3020 = vadd.f32 0.0, %v3019
    %v3021 = vpop.f32.mrb[0].mxu0
    %3022 = vdwg.mxu0
    %v3024 = vsel %vm2665, %v2848, 0
    %v3027 = vsel %vm2665, %v2849, 0
    %3029 = vmatprep.subr.bf16.mxu0 0
    %3030 = vmatpush1.bf16.msra.mxu0 %v2856
    %3031 = vmatprep.subr.bf16.mxu0 0
    %3032 = vmatpush1.bf16.msra.mxu0 %v2857
    %3033 = vmatprep.subr.bf16.mxu0 0
    %3034 = vmatpush1.bf16.msra.mxu0 0
    %3035 = vmatprep.subr.bf16.mxu0 0
    %3036 = vmatpush1.bf16.msra.mxu0 0
    %3037 = vmatprep.subr.bf16.mxu0 0
    %3038 = vmatpush1.bf16.msra.mxu0 0
    %3039 = vmatprep.subr.bf16.mxu0 0
    %3040 = vmatpush1.bf16.msra.mxu0 0
    %3041 = vmatprep.subr.bf16.mxu0 0
    %3042 = vmatpush1.bf16.msra.mxu0 0
    %3043 = vmatprep.subr.bf16.mxu0 0
    %3044 = vmatpush1.bf16.msra.mxu0 0
    %3045 = vmatprep.subr.bf16.mxu0 0
    %3046 = vmatpush1.bf16.msra.mxu0 0
    %3047 = vmatprep.subr.bf16.mxu0 0
    %3048 = vmatpush1.bf16.msra.mxu0 0
    %3049 = vmatprep.subr.bf16.mxu0 0
    %3050 = vmatpush1.bf16.msra.mxu0 0
    %3051 = vmatprep.subr.bf16.mxu0 0
    %3052 = vmatpush1.bf16.msra.mxu0 0
    %3053 = vmatprep.subr.bf16.mxu0 0
    %3054 = vmatpush1.bf16.msra.mxu0 0
    %3055 = vmatprep.subr.bf16.mxu0 0
    %3056 = vmatpush1.bf16.msra.mxu0 0
    %3057 = vmatprep.subr.bf16.mxu0 0
    %3058 = vmatpush1.bf16.msra.mxu0 0
    %3059 = vmatprep.subr.bf16.mxu0 0
    %3060 = vmatpush1.bf16.msra.mxu0 0
    %3061 = vmatprep.mubr.bf16.mxu0 0
    %3062 = vmatmul.mubr.bf16.gmra.mrb[0].mxu0 %v3024
    %v3063 = vpop.f32.mrb[0].mxu0
    %v3064 = vadd.f32 0.0, %v3063
    %v3065 = vpop.f32.mrb[0].mxu0
    %v3066 = vpop.f32.mrb[0].mxu0
    %v3067 = vadd.f32 0.0, %v3066
    %v3068 = vpop.f32.mrb[0].mxu0
    %3069 = vmatprep.mubr.bf16.mxu0 0
    %3070 = vmatmul.mubr.bf16.gmra.mrb[0].mxu0 %v3027
    %v3071 = vpop.f32.mrb[0].mxu0
    %v3072 = vadd.f32 0.0, %v3071
    %v3073 = vpop.f32.mrb[0].mxu0
    %v3074 = vpop.f32.mrb[0].mxu0
    %v3075 = vadd.f32 0.0, %v3074
    %v3076 = vpop.f32.mrb[0].mxu0
    %3077 = vdwg.mxu0
    %v3078 = vpack.c.bf16 %v2902, %v2899
    %v3079 = vpack.c.bf16 %v2910, %v2907
    %v3080 = vpack.c.bf16 %v2957, %v2954
    %v3081 = vpack.c.bf16 %v2965, %v2962
    %v3082 = vpack.c.bf16 %v3012, %v3009
    %v3083 = vpack.c.bf16 %v3020, %v3017
    %v3084 = vpack.c.bf16 %v3067, %v3064
    %v3085 = vpack.c.bf16 %v3075, %v3072
    %v3086 = vld [vmem:[%s9] sm:$0xf]
    %v3087 = vld [vmem:[%s9 + $0x4] sm:$0xf]
    %v3088 = vld [vmem:[%s9 + $0x8] sm:$0xf]
    %v3089 = vld [vmem:[%s9 + $0xc] sm:$0xf]
    %v3090 = vld [vmem:[%s9 + $0x10] sm:$0xf]
    %v3091 = vld [vmem:[%s9 + $0x14] sm:$0xf]
    %v3092 = vld [vmem:[%s9 + $0x18] sm:$0xf]
    %v3093 = vld [vmem:[%s9 + $0x1c] sm:$0xf]
    %v3096 = vunpack.c.l.b16 %v3086
    %v3097 = vunpack.c.l.b16 %v3087
    %v3098 = vpack.c.b16 %v3097, %v3096
    %v3101 = vsel %vm2420, %v3078, 0
    %v3104 = vsel %vm2420, %v3079, 0
    %3106 = vmatprep.subr.bf16.mxu0 0
    %3107 = vmatpush1.bf16.msra.mxu0 %v3098
    %3108 = vmatprep.subr.bf16.mxu0 0
    %3109 = vmatpush1.bf16.msra.mxu0 0
    %3110 = vmatprep.subr.bf16.mxu0 0
    %3111 = vmatpush1.bf16.msra.mxu0 0
    %3112 = vmatprep.subr.bf16.mxu0 0
    %3113 = vmatpush1.bf16.msra.mxu0 0
    %3114 = vmatprep.subr.bf16.mxu0 0
    %3115 = vmatpush1.bf16.msra.mxu0 0
    %3116 = vmatprep.subr.bf16.mxu0 0
    %3117 = vmatpush1.bf16.msra.mxu0 0
    %3118 = vmatprep.subr.bf16.mxu0 0
    %3119 = vmatpush1.bf16.msra.mxu0 0
    %3120 = vmatprep.subr.bf16.mxu0 0
    %3121 = vmatpush1.bf16.msra.mxu0 0
    %3122 = vmatprep.subr.bf16.mxu0 0
    %3123 = vmatpush1.bf16.msra.mxu0 0
    %3124 = vmatprep.subr.bf16.mxu0 0
    %3125 = vmatpush1.bf16.msra.mxu0 0
    %3126 = vmatprep.subr.bf16.mxu0 0
    %3127 = vmatpush1.bf16.msra.mxu0 0
    %3128 = vmatprep.subr.bf16.mxu0 0
    %3129 = vmatpush1.bf16.msra.mxu0 0
    %3130 = vmatprep.subr.bf16.mxu0 0
    %3131 = vmatpush1.bf16.msra.mxu0 0
    %3132 = vmatprep.subr.bf16.mxu0 0
    %3133 = vmatpush1.bf16.msra.mxu0 0
    %3134 = vmatprep.subr.bf16.mxu0 0
    %3135 = vmatpush1.bf16.msra.mxu0 0
    %3136 = vmatprep.subr.bf16.mxu0 0
    %3137 = vmatpush1.bf16.msra.mxu0 0
    %3138 = vmatprep.mubr.bf16.mxu0 0
    %3139 = vmatmul.mubr.bf16.gmra.mrb[0].mxu0 %v3101
    %v3140 = vpop.f32.mrb[0].mxu0
    %v3141 = vadd.f32 0.0, %v3140
    %v3142 = vpop.f32.mrb[0].mxu0
    %v3143 = vpop.f32.mrb[0].mxu0
    %v3144 = vadd.f32 0.0, %v3143
    %v3145 = vpop.f32.mrb[0].mxu0
    %3146 = vmatprep.mubr.bf16.mxu0 0
    %3147 = vmatmul.mubr.bf16.gmra.mrb[0].mxu0 %v3104
    %v3148 = vpop.f32.mrb[0].mxu0
    %v3149 = vadd.f32 0.0, %v3148
    %v3150 = vpop.f32.mrb[0].mxu0
    %v3151 = vpop.f32.mrb[0].mxu0
    %v3152 = vadd.f32 0.0, %v3151
    %v3153 = vpop.f32.mrb[0].mxu0
    %3154 = vdwg.mxu0
    %v3157 = vunpack.c.l.b16 %v3088
    %v3158 = vunpack.c.l.b16 %v3089
    %v3159 = vpack.c.b16 %v3158, %v3157
    %v3162 = vsel %vm2420, %v3080, 0
    %v3165 = vsel %vm2420, %v3081, 0
    %3167 = vmatprep.subr.bf16.mxu0 0
    %3168 = vmatpush1.bf16.msra.mxu0 %v3159
    %3169 = vmatprep.subr.bf16.mxu0 0
    %3170 = vmatpush1.bf16.msra.mxu0 0
    %3171 = vmatprep.subr.bf16.mxu0 0
    %3172 = vmatpush1.bf16.msra.mxu0 0
    %3173 = vmatprep.subr.bf16.mxu0 0
    %3174 = vmatpush1.bf16.msra.mxu0 0
    %3175 = vmatprep.subr.bf16.mxu0 0
    %3176 = vmatpush1.bf16.msra.mxu0 0
    %3177 = vmatprep.subr.bf16.mxu0 0
    %3178 = vmatpush1.bf16.msra.mxu0 0
    %3179 = vmatprep.subr.bf16.mxu0 0
    %3180 = vmatpush1.bf16.msra.mxu0 0
    %3181 = vmatprep.subr.bf16.mxu0 0
    %3182 = vmatpush1.bf16.msra.mxu0 0
    %3183 = vmatprep.subr.bf16.mxu0 0
    %3184 = vmatpush1.bf16.msra.mxu0 0
    %3185 = vmatprep.subr.bf16.mxu0 0
    %3186 = vmatpush1.bf16.msra.mxu0 0
    %3187 = vmatprep.subr.bf16.mxu0 0
    %3188 = vmatpush1.bf16.msra.mxu0 0
    %3189 = vmatprep.subr.bf16.mxu0 0
    %3190 = vmatpush1.bf16.msra.mxu0 0
    %3191 = vmatprep.subr.bf16.mxu0 0
    %3192 = vmatpush1.bf16.msra.mxu0 0
    %3193 = vmatprep.subr.bf16.mxu0 0
    %3194 = vmatpush1.bf16.msra.mxu0 0
    %3195 = vmatprep.subr.bf16.mxu0 0
    %3196 = vmatpush1.bf16.msra.mxu0 0
    %3197 = vmatprep.subr.bf16.mxu0 0
    %3198 = vmatpush1.bf16.msra.mxu0 0
    %3199 = vmatprep.mubr.bf16.mxu0 0
    %3200 = vmatmul.mubr.bf16.gmra.mrb[0].mxu0 %v3162
    %v3201 = vpop.f32.mrb[0].mxu0
    %v3202 = vadd.f32 0.0, %v3201
    %v3203 = vpop.f32.mrb[0].mxu0
    %v3204 = vpop.f32.mrb[0].mxu0
    %v3205 = vadd.f32 0.0, %v3204
    %v3206 = vpop.f32.mrb[0].mxu0
    %3207 = vmatprep.mubr.bf16.mxu0 0
    %3208 = vmatmul.mubr.bf16.gmra.mrb[0].mxu0 %v3165
    %v3209 = vpop.f32.mrb[0].mxu0
    %v3210 = vadd.f32 0.0, %v3209
    %v3211 = vpop.f32.mrb[0].mxu0
    %v3212 = vpop.f32.mrb[0].mxu0
    %v3213 = vadd.f32 0.0, %v3212
    %v3214 = vpop.f32.mrb[0].mxu0
    %3215 = vdwg.mxu0
    %v3218 = vunpack.c.l.b16 %v3090
    %v3219 = vunpack.c.l.b16 %v3091
    %v3220 = vpack.c.b16 %v3219, %v3218
    %v3223 = vsel %vm2420, %v3082, 0
    %v3226 = vsel %vm2420, %v3083, 0
    %3228 = vmatprep.subr.bf16.mxu0 0
    %3229 = vmatpush1.bf16.msra.mxu0 %v3220
    %3230 = vmatprep.subr.bf16.mxu0 0
    %3231 = vmatpush1.bf16.msra.mxu0 0
    %3232 = vmatprep.subr.bf16.mxu0 0
    %3233 = vmatpush1.bf16.msra.mxu0 0
    %3234 = vmatprep.subr.bf16.mxu0 0
    %3235 = vmatpush1.bf16.msra.mxu0 0
    %3236 = vmatprep.subr.bf16.mxu0 0
    %3237 = vmatpush1.bf16.msra.mxu0 0
    %3238 = vmatprep.subr.bf16.mxu0 0
    %3239 = vmatpush1.bf16.msra.mxu0 0
    %3240 = vmatprep.subr.bf16.mxu0 0
    %3241 = vmatpush1.bf16.msra.mxu0 0
    %3242 = vmatprep.subr.bf16.mxu0 0
    %3243 = vmatpush1.bf16.msra.mxu0 0
    %3244 = vmatprep.subr.bf16.mxu0 0
    %3245 = vmatpush1.bf16.msra.mxu0 0
    %3246 = vmatprep.subr.bf16.mxu0 0
    %3247 = vmatpush1.bf16.msra.mxu0 0
    %3248 = vmatprep.subr.bf16.mxu0 0
    %3249 = vmatpush1.bf16.msra.mxu0 0
    %3250 = vmatprep.subr.bf16.mxu0 0
    %3251 = vmatpush1.bf16.msra.mxu0 0
    %3252 = vmatprep.subr.bf16.mxu0 0
    %3253 = vmatpush1.bf16.msra.mxu0 0
    %3254 = vmatprep.subr.bf16.mxu0 0
    %3255 = vmatpush1.bf16.msra.mxu0 0
    %3256 = vmatprep.subr.bf16.mxu0 0
    %3257 = vmatpush1.bf16.msra.mxu0 0
    %3258 = vmatprep.subr.bf16.mxu0 0
    %3259 = vmatpush1.bf16.msra.mxu0 0
    %3260 = vmatprep.mubr.bf16.mxu0 0
    %3261 = vmatmul.mubr.bf16.gmra.mrb[0].mxu0 %v3223
    %v3262 = vpop.f32.mrb[0].mxu0
    %v3263 = vadd.f32 0.0, %v3262
    %v3264 = vpop.f32.mrb[0].mxu0
    %v3265 = vpop.f32.mrb[0].mxu0
    %v3266 = vadd.f32 0.0, %v3265
    %v3267 = vpop.f32.mrb[0].mxu0
    %3268 = vmatprep.mubr.bf16.mxu0 0
    %3269 = vmatmul.mubr.bf16.gmra.mrb[0].mxu0 %v3226
    %v3270 = vpop.f32.mrb[0].mxu0
    %v3271 = vadd.f32 0.0, %v3270
    %v3272 = vpop.f32.mrb[0].mxu0
    %v3273 = vpop.f32.mrb[0].mxu0
    %v3274 = vadd.f32 0.0, %v3273
    %v3275 = vpop.f32.mrb[0].mxu0
    %3276 = vdwg.mxu0
    %v3279 = vunpack.c.l.b16 %v3092
    %v3280 = vunpack.c.l.b16 %v3093
    %v3281 = vpack.c.b16 %v3280, %v3279
    %v3284 = vsel %vm2420, %v3084, 0
    %v3287 = vsel %vm2420, %v3085, 0
    %3289 = vmatprep.subr.bf16.mxu0 0
    %3290 = vmatpush1.bf16.msra.mxu0 %v3281
    %3291 = vmatprep.subr.bf16.mxu0 0
    %3292 = vmatpush1.bf16.msra.mxu0 0
    %3293 = vmatprep.subr.bf16.mxu0 0
    %3294 = vmatpush1.bf16.msra.mxu0 0
    %3295 = vmatprep.subr.bf16.mxu0 0
    %3296 = vmatpush1.bf16.msra.mxu0 0
    %3297 = vmatprep.subr.bf16.mxu0 0
    %3298 = vmatpush1.bf16.msra.mxu0 0
    %3299 = vmatprep.subr.bf16.mxu0 0
    %3300 = vmatpush1.bf16.msra.mxu0 0
    %3301 = vmatprep.subr.bf16.mxu0 0
    %3302 = vmatpush1.bf16.msra.mxu0 0
    %3303 = vmatprep.subr.bf16.mxu0 0
    %3304 = vmatpush1.bf16.msra.mxu0 0
    %3305 = vmatprep.subr.bf16.mxu0 0
    %3306 = vmatpush1.bf16.msra.mxu0 0
    %3307 = vmatprep.subr.bf16.mxu0 0
    %3308 = vmatpush1.bf16.msra.mxu0 0
    %3309 = vmatprep.subr.bf16.mxu0 0
    %3310 = vmatpush1.bf16.msra.mxu0 0
    %3311 = vmatprep.subr.bf16.mxu0 0
    %3312 = vmatpush1.bf16.msra.mxu0 0
    %3313 = vmatprep.subr.bf16.mxu0 0
    %3314 = vmatpush1.bf16.msra.mxu0 0
    %3315 = vmatprep.subr.bf16.mxu0 0
    %3316 = vmatpush1.bf16.msra.mxu0 0
    %3317 = vmatprep.subr.bf16.mxu0 0
    %3318 = vmatpush1.bf16.msra.mxu0 0
    %3319 = vmatprep.subr.bf16.mxu0 0
    %3320 = vmatpush1.bf16.msra.mxu0 0
    %3321 = vmatprep.mubr.bf16.mxu0 0
    %3322 = vmatmul.mubr.bf16.gmra.mrb[0].mxu0 %v3284
    %v3323 = vpop.f32.mrb[0].mxu0
    %v3324 = vadd.f32 0.0, %v3323
    %v3325 = vpop.f32.mrb[0].mxu0
    %v3326 = vpop.f32.mrb[0].mxu0
    %v3327 = vadd.f32 0.0, %v3326
    %v3328 = vpop.f32.mrb[0].mxu0
    %3329 = vmatprep.mubr.bf16.mxu0 0
    %3330 = vmatmul.mubr.bf16.gmra.mrb[0].mxu0 %v3287
    %v3331 = vpop.f32.mrb[0].mxu0
    %v3332 = vadd.f32 0.0, %v3331
    %v3333 = vpop.f32.mrb[0].mxu0
    %v3334 = vpop.f32.mrb[0].mxu0
    %v3335 = vadd.f32 0.0, %v3334
    %v3336 = vpop.f32.mrb[0].mxu0
    %3337 = vdwg.mxu0
    %v3338 = vsel %vm273, %v3141, 0.0
    %v3339 = vsel %vm273, %v3202, 0.0
    %v3340 = vadd.f32 %v3338, %v3339
    %v3341 = vsel %vm273, %v3263, 0.0
    %v3342 = vadd.f32 %v3340, %v3341
    %v3343 = vsel %vm273, %v3324, 0.0
    %v3344 = vadd.f32 %v3342, %v3343
    %v3345 = vsel %vm273, %v3144, 0.0
    %v3346 = vsel %vm273, %v3205, 0.0
    %v3347 = vadd.f32 %v3345, %v3346
    %v3348 = vsel %vm273, %v3266, 0.0
    %v3349 = vadd.f32 %v3347, %v3348
    %v3350 = vsel %vm273, %v3327, 0.0
    %v3351 = vadd.f32 %v3349, %v3350
    %v3352 = vsel %vm273, %v3149, 0.0
    %v3353 = vsel %vm273, %v3210, 0.0
    %v3354 = vadd.f32 %v3352, %v3353
    %v3355 = vsel %vm273, %v3271, 0.0
    %v3356 = vadd.f32 %v3354, %v3355
    %v3357 = vsel %vm273, %v3332, 0.0
    %v3358 = vadd.f32 %v3356, %v3357
    %v3359 = vsel %vm273, %v3152, 0.0
    %v3360 = vsel %vm273, %v3213, 0.0
    %v3361 = vadd.f32 %v3359, %v3360
    %v3362 = vsel %vm273, %v3274, 0.0
    %v3363 = vadd.f32 %v3361, %v3362
    %v3364 = vsel %vm273, %v3335, 0.0
    %v3365 = vadd.f32 %v3363, %v3364
    %v3366 = vadd.f32 %v297, %v3344
    %v3367 = vadd.f32 %v298, %v3351
    %v3368 = vadd.f32 %v299, %v3358
    %v3369 = vadd.f32 %v300, %v3365
    %v3370 = vld [vmem:[%s10] sm:$0x1]
    %v3372 = vlaneseq
    %v3373 = vshrl.u32 %v3372, 7
    %v3374 = vsub.s32 0, %v3373
    %v3375 = vrot.slane %v3370, %v3374
    %v3377 = vadd.f32 %v3366, %v3375
    %v3378 = vadd.f32 %v3367, %v3375
    %v3379 = vadd.f32 %v3368, %v3375
    %v3380 = vadd.f32 %v3369, %v3375
    %v3381 = vld [vmem:[%s11] sm:$0x1]
    %v3382 = vld [vmem:[%s12] sm:$0x1]
    %v3383 = vsel %vm273, %v3377, 0.0
    %3384 = vadd.xlane.f32.xlu0 %v3383
    %v3385 = vpop.xlane.xlu0 %3384
    %v3386 = vsel %vm273, %v3378, 0.0
    %3387 = vadd.xlane.f32.xlu0 %v3386
    %v3388 = vpop.xlane.xlu0 %3387
    %v3389 = vsel %vm273, %v3379, 0.0
    %3390 = vadd.xlane.f32.xlu0 %v3389
    %v3391 = vpop.xlane.xlu0 %3390
    %v3392 = vsel %vm273, %v3380, 0.0
    %3393 = vadd.xlane.f32.xlu0 %v3392
    %v3394 = vpop.xlane.xlu0 %3393
    %v3395 = vmul.f32 %v3385, %v319
    %v3396 = vmul.f32 %v3388, %v319
    %v3397 = vmul.f32 %v3391, %v319
    %v3398 = vmul.f32 %v3394, %v319
    %v3399 = vsub.f32 %v3377, %v3395
    %v3400 = vsub.f32 %v3378, %v3396
    %v3401 = vsub.f32 %v3379, %v3397
    %v3402 = vsub.f32 %v3380, %v3398
    %v3403 = vmul.f32 %v3399, %v3399
    %v3404 = vmul.f32 %v3400, %v3400
    %v3405 = vmul.f32 %v3401, %v3401
    %v3406 = vmul.f32 %v3402, %v3402
    %v3407 = vsel %vm273, %v3403, 0.0
    %3408 = vadd.xlane.f32.xlu0 %v3407
    %v3409 = vpop.xlane.xlu0 %3408
    %v3410 = vsel %vm273, %v3404, 0.0
    %3411 = vadd.xlane.f32.xlu0 %v3410
    %v3412 = vpop.xlane.xlu0 %3411
    %v3413 = vsel %vm273, %v3405, 0.0
    %3414 = vadd.xlane.f32.xlu0 %v3413
    %v3415 = vpop.xlane.xlu0 %3414
    %v3416 = vsel %vm273, %v3406, 0.0
    %3417 = vadd.xlane.f32.xlu0 %v3416
    %v3418 = vpop.xlane.xlu0 %3417
    %v3419 = vmul.f32 %v3409, %v319
    %v3420 = vmul.f32 %v3412, %v319
    %v3421 = vmul.f32 %v3415, %v319
    %v3422 = vmul.f32 %v3418, %v319
    %v3423 = vadd.f32 %v3419, 1e-06
    %v3424 = vadd.f32 %v3420, 1e-06
    %v3425 = vadd.f32 %v3421, 1e-06
    %v3426 = vadd.f32 %v3422, 1e-06
    %v3427 = vrsqrt.pop %v3423
    %v3428 = vrsqrt.pop %v3424
    %v3429 = vrsqrt.pop %v3425
    %v3430 = vrsqrt.pop %v3426
    %v3431 = vmul.f32 %v3399, %v3427
    %v3432 = vmul.f32 %v3400, %v3428
    %v3433 = vmul.f32 %v3401, %v3429
    %v3434 = vmul.f32 %v3402, %v3430
    %v3436 = vlaneseq
    %v3437 = vshrl.u32 %v3436, 7
    %v3438 = vsub.s32 0, %v3437
    %v3439 = vrot.slane %v3381, %v3438
    %v3441 = vmul.f32 %v3431, %v3439
    %v3442 = vmul.f32 %v3432, %v3439
    %v3443 = vmul.f32 %v3433, %v3439
    %v3444 = vmul.f32 %v3434, %v3439
    %v3446 = vlaneseq
    %v3447 = vshrl.u32 %v3446, 7
    %v3448 = vsub.s32 0, %v3447
    %v3449 = vrot.slane %v3382, %v3448
    %v3451 = vadd.f32 %v3441, %v3449
    %v3452 = vadd.f32 %v3442, %v3449
    %v3453 = vadd.f32 %v3443, %v3449
    %v3454 = vadd.f32 %v3444, %v3449
    %v3455 = vpack.c.bf16 %v3452, %v3451
    %v3456 = vpack.c.bf16 %v3454, %v3453
    %v3457 = vld [vmem:[%s13] sm:$0xff]
    %v3458 = vld [vmem:[%s13 + $0x8] sm:$0xff]
    %v3459 = vld [vmem:[%s13 + $0x10] sm:$0xff]
    %v3460 = vld [vmem:[%s13 + $0x18] sm:$0xff]
    %v3461 = vld [vmem:[%s13 + $0x20] sm:$0xff]
    %v3462 = vld [vmem:[%s13 + $0x28] sm:$0xff]
    %v3463 = vld [vmem:[%s13 + $0x30] sm:$0xff]
    %v3464 = vld [vmem:[%s13 + $0x38] sm:$0xff]
    %v3465 = vld [vmem:[%s14] sm:$0x3]
    %v3467 = vlaneseq
    %v3468 = vshrl.u32 %v3467, 7
    %v3469 = vsub.s32 0, %v3468
    %v3470 = vrot.slane %v3465, %v3469
    %v3471 = vlaneseq
    %v3472 = vshrl.u32 %v3471, 7
    %v3473 = vsub.s32 1, %v3472
    %v3474 = vrot.slane %v3465, %v3473
    %v3485 = vunpack.c.l.b16 %v3457
    %v3486 = vunpack.c.h.b16 %v3457
    %v3487 = vunpack.c.l.b16 %v3458
    %v3488 = vunpack.c.h.b16 %v3458
    %v3489 = vunpack.c.l.b16 %v3459
    %v3490 = vunpack.c.h.b16 %v3459
    %v3491 = vunpack.c.l.b16 %v3460
    %v3492 = vunpack.c.h.b16 %v3460
    %v3493 = vunpack.c.l.b16 %v3461
    %v3494 = vunpack.c.h.b16 %v3461
    %v3495 = vunpack.c.l.b16 %v3462
    %v3496 = vunpack.c.h.b16 %v3462
    %v3497 = vunpack.c.l.b16 %v3463
    %v3498 = vunpack.c.h.b16 %v3463
    %v3499 = vunpack.c.l.b16 %v3464
    %v3500 = vunpack.c.h.b16 %v3464
    %v3501 = vpack.c.b16 %v3487, %v3485
    %v3502 = vpack.c.b16 %v3488, %v3486
    %v3503 = vpack.c.b16 %v3491, %v3489
    %v3504 = vpack.c.b16 %v3492, %v3490
    %v3505 = vpack.c.b16 %v3495, %v3493
    %v3506 = vpack.c.b16 %v3496, %v3494
    %v3507 = vpack.c.b16 %v3499, %v3497
    %v3508 = vpack.c.b16 %v3500, %v3498
    %v3518 = vsel %vm273, %v3455, 0
    %v3521 = vsel %vm273, %v3456, 0
    %3523 = vmatprep.subr.bf16.mxu0 %v3502
    %3524 = vmatpush1.bf16.msra.mxu0 %v3501
    %3525 = vmatprep.subr.bf16.mxu0 %v3504
    %3526 = vmatpush1.bf16.msra.mxu0 %v3503
    %3527 = vmatprep.subr.bf16.mxu0 %v3506
    %3528 = vmatpush1.bf16.msra.mxu0 %v3505
    %3529 = vmatprep.subr.bf16.mxu0 %v3508
    %3530 = vmatpush1.bf16.msra.mxu0 %v3507
    %3531 = vmatprep.subr.bf16.mxu0 0
    %3532 = vmatpush1.bf16.msra.mxu0 0
    %3533 = vmatprep.subr.bf16.mxu0 0
    %3534 = vmatpush1.bf16.msra.mxu0 0
    %3535 = vmatprep.subr.bf16.mxu0 0
    %3536 = vmatpush1.bf16.msra.mxu0 0
    %3537 = vmatprep.subr.bf16.mxu0 0
    %3538 = vmatpush1.bf16.msra.mxu0 0
    %3539 = vmatprep.subr.bf16.mxu0 0
    %3540 = vmatpush1.bf16.msra.mxu0 0
    %3541 = vmatprep.subr.bf16.mxu0 0
    %3542 = vmatpush1.bf16.msra.mxu0 0
    %3543 = vmatprep.subr.bf16.mxu0 0
    %3544 = vmatpush1.bf16.msra.mxu0 0
    %3545 = vmatprep.subr.bf16.mxu0 0
    %3546 = vmatpush1.bf16.msra.mxu0 0
    %3547 = vmatprep.subr.bf16.mxu0 0
    %3548 = vmatpush1.bf16.msra.mxu0 0
    %3549 = vmatprep.subr.bf16.mxu0 0
    %3550 = vmatpush1.bf16.msra.mxu0 0
    %3551 = vmatprep.subr.bf16.mxu0 0
    %3552 = vmatpush1.bf16.msra.mxu0 0
    %3553 = vmatprep.subr.bf16.mxu0 0
    %3554 = vmatpush1.bf16.msra.mxu0 0
    %3555 = vmatprep.mubr.bf16.mxu0 0
    %3556 = vmatmul.mubr.bf16.gmra.mrb[0].mxu0 %v3518
    %v3557 = vpop.f32.mrb[0].mxu0
    %v3558 = vadd.f32 %v3470, %v3557
    %v3559 = vpop.f32.mrb[0].mxu0
    %v3560 = vadd.f32 %v3474, %v3559
    %v3561 = vpop.f32.mrb[0].mxu0
    %v3562 = vadd.f32 %v3470, %v3561
    %v3563 = vpop.f32.mrb[0].mxu0
    %v3564 = vadd.f32 %v3474, %v3563
    %3565 = vmatprep.mubr.bf16.mxu0 0
    %3566 = vmatmul.mubr.bf16.gmra.mrb[0].mxu0 %v3521
    %v3567 = vpop.f32.mrb[0].mxu0
    %v3568 = vadd.f32 %v3470, %v3567
    %v3569 = vpop.f32.mrb[0].mxu0
    %v3570 = vadd.f32 %v3474, %v3569
    %v3571 = vpop.f32.mrb[0].mxu0
    %v3572 = vadd.f32 %v3470, %v3571
    %v3573 = vpop.f32.mrb[0].mxu0
    %v3574 = vadd.f32 %v3474, %v3573
    %3575 = vdwg.mxu0
    %v3576 = vmul.f32 %v3558, 0.5
    %v3577 = vmul.f32 %v3560, 0.5
    %v3578 = vmul.f32 %v3562, 0.5
    %v3579 = vmul.f32 %v3564, 0.5
    %v3580 = vmul.f32 %v3568, 0.5
    %v3581 = vmul.f32 %v3570, 0.5
    %v3582 = vmul.f32 %v3572, 0.5
    %v3583 = vmul.f32 %v3574, 0.5
    %v3584 = vmul.f32 %v3558, 0.70710677
    %v3585 = vmul.f32 %v3560, 0.70710677
    %v3586 = vmul.f32 %v3562, 0.70710677
    %v3587 = vmul.f32 %v3564, 0.70710677
    %v3588 = vmul.f32 %v3568, 0.70710677
    %v3589 = vmul.f32 %v3570, 0.70710677
    %v3590 = vmul.f32 %v3572, 0.70710677
    %v3591 = vmul.f32 %v3574, 0.70710677
    %v3592 = verf.f32.pop %v3584
    %v3593 = verf.f32.pop %v3585
    %v3594 = verf.f32.pop %v3586
    %v3595 = verf.f32.pop %v3587
    %v3596 = verf.f32.pop %v3588
    %v3597 = verf.f32.pop %v3589
    %v3598 = verf.f32.pop %v3590
    %v3599 = verf.f32.pop %v3591
    %v3600 = vadd.f32 %v3592, 1.0
    %v3601 = vadd.f32 %v3593, 1.0
    %v3602 = vadd.f32 %v3594, 1.0
    %v3603 = vadd.f32 %v3595, 1.0
    %v3604 = vadd.f32 %v3596, 1.0
    %v3605 = vadd.f32 %v3597, 1.0
    %v3606 = vadd.f32 %v3598, 1.0
    %v3607 = vadd.f32 %v3599, 1.0
    %v3608 = vmul.f32 %v3576, %v3600
    %v3609 = vmul.f32 %v3577, %v3601
    %v3610 = vmul.f32 %v3578, %v3602
    %v3611 = vmul.f32 %v3579, %v3603
    %v3612 = vmul.f32 %v3580, %v3604
    %v3613 = vmul.f32 %v3581, %v3605
    %v3614 = vmul.f32 %v3582, %v3606
    %v3615 = vmul.f32 %v3583, %v3607
    %v3616 = vpack.c.bf16 %v3610, %v3608
    %v3617 = vpack.c.bf16 %v3611, %v3609
    %v3618 = vpack.c.bf16 %v3614, %v3612
    %v3619 = vpack.c.bf16 %v3615, %v3613
    %v3620 = vld [vmem:[%s15] sm:$0xf]
    %v3621 = vld [vmem:[%s15 + $0x4] sm:$0xf]
    %v3622 = vld [vmem:[%s15 + $0x8] sm:$0xf]
    %v3623 = vld [vmem:[%s15 + $0xc] sm:$0xf]
    %v3624 = vld [vmem:[%s15 + $0x10] sm:$0xf]
    %v3625 = vld [vmem:[%s15 + $0x14] sm:$0xf]
    %v3626 = vld [vmem:[%s15 + $0x18] sm:$0xf]
    %v3627 = vld [vmem:[%s15 + $0x1c] sm:$0xf]
    %v3628 = vld [vmem:[%s15 + $0x20] sm:$0xf]
    %v3629 = vld [vmem:[%s15 + $0x24] sm:$0xf]
    %v3630 = vld [vmem:[%s15 + $0x28] sm:$0xf]
    %v3631 = vld [vmem:[%s15 + $0x2c] sm:$0xf]
    %v3632 = vld [vmem:[%s15 + $0x30] sm:$0xf]
    %v3633 = vld [vmem:[%s15 + $0x34] sm:$0xf]
    %v3634 = vld [vmem:[%s15 + $0x38] sm:$0xf]
    %v3635 = vld [vmem:[%s15 + $0x3c] sm:$0xf]
    %v3636 = vld [vmem:[%s15 + $0x40] sm:$0xf]
    %v3637 = vld [vmem:[%s15 + $0x44] sm:$0xf]
    %v3638 = vld [vmem:[%s15 + $0x48] sm:$0xf]
    %v3639 = vld [vmem:[%s15 + $0x4c] sm:$0xf]
    %v3640 = vld [vmem:[%s15 + $0x50] sm:$0xf]
    %v3641 = vld [vmem:[%s15 + $0x54] sm:$0xf]
    %v3642 = vld [vmem:[%s15 + $0x58] sm:$0xf]
    %v3643 = vld [vmem:[%s15 + $0x5c] sm:$0xf]
    %v3644 = vld [vmem:[%s15 + $0x60] sm:$0xf]
    %v3645 = vld [vmem:[%s15 + $0x64] sm:$0xf]
    %v3646 = vld [vmem:[%s15 + $0x68] sm:$0xf]
    %v3647 = vld [vmem:[%s15 + $0x6c] sm:$0xf]
    %v3648 = vld [vmem:[%s15 + $0x70] sm:$0xf]
    %v3649 = vld [vmem:[%s15 + $0x74] sm:$0xf]
    %v3650 = vld [vmem:[%s15 + $0x78] sm:$0xf]
    %v3651 = vld [vmem:[%s15 + $0x7c] sm:$0xf]
    %v3684 = vunpack.c.l.b16 %v3620
    %v3685 = vunpack.c.l.b16 %v3621
    %v3686 = vunpack.c.l.b16 %v3622
    %v3687 = vunpack.c.l.b16 %v3623
    %v3688 = vunpack.c.l.b16 %v3624
    %v3689 = vunpack.c.l.b16 %v3625
    %v3690 = vunpack.c.l.b16 %v3626
    %v3691 = vunpack.c.l.b16 %v3627
    %v3692 = vunpack.c.l.b16 %v3628
    %v3693 = vunpack.c.l.b16 %v3629
    %v3694 = vunpack.c.l.b16 %v3630
    %v3695 = vunpack.c.l.b16 %v3631
    %v3696 = vunpack.c.l.b16 %v3632
    %v3697 = vunpack.c.l.b16 %v3633
    %v3698 = vunpack.c.l.b16 %v3634
    %v3699 = vunpack.c.l.b16 %v3635
    %v3700 = vunpack.c.l.b16 %v3636
    %v3701 = vunpack.c.l.b16 %v3637
    %v3702 = vunpack.c.l.b16 %v3638
    %v3703 = vunpack.c.l.b16 %v3639
    %v3704 = vunpack.c.l.b16 %v3640
    %v3705 = vunpack.c.l.b16 %v3641
    %v3706 = vunpack.c.l.b16 %v3642
    %v3707 = vunpack.c.l.b16 %v3643
    %v3708 = vunpack.c.l.b16 %v3644
    %v3709 = vunpack.c.l.b16 %v3645
    %v3710 = vunpack.c.l.b16 %v3646
    %v3711 = vunpack.c.l.b16 %v3647
    %v3712 = vunpack.c.l.b16 %v3648
    %v3713 = vunpack.c.l.b16 %v3649
    %v3714 = vunpack.c.l.b16 %v3650
    %v3715 = vunpack.c.l.b16 %v3651
    %v3716 = vpack.c.b16 %v3685, %v3684
    %v3717 = vpack.c.b16 %v3687, %v3686
    %v3718 = vpack.c.b16 %v3689, %v3688
    %v3719 = vpack.c.b16 %v3691, %v3690
    %v3720 = vpack.c.b16 %v3693, %v3692
    %v3721 = vpack.c.b16 %v3695, %v3694
    %v3722 = vpack.c.b16 %v3697, %v3696
    %v3723 = vpack.c.b16 %v3699, %v3698
    %v3724 = vpack.c.b16 %v3701, %v3700
    %v3725 = vpack.c.b16 %v3703, %v3702
    %v3726 = vpack.c.b16 %v3705, %v3704
    %v3727 = vpack.c.b16 %v3707, %v3706
    %v3728 = vpack.c.b16 %v3709, %v3708
    %v3729 = vpack.c.b16 %v3711, %v3710
    %v3730 = vpack.c.b16 %v3713, %v3712
    %v3731 = vpack.c.b16 %v3715, %v3714
    %3748 = vmatprep.subr.bf16.mxu0 0
    %3749 = vmatpush1.bf16.msra.mxu0 %v3716
    %3750 = vmatprep.subr.bf16.mxu0 0
    %3751 = vmatpush1.bf16.msra.mxu0 %v3717
    %3752 = vmatprep.subr.bf16.mxu0 0
    %3753 = vmatpush1.bf16.msra.mxu0 %v3718
    %3754 = vmatprep.subr.bf16.mxu0 0
    %3755 = vmatpush1.bf16.msra.mxu0 %v3719
    %3756 = vmatprep.subr.bf16.mxu0 0
    %3757 = vmatpush1.bf16.msra.mxu0 %v3720
    %3758 = vmatprep.subr.bf16.mxu0 0
    %3759 = vmatpush1.bf16.msra.mxu0 %v3721
    %3760 = vmatprep.subr.bf16.mxu0 0
    %3761 = vmatpush1.bf16.msra.mxu0 %v3722
    %3762 = vmatprep.subr.bf16.mxu0 0
    %3763 = vmatpush1.bf16.msra.mxu0 %v3723
    %3764 = vmatprep.subr.bf16.mxu0 0
    %3765 = vmatpush1.bf16.msra.mxu0 %v3724
    %3766 = vmatprep.subr.bf16.mxu0 0
    %3767 = vmatpush1.bf16.msra.mxu0 %v3725
    %3768 = vmatprep.subr.bf16.mxu0 0
    %3769 = vmatpush1.bf16.msra.mxu0 %v3726
    %3770 = vmatprep.subr.bf16.mxu0 0
    %3771 = vmatpush1.bf16.msra.mxu0 %v3727
    %3772 = vmatprep.subr.bf16.mxu0 0
    %3773 = vmatpush1.bf16.msra.mxu0 %v3728
    %3774 = vmatprep.subr.bf16.mxu0 0
    %3775 = vmatpush1.bf16.msra.mxu0 %v3729
    %3776 = vmatprep.subr.bf16.mxu0 0
    %3777 = vmatpush1.bf16.msra.mxu0 %v3730
    %3778 = vmatprep.subr.bf16.mxu0 0
    %3779 = vmatpush1.bf16.msra.mxu0 %v3731
    %3780 = vmatprep.mubr.bf16.mxu0 %v3617
    %3781 = vmatmul.mubr.bf16.gmra.mrb[0].mxu0 %v3616
    %v3782 = vpop.f32.mrb[0].mxu0
    %v3783 = vadd.f32 0.0, %v3782
    %v3784 = vpop.f32.mrb[0].mxu0
    %v3785 = vpop.f32.mrb[0].mxu0
    %v3786 = vadd.f32 0.0, %v3785
    %v3787 = vpop.f32.mrb[0].mxu0
    %3788 = vmatprep.mubr.bf16.mxu0 %v3619
    %3789 = vmatmul.mubr.bf16.gmra.mrb[0].mxu0 %v3618
    %v3790 = vpop.f32.mrb[0].mxu0
    %v3791 = vadd.f32 0.0, %v3790
    %v3792 = vpop.f32.mrb[0].mxu0
    %v3793 = vpop.f32.mrb[0].mxu0
    %v3794 = vadd.f32 0.0, %v3793
    %v3795 = vpop.f32.mrb[0].mxu0
    %3796 = vdwg.mxu0
    %v3797 = vadd.f32 %v3377, %v3783
    %v3798 = vadd.f32 %v3378, %v3786
    %v3799 = vadd.f32 %v3379, %v3791
    %v3800 = vadd.f32 %v3380, %v3794
    %v3801 = vld [vmem:[%s16] sm:$0x1]
    %v3803 = vlaneseq
    %v3804 = vshrl.u32 %v3803, 7
    %v3805 = vsub.s32 0, %v3804
    %v3806 = vrot.slane %v3801, %v3805
    %v3808 = vadd.f32 %v3797, %v3806
    %v3809 = vadd.f32 %v3798, %v3806
    %v3810 = vadd.f32 %v3799, %v3806
    %v3811 = vadd.f32 %v3800, %v3806
    %s3812 = scalar_lea.vmem %s5, 1
    %v3813 = vld [vmem:[%s3812] sm:$0x1]
    %s3814 = scalar_lea.vmem %s6, 1
    %v3815 = vld [vmem:[%s3814] sm:$0x1]
    %v3816 = vsel %vm273, %v3808, 0.0
    %3817 = vadd.xlane.f32.xlu0 %v3816
    %v3818 = vpop.xlane.xlu0 %3817
    %v3819 = vsel %vm273, %v3809, 0.0
    %3820 = vadd.xlane.f32.xlu0 %v3819
    %v3821 = vpop.xlane.xlu0 %3820
    %v3822 = vsel %vm273, %v3810, 0.0
    %3823 = vadd.xlane.f32.xlu0 %v3822
    %v3824 = vpop.xlane.xlu0 %3823
    %v3825 = vsel %vm273, %v3811, 0.0
    %3826 = vadd.xlane.f32.xlu0 %v3825
    %v3827 = vpop.xlane.xlu0 %3826
    %v3828 = vmul.f32 %v3818, %v319
    %v3829 = vmul.f32 %v3821, %v319
    %v3830 = vmul.f32 %v3824, %v319
    %v3831 = vmul.f32 %v3827, %v319
    %v3832 = vsub.f32 %v3808, %v3828
    %v3833 = vsub.f32 %v3809, %v3829
    %v3834 = vsub.f32 %v3810, %v3830
    %v3835 = vsub.f32 %v3811, %v3831
    %v3836 = vmul.f32 %v3832, %v3832
    %v3837 = vmul.f32 %v3833, %v3833
    %v3838 = vmul.f32 %v3834, %v3834
    %v3839 = vmul.f32 %v3835, %v3835
    %v3840 = vsel %vm273, %v3836, 0.0
    %3841 = vadd.xlane.f32.xlu0 %v3840
    %v3842 = vpop.xlane.xlu0 %3841
    %v3843 = vsel %vm273, %v3837, 0.0
    %3844 = vadd.xlane.f32.xlu0 %v3843
    %v3845 = vpop.xlane.xlu0 %3844
    %v3846 = vsel %vm273, %v3838, 0.0
    %3847 = vadd.xlane.f32.xlu0 %v3846
    %v3848 = vpop.xlane.xlu0 %3847
    %v3849 = vsel %vm273, %v3839, 0.0
    %3850 = vadd.xlane.f32.xlu0 %v3849
    %v3851 = vpop.xlane.xlu0 %3850
    %v3852 = vmul.f32 %v3842, %v319
    %v3853 = vmul.f32 %v3845, %v319
    %v3854 = vmul.f32 %v3848, %v319
    %v3855 = vmul.f32 %v3851, %v319
    %v3856 = vadd.f32 %v3852, 1e-06
    %v3857 = vadd.f32 %v3853, 1e-06
    %v3858 = vadd.f32 %v3854, 1e-06
    %v3859 = vadd.f32 %v3855, 1e-06
    %v3860 = vrsqrt.pop %v3856
    %v3861 = vrsqrt.pop %v3857
    %v3862 = vrsqrt.pop %v3858
    %v3863 = vrsqrt.pop %v3859
    %v3864 = vmul.f32 %v3832, %v3860
    %v3865 = vmul.f32 %v3833, %v3861
    %v3866 = vmul.f32 %v3834, %v3862
    %v3867 = vmul.f32 %v3835, %v3863
    %v3869 = vlaneseq
    %v3870 = vshrl.u32 %v3869, 7
    %v3871 = vsub.s32 0, %v3870
    %v3872 = vrot.slane %v3813, %v3871
    %v3874 = vmul.f32 %v3864, %v3872
    %v3875 = vmul.f32 %v3865, %v3872
    %v3876 = vmul.f32 %v3866, %v3872
    %v3877 = vmul.f32 %v3867, %v3872
    %v3879 = vlaneseq
    %v3880 = vshrl.u32 %v3879, 7
    %v3881 = vsub.s32 0, %v3880
    %v3882 = vrot.slane %v3815, %v3881
    %v3884 = vadd.f32 %v3874, %v3882
    %v3885 = vadd.f32 %v3875, %v3882
    %v3886 = vadd.f32 %v3876, %v3882
    %v3887 = vadd.f32 %v3877, %v3882
    %v3888 = vpack.c.bf16 %v3885, %v3884
    %v3889 = vpack.c.bf16 %v3887, %v3886
    %s3890 = scalar_lea.vmem %s7, 96
    %v3891 = vld [vmem:[%s3890] sm:$0xf]
    %v3892 = vld [vmem:[%s3890 + $0x4] sm:$0xf]
    %v3893 = vld [vmem:[%s3890 + $0x8] sm:$0xf]
    %v3894 = vld [vmem:[%s3890 + $0xc] sm:$0xf]
    %v3895 = vld [vmem:[%s3890 + $0x10] sm:$0xf]
    %v3896 = vld [vmem:[%s3890 + $0x14] sm:$0xf]
    %v3897 = vld [vmem:[%s3890 + $0x18] sm:$0xf]
    %v3898 = vld [vmem:[%s3890 + $0x1c] sm:$0xf]
    %v3899 = vld [vmem:[%s3890 + $0x20] sm:$0xf]
    %v3900 = vld [vmem:[%s3890 + $0x24] sm:$0xf]
    %v3901 = vld [vmem:[%s3890 + $0x28] sm:$0xf]
    %v3902 = vld [vmem:[%s3890 + $0x2c] sm:$0xf]
    %v3903 = vld [vmem:[%s3890 + $0x30] sm:$0xf]
    %v3904 = vld [vmem:[%s3890 + $0x34] sm:$0xf]
    %v3905 = vld [vmem:[%s3890 + $0x38] sm:$0xf]
    %v3906 = vld [vmem:[%s3890 + $0x3c] sm:$0xf]
    %v3907 = vld [vmem:[%s3890 + $0x40] sm:$0xf]
    %v3908 = vld [vmem:[%s3890 + $0x44] sm:$0xf]
    %v3909 = vld [vmem:[%s3890 + $0x48] sm:$0xf]
    %v3910 = vld [vmem:[%s3890 + $0x4c] sm:$0xf]
    %v3911 = vld [vmem:[%s3890 + $0x50] sm:$0xf]
    %v3912 = vld [vmem:[%s3890 + $0x54] sm:$0xf]
    %v3913 = vld [vmem:[%s3890 + $0x58] sm:$0xf]
    %v3914 = vld [vmem:[%s3890 + $0x5c] sm:$0xf]
    %s3915 = scalar_lea.vmem %s8, 3
    %v3916 = vld [vmem:[%s3915] sm:$0x1]
    %v3917 = vld [vmem:[%s3915 + $0x1] sm:$0x1]
    %v3918 = vld [vmem:[%s3915 + $0x2] sm:$0x1]
    %v3920 = vlaneseq
    %v3921 = vshrl.u32 %v3920, 7
    %v3922 = vsub.s32 0, %v3921
    %v3923 = vrot.slane %v3916, %v3922
    %v3933 = vunpack.c.l.b16 %v3891
    %v3934 = vunpack.c.l.b16 %v3892
    %v3935 = vunpack.c.l.b16 %v3893
    %v3936 = vunpack.c.l.b16 %v3894
    %v3937 = vunpack.c.l.b16 %v3895
    %v3938 = vunpack.c.l.b16 %v3896
    %v3939 = vunpack.c.l.b16 %v3897
    %v3940 = vunpack.c.l.b16 %v3898
    %v3941 = vpack.c.b16 %v3934, %v3933
    %v3942 = vpack.c.b16 %v3936, %v3935
    %v3943 = vpack.c.b16 %v3938, %v3937
    %v3944 = vpack.c.b16 %v3940, %v3939
    %v3950 = vsel %vm273, %v3888, 0
    %v3953 = vsel %vm273, %v3889, 0
    %3955 = vmatprep.subr.bf16.mxu0 0
    %3956 = vmatpush1.bf16.msra.mxu0 %v3941
    %3957 = vmatprep.subr.bf16.mxu0 0
    %3958 = vmatpush1.bf16.msra.mxu0 %v3942
    %3959 = vmatprep.subr.bf16.mxu0 0
    %3960 = vmatpush1.bf16.msra.mxu0 %v3943
    %3961 = vmatprep.subr.bf16.mxu0 0
    %3962 = vmatpush1.bf16.msra.mxu0 %v3944
    %3963 = vmatprep.subr.bf16.mxu0 0
    %3964 = vmatpush1.bf16.msra.mxu0 0
    %3965 = vmatprep.subr.bf16.mxu0 0
    %3966 = vmatpush1.bf16.msra.mxu0 0
    %3967 = vmatprep.subr.bf16.mxu0 0
    %3968 = vmatpush1.bf16.msra.mxu0 0
    %3969 = vmatprep.subr.bf16.mxu0 0
    %3970 = vmatpush1.bf16.msra.mxu0 0
    %3971 = vmatprep.subr.bf16.mxu0 0
    %3972 = vmatpush1.bf16.msra.mxu0 0
    %3973 = vmatprep.subr.bf16.mxu0 0
    %3974 = vmatpush1.bf16.msra.mxu0 0
    %3975 = vmatprep.subr.bf16.mxu0 0
    %3976 = vmatpush1.bf16.msra.mxu0 0
    %3977 = vmatprep.subr.bf16.mxu0 0
    %3978 = vmatpush1.bf16.msra.mxu0 0
    %3979 = vmatprep.subr.bf16.mxu0 0
    %3980 = vmatpush1.bf16.msra.mxu0 0
    %3981 = vmatprep.subr.bf16.mxu0 0
    %3982 = vmatpush1.bf16.msra.mxu0 0
    %3983 = vmatprep.subr.bf16.mxu0 0
    %3984 = vmatpush1.bf16.msra.mxu0 0
    %3985 = vmatprep.subr.bf16.mxu0 0
    %3986 = vmatpush1.bf16.msra.mxu0 0
    %3987 = vmatprep.mubr.bf16.mxu0 0
    %3988 = vmatmul.mubr.bf16.gmra.mrb[0].mxu0 %v3950
    %v3989 = vpop.f32.mrb[0].mxu0
    %v3990 = vadd.f32 %v3923, %v3989
    %v3991 = vpop.f32.mrb[0].mxu0
    %v3992 = vpop.f32.mrb[0].mxu0
    %v3993 = vadd.f32 %v3923, %v3992
    %v3994 = vpop.f32.mrb[0].mxu0
    %3995 = vmatprep.mubr.bf16.mxu0 0
    %3996 = vmatmul.mubr.bf16.gmra.mrb[0].mxu0 %v3953
    %v3997 = vpop.f32.mrb[0].mxu0
    %v3998 = vadd.f32 %v3923, %v3997
    %v3999 = vpop.f32.mrb[0].mxu0
    %v4000 = vpop.f32.mrb[0].mxu0
    %v4001 = vadd.f32 %v3923, %v4000
    %v4002 = vpop.f32.mrb[0].mxu0
    %4003 = vdwg.mxu0
    %v4005 = vlaneseq
    %v4006 = vshrl.u32 %v4005, 7
    %v4007 = vsub.s32 0, %v4006
    %v4008 = vrot.slane %v3917, %v4007
    %v4018 = vunpack.c.l.b16 %v3899
    %v4019 = vunpack.c.l.b16 %v3900
    %v4020 = vunpack.c.l.b16 %v3901
    %v4021 = vunpack.c.l.b16 %v3902
    %v4022 = vunpack.c.l.b16 %v3903
    %v4023 = vunpack.c.l.b16 %v3904
    %v4024 = vunpack.c.l.b16 %v3905
    %v4025 = vunpack.c.l.b16 %v3906
    %v4026 = vpack.c.b16 %v4019, %v4018
    %v4027 = vpack.c.b16 %v4021, %v4020
    %v4028 = vpack.c.b16 %v4023, %v4022
    %v4029 = vpack.c.b16 %v4025, %v4024
    %4034 = vmatprep.subr.bf16.mxu0 0
    %4035 = vmatpush1.bf16.msra.mxu0 %v4026
    %4036 = vmatprep.subr.bf16.mxu0 0
    %4037 = vmatpush1.bf16.msra.mxu0 %v4027
    %4038 = vmatprep.subr.bf16.mxu0 0
    %4039 = vmatpush1.bf16.msra.mxu0 %v4028
    %4040 = vmatprep.subr.bf16.mxu0 0
    %4041 = vmatpush1.bf16.msra.mxu0 %v4029
    %4042 = vmatprep.subr.bf16.mxu0 0
    %4043 = vmatpush1.bf16.msra.mxu0 0
    %4044 = vmatprep.subr.bf16.mxu0 0
    %4045 = vmatpush1.bf16.msra.mxu0 0
    %4046 = vmatprep.subr.bf16.mxu0 0
    %4047 = vmatpush1.bf16.msra.mxu0 0
    %4048 = vmatprep.subr.bf16.mxu0 0
    %4049 = vmatpush1.bf16.msra.mxu0 0
    %4050 = vmatprep.subr.bf16.mxu0 0
    %4051 = vmatpush1.bf16.msra.mxu0 0
    %4052 = vmatprep.subr.bf16.mxu0 0
    %4053 = vmatpush1.bf16.msra.mxu0 0
    %4054 = vmatprep.subr.bf16.mxu0 0
    %4055 = vmatpush1.bf16.msra.mxu0 0
    %4056 = vmatprep.subr.bf16.mxu0 0
    %4057 = vmatpush1.bf16.msra.mxu0 0
    %4058 = vmatprep.subr.bf16.mxu0 0
    %4059 = vmatpush1.bf16.msra.mxu0 0
    %4060 = vmatprep.subr.bf16.mxu0 0
    %4061 = vmatpush1.bf16.msra.mxu0 0
    %4062 = vmatprep.subr.bf16.mxu0 0
    %4063 = vmatpush1.bf16.msra.mxu0 0
    %4064 = vmatprep.subr.bf16.mxu0 0
    %4065 = vmatpush1.bf16.msra.mxu0 0
    %4066 = vmatprep.mubr.bf16.mxu0 0
    %4067 = vmatmul.mubr.bf16.gmra.mrb[0].mxu0 %v3950
    %v4068 = vpop.f32.mrb[0].mxu0
    %v4069 = vadd.f32 %v4008, %v4068
    %v4070 = vpop.f32.mrb[0].mxu0
    %v4071 = vpop.f32.mrb[0].mxu0
    %v4072 = vadd.f32 %v4008, %v4071
    %v4073 = vpop.f32.mrb[0].mxu0
    %4074 = vmatprep.mubr.bf16.mxu0 0
    %4075 = vmatmul.mubr.bf16.gmra.mrb[0].mxu0 %v3953
    %v4076 = vpop.f32.mrb[0].mxu0
    %v4077 = vadd.f32 %v4008, %v4076
    %v4078 = vpop.f32.mrb[0].mxu0
    %v4079 = vpop.f32.mrb[0].mxu0
    %v4080 = vadd.f32 %v4008, %v4079
    %v4081 = vpop.f32.mrb[0].mxu0
    %4082 = vdwg.mxu0
    %v4084 = vlaneseq
    %v4085 = vshrl.u32 %v4084, 7
    %v4086 = vsub.s32 0, %v4085
    %v4087 = vrot.slane %v3918, %v4086
    %v4097 = vunpack.c.l.b16 %v3907
    %v4098 = vunpack.c.l.b16 %v3908
    %v4099 = vunpack.c.l.b16 %v3909
    %v4100 = vunpack.c.l.b16 %v3910
    %v4101 = vunpack.c.l.b16 %v3911
    %v4102 = vunpack.c.l.b16 %v3912
    %v4103 = vunpack.c.l.b16 %v3913
    %v4104 = vunpack.c.l.b16 %v3914
    %v4105 = vpack.c.b16 %v4098, %v4097
    %v4106 = vpack.c.b16 %v4100, %v4099
    %v4107 = vpack.c.b16 %v4102, %v4101
    %v4108 = vpack.c.b16 %v4104, %v4103
    %4113 = vmatprep.subr.bf16.mxu0 0
    %4114 = vmatpush1.bf16.msra.mxu0 %v4105
    %4115 = vmatprep.subr.bf16.mxu0 0
    %4116 = vmatpush1.bf16.msra.mxu0 %v4106
    %4117 = vmatprep.subr.bf16.mxu0 0
    %4118 = vmatpush1.bf16.msra.mxu0 %v4107
    %4119 = vmatprep.subr.bf16.mxu0 0
    %4120 = vmatpush1.bf16.msra.mxu0 %v4108
    %4121 = vmatprep.subr.bf16.mxu0 0
    %4122 = vmatpush1.bf16.msra.mxu0 0
    %4123 = vmatprep.subr.bf16.mxu0 0
    %4124 = vmatpush1.bf16.msra.mxu0 0
    %4125 = vmatprep.subr.bf16.mxu0 0
    %4126 = vmatpush1.bf16.msra.mxu0 0
    %4127 = vmatprep.subr.bf16.mxu0 0
    %4128 = vmatpush1.bf16.msra.mxu0 0
    %4129 = vmatprep.subr.bf16.mxu0 0
    %4130 = vmatpush1.bf16.msra.mxu0 0
    %4131 = vmatprep.subr.bf16.mxu0 0
    %4132 = vmatpush1.bf16.msra.mxu0 0
    %4133 = vmatprep.subr.bf16.mxu0 0
    %4134 = vmatpush1.bf16.msra.mxu0 0
    %4135 = vmatprep.subr.bf16.mxu0 0
    %4136 = vmatpush1.bf16.msra.mxu0 0
    %4137 = vmatprep.subr.bf16.mxu0 0
    %4138 = vmatpush1.bf16.msra.mxu0 0
    %4139 = vmatprep.subr.bf16.mxu0 0
    %4140 = vmatpush1.bf16.msra.mxu0 0
    %4141 = vmatprep.subr.bf16.mxu0 0
    %4142 = vmatpush1.bf16.msra.mxu0 0
    %4143 = vmatprep.subr.bf16.mxu0 0
    %4144 = vmatpush1.bf16.msra.mxu0 0
    %4145 = vmatprep.mubr.bf16.mxu0 0
    %4146 = vmatmul.mubr.bf16.gmra.mrb[0].mxu0 %v3950
    %v4147 = vpop.f32.mrb[0].mxu0
    %v4148 = vadd.f32 %v4087, %v4147
    %v4149 = vpop.f32.mrb[0].mxu0
    %v4150 = vpop.f32.mrb[0].mxu0
    %v4151 = vadd.f32 %v4087, %v4150
    %v4152 = vpop.f32.mrb[0].mxu0
    %4153 = vmatprep.mubr.bf16.mxu0 0
    %4154 = vmatmul.mubr.bf16.gmra.mrb[0].mxu0 %v3953
    %v4155 = vpop.f32.mrb[0].mxu0
    %v4156 = vadd.f32 %v4087, %v4155
    %v4157 = vpop.f32.mrb[0].mxu0
    %v4158 = vpop.f32.mrb[0].mxu0
    %v4159 = vadd.f32 %v4087, %v4158
    %v4160 = vpop.f32.mrb[0].mxu0
    %4161 = vdwg.mxu0
    %4166 = vrot.lane.b32.xlu0 %v3990, 112
    %v4167 = vpop.permute.xlu0 %4166
    %4168 = vrot.lane.b32.xlu0 %v3993, 112
    %v4169 = vpop.permute.xlu0 %4168
    %4170 = vrot.lane.b32.xlu0 %v3998, 112
    %v4171 = vpop.permute.xlu0 %4170
    %4172 = vrot.lane.b32.xlu0 %v4001, 112
    %v4173 = vpop.permute.xlu0 %4172
    %4178 = vrot.lane.b32.xlu0 %v3990, 96
    %v4179 = vpop.permute.xlu0 %4178
    %4180 = vrot.lane.b32.xlu0 %v3993, 96
    %v4181 = vpop.permute.xlu0 %4180
    %4182 = vrot.lane.b32.xlu0 %v3998, 96
    %v4183 = vpop.permute.xlu0 %4182
    %4184 = vrot.lane.b32.xlu0 %v4001, 96
    %v4185 = vpop.permute.xlu0 %4184
    %4190 = vrot.lane.b32.xlu0 %v3990, 80
    %v4191 = vpop.permute.xlu0 %4190
    %4192 = vrot.lane.b32.xlu0 %v3993, 80
    %v4193 = vpop.permute.xlu0 %4192
    %4194 = vrot.lane.b32.xlu0 %v3998, 80
    %v4195 = vpop.permute.xlu0 %4194
    %4196 = vrot.lane.b32.xlu0 %v4001, 80
    %v4197 = vpop.permute.xlu0 %4196
    %v4202 = vcombine.low %v3990, %v4179
    %v4203 = vcombine.high %v3990, %v4179
    %v4205 = vunpack.c.l.s4 1983009808
    %v4206 = vunpack.c.0.s8 %v4205
    %v4207 = vlaneseq
    %v4208 = vshrl.u32 %v4207, 7
    %v4209 = vsub.s32 %v4206, %v4208
    %v4210 = vrot.slane %v4202, %v4209
    %v4212 = vunpack.c.l.s4 1983009808
    %v4213 = vunpack.c.0.s8 %v4212
    %v4214 = vlaneseq
    %v4215 = vshrl.u32 %v4214, 7
    %v4216 = vsub.s32 %v4213, %v4215
    %v4217 = vrot.slane %v4203, %v4216
    %v4218 = vcombine.low %v4167, %v4191
    %v4219 = vcombine.high %v4167, %v4191
    %v4221 = vunpack.c.l.s4 1983009808
    %v4222 = vunpack.c.0.s8 %v4221
    %v4223 = vlaneseq
    %v4224 = vshrl.u32 %v4223, 7
    %v4225 = vsub.s32 %v4222, %v4224
    %v4226 = vrot.slane %v4218, %v4225
    %v4228 = vunpack.c.l.s4 1983009808
    %v4229 = vunpack.c.0.s8 %v4228
    %v4230 = vlaneseq
    %v4231 = vshrl.u32 %v4230, 7
    %v4232 = vsub.s32 %v4229, %v4231
    %v4233 = vrot.slane %v4219, %v4232
    %v4234 = vcombine.low %v4210, %v4226
    %v4235 = vcombine.high %v4210, %v4226
    %v4237 = vunpack.c.l.s4 1934713408
    %v4238 = vunpack.c.0.s8 %v4237
    %v4239 = vlaneseq
    %v4240 = vshrl.u32 %v4239, 7
    %v4241 = vsub.s32 %v4238, %v4240
    %v4242 = vrot.slane %v4234, %v4241
    %v4244 = vunpack.c.l.s4 1934713408
    %v4245 = vunpack.c.0.s8 %v4244
    %v4246 = vlaneseq
    %v4247 = vshrl.u32 %v4246, 7
    %v4248 = vsub.s32 %v4245, %v4247
    %v4249 = vrot.slane %v4235, %v4248
    %v4250 = vcombine.low %v4217, %v4233
    %v4251 = vcombine.high %v4217, %v4233
    %v4253 = vunpack.c.l.s4 1934713408
    %v4254 = vunpack.c.0.s8 %v4253
    %v4255 = vlaneseq
    %v4256 = vshrl.u32 %v4255, 7
    %v4257 = vsub.s32 %v4254, %v4256
    %v4258 = vrot.slane %v4250, %v4257
    %v4260 = vunpack.c.l.s4 1934713408
    %v4261 = vunpack.c.0.s8 %v4260
    %v4262 = vlaneseq
    %v4263 = vshrl.u32 %v4262, 7
    %v4264 = vsub.s32 %v4261, %v4263
    %v4265 = vrot.slane %v4251, %v4264
    %v4266 = vcombine.high %v4242, 0.0
    %v4267 = vcombine.high %v4249, 0.0
    %v4268 = vcombine.high %v4258, 0.0
    %v4269 = vcombine.high %v4265, 0.0
    %v4270 = vcombine.low %v3993, %v4181
    %v4271 = vcombine.high %v3993, %v4181
    %v4273 = vunpack.c.l.s4 1983009808
    %v4274 = vunpack.c.0.s8 %v4273
    %v4275 = vlaneseq
    %v4276 = vshrl.u32 %v4275, 7
    %v4277 = vsub.s32 %v4274, %v4276
    %v4278 = vrot.slane %v4270, %v4277
    %v4280 = vunpack.c.l.s4 1983009808
    %v4281 = vunpack.c.0.s8 %v4280
    %v4282 = vlaneseq
    %v4283 = vshrl.u32 %v4282, 7
    %v4284 = vsub.s32 %v4281, %v4283
    %v4285 = vrot.slane %v4271, %v4284
    %v4286 = vcombine.low %v4169, %v4193
    %v4287 = vcombine.high %v4169, %v4193
    %v4289 = vunpack.c.l.s4 1983009808
    %v4290 = vunpack.c.0.s8 %v4289
    %v4291 = vlaneseq
    %v4292 = vshrl.u32 %v4291, 7
    %v4293 = vsub.s32 %v4290, %v4292
    %v4294 = vrot.slane %v4286, %v4293
    %v4296 = vunpack.c.l.s4 1983009808
    %v4297 = vunpack.c.0.s8 %v4296
    %v4298 = vlaneseq
    %v4299 = vshrl.u32 %v4298, 7
    %v4300 = vsub.s32 %v4297, %v4299
    %v4301 = vrot.slane %v4287, %v4300
    %v4302 = vcombine.low %v4278, %v4294
    %v4303 = vcombine.high %v4278, %v4294
    %v4305 = vunpack.c.l.s4 1934713408
    %v4306 = vunpack.c.0.s8 %v4305
    %v4307 = vlaneseq
    %v4308 = vshrl.u32 %v4307, 7
    %v4309 = vsub.s32 %v4306, %v4308
    %v4310 = vrot.slane %v4302, %v4309
    %v4312 = vunpack.c.l.s4 1934713408
    %v4313 = vunpack.c.0.s8 %v4312
    %v4314 = vlaneseq
    %v4315 = vshrl.u32 %v4314, 7
    %v4316 = vsub.s32 %v4313, %v4315
    %v4317 = vrot.slane %v4303, %v4316
    %v4318 = vcombine.low %v4285, %v4301
    %v4319 = vcombine.high %v4285, %v4301
    %v4321 = vunpack.c.l.s4 1934713408
    %v4322 = vunpack.c.0.s8 %v4321
    %v4323 = vlaneseq
    %v4324 = vshrl.u32 %v4323, 7
    %v4325 = vsub.s32 %v4322, %v4324
    %v4326 = vrot.slane %v4318, %v4325
    %v4328 = vunpack.c.l.s4 1934713408
    %v4329 = vunpack.c.0.s8 %v4328
    %v4330 = vlaneseq
    %v4331 = vshrl.u32 %v4330, 7
    %v4332 = vsub.s32 %v4329, %v4331
    %v4333 = vrot.slane %v4319, %v4332
    %v4334 = vcombine.high %v4310, 0.0
    %v4335 = vcombine.high %v4317, 0.0
    %v4336 = vcombine.high %v4326, 0.0
    %v4337 = vcombine.high %v4333, 0.0
    %v4338 = vcombine.low %v3998, %v4183
    %v4339 = vcombine.high %v3998, %v4183
    %v4341 = vunpack.c.l.s4 1983009808
    %v4342 = vunpack.c.0.s8 %v4341
    %v4343 = vlaneseq
    %v4344 = vshrl.u32 %v4343, 7
    %v4345 = vsub.s32 %v4342, %v4344
    %v4346 = vrot.slane %v4338, %v4345
    %v4348 = vunpack.c.l.s4 1983009808
    %v4349 = vunpack.c.0.s8 %v4348
    %v4350 = vlaneseq
    %v4351 = vshrl.u32 %v4350, 7
    %v4352 = vsub.s32 %v4349, %v4351
    %v4353 = vrot.slane %v4339, %v4352
    %v4354 = vcombine.low %v4171, %v4195
    %v4355 = vcombine.high %v4171, %v4195
    %v4357 = vunpack.c.l.s4 1983009808
    %v4358 = vunpack.c.0.s8 %v4357
    %v4359 = vlaneseq
    %v4360 = vshrl.u32 %v4359, 7
    %v4361 = vsub.s32 %v4358, %v4360
    %v4362 = vrot.slane %v4354, %v4361
    %v4364 = vunpack.c.l.s4 1983009808
    %v4365 = vunpack.c.0.s8 %v4364
    %v4366 = vlaneseq
    %v4367 = vshrl.u32 %v4366, 7
    %v4368 = vsub.s32 %v4365, %v4367
    %v4369 = vrot.slane %v4355, %v4368
    %v4370 = vcombine.low %v4346, %v4362
    %v4371 = vcombine.high %v4346, %v4362
    %v4373 = vunpack.c.l.s4 1934713408
    %v4374 = vunpack.c.0.s8 %v4373
    %v4375 = vlaneseq
    %v4376 = vshrl.u32 %v4375, 7
    %v4377 = vsub.s32 %v4374, %v4376
    %v4378 = vrot.slane %v4370, %v4377
    %v4380 = vunpack.c.l.s4 1934713408
    %v4381 = vunpack.c.0.s8 %v4380
    %v4382 = vlaneseq
    %v4383 = vshrl.u32 %v4382, 7
    %v4384 = vsub.s32 %v4381, %v4383
    %v4385 = vrot.slane %v4371, %v4384
    %v4386 = vcombine.low %v4353, %v4369
    %v4387 = vcombine.high %v4353, %v4369
    %v4389 = vunpack.c.l.s4 1934713408
    %v4390 = vunpack.c.0.s8 %v4389
    %v4391 = vlaneseq
    %v4392 = vshrl.u32 %v4391, 7
    %v4393 = vsub.s32 %v4390, %v4392
    %v4394 = vrot.slane %v4386, %v4393
    %v4396 = vunpack.c.l.s4 1934713408
    %v4397 = vunpack.c.0.s8 %v4396
    %v4398 = vlaneseq
    %v4399 = vshrl.u32 %v4398, 7
    %v4400 = vsub.s32 %v4397, %v4399
    %v4401 = vrot.slane %v4387, %v4400
    %v4402 = vcombine.high %v4378, 0.0
    %v4403 = vcombine.high %v4385, 0.0
    %v4404 = vcombine.high %v4394, 0.0
    %v4405 = vcombine.high %v4401, 0.0
    %v4406 = vcombine.low %v4001, %v4185
    %v4407 = vcombine.high %v4001, %v4185
    %v4409 = vunpack.c.l.s4 1983009808
    %v4410 = vunpack.c.0.s8 %v4409
    %v4411 = vlaneseq
    %v4412 = vshrl.u32 %v4411, 7
    %v4413 = vsub.s32 %v4410, %v4412
    %v4414 = vrot.slane %v4406, %v4413
    %v4416 = vunpack.c.l.s4 1983009808
    %v4417 = vunpack.c.0.s8 %v4416
    %v4418 = vlaneseq
    %v4419 = vshrl.u32 %v4418, 7
    %v4420 = vsub.s32 %v4417, %v4419
    %v4421 = vrot.slane %v4407, %v4420
    %v4422 = vcombine.low %v4173, %v4197
    %v4423 = vcombine.high %v4173, %v4197
    %v4425 = vunpack.c.l.s4 1983009808
    %v4426 = vunpack.c.0.s8 %v4425
    %v4427 = vlaneseq
    %v4428 = vshrl.u32 %v4427, 7
    %v4429 = vsub.s32 %v4426, %v4428
    %v4430 = vrot.slane %v4422, %v4429
    %v4432 = vunpack.c.l.s4 1983009808
    %v4433 = vunpack.c.0.s8 %v4432
    %v4434 = vlaneseq
    %v4435 = vshrl.u32 %v4434, 7
    %v4436 = vsub.s32 %v4433, %v4435
    %v4437 = vrot.slane %v4423, %v4436
    %v4438 = vcombine.low %v4414, %v4430
    %v4439 = vcombine.high %v4414, %v4430
    %v4441 = vunpack.c.l.s4 1934713408
    %v4442 = vunpack.c.0.s8 %v4441
    %v4443 = vlaneseq
    %v4444 = vshrl.u32 %v4443, 7
    %v4445 = vsub.s32 %v4442, %v4444
    %v4446 = vrot.slane %v4438, %v4445
    %v4448 = vunpack.c.l.s4 1934713408
    %v4449 = vunpack.c.0.s8 %v4448
    %v4450 = vlaneseq
    %v4451 = vshrl.u32 %v4450, 7
    %v4452 = vsub.s32 %v4449, %v4451
    %v4453 = vrot.slane %v4439, %v4452
    %v4454 = vcombine.low %v4421, %v4437
    %v4455 = vcombine.high %v4421, %v4437
    %v4457 = vunpack.c.l.s4 1934713408
    %v4458 = vunpack.c.0.s8 %v4457
    %v4459 = vlaneseq
    %v4460 = vshrl.u32 %v4459, 7
    %v4461 = vsub.s32 %v4458, %v4460
    %v4462 = vrot.slane %v4454, %v4461
    %v4464 = vunpack.c.l.s4 1934713408
    %v4465 = vunpack.c.0.s8 %v4464
    %v4466 = vlaneseq
    %v4467 = vshrl.u32 %v4466, 7
    %v4468 = vsub.s32 %v4465, %v4467
    %v4469 = vrot.slane %v4455, %v4468
    %v4470 = vcombine.high %v4446, 0.0
    %v4471 = vcombine.high %v4453, 0.0
    %v4472 = vcombine.high %v4462, 0.0
    %v4473 = vcombine.high %v4469, 0.0
    %v4474 = vcombine.low %v4242, %v4249
    %v4476 = vunpack.c.l.s4 1983009808
    %v4477 = vunpack.c.0.s8 %v4476
    %v4478 = vlaneseq
    %v4479 = vshrl.u32 %v4478, 7
    %v4480 = vsub.s32 %v4477, %v4479
    %v4481 = vrot.slane %v4474, %v4480
    %v4482 = vcombine.low %v4266, %v4267
    %v4484 = vunpack.c.l.s4 1983009808
    %v4485 = vunpack.c.0.s8 %v4484
    %v4486 = vlaneseq
    %v4487 = vshrl.u32 %v4486, 7
    %v4488 = vsub.s32 %v4485, %v4487
    %v4489 = vrot.slane %v4482, %v4488
    %v4490 = vcombine.low %v4258, %v4265
    %v4492 = vunpack.c.l.s4 1983009808
    %v4493 = vunpack.c.0.s8 %v4492
    %v4494 = vlaneseq
    %v4495 = vshrl.u32 %v4494, 7
    %v4496 = vsub.s32 %v4493, %v4495
    %v4497 = vrot.slane %v4490, %v4496
    %v4498 = vcombine.low %v4268, %v4269
    %v4500 = vunpack.c.l.s4 1983009808
    %v4501 = vunpack.c.0.s8 %v4500
    %v4502 = vlaneseq
    %v4503 = vshrl.u32 %v4502, 7
    %v4504 = vsub.s32 %v4501, %v4503
    %v4505 = vrot.slane %v4498, %v4504
    %v4506 = vcombine.low %v4481, %v4489
    %v4507 = vcombine.high %v4481, %v4489
    %v4509 = vunpack.c.l.s4 1934713408
    %v4510 = vunpack.c.0.s8 %v4509
    %v4511 = vlaneseq
    %v4512 = vshrl.u32 %v4511, 7
    %v4513 = vsub.s32 %v4510, %v4512
    %v4514 = vrot.slane %v4506, %v4513
    %v4516 = vunpack.c.l.s4 1934713408
    %v4517 = vunpack.c.0.s8 %v4516
    %v4518 = vlaneseq
    %v4519 = vshrl.u32 %v4518, 7
    %v4520 = vsub.s32 %v4517, %v4519
    %v4521 = vrot.slane %v4507, %v4520
    %v4522 = vcombine.low %v4497, %v4505
    %v4523 = vcombine.high %v4497, %v4505
    %v4525 = vunpack.c.l.s4 1934713408
    %v4526 = vunpack.c.0.s8 %v4525
    %v4527 = vlaneseq
    %v4528 = vshrl.u32 %v4527, 7
    %v4529 = vsub.s32 %v4526, %v4528
    %v4530 = vrot.slane %v4522, %v4529
    %v4532 = vunpack.c.l.s4 1934713408
    %v4533 = vunpack.c.0.s8 %v4532
    %v4534 = vlaneseq
    %v4535 = vshrl.u32 %v4534, 7
    %v4536 = vsub.s32 %v4533, %v4535
    %v4537 = vrot.slane %v4523, %v4536
    %v4538 = vcombine.low %v4514, %v4530
    %v4539 = vcombine.high %v4514, %v4530
    %v4540 = vcombine.low %v4521, %v4537
    %v4541 = vcombine.high %v4521, %v4537
    %v4542 = vcombine.low %v4310, %v4317
    %v4544 = vunpack.c.l.s4 1983009808
    %v4545 = vunpack.c.0.s8 %v4544
    %v4546 = vlaneseq
    %v4547 = vshrl.u32 %v4546, 7
    %v4548 = vsub.s32 %v4545, %v4547
    %v4549 = vrot.slane %v4542, %v4548
    %v4550 = vcombine.low %v4334, %v4335
    %v4552 = vunpack.c.l.s4 1983009808
    %v4553 = vunpack.c.0.s8 %v4552
    %v4554 = vlaneseq
    %v4555 = vshrl.u32 %v4554, 7
    %v4556 = vsub.s32 %v4553, %v4555
    %v4557 = vrot.slane %v4550, %v4556
    %v4558 = vcombine.low %v4326, %v4333
    %v4560 = vunpack.c.l.s4 1983009808
    %v4561 = vunpack.c.0.s8 %v4560
    %v4562 = vlaneseq
    %v4563 = vshrl.u32 %v4562, 7
    %v4564 = vsub.s32 %v4561, %v4563
    %v4565 = vrot.slane %v4558, %v4564
    %v4566 = vcombine.low %v4336, %v4337
    %v4568 = vunpack.c.l.s4 1983009808
    %v4569 = vunpack.c.0.s8 %v4568
    %v4570 = vlaneseq
    %v4571 = vshrl.u32 %v4570, 7
    %v4572 = vsub.s32 %v4569, %v4571
    %v4573 = vrot.slane %v4566, %v4572
    %v4574 = vcombine.low %v4549, %v4557
    %v4575 = vcombine.high %v4549, %v4557
    %v4577 = vunpack.c.l.s4 1934713408
    %v4578 = vunpack.c.0.s8 %v4577
    %v4579 = vlaneseq
    %v4580 = vshrl.u32 %v4579, 7
    %v4581 = vsub.s32 %v4578, %v4580
    %v4582 = vrot.slane %v4574, %v4581
    %v4584 = vunpack.c.l.s4 1934713408
    %v4585 = vunpack.c.0.s8 %v4584
    %v4586 = vlaneseq
    %v4587 = vshrl.u32 %v4586, 7
    %v4588 = vsub.s32 %v4585, %v4587
    %v4589 = vrot.slane %v4575, %v4588
    %v4590 = vcombine.low %v4565, %v4573
    %v4591 = vcombine.high %v4565, %v4573
    %v4593 = vunpack.c.l.s4 1934713408
    %v4594 = vunpack.c.0.s8 %v4593
    %v4595 = vlaneseq
    %v4596 = vshrl.u32 %v4595, 7
    %v4597 = vsub.s32 %v4594, %v4596
    %v4598 = vrot.slane %v4590, %v4597
    %v4600 = vunpack.c.l.s4 1934713408
    %v4601 = vunpack.c.0.s8 %v4600
    %v4602 = vlaneseq
    %v4603 = vshrl.u32 %v4602, 7
    %v4604 = vsub.s32 %v4601, %v4603
    %v4605 = vrot.slane %v4591, %v4604
    %v4606 = vcombine.low %v4582, %v4598
    %v4607 = vcombine.high %v4582, %v4598
    %v4608 = vcombine.low %v4589, %v4605
    %v4609 = vcombine.high %v4589, %v4605
    %v4610 = vcombine.low %v4378, %v4385
    %v4612 = vunpack.c.l.s4 1983009808
    %v4613 = vunpack.c.0.s8 %v4612
    %v4614 = vlaneseq
    %v4615 = vshrl.u32 %v4614, 7
    %v4616 = vsub.s32 %v4613, %v4615
    %v4617 = vrot.slane %v4610, %v4616
    %v4618 = vcombine.low %v4402, %v4403
    %v4620 = vunpack.c.l.s4 1983009808
    %v4621 = vunpack.c.0.s8 %v4620
    %v4622 = vlaneseq
    %v4623 = vshrl.u32 %v4622, 7
    %v4624 = vsub.s32 %v4621, %v4623
    %v4625 = vrot.slane %v4618, %v4624
    %v4626 = vcombine.low %v4394, %v4401
    %v4628 = vunpack.c.l.s4 1983009808
    %v4629 = vunpack.c.0.s8 %v4628
    %v4630 = vlaneseq
    %v4631 = vshrl.u32 %v4630, 7
    %v4632 = vsub.s32 %v4629, %v4631
    %v4633 = vrot.slane %v4626, %v4632
    %v4634 = vcombine.low %v4404, %v4405
    %v4636 = vunpack.c.l.s4 1983009808
    %v4637 = vunpack.c.0.s8 %v4636
    %v4638 = vlaneseq
    %v4639 = vshrl.u32 %v4638, 7
    %v4640 = vsub.s32 %v4637, %v4639
    %v4641 = vrot.slane %v4634, %v4640
    %v4642 = vcombine.low %v4617, %v4625
    %v4643 = vcombine.high %v4617, %v4625
    %v4645 = vunpack.c.l.s4 1934713408
    %v4646 = vunpack.c.0.s8 %v4645
    %v4647 = vlaneseq
    %v4648 = vshrl.u32 %v4647, 7
    %v4649 = vsub.s32 %v4646, %v4648
    %v4650 = vrot.slane %v4642, %v4649
    %v4652 = vunpack.c.l.s4 1934713408
    %v4653 = vunpack.c.0.s8 %v4652
    %v4654 = vlaneseq
    %v4655 = vshrl.u32 %v4654, 7
    %v4656 = vsub.s32 %v4653, %v4655
    %v4657 = vrot.slane %v4643, %v4656
    %v4658 = vcombine.low %v4633, %v4641
    %v4659 = vcombine.high %v4633, %v4641
    %v4661 = vunpack.c.l.s4 1934713408
    %v4662 = vunpack.c.0.s8 %v4661
    %v4663 = vlaneseq
    %v4664 = vshrl.u32 %v4663, 7
    %v4665 = vsub.s32 %v4662, %v4664
    %v4666 = vrot.slane %v4658, %v4665
    %v4668 = vunpack.c.l.s4 1934713408
    %v4669 = vunpack.c.0.s8 %v4668
    %v4670 = vlaneseq
    %v4671 = vshrl.u32 %v4670, 7
    %v4672 = vsub.s32 %v4669, %v4671
    %v4673 = vrot.slane %v4659, %v4672
    %v4674 = vcombine.low %v4650, %v4666
    %v4675 = vcombine.high %v4650, %v4666
    %v4676 = vcombine.low %v4657, %v4673
    %v4677 = vcombine.high %v4657, %v4673
    %v4678 = vcombine.low %v4446, %v4453
    %v4680 = vunpack.c.l.s4 1983009808
    %v4681 = vunpack.c.0.s8 %v4680
    %v4682 = vlaneseq
    %v4683 = vshrl.u32 %v4682, 7
    %v4684 = vsub.s32 %v4681, %v4683
    %v4685 = vrot.slane %v4678, %v4684
    %v4686 = vcombine.low %v4470, %v4471
    %v4688 = vunpack.c.l.s4 1983009808
    %v4689 = vunpack.c.0.s8 %v4688
    %v4690 = vlaneseq
    %v4691 = vshrl.u32 %v4690, 7
    %v4692 = vsub.s32 %v4689, %v4691
    %v4693 = vrot.slane %v4686, %v4692
    %v4694 = vcombine.low %v4462, %v4469
    %v4696 = vunpack.c.l.s4 1983009808
    %v4697 = vunpack.c.0.s8 %v4696
    %v4698 = vlaneseq
    %v4699 = vshrl.u32 %v4698, 7
    %v4700 = vsub.s32 %v4697, %v4699
    %v4701 = vrot.slane %v4694, %v4700
    %v4702 = vcombine.low %v4472, %v4473
    %v4704 = vunpack.c.l.s4 1983009808
    %v4705 = vunpack.c.0.s8 %v4704
    %v4706 = vlaneseq
    %v4707 = vshrl.u32 %v4706, 7
    %v4708 = vsub.s32 %v4705, %v4707
    %v4709 = vrot.slane %v4702, %v4708
    %v4710 = vcombine.low %v4685, %v4693
    %v4711 = vcombine.high %v4685, %v4693
    %v4713 = vunpack.c.l.s4 1934713408
    %v4714 = vunpack.c.0.s8 %v4713
    %v4715 = vlaneseq
    %v4716 = vshrl.u32 %v4715, 7
    %v4717 = vsub.s32 %v4714, %v4716
    %v4718 = vrot.slane %v4710, %v4717
    %v4720 = vunpack.c.l.s4 1934713408
    %v4721 = vunpack.c.0.s8 %v4720
    %v4722 = vlaneseq
    %v4723 = vshrl.u32 %v4722, 7
    %v4724 = vsub.s32 %v4721, %v4723
    %v4725 = vrot.slane %v4711, %v4724
    %v4726 = vcombine.low %v4701, %v4709
    %v4727 = vcombine.high %v4701, %v4709
    %v4729 = vunpack.c.l.s4 1934713408
    %v4730 = vunpack.c.0.s8 %v4729
    %v4731 = vlaneseq
    %v4732 = vshrl.u32 %v4731, 7
    %v4733 = vsub.s32 %v4730, %v4732
    %v4734 = vrot.slane %v4726, %v4733
    %v4736 = vunpack.c.l.s4 1934713408
    %v4737 = vunpack.c.0.s8 %v4736
    %v4738 = vlaneseq
    %v4739 = vshrl.u32 %v4738, 7
    %v4740 = vsub.s32 %v4737, %v4739
    %v4741 = vrot.slane %v4727, %v4740
    %v4742 = vcombine.low %v4718, %v4734
    %v4743 = vcombine.high %v4718, %v4734
    %v4744 = vcombine.low %v4725, %v4741
    %v4745 = vcombine.high %v4725, %v4741
    %4750 = vrot.lane.b32.xlu0 %v4069, 112
    %v4751 = vpop.permute.xlu0 %4750
    %4752 = vrot.lane.b32.xlu0 %v4072, 112
    %v4753 = vpop.permute.xlu0 %4752
    %4754 = vrot.lane.b32.xlu0 %v4077, 112
    %v4755 = vpop.permute.xlu0 %4754
    %4756 = vrot.lane.b32.xlu0 %v4080, 112
    %v4757 = vpop.permute.xlu0 %4756
    %4762 = vrot.lane.b32.xlu0 %v4069, 96
    %v4763 = vpop.permute.xlu0 %4762
    %4764 = vrot.lane.b32.xlu0 %v4072, 96
    %v4765 = vpop.permute.xlu0 %4764
    %4766 = vrot.lane.b32.xlu0 %v4077, 96
    %v4767 = vpop.permute.xlu0 %4766
    %4768 = vrot.lane.b32.xlu0 %v4080, 96
    %v4769 = vpop.permute.xlu0 %4768
    %4774 = vrot.lane.b32.xlu0 %v4069, 80
    %v4775 = vpop.permute.xlu0 %4774
    %4776 = vrot.lane.b32.xlu0 %v4072, 80
    %v4777 = vpop.permute.xlu0 %4776
    %4778 = vrot.lane.b32.xlu0 %v4077, 80
    %v4779 = vpop.permute.xlu0 %4778
    %4780 = vrot.lane.b32.xlu0 %v4080, 80
    %v4781 = vpop.permute.xlu0 %4780
    %v4786 = vcombine.low %v4069, %v4763
    %v4787 = vcombine.high %v4069, %v4763
    %v4789 = vunpack.c.l.s4 1983009808
    %v4790 = vunpack.c.0.s8 %v4789
    %v4791 = vlaneseq
    %v4792 = vshrl.u32 %v4791, 7
    %v4793 = vsub.s32 %v4790, %v4792
    %v4794 = vrot.slane %v4786, %v4793
    %v4796 = vunpack.c.l.s4 1983009808
    %v4797 = vunpack.c.0.s8 %v4796
    %v4798 = vlaneseq
    %v4799 = vshrl.u32 %v4798, 7
    %v4800 = vsub.s32 %v4797, %v4799
    %v4801 = vrot.slane %v4787, %v4800
    %v4802 = vcombine.low %v4751, %v4775
    %v4803 = vcombine.high %v4751, %v4775
    %v4805 = vunpack.c.l.s4 1983009808
    %v4806 = vunpack.c.0.s8 %v4805
    %v4807 = vlaneseq
    %v4808 = vshrl.u32 %v4807, 7
    %v4809 = vsub.s32 %v4806, %v4808
    %v4810 = vrot.slane %v4802, %v4809
    %v4812 = vunpack.c.l.s4 1983009808
    %v4813 = vunpack.c.0.s8 %v4812
    %v4814 = vlaneseq
    %v4815 = vshrl.u32 %v4814, 7
    %v4816 = vsub.s32 %v4813, %v4815
    %v4817 = vrot.slane %v4803, %v4816
    %v4818 = vcombine.low %v4794, %v4810
    %v4819 = vcombine.high %v4794, %v4810
    %v4821 = vunpack.c.l.s4 1934713408
    %v4822 = vunpack.c.0.s8 %v4821
    %v4823 = vlaneseq
    %v4824 = vshrl.u32 %v4823, 7
    %v4825 = vsub.s32 %v4822, %v4824
    %v4826 = vrot.slane %v4818, %v4825
    %v4828 = vunpack.c.l.s4 1934713408
    %v4829 = vunpack.c.0.s8 %v4828
    %v4830 = vlaneseq
    %v4831 = vshrl.u32 %v4830, 7
    %v4832 = vsub.s32 %v4829, %v4831
    %v4833 = vrot.slane %v4819, %v4832
    %v4834 = vcombine.low %v4801, %v4817
    %v4835 = vcombine.high %v4801, %v4817
    %v4837 = vunpack.c.l.s4 1934713408
    %v4838 = vunpack.c.0.s8 %v4837
    %v4839 = vlaneseq
    %v4840 = vshrl.u32 %v4839, 7
    %v4841 = vsub.s32 %v4838, %v4840
    %v4842 = vrot.slane %v4834, %v4841
    %v4844 = vunpack.c.l.s4 1934713408
    %v4845 = vunpack.c.0.s8 %v4844
    %v4846 = vlaneseq
    %v4847 = vshrl.u32 %v4846, 7
    %v4848 = vsub.s32 %v4845, %v4847
    %v4849 = vrot.slane %v4835, %v4848
    %v4850 = vcombine.high %v4826, 0.0
    %v4851 = vcombine.high %v4833, 0.0
    %v4852 = vcombine.high %v4842, 0.0
    %v4853 = vcombine.high %v4849, 0.0
    %v4854 = vcombine.low %v4072, %v4765
    %v4855 = vcombine.high %v4072, %v4765
    %v4857 = vunpack.c.l.s4 1983009808
    %v4858 = vunpack.c.0.s8 %v4857
    %v4859 = vlaneseq
    %v4860 = vshrl.u32 %v4859, 7
    %v4861 = vsub.s32 %v4858, %v4860
    %v4862 = vrot.slane %v4854, %v4861
    %v4864 = vunpack.c.l.s4 1983009808
    %v4865 = vunpack.c.0.s8 %v4864
    %v4866 = vlaneseq
    %v4867 = vshrl.u32 %v4866, 7
    %v4868 = vsub.s32 %v4865, %v4867
    %v4869 = vrot.slane %v4855, %v4868
    %v4870 = vcombine.low %v4753, %v4777
    %v4871 = vcombine.high %v4753, %v4777
    %v4873 = vunpack.c.l.s4 1983009808
    %v4874 = vunpack.c.0.s8 %v4873
    %v4875 = vlaneseq
    %v4876 = vshrl.u32 %v4875, 7
    %v4877 = vsub.s32 %v4874, %v4876
    %v4878 = vrot.slane %v4870, %v4877
    %v4880 = vunpack.c.l.s4 1983009808
    %v4881 = vunpack.c.0.s8 %v4880
    %v4882 = vlaneseq
    %v4883 = vshrl.u32 %v4882, 7
    %v4884 = vsub.s32 %v4881, %v4883
    %v4885 = vrot.slane %v4871, %v4884
    %v4886 = vcombine.low %v4862, %v4878
    %v4887 = vcombine.high %v4862, %v4878
    %v4889 = vunpack.c.l.s4 1934713408
    %v4890 = vunpack.c.0.s8 %v4889
    %v4891 = vlaneseq
    %v4892 = vshrl.u32 %v4891, 7
    %v4893 = vsub.s32 %v4890, %v4892
    %v4894 = vrot.slane %v4886, %v4893
    %v4896 = vunpack.c.l.s4 1934713408
    %v4897 = vunpack.c.0.s8 %v4896
    %v4898 = vlaneseq
    %v4899 = vshrl.u32 %v4898, 7
    %v4900 = vsub.s32 %v4897, %v4899
    %v4901 = vrot.slane %v4887, %v4900
    %v4902 = vcombine.low %v4869, %v4885
    %v4903 = vcombine.high %v4869, %v4885
    %v4905 = vunpack.c.l.s4 1934713408
    %v4906 = vunpack.c.0.s8 %v4905
    %v4907 = vlaneseq
    %v4908 = vshrl.u32 %v4907, 7
    %v4909 = vsub.s32 %v4906, %v4908
    %v4910 = vrot.slane %v4902, %v4909
    %v4912 = vunpack.c.l.s4 1934713408
    %v4913 = vunpack.c.0.s8 %v4912
    %v4914 = vlaneseq
    %v4915 = vshrl.u32 %v4914, 7
    %v4916 = vsub.s32 %v4913, %v4915
    %v4917 = vrot.slane %v4903, %v4916
    %v4918 = vcombine.high %v4894, 0.0
    %v4919 = vcombine.high %v4901, 0.0
    %v4920 = vcombine.high %v4910, 0.0
    %v4921 = vcombine.high %v4917, 0.0
    %v4922 = vcombine.low %v4077, %v4767
    %v4923 = vcombine.high %v4077, %v4767
    %v4925 = vunpack.c.l.s4 1983009808
    %v4926 = vunpack.c.0.s8 %v4925
    %v4927 = vlaneseq
    %v4928 = vshrl.u32 %v4927, 7
    %v4929 = vsub.s32 %v4926, %v4928
    %v4930 = vrot.slane %v4922, %v4929
    %v4932 = vunpack.c.l.s4 1983009808
    %v4933 = vunpack.c.0.s8 %v4932
    %v4934 = vlaneseq
    %v4935 = vshrl.u32 %v4934, 7
    %v4936 = vsub.s32 %v4933, %v4935
    %v4937 = vrot.slane %v4923, %v4936
    %v4938 = vcombine.low %v4755, %v4779
    %v4939 = vcombine.high %v4755, %v4779
    %v4941 = vunpack.c.l.s4 1983009808
    %v4942 = vunpack.c.0.s8 %v4941
    %v4943 = vlaneseq
    %v4944 = vshrl.u32 %v4943, 7
    %v4945 = vsub.s32 %v4942, %v4944
    %v4946 = vrot.slane %v4938, %v4945
    %v4948 = vunpack.c.l.s4 1983009808
    %v4949 = vunpack.c.0.s8 %v4948
    %v4950 = vlaneseq
    %v4951 = vshrl.u32 %v4950, 7
    %v4952 = vsub.s32 %v4949, %v4951
    %v4953 = vrot.slane %v4939, %v4952
    %v4954 = vcombine.low %v4930, %v4946
    %v4955 = vcombine.high %v4930, %v4946
    %v4957 = vunpack.c.l.s4 1934713408
    %v4958 = vunpack.c.0.s8 %v4957
    %v4959 = vlaneseq
    %v4960 = vshrl.u32 %v4959, 7
    %v4961 = vsub.s32 %v4958, %v4960
    %v4962 = vrot.slane %v4954, %v4961
    %v4964 = vunpack.c.l.s4 1934713408
    %v4965 = vunpack.c.0.s8 %v4964
    %v4966 = vlaneseq
    %v4967 = vshrl.u32 %v4966, 7
    %v4968 = vsub.s32 %v4965, %v4967
    %v4969 = vrot.slane %v4955, %v4968
    %v4970 = vcombine.low %v4937, %v4953
    %v4971 = vcombine.high %v4937, %v4953
    %v4973 = vunpack.c.l.s4 1934713408
    %v4974 = vunpack.c.0.s8 %v4973
    %v4975 = vlaneseq
    %v4976 = vshrl.u32 %v4975, 7
    %v4977 = vsub.s32 %v4974, %v4976
    %v4978 = vrot.slane %v4970, %v4977
    %v4980 = vunpack.c.l.s4 1934713408
    %v4981 = vunpack.c.0.s8 %v4980
    %v4982 = vlaneseq
    %v4983 = vshrl.u32 %v4982, 7
    %v4984 = vsub.s32 %v4981, %v4983
    %v4985 = vrot.slane %v4971, %v4984
    %v4986 = vcombine.high %v4962, 0.0
    %v4987 = vcombine.high %v4969, 0.0
    %v4988 = vcombine.high %v4978, 0.0
    %v4989 = vcombine.high %v4985, 0.0
    %v4990 = vcombine.low %v4080, %v4769
    %v4991 = vcombine.high %v4080, %v4769
    %v4993 = vunpack.c.l.s4 1983009808
    %v4994 = vunpack.c.0.s8 %v4993
    %v4995 = vlaneseq
    %v4996 = vshrl.u32 %v4995, 7
    %v4997 = vsub.s32 %v4994, %v4996
    %v4998 = vrot.slane %v4990, %v4997
    %v5000 = vunpack.c.l.s4 1983009808
    %v5001 = vunpack.c.0.s8 %v5000
    %v5002 = vlaneseq
    %v5003 = vshrl.u32 %v5002, 7
    %v5004 = vsub.s32 %v5001, %v5003
    %v5005 = vrot.slane %v4991, %v5004
    %v5006 = vcombine.low %v4757, %v4781
    %v5007 = vcombine.high %v4757, %v4781
    %v5009 = vunpack.c.l.s4 1983009808
    %v5010 = vunpack.c.0.s8 %v5009
    %v5011 = vlaneseq
    %v5012 = vshrl.u32 %v5011, 7
    %v5013 = vsub.s32 %v5010, %v5012
    %v5014 = vrot.slane %v5006, %v5013
    %v5016 = vunpack.c.l.s4 1983009808
    %v5017 = vunpack.c.0.s8 %v5016
    %v5018 = vlaneseq
    %v5019 = vshrl.u32 %v5018, 7
    %v5020 = vsub.s32 %v5017, %v5019
    %v5021 = vrot.slane %v5007, %v5020
    %v5022 = vcombine.low %v4998, %v5014
    %v5023 = vcombine.high %v4998, %v5014
    %v5025 = vunpack.c.l.s4 1934713408
    %v5026 = vunpack.c.0.s8 %v5025
    %v5027 = vlaneseq
    %v5028 = vshrl.u32 %v5027, 7
    %v5029 = vsub.s32 %v5026, %v5028
    %v5030 = vrot.slane %v5022, %v5029
    %v5032 = vunpack.c.l.s4 1934713408
    %v5033 = vunpack.c.0.s8 %v5032
    %v5034 = vlaneseq
    %v5035 = vshrl.u32 %v5034, 7
    %v5036 = vsub.s32 %v5033, %v5035
    %v5037 = vrot.slane %v5023, %v5036
    %v5038 = vcombine.low %v5005, %v5021
    %v5039 = vcombine.high %v5005, %v5021
    %v5041 = vunpack.c.l.s4 1934713408
    %v5042 = vunpack.c.0.s8 %v5041
    %v5043 = vlaneseq
    %v5044 = vshrl.u32 %v5043, 7
    %v5045 = vsub.s32 %v5042, %v5044
    %v5046 = vrot.slane %v5038, %v5045
    %v5048 = vunpack.c.l.s4 1934713408
    %v5049 = vunpack.c.0.s8 %v5048
    %v5050 = vlaneseq
    %v5051 = vshrl.u32 %v5050, 7
    %v5052 = vsub.s32 %v5049, %v5051
    %v5053 = vrot.slane %v5039, %v5052
    %v5054 = vcombine.high %v5030, 0.0
    %v5055 = vcombine.high %v5037, 0.0
    %v5056 = vcombine.high %v5046, 0.0
    %v5057 = vcombine.high %v5053, 0.0
    %v5058 = vcombine.low %v4826, %v4833
    %v5060 = vunpack.c.l.s4 1983009808
    %v5061 = vunpack.c.0.s8 %v5060
    %v5062 = vlaneseq
    %v5063 = vshrl.u32 %v5062, 7
    %v5064 = vsub.s32 %v5061, %v5063
    %v5065 = vrot.slane %v5058, %v5064
    %v5066 = vcombine.low %v4850, %v4851
    %v5068 = vunpack.c.l.s4 1983009808
    %v5069 = vunpack.c.0.s8 %v5068
    %v5070 = vlaneseq
    %v5071 = vshrl.u32 %v5070, 7
    %v5072 = vsub.s32 %v5069, %v5071
    %v5073 = vrot.slane %v5066, %v5072
    %v5074 = vcombine.low %v4842, %v4849
    %v5076 = vunpack.c.l.s4 1983009808
    %v5077 = vunpack.c.0.s8 %v5076
    %v5078 = vlaneseq
    %v5079 = vshrl.u32 %v5078, 7
    %v5080 = vsub.s32 %v5077, %v5079
    %v5081 = vrot.slane %v5074, %v5080
    %v5082 = vcombine.low %v4852, %v4853
    %v5084 = vunpack.c.l.s4 1983009808
    %v5085 = vunpack.c.0.s8 %v5084
    %v5086 = vlaneseq
    %v5087 = vshrl.u32 %v5086, 7
    %v5088 = vsub.s32 %v5085, %v5087
    %v5089 = vrot.slane %v5082, %v5088
    %v5090 = vcombine.low %v5065, %v5073
    %v5091 = vcombine.high %v5065, %v5073
    %v5093 = vunpack.c.l.s4 1934713408
    %v5094 = vunpack.c.0.s8 %v5093
    %v5095 = vlaneseq
    %v5096 = vshrl.u32 %v5095, 7
    %v5097 = vsub.s32 %v5094, %v5096
    %v5098 = vrot.slane %v5090, %v5097
    %v5100 = vunpack.c.l.s4 1934713408
    %v5101 = vunpack.c.0.s8 %v5100
    %v5102 = vlaneseq
    %v5103 = vshrl.u32 %v5102, 7
    %v5104 = vsub.s32 %v5101, %v5103
    %v5105 = vrot.slane %v5091, %v5104
    %v5106 = vcombine.low %v5081, %v5089
    %v5107 = vcombine.high %v5081, %v5089
    %v5109 = vunpack.c.l.s4 1934713408
    %v5110 = vunpack.c.0.s8 %v5109
    %v5111 = vlaneseq
    %v5112 = vshrl.u32 %v5111, 7
    %v5113 = vsub.s32 %v5110, %v5112
    %v5114 = vrot.slane %v5106, %v5113
    %v5116 = vunpack.c.l.s4 1934713408
    %v5117 = vunpack.c.0.s8 %v5116
    %v5118 = vlaneseq
    %v5119 = vshrl.u32 %v5118, 7
    %v5120 = vsub.s32 %v5117, %v5119
    %v5121 = vrot.slane %v5107, %v5120
    %v5122 = vcombine.low %v5098, %v5114
    %v5123 = vcombine.high %v5098, %v5114
    %v5124 = vcombine.low %v5105, %v5121
    %v5125 = vcombine.high %v5105, %v5121
    %v5126 = vcombine.low %v4894, %v4901
    %v5128 = vunpack.c.l.s4 1983009808
    %v5129 = vunpack.c.0.s8 %v5128
    %v5130 = vlaneseq
    %v5131 = vshrl.u32 %v5130, 7
    %v5132 = vsub.s32 %v5129, %v5131
    %v5133 = vrot.slane %v5126, %v5132
    %v5134 = vcombine.low %v4918, %v4919
    %v5136 = vunpack.c.l.s4 1983009808
    %v5137 = vunpack.c.0.s8 %v5136
    %v5138 = vlaneseq
    %v5139 = vshrl.u32 %v5138, 7
    %v5140 = vsub.s32 %v5137, %v5139
    %v5141 = vrot.slane %v5134, %v5140
    %v5142 = vcombine.low %v4910, %v4917
    %v5144 = vunpack.c.l.s4 1983009808
    %v5145 = vunpack.c.0.s8 %v5144
    %v5146 = vlaneseq
    %v5147 = vshrl.u32 %v5146, 7
    %v5148 = vsub.s32 %v5145, %v5147
    %v5149 = vrot.slane %v5142, %v5148
    %v5150 = vcombine.low %v4920, %v4921
    %v5152 = vunpack.c.l.s4 1983009808
    %v5153 = vunpack.c.0.s8 %v5152
    %v5154 = vlaneseq
    %v5155 = vshrl.u32 %v5154, 7
    %v5156 = vsub.s32 %v5153, %v5155
    %v5157 = vrot.slane %v5150, %v5156
    %v5158 = vcombine.low %v5133, %v5141
    %v5159 = vcombine.high %v5133, %v5141
    %v5161 = vunpack.c.l.s4 1934713408
    %v5162 = vunpack.c.0.s8 %v5161
    %v5163 = vlaneseq
    %v5164 = vshrl.u32 %v5163, 7
    %v5165 = vsub.s32 %v5162, %v5164
    %v5166 = vrot.slane %v5158, %v5165
    %v5168 = vunpack.c.l.s4 1934713408
    %v5169 = vunpack.c.0.s8 %v5168
    %v5170 = vlaneseq
    %v5171 = vshrl.u32 %v5170, 7
    %v5172 = vsub.s32 %v5169, %v5171
    %v5173 = vrot.slane %v5159, %v5172
    %v5174 = vcombine.low %v5149, %v5157
    %v5175 = vcombine.high %v5149, %v5157
    %v5177 = vunpack.c.l.s4 1934713408
    %v5178 = vunpack.c.0.s8 %v5177
    %v5179 = vlaneseq
    %v5180 = vshrl.u32 %v5179, 7
    %v5181 = vsub.s32 %v5178, %v5180
    %v5182 = vrot.slane %v5174, %v5181
    %v5184 = vunpack.c.l.s4 1934713408
    %v5185 = vunpack.c.0.s8 %v5184
    %v5186 = vlaneseq
    %v5187 = vshrl.u32 %v5186, 7
    %v5188 = vsub.s32 %v5185, %v5187
    %v5189 = vrot.slane %v5175, %v5188
    %v5190 = vcombine.low %v5166, %v5182
    %v5191 = vcombine.high %v5166, %v5182
    %v5192 = vcombine.low %v5173, %v5189
    %v5193 = vcombine.high %v5173, %v5189
    %v5194 = vcombine.low %v4962, %v4969
    %v5196 = vunpack.c.l.s4 1983009808
    %v5197 = vunpack.c.0.s8 %v5196
    %v5198 = vlaneseq
    %v5199 = vshrl.u32 %v5198, 7
    %v5200 = vsub.s32 %v5197, %v5199
    %v5201 = vrot.slane %v5194, %v5200
    %v5202 = vcombine.low %v4986, %v4987
    %v5204 = vunpack.c.l.s4 1983009808
    %v5205 = vunpack.c.0.s8 %v5204
    %v5206 = vlaneseq
    %v5207 = vshrl.u32 %v5206, 7
    %v5208 = vsub.s32 %v5205, %v5207
    %v5209 = vrot.slane %v5202, %v5208
    %v5210 = vcombine.low %v4978, %v4985
    %v5212 = vunpack.c.l.s4 1983009808
    %v5213 = vunpack.c.0.s8 %v5212
    %v5214 = vlaneseq
    %v5215 = vshrl.u32 %v5214, 7
    %v5216 = vsub.s32 %v5213, %v5215
    %v5217 = vrot.slane %v5210, %v5216
    %v5218 = vcombine.low %v4988, %v4989
    %v5220 = vunpack.c.l.s4 1983009808
    %v5221 = vunpack.c.0.s8 %v5220
    %v5222 = vlaneseq
    %v5223 = vshrl.u32 %v5222, 7
    %v5224 = vsub.s32 %v5221, %v5223
    %v5225 = vrot.slane %v5218, %v5224
    %v5226 = vcombine.low %v5201, %v5209
    %v5227 = vcombine.high %v5201, %v5209
    %v5229 = vunpack.c.l.s4 1934713408
    %v5230 = vunpack.c.0.s8 %v5229
    %v5231 = vlaneseq
    %v5232 = vshrl.u32 %v5231, 7
    %v5233 = vsub.s32 %v5230, %v5232
    %v5234 = vrot.slane %v5226, %v5233
    %v5236 = vunpack.c.l.s4 1934713408
    %v5237 = vunpack.c.0.s8 %v5236
    %v5238 = vlaneseq
    %v5239 = vshrl.u32 %v5238, 7
    %v5240 = vsub.s32 %v5237, %v5239
    %v5241 = vrot.slane %v5227, %v5240
    %v5242 = vcombine.low %v5217, %v5225
    %v5243 = vcombine.high %v5217, %v5225
    %v5245 = vunpack.c.l.s4 1934713408
    %v5246 = vunpack.c.0.s8 %v5245
    %v5247 = vlaneseq
    %v5248 = vshrl.u32 %v5247, 7
    %v5249 = vsub.s32 %v5246, %v5248
    %v5250 = vrot.slane %v5242, %v5249
    %v5252 = vunpack.c.l.s4 1934713408
    %v5253 = vunpack.c.0.s8 %v5252
    %v5254 = vlaneseq
    %v5255 = vshrl.u32 %v5254, 7
    %v5256 = vsub.s32 %v5253, %v5255
    %v5257 = vrot.slane %v5243, %v5256
    %v5258 = vcombine.low %v5234, %v5250
    %v5259 = vcombine.high %v5234, %v5250
    %v5260 = vcombine.low %v5241, %v5257
    %v5261 = vcombine.high %v5241, %v5257
    %v5262 = vcombine.low %v5030, %v5037
    %v5264 = vunpack.c.l.s4 1983009808
    %v5265 = vunpack.c.0.s8 %v5264
    %v5266 = vlaneseq
    %v5267 = vshrl.u32 %v5266, 7
    %v5268 = vsub.s32 %v5265, %v5267
    %v5269 = vrot.slane %v5262, %v5268
    %v5270 = vcombine.low %v5054, %v5055
    %v5272 = vunpack.c.l.s4 1983009808
    %v5273 = vunpack.c.0.s8 %v5272
    %v5274 = vlaneseq
    %v5275 = vshrl.u32 %v5274, 7
    %v5276 = vsub.s32 %v5273, %v5275
    %v5277 = vrot.slane %v5270, %v5276
    %v5278 = vcombine.low %v5046, %v5053
    %v5280 = vunpack.c.l.s4 1983009808
    %v5281 = vunpack.c.0.s8 %v5280
    %v5282 = vlaneseq
    %v5283 = vshrl.u32 %v5282, 7
    %v5284 = vsub.s32 %v5281, %v5283
    %v5285 = vrot.slane %v5278, %v5284
    %v5286 = vcombine.low %v5056, %v5057
    %v5288 = vunpack.c.l.s4 1983009808
    %v5289 = vunpack.c.0.s8 %v5288
    %v5290 = vlaneseq
    %v5291 = vshrl.u32 %v5290, 7
    %v5292 = vsub.s32 %v5289, %v5291
    %v5293 = vrot.slane %v5286, %v5292
    %v5294 = vcombine.low %v5269, %v5277
    %v5295 = vcombine.high %v5269, %v5277
    %v5297 = vunpack.c.l.s4 1934713408
    %v5298 = vunpack.c.0.s8 %v5297
    %v5299 = vlaneseq
    %v5300 = vshrl.u32 %v5299, 7
    %v5301 = vsub.s32 %v5298, %v5300
    %v5302 = vrot.slane %v5294, %v5301
    %v5304 = vunpack.c.l.s4 1934713408
    %v5305 = vunpack.c.0.s8 %v5304
    %v5306 = vlaneseq
    %v5307 = vshrl.u32 %v5306, 7
    %v5308 = vsub.s32 %v5305, %v5307
    %v5309 = vrot.slane %v5295, %v5308
    %v5310 = vcombine.low %v5285, %v5293
    %v5311 = vcombine.high %v5285, %v5293
    %v5313 = vunpack.c.l.s4 1934713408
    %v5314 = vunpack.c.0.s8 %v5313
    %v5315 = vlaneseq
    %v5316 = vshrl.u32 %v5315, 7
    %v5317 = vsub.s32 %v5314, %v5316
    %v5318 = vrot.slane %v5310, %v5317
    %v5320 = vunpack.c.l.s4 1934713408
    %v5321 = vunpack.c.0.s8 %v5320
    %v5322 = vlaneseq
    %v5323 = vshrl.u32 %v5322, 7
    %v5324 = vsub.s32 %v5321, %v5323
    %v5325 = vrot.slane %v5311, %v5324
    %v5326 = vcombine.low %v5302, %v5318
    %v5327 = vcombine.high %v5302, %v5318
    %v5328 = vcombine.low %v5309, %v5325
    %v5329 = vcombine.high %v5309, %v5325
    %5334 = vrot.lane.b32.xlu0 %v4148, 112
    %v5335 = vpop.permute.xlu0 %5334
    %5336 = vrot.lane.b32.xlu0 %v4151, 112
    %v5337 = vpop.permute.xlu0 %5336
    %5338 = vrot.lane.b32.xlu0 %v4156, 112
    %v5339 = vpop.permute.xlu0 %5338
    %5340 = vrot.lane.b32.xlu0 %v4159, 112
    %v5341 = vpop.permute.xlu0 %5340
    %5346 = vrot.lane.b32.xlu0 %v4148, 96
    %v5347 = vpop.permute.xlu0 %5346
    %5348 = vrot.lane.b32.xlu0 %v4151, 96
    %v5349 = vpop.permute.xlu0 %5348
    %5350 = vrot.lane.b32.xlu0 %v4156, 96
    %v5351 = vpop.permute.xlu0 %5350
    %5352 = vrot.lane.b32.xlu0 %v4159, 96
    %v5353 = vpop.permute.xlu0 %5352
    %5358 = vrot.lane.b32.xlu0 %v4148, 80
    %v5359 = vpop.permute.xlu0 %5358
    %5360 = vrot.lane.b32.xlu0 %v4151, 80
    %v5361 = vpop.permute.xlu0 %5360
    %5362 = vrot.lane.b32.xlu0 %v4156, 80
    %v5363 = vpop.permute.xlu0 %5362
    %5364 = vrot.lane.b32.xlu0 %v4159, 80
    %v5365 = vpop.permute.xlu0 %5364
    %v5370 = vcombine.low %v4148, %v5347
    %v5371 = vcombine.high %v4148, %v5347
    %v5373 = vunpack.c.l.s4 1983009808
    %v5374 = vunpack.c.0.s8 %v5373
    %v5375 = vlaneseq
    %v5376 = vshrl.u32 %v5375, 7
    %v5377 = vsub.s32 %v5374, %v5376
    %v5378 = vrot.slane %v5370, %v5377
    %v5380 = vunpack.c.l.s4 1983009808
    %v5381 = vunpack.c.0.s8 %v5380
    %v5382 = vlaneseq
    %v5383 = vshrl.u32 %v5382, 7
    %v5384 = vsub.s32 %v5381, %v5383
    %v5385 = vrot.slane %v5371, %v5384
    %v5386 = vcombine.low %v5335, %v5359
    %v5387 = vcombine.high %v5335, %v5359
    %v5389 = vunpack.c.l.s4 1983009808
    %v5390 = vunpack.c.0.s8 %v5389
    %v5391 = vlaneseq
    %v5392 = vshrl.u32 %v5391, 7
    %v5393 = vsub.s32 %v5390, %v5392
    %v5394 = vrot.slane %v5386, %v5393
    %v5396 = vunpack.c.l.s4 1983009808
    %v5397 = vunpack.c.0.s8 %v5396
    %v5398 = vlaneseq
    %v5399 = vshrl.u32 %v5398, 7
    %v5400 = vsub.s32 %v5397, %v5399
    %v5401 = vrot.slane %v5387, %v5400
    %v5402 = vcombine.low %v5378, %v5394
    %v5403 = vcombine.high %v5378, %v5394
    %v5405 = vunpack.c.l.s4 1934713408
    %v5406 = vunpack.c.0.s8 %v5405
    %v5407 = vlaneseq
    %v5408 = vshrl.u32 %v5407, 7
    %v5409 = vsub.s32 %v5406, %v5408
    %v5410 = vrot.slane %v5402, %v5409
    %v5412 = vunpack.c.l.s4 1934713408
    %v5413 = vunpack.c.0.s8 %v5412
    %v5414 = vlaneseq
    %v5415 = vshrl.u32 %v5414, 7
    %v5416 = vsub.s32 %v5413, %v5415
    %v5417 = vrot.slane %v5403, %v5416
    %v5418 = vcombine.low %v5385, %v5401
    %v5419 = vcombine.high %v5385, %v5401
    %v5421 = vunpack.c.l.s4 1934713408
    %v5422 = vunpack.c.0.s8 %v5421
    %v5423 = vlaneseq
    %v5424 = vshrl.u32 %v5423, 7
    %v5425 = vsub.s32 %v5422, %v5424
    %v5426 = vrot.slane %v5418, %v5425
    %v5428 = vunpack.c.l.s4 1934713408
    %v5429 = vunpack.c.0.s8 %v5428
    %v5430 = vlaneseq
    %v5431 = vshrl.u32 %v5430, 7
    %v5432 = vsub.s32 %v5429, %v5431
    %v5433 = vrot.slane %v5419, %v5432
    %v5434 = vcombine.high %v5410, 0.0
    %v5435 = vcombine.high %v5417, 0.0
    %v5436 = vcombine.high %v5426, 0.0
    %v5437 = vcombine.high %v5433, 0.0
    %v5438 = vcombine.low %v4151, %v5349
    %v5439 = vcombine.high %v4151, %v5349
    %v5441 = vunpack.c.l.s4 1983009808
    %v5442 = vunpack.c.0.s8 %v5441
    %v5443 = vlaneseq
    %v5444 = vshrl.u32 %v5443, 7
    %v5445 = vsub.s32 %v5442, %v5444
    %v5446 = vrot.slane %v5438, %v5445
    %v5448 = vunpack.c.l.s4 1983009808
    %v5449 = vunpack.c.0.s8 %v5448
    %v5450 = vlaneseq
    %v5451 = vshrl.u32 %v5450, 7
    %v5452 = vsub.s32 %v5449, %v5451
    %v5453 = vrot.slane %v5439, %v5452
    %v5454 = vcombine.low %v5337, %v5361
    %v5455 = vcombine.high %v5337, %v5361
    %v5457 = vunpack.c.l.s4 1983009808
    %v5458 = vunpack.c.0.s8 %v5457
    %v5459 = vlaneseq
    %v5460 = vshrl.u32 %v5459, 7
    %v5461 = vsub.s32 %v5458, %v5460
    %v5462 = vrot.slane %v5454, %v5461
    %v5464 = vunpack.c.l.s4 1983009808
    %v5465 = vunpack.c.0.s8 %v5464
    %v5466 = vlaneseq
    %v5467 = vshrl.u32 %v5466, 7
    %v5468 = vsub.s32 %v5465, %v5467
    %v5469 = vrot.slane %v5455, %v5468
    %v5470 = vcombine.low %v5446, %v5462
    %v5471 = vcombine.high %v5446, %v5462
    %v5473 = vunpack.c.l.s4 1934713408
    %v5474 = vunpack.c.0.s8 %v5473
    %v5475 = vlaneseq
    %v5476 = vshrl.u32 %v5475, 7
    %v5477 = vsub.s32 %v5474, %v5476
    %v5478 = vrot.slane %v5470, %v5477
    %v5480 = vunpack.c.l.s4 1934713408
    %v5481 = vunpack.c.0.s8 %v5480
    %v5482 = vlaneseq
    %v5483 = vshrl.u32 %v5482, 7
    %v5484 = vsub.s32 %v5481, %v5483
    %v5485 = vrot.slane %v5471, %v5484
    %v5486 = vcombine.low %v5453, %v5469
    %v5487 = vcombine.high %v5453, %v5469
    %v5489 = vunpack.c.l.s4 1934713408
    %v5490 = vunpack.c.0.s8 %v5489
    %v5491 = vlaneseq
    %v5492 = vshrl.u32 %v5491, 7
    %v5493 = vsub.s32 %v5490, %v5492
    %v5494 = vrot.slane %v5486, %v5493
    %v5496 = vunpack.c.l.s4 1934713408
    %v5497 = vunpack.c.0.s8 %v5496
    %v5498 = vlaneseq
    %v5499 = vshrl.u32 %v5498, 7
    %v5500 = vsub.s32 %v5497, %v5499
    %v5501 = vrot.slane %v5487, %v5500
    %v5502 = vcombine.high %v5478, 0.0
    %v5503 = vcombine.high %v5485, 0.0
    %v5504 = vcombine.high %v5494, 0.0
    %v5505 = vcombine.high %v5501, 0.0
    %v5506 = vcombine.low %v4156, %v5351
    %v5507 = vcombine.high %v4156, %v5351
    %v5509 = vunpack.c.l.s4 1983009808
    %v5510 = vunpack.c.0.s8 %v5509
    %v5511 = vlaneseq
    %v5512 = vshrl.u32 %v5511, 7
    %v5513 = vsub.s32 %v5510, %v5512
    %v5514 = vrot.slane %v5506, %v5513
    %v5516 = vunpack.c.l.s4 1983009808
    %v5517 = vunpack.c.0.s8 %v5516
    %v5518 = vlaneseq
    %v5519 = vshrl.u32 %v5518, 7
    %v5520 = vsub.s32 %v5517, %v5519
    %v5521 = vrot.slane %v5507, %v5520
    %v5522 = vcombine.low %v5339, %v5363
    %v5523 = vcombine.high %v5339, %v5363
    %v5525 = vunpack.c.l.s4 1983009808
    %v5526 = vunpack.c.0.s8 %v5525
    %v5527 = vlaneseq
    %v5528 = vshrl.u32 %v5527, 7
    %v5529 = vsub.s32 %v5526, %v5528
    %v5530 = vrot.slane %v5522, %v5529
    %v5532 = vunpack.c.l.s4 1983009808
    %v5533 = vunpack.c.0.s8 %v5532
    %v5534 = vlaneseq
    %v5535 = vshrl.u32 %v5534, 7
    %v5536 = vsub.s32 %v5533, %v5535
    %v5537 = vrot.slane %v5523, %v5536
    %v5538 = vcombine.low %v5514, %v5530
    %v5539 = vcombine.high %v5514, %v5530
    %v5541 = vunpack.c.l.s4 1934713408
    %v5542 = vunpack.c.0.s8 %v5541
    %v5543 = vlaneseq
    %v5544 = vshrl.u32 %v5543, 7
    %v5545 = vsub.s32 %v5542, %v5544
    %v5546 = vrot.slane %v5538, %v5545
    %v5548 = vunpack.c.l.s4 1934713408
    %v5549 = vunpack.c.0.s8 %v5548
    %v5550 = vlaneseq
    %v5551 = vshrl.u32 %v5550, 7
    %v5552 = vsub.s32 %v5549, %v5551
    %v5553 = vrot.slane %v5539, %v5552
    %v5554 = vcombine.low %v5521, %v5537
    %v5555 = vcombine.high %v5521, %v5537
    %v5557 = vunpack.c.l.s4 1934713408
    %v5558 = vunpack.c.0.s8 %v5557
    %v5559 = vlaneseq
    %v5560 = vshrl.u32 %v5559, 7
    %v5561 = vsub.s32 %v5558, %v5560
    %v5562 = vrot.slane %v5554, %v5561
    %v5564 = vunpack.c.l.s4 1934713408
    %v5565 = vunpack.c.0.s8 %v5564
    %v5566 = vlaneseq
    %v5567 = vshrl.u32 %v5566, 7
    %v5568 = vsub.s32 %v5565, %v5567
    %v5569 = vrot.slane %v5555, %v5568
    %v5570 = vcombine.high %v5546, 0.0
    %v5571 = vcombine.high %v5553, 0.0
    %v5572 = vcombine.high %v5562, 0.0
    %v5573 = vcombine.high %v5569, 0.0
    %v5574 = vcombine.low %v4159, %v5353
    %v5575 = vcombine.high %v4159, %v5353
    %v5577 = vunpack.c.l.s4 1983009808
    %v5578 = vunpack.c.0.s8 %v5577
    %v5579 = vlaneseq
    %v5580 = vshrl.u32 %v5579, 7
    %v5581 = vsub.s32 %v5578, %v5580
    %v5582 = vrot.slane %v5574, %v5581
    %v5584 = vunpack.c.l.s4 1983009808
    %v5585 = vunpack.c.0.s8 %v5584
    %v5586 = vlaneseq
    %v5587 = vshrl.u32 %v5586, 7
    %v5588 = vsub.s32 %v5585, %v5587
    %v5589 = vrot.slane %v5575, %v5588
    %v5590 = vcombine.low %v5341, %v5365
    %v5591 = vcombine.high %v5341, %v5365
    %v5593 = vunpack.c.l.s4 1983009808
    %v5594 = vunpack.c.0.s8 %v5593
    %v5595 = vlaneseq
    %v5596 = vshrl.u32 %v5595, 7
    %v5597 = vsub.s32 %v5594, %v5596
    %v5598 = vrot.slane %v5590, %v5597
    %v5600 = vunpack.c.l.s4 1983009808
    %v5601 = vunpack.c.0.s8 %v5600
    %v5602 = vlaneseq
    %v5603 = vshrl.u32 %v5602, 7
    %v5604 = vsub.s32 %v5601, %v5603
    %v5605 = vrot.slane %v5591, %v5604
    %v5606 = vcombine.low %v5582, %v5598
    %v5607 = vcombine.high %v5582, %v5598
    %v5609 = vunpack.c.l.s4 1934713408
    %v5610 = vunpack.c.0.s8 %v5609
    %v5611 = vlaneseq
    %v5612 = vshrl.u32 %v5611, 7
    %v5613 = vsub.s32 %v5610, %v5612
    %v5614 = vrot.slane %v5606, %v5613
    %v5616 = vunpack.c.l.s4 1934713408
    %v5617 = vunpack.c.0.s8 %v5616
    %v5618 = vlaneseq
    %v5619 = vshrl.u32 %v5618, 7
    %v5620 = vsub.s32 %v5617, %v5619
    %v5621 = vrot.slane %v5607, %v5620
    %v5622 = vcombine.low %v5589, %v5605
    %v5623 = vcombine.high %v5589, %v5605
    %v5625 = vunpack.c.l.s4 1934713408
    %v5626 = vunpack.c.0.s8 %v5625
    %v5627 = vlaneseq
    %v5628 = vshrl.u32 %v5627, 7
    %v5629 = vsub.s32 %v5626, %v5628
    %v5630 = vrot.slane %v5622, %v5629
    %v5632 = vunpack.c.l.s4 1934713408
    %v5633 = vunpack.c.0.s8 %v5632
    %v5634 = vlaneseq
    %v5635 = vshrl.u32 %v5634, 7
    %v5636 = vsub.s32 %v5633, %v5635
    %v5637 = vrot.slane %v5623, %v5636
    %v5638 = vcombine.high %v5614, 0.0
    %v5639 = vcombine.high %v5621, 0.0
    %v5640 = vcombine.high %v5630, 0.0
    %v5641 = vcombine.high %v5637, 0.0
    %v5642 = vcombine.low %v5410, %v5417
    %v5644 = vunpack.c.l.s4 1983009808
    %v5645 = vunpack.c.0.s8 %v5644
    %v5646 = vlaneseq
    %v5647 = vshrl.u32 %v5646, 7
    %v5648 = vsub.s32 %v5645, %v5647
    %v5649 = vrot.slane %v5642, %v5648
    %v5650 = vcombine.low %v5434, %v5435
    %v5652 = vunpack.c.l.s4 1983009808
    %v5653 = vunpack.c.0.s8 %v5652
    %v5654 = vlaneseq
    %v5655 = vshrl.u32 %v5654, 7
    %v5656 = vsub.s32 %v5653, %v5655
    %v5657 = vrot.slane %v5650, %v5656
    %v5658 = vcombine.low %v5426, %v5433
    %v5660 = vunpack.c.l.s4 1983009808
    %v5661 = vunpack.c.0.s8 %v5660
    %v5662 = vlaneseq
    %v5663 = vshrl.u32 %v5662, 7
    %v5664 = vsub.s32 %v5661, %v5663
    %v5665 = vrot.slane %v5658, %v5664
    %v5666 = vcombine.low %v5436, %v5437
    %v5668 = vunpack.c.l.s4 1983009808
    %v5669 = vunpack.c.0.s8 %v5668
    %v5670 = vlaneseq
    %v5671 = vshrl.u32 %v5670, 7
    %v5672 = vsub.s32 %v5669, %v5671
    %v5673 = vrot.slane %v5666, %v5672
    %v5674 = vcombine.low %v5649, %v5657
    %v5675 = vcombine.high %v5649, %v5657
    %v5677 = vunpack.c.l.s4 1934713408
    %v5678 = vunpack.c.0.s8 %v5677
    %v5679 = vlaneseq
    %v5680 = vshrl.u32 %v5679, 7
    %v5681 = vsub.s32 %v5678, %v5680
    %v5682 = vrot.slane %v5674, %v5681
    %v5684 = vunpack.c.l.s4 1934713408
    %v5685 = vunpack.c.0.s8 %v5684
    %v5686 = vlaneseq
    %v5687 = vshrl.u32 %v5686, 7
    %v5688 = vsub.s32 %v5685, %v5687
    %v5689 = vrot.slane %v5675, %v5688
    %v5690 = vcombine.low %v5665, %v5673
    %v5691 = vcombine.high %v5665, %v5673
    %v5693 = vunpack.c.l.s4 1934713408
    %v5694 = vunpack.c.0.s8 %v5693
    %v5695 = vlaneseq
    %v5696 = vshrl.u32 %v5695, 7
    %v5697 = vsub.s32 %v5694, %v5696
    %v5698 = vrot.slane %v5690, %v5697
    %v5700 = vunpack.c.l.s4 1934713408
    %v5701 = vunpack.c.0.s8 %v5700
    %v5702 = vlaneseq
    %v5703 = vshrl.u32 %v5702, 7
    %v5704 = vsub.s32 %v5701, %v5703
    %v5705 = vrot.slane %v5691, %v5704
    %v5706 = vcombine.low %v5682, %v5698
    %v5707 = vcombine.high %v5682, %v5698
    %v5708 = vcombine.low %v5689, %v5705
    %v5709 = vcombine.high %v5689, %v5705
    %v5710 = vcombine.low %v5478, %v5485
    %v5712 = vunpack.c.l.s4 1983009808
    %v5713 = vunpack.c.0.s8 %v5712
    %v5714 = vlaneseq
    %v5715 = vshrl.u32 %v5714, 7
    %v5716 = vsub.s32 %v5713, %v5715
    %v5717 = vrot.slane %v5710, %v5716
    %v5718 = vcombine.low %v5502, %v5503
    %v5720 = vunpack.c.l.s4 1983009808
    %v5721 = vunpack.c.0.s8 %v5720
    %v5722 = vlaneseq
    %v5723 = vshrl.u32 %v5722, 7
    %v5724 = vsub.s32 %v5721, %v5723
    %v5725 = vrot.slane %v5718, %v5724
    %v5726 = vcombine.low %v5494, %v5501
    %v5728 = vunpack.c.l.s4 1983009808
    %v5729 = vunpack.c.0.s8 %v5728
    %v5730 = vlaneseq
    %v5731 = vshrl.u32 %v5730, 7
    %v5732 = vsub.s32 %v5729, %v5731
    %v5733 = vrot.slane %v5726, %v5732
    %v5734 = vcombine.low %v5504, %v5505
    %v5736 = vunpack.c.l.s4 1983009808
    %v5737 = vunpack.c.0.s8 %v5736
    %v5738 = vlaneseq
    %v5739 = vshrl.u32 %v5738, 7
    %v5740 = vsub.s32 %v5737, %v5739
    %v5741 = vrot.slane %v5734, %v5740
    %v5742 = vcombine.low %v5717, %v5725
    %v5743 = vcombine.high %v5717, %v5725
    %v5745 = vunpack.c.l.s4 1934713408
    %v5746 = vunpack.c.0.s8 %v5745
    %v5747 = vlaneseq
    %v5748 = vshrl.u32 %v5747, 7
    %v5749 = vsub.s32 %v5746, %v5748
    %v5750 = vrot.slane %v5742, %v5749
    %v5752 = vunpack.c.l.s4 1934713408
    %v5753 = vunpack.c.0.s8 %v5752
    %v5754 = vlaneseq
    %v5755 = vshrl.u32 %v5754, 7
    %v5756 = vsub.s32 %v5753, %v5755
    %v5757 = vrot.slane %v5743, %v5756
    %v5758 = vcombine.low %v5733, %v5741
    %v5759 = vcombine.high %v5733, %v5741
    %v5761 = vunpack.c.l.s4 1934713408
    %v5762 = vunpack.c.0.s8 %v5761
    %v5763 = vlaneseq
    %v5764 = vshrl.u32 %v5763, 7
    %v5765 = vsub.s32 %v5762, %v5764
    %v5766 = vrot.slane %v5758, %v5765
    %v5768 = vunpack.c.l.s4 1934713408
    %v5769 = vunpack.c.0.s8 %v5768
    %v5770 = vlaneseq
    %v5771 = vshrl.u32 %v5770, 7
    %v5772 = vsub.s32 %v5769, %v5771
    %v5773 = vrot.slane %v5759, %v5772
    %v5774 = vcombine.low %v5750, %v5766
    %v5775 = vcombine.high %v5750, %v5766
    %v5776 = vcombine.low %v5757, %v5773
    %v5777 = vcombine.high %v5757, %v5773
    %v5778 = vcombine.low %v5546, %v5553
    %v5780 = vunpack.c.l.s4 1983009808
    %v5781 = vunpack.c.0.s8 %v5780
    %v5782 = vlaneseq
    %v5783 = vshrl.u32 %v5782, 7
    %v5784 = vsub.s32 %v5781, %v5783
    %v5785 = vrot.slane %v5778, %v5784
    %v5786 = vcombine.low %v5570, %v5571
    %v5788 = vunpack.c.l.s4 1983009808
    %v5789 = vunpack.c.0.s8 %v5788
    %v5790 = vlaneseq
    %v5791 = vshrl.u32 %v5790, 7
    %v5792 = vsub.s32 %v5789, %v5791
    %v5793 = vrot.slane %v5786, %v5792
    %v5794 = vcombine.low %v5562, %v5569
    %v5796 = vunpack.c.l.s4 1983009808
    %v5797 = vunpack.c.0.s8 %v5796
    %v5798 = vlaneseq
    %v5799 = vshrl.u32 %v5798, 7
    %v5800 = vsub.s32 %v5797, %v5799
    %v5801 = vrot.slane %v5794, %v5800
    %v5802 = vcombine.low %v5572, %v5573
    %v5804 = vunpack.c.l.s4 1983009808
    %v5805 = vunpack.c.0.s8 %v5804
    %v5806 = vlaneseq
    %v5807 = vshrl.u32 %v5806, 7
    %v5808 = vsub.s32 %v5805, %v5807
    %v5809 = vrot.slane %v5802, %v5808
    %v5810 = vcombine.low %v5785, %v5793
    %v5811 = vcombine.high %v5785, %v5793
    %v5813 = vunpack.c.l.s4 1934713408
    %v5814 = vunpack.c.0.s8 %v5813
    %v5815 = vlaneseq
    %v5816 = vshrl.u32 %v5815, 7
    %v5817 = vsub.s32 %v5814, %v5816
    %v5818 = vrot.slane %v5810, %v5817
    %v5820 = vunpack.c.l.s4 1934713408
    %v5821 = vunpack.c.0.s8 %v5820
    %v5822 = vlaneseq
    %v5823 = vshrl.u32 %v5822, 7
    %v5824 = vsub.s32 %v5821, %v5823
    %v5825 = vrot.slane %v5811, %v5824
    %v5826 = vcombine.low %v5801, %v5809
    %v5827 = vcombine.high %v5801, %v5809
    %v5829 = vunpack.c.l.s4 1934713408
    %v5830 = vunpack.c.0.s8 %v5829
    %v5831 = vlaneseq
    %v5832 = vshrl.u32 %v5831, 7
    %v5833 = vsub.s32 %v5830, %v5832
    %v5834 = vrot.slane %v5826, %v5833
    %v5836 = vunpack.c.l.s4 1934713408
    %v5837 = vunpack.c.0.s8 %v5836
    %v5838 = vlaneseq
    %v5839 = vshrl.u32 %v5838, 7
    %v5840 = vsub.s32 %v5837, %v5839
    %v5841 = vrot.slane %v5827, %v5840
    %v5842 = vcombine.low %v5818, %v5834
    %v5843 = vcombine.high %v5818, %v5834
    %v5844 = vcombine.low %v5825, %v5841
    %v5845 = vcombine.high %v5825, %v5841
    %v5846 = vcombine.low %v5614, %v5621
    %v5848 = vunpack.c.l.s4 1983009808
    %v5849 = vunpack.c.0.s8 %v5848
    %v5850 = vlaneseq
    %v5851 = vshrl.u32 %v5850, 7
    %v5852 = vsub.s32 %v5849, %v5851
    %v5853 = vrot.slane %v5846, %v5852
    %v5854 = vcombine.low %v5638, %v5639
    %v5856 = vunpack.c.l.s4 1983009808
    %v5857 = vunpack.c.0.s8 %v5856
    %v5858 = vlaneseq
    %v5859 = vshrl.u32 %v5858, 7
    %v5860 = vsub.s32 %v5857, %v5859
    %v5861 = vrot.slane %v5854, %v5860
    %v5862 = vcombine.low %v5630, %v5637
    %v5864 = vunpack.c.l.s4 1983009808
    %v5865 = vunpack.c.0.s8 %v5864
    %v5866 = vlaneseq
    %v5867 = vshrl.u32 %v5866, 7
    %v5868 = vsub.s32 %v5865, %v5867
    %v5869 = vrot.slane %v5862, %v5868
    %v5870 = vcombine.low %v5640, %v5641
    %v5872 = vunpack.c.l.s4 1983009808
    %v5873 = vunpack.c.0.s8 %v5872
    %v5874 = vlaneseq
    %v5875 = vshrl.u32 %v5874, 7
    %v5876 = vsub.s32 %v5873, %v5875
    %v5877 = vrot.slane %v5870, %v5876
    %v5878 = vcombine.low %v5853, %v5861
    %v5879 = vcombine.high %v5853, %v5861
    %v5881 = vunpack.c.l.s4 1934713408
    %v5882 = vunpack.c.0.s8 %v5881
    %v5883 = vlaneseq
    %v5884 = vshrl.u32 %v5883, 7
    %v5885 = vsub.s32 %v5882, %v5884
    %v5886 = vrot.slane %v5878, %v5885
    %v5888 = vunpack.c.l.s4 1934713408
    %v5889 = vunpack.c.0.s8 %v5888
    %v5890 = vlaneseq
    %v5891 = vshrl.u32 %v5890, 7
    %v5892 = vsub.s32 %v5889, %v5891
    %v5893 = vrot.slane %v5879, %v5892
    %v5894 = vcombine.low %v5869, %v5877
    %v5895 = vcombine.high %v5869, %v5877
    %v5897 = vunpack.c.l.s4 1934713408
    %v5898 = vunpack.c.0.s8 %v5897
    %v5899 = vlaneseq
    %v5900 = vshrl.u32 %v5899, 7
    %v5901 = vsub.s32 %v5898, %v5900
    %v5902 = vrot.slane %v5894, %v5901
    %v5904 = vunpack.c.l.s4 1934713408
    %v5905 = vunpack.c.0.s8 %v5904
    %v5906 = vlaneseq
    %v5907 = vshrl.u32 %v5906, 7
    %v5908 = vsub.s32 %v5905, %v5907
    %v5909 = vrot.slane %v5895, %v5908
    %v5910 = vcombine.low %v5886, %v5902
    %v5911 = vcombine.high %v5886, %v5902
    %v5912 = vcombine.low %v5893, %v5909
    %v5913 = vcombine.high %v5893, %v5909
    %v5914 = vpack.c.bf16 %v4606, %v4538
    %v5915 = vpack.c.bf16 %v4742, %v4674
    %v5916 = vpack.c.bf16 %v4607, %v4539
    %v5917 = vpack.c.bf16 %v4743, %v4675
    %v5918 = vpack.c.bf16 %v4608, %v4540
    %v5919 = vpack.c.bf16 %v4744, %v4676
    %v5920 = vpack.c.bf16 %v4609, %v4541
    %v5921 = vpack.c.bf16 %v4745, %v4677
    %v5922 = vpack.c.bf16 %v5190, %v5122
    %v5923 = vpack.c.bf16 %v5326, %v5258
    %v5924 = vpack.c.bf16 %v5191, %v5123
    %v5925 = vpack.c.bf16 %v5327, %v5259
    %v5926 = vpack.c.bf16 %v5192, %v5124
    %v5927 = vpack.c.bf16 %v5328, %v5260
    %v5928 = vpack.c.bf16 %v5193, %v5125
    %v5929 = vpack.c.bf16 %v5329, %v5261
    %v5931 = vsel %vm2420, %v5914, 0
    %v5934 = vsel %vm2420, %v5915, 0
    %v5937 = vsel %vm2420, %v5922, 0
    %v5940 = vsel %vm2420, %v5923, 0
    %5942 = vmatprep.subr.bf16.mxu0 0
    %5943 = vmatpush1.bf16.xpose.msra.mxu0 %v5937
    %5944 = vmatprep.subr.bf16.mxu0 0
    %5945 = vmatpush1.bf16.xpose.msra.mxu0 %v5940
    %5946 = vmatprep.subr.bf16.mxu0 0
    %5947 = vmatpush1.bf16.xpose.msra.mxu0 0
    %5948 = vmatprep.subr.bf16.mxu0 0
    %5949 = vmatpush1.bf16.xpose.msra.mxu0 0
    %5950 = vmatprep.subr.bf16.mxu0 0
    %5951 = vmatpush1.bf16.xpose.msra.mxu0 0
    %5952 = vmatprep.subr.bf16.mxu0 0
    %5953 = vmatpush1.bf16.xpose.msra.mxu0 0
    %5954 = vmatprep.subr.bf16.mxu0 0
    %5955 = vmatpush1.bf16.xpose.msra.mxu0 0
    %5956 = vmatprep.subr.bf16.mxu0 0
    %5957 = vmatpush1.bf16.xpose.msra.mxu0 0
    %5958 = vmatprep.subr.bf16.mxu0 0
    %5959 = vmatpush1.bf16.xpose.msra.mxu0 0
    %5960 = vmatprep.subr.bf16.mxu0 0
    %5961 = vmatpush1.bf16.xpose.msra.mxu0 0
    %5962 = vmatprep.subr.bf16.mxu0 0
    %5963 = vmatpush1.bf16.xpose.msra.mxu0 0
    %5964 = vmatprep.subr.bf16.mxu0 0
    %5965 = vmatpush1.bf16.xpose.msra.mxu0 0
    %5966 = vmatprep.subr.bf16.mxu0 0
    %5967 = vmatpush1.bf16.xpose.msra.mxu0 0
    %5968 = vmatprep.subr.bf16.mxu0 0
    %5969 = vmatpush1.bf16.xpose.msra.mxu0 0
    %5970 = vmatprep.subr.bf16.mxu0 0
    %5971 = vmatpush1.bf16.xpose.msra.mxu0 0
    %5972 = vmatprep.subr.bf16.mxu0 0
    %5973 = vmatpush1.bf16.xpose.msra.mxu0 0
    %5974 = vmatprep.mubr.bf16.mxu0 0
    %5975 = vmatmul.mubr.bf16.gmra.mrb[0].mxu0 %v5931
    %v5976 = vpop.f32.mrb[0].mxu0
    %v5977 = vadd.f32 %v301, %v5976
    %v5978 = vpop.f32.mrb[0].mxu0
    %v5979 = vpop.f32.mrb[0].mxu0
    %v5980 = vadd.f32 %v302, %v5979
    %v5981 = vpop.f32.mrb[0].mxu0
    %5982 = vmatprep.mubr.bf16.mxu0 0
    %5983 = vmatmul.mubr.bf16.gmra.mrb[0].mxu0 %v5934
    %v5984 = vpop.f32.mrb[0].mxu0
    %v5985 = vadd.f32 %v303, %v5984
    %v5986 = vpop.f32.mrb[0].mxu0
    %v5987 = vpop.f32.mrb[0].mxu0
    %v5988 = vadd.f32 %v304, %v5987
    %v5989 = vpop.f32.mrb[0].mxu0
    %5990 = vdwg.mxu0
    %v5992 = vsel %vm2420, %v5916, 0
    %v5995 = vsel %vm2420, %v5917, 0
    %v5998 = vsel %vm2420, %v5924, 0
    %v6001 = vsel %vm2420, %v5925, 0
    %6003 = vmatprep.subr.bf16.mxu0 0
    %6004 = vmatpush1.bf16.xpose.msra.mxu0 %v5998
    %6005 = vmatprep.subr.bf16.mxu0 0
    %6006 = vmatpush1.bf16.xpose.msra.mxu0 %v6001
    %6007 = vmatprep.subr.bf16.mxu0 0
    %6008 = vmatpush1.bf16.xpose.msra.mxu0 0
    %6009 = vmatprep.subr.bf16.mxu0 0
    %6010 = vmatpush1.bf16.xpose.msra.mxu0 0
    %6011 = vmatprep.subr.bf16.mxu0 0
    %6012 = vmatpush1.bf16.xpose.msra.mxu0 0
    %6013 = vmatprep.subr.bf16.mxu0 0
    %6014 = vmatpush1.bf16.xpose.msra.mxu0 0
    %6015 = vmatprep.subr.bf16.mxu0 0
    %6016 = vmatpush1.bf16.xpose.msra.mxu0 0
    %6017 = vmatprep.subr.bf16.mxu0 0
    %6018 = vmatpush1.bf16.xpose.msra.mxu0 0
    %6019 = vmatprep.subr.bf16.mxu0 0
    %6020 = vmatpush1.bf16.xpose.msra.mxu0 0
    %6021 = vmatprep.subr.bf16.mxu0 0
    %6022 = vmatpush1.bf16.xpose.msra.mxu0 0
    %6023 = vmatprep.subr.bf16.mxu0 0
    %6024 = vmatpush1.bf16.xpose.msra.mxu0 0
    %6025 = vmatprep.subr.bf16.mxu0 0
    %6026 = vmatpush1.bf16.xpose.msra.mxu0 0
    %6027 = vmatprep.subr.bf16.mxu0 0
    %6028 = vmatpush1.bf16.xpose.msra.mxu0 0
    %6029 = vmatprep.subr.bf16.mxu0 0
    %6030 = vmatpush1.bf16.xpose.msra.mxu0 0
    %6031 = vmatprep.subr.bf16.mxu0 0
    %6032 = vmatpush1.bf16.xpose.msra.mxu0 0
    %6033 = vmatprep.subr.bf16.mxu0 0
    %6034 = vmatpush1.bf16.xpose.msra.mxu0 0
    %6035 = vmatprep.mubr.bf16.mxu0 0
    %6036 = vmatmul.mubr.bf16.gmra.mrb[0].mxu0 %v5992
    %v6037 = vpop.f32.mrb[0].mxu0
    %v6038 = vadd.f32 %v301, %v6037
    %v6039 = vpop.f32.mrb[0].mxu0
    %v6040 = vpop.f32.mrb[0].mxu0
    %v6041 = vadd.f32 %v302, %v6040
    %v6042 = vpop.f32.mrb[0].mxu0
    %6043 = vmatprep.mubr.bf16.mxu0 0
    %6044 = vmatmul.mubr.bf16.gmra.mrb[0].mxu0 %v5995
    %v6045 = vpop.f32.mrb[0].mxu0
    %v6046 = vadd.f32 %v303, %v6045
    %v6047 = vpop.f32.mrb[0].mxu0
    %v6048 = vpop.f32.mrb[0].mxu0
    %v6049 = vadd.f32 %v304, %v6048
    %v6050 = vpop.f32.mrb[0].mxu0
    %6051 = vdwg.mxu0
    %v6053 = vsel %vm2420, %v5918, 0
    %v6056 = vsel %vm2420, %v5919, 0
    %v6059 = vsel %vm2420, %v5926, 0
    %v6062 = vsel %vm2420, %v5927, 0
    %6064 = vmatprep.subr.bf16.mxu0 0
    %6065 = vmatpush1.bf16.xpose.msra.mxu0 %v6059
    %6066 = vmatprep.subr.bf16.mxu0 0
    %6067 = vmatpush1.bf16.xpose.msra.mxu0 %v6062
    %6068 = vmatprep.subr.bf16.mxu0 0
    %6069 = vmatpush1.bf16.xpose.msra.mxu0 0
    %6070 = vmatprep.subr.bf16.mxu0 0
    %6071 = vmatpush1.bf16.xpose.msra.mxu0 0
    %6072 = vmatprep.subr.bf16.mxu0 0
    %6073 = vmatpush1.bf16.xpose.msra.mxu0 0
    %6074 = vmatprep.subr.bf16.mxu0 0
    %6075 = vmatpush1.bf16.xpose.msra.mxu0 0
    %6076 = vmatprep.subr.bf16.mxu0 0
    %6077 = vmatpush1.bf16.xpose.msra.mxu0 0
    %6078 = vmatprep.subr.bf16.mxu0 0
    %6079 = vmatpush1.bf16.xpose.msra.mxu0 0
    %6080 = vmatprep.subr.bf16.mxu0 0
    %6081 = vmatpush1.bf16.xpose.msra.mxu0 0
    %6082 = vmatprep.subr.bf16.mxu0 0
    %6083 = vmatpush1.bf16.xpose.msra.mxu0 0
    %6084 = vmatprep.subr.bf16.mxu0 0
    %6085 = vmatpush1.bf16.xpose.msra.mxu0 0
    %6086 = vmatprep.subr.bf16.mxu0 0
    %6087 = vmatpush1.bf16.xpose.msra.mxu0 0
    %6088 = vmatprep.subr.bf16.mxu0 0
    %6089 = vmatpush1.bf16.xpose.msra.mxu0 0
    %6090 = vmatprep.subr.bf16.mxu0 0
    %6091 = vmatpush1.bf16.xpose.msra.mxu0 0
    %6092 = vmatprep.subr.bf16.mxu0 0
    %6093 = vmatpush1.bf16.xpose.msra.mxu0 0
    %6094 = vmatprep.subr.bf16.mxu0 0
    %6095 = vmatpush1.bf16.xpose.msra.mxu0 0
    %6096 = vmatprep.mubr.bf16.mxu0 0
    %6097 = vmatmul.mubr.bf16.gmra.mrb[0].mxu0 %v6053
    %v6098 = vpop.f32.mrb[0].mxu0
    %v6099 = vadd.f32 %v301, %v6098
    %v6100 = vpop.f32.mrb[0].mxu0
    %v6101 = vpop.f32.mrb[0].mxu0
    %v6102 = vadd.f32 %v302, %v6101
    %v6103 = vpop.f32.mrb[0].mxu0
    %6104 = vmatprep.mubr.bf16.mxu0 0
    %6105 = vmatmul.mubr.bf16.gmra.mrb[0].mxu0 %v6056
    %v6106 = vpop.f32.mrb[0].mxu0
    %v6107 = vadd.f32 %v303, %v6106
    %v6108 = vpop.f32.mrb[0].mxu0
    %v6109 = vpop.f32.mrb[0].mxu0
    %v6110 = vadd.f32 %v304, %v6109
    %v6111 = vpop.f32.mrb[0].mxu0
    %6112 = vdwg.mxu0
    %v6114 = vsel %vm2420, %v5920, 0
    %v6117 = vsel %vm2420, %v5921, 0
    %v6120 = vsel %vm2420, %v5928, 0
    %v6123 = vsel %vm2420, %v5929, 0
    %6125 = vmatprep.subr.bf16.mxu0 0
    %6126 = vmatpush1.bf16.xpose.msra.mxu0 %v6120
    %6127 = vmatprep.subr.bf16.mxu0 0
    %6128 = vmatpush1.bf16.xpose.msra.mxu0 %v6123
    %6129 = vmatprep.subr.bf16.mxu0 0
    %6130 = vmatpush1.bf16.xpose.msra.mxu0 0
    %6131 = vmatprep.subr.bf16.mxu0 0
    %6132 = vmatpush1.bf16.xpose.msra.mxu0 0
    %6133 = vmatprep.subr.bf16.mxu0 0
    %6134 = vmatpush1.bf16.xpose.msra.mxu0 0
    %6135 = vmatprep.subr.bf16.mxu0 0
    %6136 = vmatpush1.bf16.xpose.msra.mxu0 0
    %6137 = vmatprep.subr.bf16.mxu0 0
    %6138 = vmatpush1.bf16.xpose.msra.mxu0 0
    %6139 = vmatprep.subr.bf16.mxu0 0
    %6140 = vmatpush1.bf16.xpose.msra.mxu0 0
    %6141 = vmatprep.subr.bf16.mxu0 0
    %6142 = vmatpush1.bf16.xpose.msra.mxu0 0
    %6143 = vmatprep.subr.bf16.mxu0 0
    %6144 = vmatpush1.bf16.xpose.msra.mxu0 0
    %6145 = vmatprep.subr.bf16.mxu0 0
    %6146 = vmatpush1.bf16.xpose.msra.mxu0 0
    %6147 = vmatprep.subr.bf16.mxu0 0
    %6148 = vmatpush1.bf16.xpose.msra.mxu0 0
    %6149 = vmatprep.subr.bf16.mxu0 0
    %6150 = vmatpush1.bf16.xpose.msra.mxu0 0
    %6151 = vmatprep.subr.bf16.mxu0 0
    %6152 = vmatpush1.bf16.xpose.msra.mxu0 0
    %6153 = vmatprep.subr.bf16.mxu0 0
    %6154 = vmatpush1.bf16.xpose.msra.mxu0 0
    %6155 = vmatprep.subr.bf16.mxu0 0
    %6156 = vmatpush1.bf16.xpose.msra.mxu0 0
    %6157 = vmatprep.mubr.bf16.mxu0 0
    %6158 = vmatmul.mubr.bf16.gmra.mrb[0].mxu0 %v6114
    %v6159 = vpop.f32.mrb[0].mxu0
    %v6160 = vadd.f32 %v301, %v6159
    %v6161 = vpop.f32.mrb[0].mxu0
    %v6162 = vpop.f32.mrb[0].mxu0
    %v6163 = vadd.f32 %v302, %v6162
    %v6164 = vpop.f32.mrb[0].mxu0
    %6165 = vmatprep.mubr.bf16.mxu0 0
    %6166 = vmatmul.mubr.bf16.gmra.mrb[0].mxu0 %v6117
    %v6167 = vpop.f32.mrb[0].mxu0
    %v6168 = vadd.f32 %v303, %v6167
    %v6169 = vpop.f32.mrb[0].mxu0
    %v6170 = vpop.f32.mrb[0].mxu0
    %v6171 = vadd.f32 %v304, %v6170
    %v6172 = vpop.f32.mrb[0].mxu0
    %6173 = vdwg.mxu0
    %v6174 = vsel %vm2665, %v5977, -inf
    %6175 = vmax.xlane.f32.xlu0 %v6174
    %v6176 = vpop.xlane.xlu0 %6175
    %v6177 = vsel %vm2665, %v5980, -inf
    %6178 = vmax.xlane.f32.xlu0 %v6177
    %v6179 = vpop.xlane.xlu0 %6178
    %v6180 = vsel %vm2665, %v5985, -inf
    %6181 = vmax.xlane.f32.xlu0 %v6180
    %v6182 = vpop.xlane.xlu0 %6181
    %v6183 = vsel %vm2665, %v5988, -inf
    %6184 = vmax.xlane.f32.xlu0 %v6183
    %v6185 = vpop.xlane.xlu0 %6184
    %v6186 = vsel %vm2665, %v6038, -inf
    %6187 = vmax.xlane.f32.xlu0 %v6186
    %v6188 = vpop.xlane.xlu0 %6187
    %v6189 = vsel %vm2665, %v6041, -inf
    %6190 = vmax.xlane.f32.xlu0 %v6189
    %v6191 = vpop.xlane.xlu0 %6190
    %v6192 = vsel %vm2665, %v6046, -inf
    %6193 = vmax.xlane.f32.xlu0 %v6192
    %v6194 = vpop.xlane.xlu0 %6193
    %v6195 = vsel %vm2665, %v6049, -inf
    %6196 = vmax.xlane.f32.xlu0 %v6195
    %v6197 = vpop.xlane.xlu0 %6196
    %v6198 = vsel %vm2665, %v6099, -inf
    %6199 = vmax.xlane.f32.xlu0 %v6198
    %v6200 = vpop.xlane.xlu0 %6199
    %v6201 = vsel %vm2665, %v6102, -inf
    %6202 = vmax.xlane.f32.xlu0 %v6201
    %v6203 = vpop.xlane.xlu0 %6202
    %v6204 = vsel %vm2665, %v6107, -inf
    %6205 = vmax.xlane.f32.xlu0 %v6204
    %v6206 = vpop.xlane.xlu0 %6205
    %v6207 = vsel %vm2665, %v6110, -inf
    %6208 = vmax.xlane.f32.xlu0 %v6207
    %v6209 = vpop.xlane.xlu0 %6208
    %v6210 = vsel %vm2665, %v6160, -inf
    %6211 = vmax.xlane.f32.xlu0 %v6210
    %v6212 = vpop.xlane.xlu0 %6211
    %v6213 = vsel %vm2665, %v6163, -inf
    %6214 = vmax.xlane.f32.xlu0 %v6213
    %v6215 = vpop.xlane.xlu0 %6214
    %v6216 = vsel %vm2665, %v6168, -inf
    %6217 = vmax.xlane.f32.xlu0 %v6216
    %v6218 = vpop.xlane.xlu0 %6217
    %v6219 = vsel %vm2665, %v6171, -inf
    %6220 = vmax.xlane.f32.xlu0 %v6219
    %v6221 = vpop.xlane.xlu0 %6220
    %v6222 = vsub.f32 %v5977, %v6176
    %v6223 = vsub.f32 %v5980, %v6179
    %v6224 = vsub.f32 %v5985, %v6182
    %v6225 = vsub.f32 %v5988, %v6185
    %v6226 = vsub.f32 %v6038, %v6188
    %v6227 = vsub.f32 %v6041, %v6191
    %v6228 = vsub.f32 %v6046, %v6194
    %v6229 = vsub.f32 %v6049, %v6197
    %v6230 = vsub.f32 %v6099, %v6200
    %v6231 = vsub.f32 %v6102, %v6203
    %v6232 = vsub.f32 %v6107, %v6206
    %v6233 = vsub.f32 %v6110, %v6209
    %v6234 = vsub.f32 %v6160, %v6212
    %v6235 = vsub.f32 %v6163, %v6215
    %v6236 = vsub.f32 %v6168, %v6218
    %v6237 = vsub.f32 %v6171, %v6221
    %v6238 = vmul.f32 %v6222, 1.442695
    %v6239 = vpow.pop %v6238
    %v6240 = vmul.f32 %v6223, 1.442695
    %v6241 = vpow.pop %v6240
    %v6242 = vmul.f32 %v6224, 1.442695
    %v6243 = vpow.pop %v6242
    %v6244 = vmul.f32 %v6225, 1.442695
    %v6245 = vpow.pop %v6244
    %v6246 = vmul.f32 %v6226, 1.442695
    %v6247 = vpow.pop %v6246
    %v6248 = vmul.f32 %v6227, 1.442695
    %v6249 = vpow.pop %v6248
    %v6250 = vmul.f32 %v6228, 1.442695
    %v6251 = vpow.pop %v6250
    %v6252 = vmul.f32 %v6229, 1.442695
    %v6253 = vpow.pop %v6252
    %v6254 = vmul.f32 %v6230, 1.442695
    %v6255 = vpow.pop %v6254
    %v6256 = vmul.f32 %v6231, 1.442695
    %v6257 = vpow.pop %v6256
    %v6258 = vmul.f32 %v6232, 1.442695
    %v6259 = vpow.pop %v6258
    %v6260 = vmul.f32 %v6233, 1.442695
    %v6261 = vpow.pop %v6260
    %v6262 = vmul.f32 %v6234, 1.442695
    %v6263 = vpow.pop %v6262
    %v6264 = vmul.f32 %v6235, 1.442695
    %v6265 = vpow.pop %v6264
    %v6266 = vmul.f32 %v6236, 1.442695
    %v6267 = vpow.pop %v6266
    %v6268 = vmul.f32 %v6237, 1.442695
    %v6269 = vpow.pop %v6268
    %v6270 = vsel %vm2665, %v6239, 0.0
    %6271 = vadd.xlane.f32.xlu0 %v6270
    %v6272 = vpop.xlane.xlu0 %6271
    %v6273 = vsel %vm2665, %v6241, 0.0
    %6274 = vadd.xlane.f32.xlu0 %v6273
    %v6275 = vpop.xlane.xlu0 %6274
    %v6276 = vsel %vm2665, %v6243, 0.0
    %6277 = vadd.xlane.f32.xlu0 %v6276
    %v6278 = vpop.xlane.xlu0 %6277
    %v6279 = vsel %vm2665, %v6245, 0.0
    %6280 = vadd.xlane.f32.xlu0 %v6279
    %v6281 = vpop.xlane.xlu0 %6280
    %v6282 = vsel %vm2665, %v6247, 0.0
    %6283 = vadd.xlane.f32.xlu0 %v6282
    %v6284 = vpop.xlane.xlu0 %6283
    %v6285 = vsel %vm2665, %v6249, 0.0
    %6286 = vadd.xlane.f32.xlu0 %v6285
    %v6287 = vpop.xlane.xlu0 %6286
    %v6288 = vsel %vm2665, %v6251, 0.0
    %6289 = vadd.xlane.f32.xlu0 %v6288
    %v6290 = vpop.xlane.xlu0 %6289
    %v6291 = vsel %vm2665, %v6253, 0.0
    %6292 = vadd.xlane.f32.xlu0 %v6291
    %v6293 = vpop.xlane.xlu0 %6292
    %v6294 = vsel %vm2665, %v6255, 0.0
    %6295 = vadd.xlane.f32.xlu0 %v6294
    %v6296 = vpop.xlane.xlu0 %6295
    %v6297 = vsel %vm2665, %v6257, 0.0
    %6298 = vadd.xlane.f32.xlu0 %v6297
    %v6299 = vpop.xlane.xlu0 %6298
    %v6300 = vsel %vm2665, %v6259, 0.0
    %6301 = vadd.xlane.f32.xlu0 %v6300
    %v6302 = vpop.xlane.xlu0 %6301
    %v6303 = vsel %vm2665, %v6261, 0.0
    %6304 = vadd.xlane.f32.xlu0 %v6303
    %v6305 = vpop.xlane.xlu0 %6304
    %v6306 = vsel %vm2665, %v6263, 0.0
    %6307 = vadd.xlane.f32.xlu0 %v6306
    %v6308 = vpop.xlane.xlu0 %6307
    %v6309 = vsel %vm2665, %v6265, 0.0
    %6310 = vadd.xlane.f32.xlu0 %v6309
    %v6311 = vpop.xlane.xlu0 %6310
    %v6312 = vsel %vm2665, %v6267, 0.0
    %6313 = vadd.xlane.f32.xlu0 %v6312
    %v6314 = vpop.xlane.xlu0 %6313
    %v6315 = vsel %vm2665, %v6269, 0.0
    %6316 = vadd.xlane.f32.xlu0 %v6315
    %v6317 = vpop.xlane.xlu0 %6316
    %v6318 = vrcp.pop %v6272
    %v6319 = vrcp.pop %v6275
    %v6320 = vrcp.pop %v6278
    %v6321 = vrcp.pop %v6281
    %v6322 = vrcp.pop %v6284
    %v6323 = vrcp.pop %v6287
    %v6324 = vrcp.pop %v6290
    %v6325 = vrcp.pop %v6293
    %v6326 = vrcp.pop %v6296
    %v6327 = vrcp.pop %v6299
    %v6328 = vrcp.pop %v6302
    %v6329 = vrcp.pop %v6305
    %v6330 = vrcp.pop %v6308
    %v6331 = vrcp.pop %v6311
    %v6332 = vrcp.pop %v6314
    %v6333 = vrcp.pop %v6317
    %v6334 = vmul.f32 %v6239, %v6318
    %v6335 = vmul.f32 %v6241, %v6319
    %v6336 = vmul.f32 %v6243, %v6320
    %v6337 = vmul.f32 %v6245, %v6321
    %v6338 = vmul.f32 %v6247, %v6322
    %v6339 = vmul.f32 %v6249, %v6323
    %v6340 = vmul.f32 %v6251, %v6324
    %v6341 = vmul.f32 %v6253, %v6325
    %v6342 = vmul.f32 %v6255, %v6326
    %v6343 = vmul.f32 %v6257, %v6327
    %v6344 = vmul.f32 %v6259, %v6328
    %v6345 = vmul.f32 %v6261, %v6329
    %v6346 = vmul.f32 %v6263, %v6330
    %v6347 = vmul.f32 %v6265, %v6331
    %v6348 = vmul.f32 %v6267, %v6332
    %v6349 = vmul.f32 %v6269, %v6333
    %v6350 = vpack.c.bf16 %v6335, %v6334
    %v6351 = vpack.c.bf16 %v6337, %v6336
    %v6352 = vpack.c.bf16 %v6339, %v6338
    %v6353 = vpack.c.bf16 %v6341, %v6340
    %v6354 = vpack.c.bf16 %v6343, %v6342
    %v6355 = vpack.c.bf16 %v6345, %v6344
    %v6356 = vpack.c.bf16 %v6347, %v6346
    %v6357 = vpack.c.bf16 %v6349, %v6348
    %v6358 = vpack.c.bf16 %v5774, %v5706
    %v6359 = vpack.c.bf16 %v5910, %v5842
    %v6360 = vpack.c.bf16 %v5775, %v5707
    %v6361 = vpack.c.bf16 %v5911, %v5843
    %v6362 = vpack.c.bf16 %v5776, %v5708
    %v6363 = vpack.c.bf16 %v5912, %v5844
    %v6364 = vpack.c.bf16 %v5777, %v5709
    %v6365 = vpack.c.bf16 %v5913, %v5845
    %v6367 = vsel %vm2665, %v6350, 0
    %v6370 = vsel %vm2665, %v6351, 0
    %6372 = vmatprep.subr.bf16.mxu0 0
    %6373 = vmatpush1.bf16.msra.mxu0 %v6358
    %6374 = vmatprep.subr.bf16.mxu0 0
    %6375 = vmatpush1.bf16.msra.mxu0 %v6359
    %6376 = vmatprep.subr.bf16.mxu0 0
    %6377 = vmatpush1.bf16.msra.mxu0 0
    %6378 = vmatprep.subr.bf16.mxu0 0
    %6379 = vmatpush1.bf16.msra.mxu0 0
    %6380 = vmatprep.subr.bf16.mxu0 0
    %6381 = vmatpush1.bf16.msra.mxu0 0
    %6382 = vmatprep.subr.bf16.mxu0 0
    %6383 = vmatpush1.bf16.msra.mxu0 0
    %6384 = vmatprep.subr.bf16.mxu0 0
    %6385 = vmatpush1.bf16.msra.mxu0 0
    %6386 = vmatprep.subr.bf16.mxu0 0
    %6387 = vmatpush1.bf16.msra.mxu0 0
    %6388 = vmatprep.subr.bf16.mxu0 0
    %6389 = vmatpush1.bf16.msra.mxu0 0
    %6390 = vmatprep.subr.bf16.mxu0 0
    %6391 = vmatpush1.bf16.msra.mxu0 0
    %6392 = vmatprep.subr.bf16.mxu0 0
    %6393 = vmatpush1.bf16.msra.mxu0 0
    %6394 = vmatprep.subr.bf16.mxu0 0
    %6395 = vmatpush1.bf16.msra.mxu0 0
    %6396 = vmatprep.subr.bf16.mxu0 0
    %6397 = vmatpush1.bf16.msra.mxu0 0
    %6398 = vmatprep.subr.bf16.mxu0 0
    %6399 = vmatpush1.bf16.msra.mxu0 0
    %6400 = vmatprep.subr.bf16.mxu0 0
    %6401 = vmatpush1.bf16.msra.mxu0 0
    %6402 = vmatprep.subr.bf16.mxu0 0
    %6403 = vmatpush1.bf16.msra.mxu0 0
    %6404 = vmatprep.mubr.bf16.mxu0 0
    %6405 = vmatmul.mubr.bf16.gmra.mrb[0].mxu0 %v6367
    %v6406 = vpop.f32.mrb[0].mxu0
    %v6407 = vadd.f32 0.0, %v6406
    %v6408 = vpop.f32.mrb[0].mxu0
    %v6409 = vpop.f32.mrb[0].mxu0
    %v6410 = vadd.f32 0.0, %v6409
    %v6411 = vpop.f32.mrb[0].mxu0
    %6412 = vmatprep.mubr.bf16.mxu0 0
    %6413 = vmatmul.mubr.bf16.gmra.mrb[0].mxu0 %v6370
    %v6414 = vpop.f32.mrb[0].mxu0
    %v6415 = vadd.f32 0.0, %v6414
    %v6416 = vpop.f32.mrb[0].mxu0
    %v6417 = vpop.f32.mrb[0].mxu0
    %v6418 = vadd.f32 0.0, %v6417
    %v6419 = vpop.f32.mrb[0].mxu0
    %6420 = vdwg.mxu0
    %v6422 = vsel %vm2665, %v6352, 0
    %v6425 = vsel %vm2665, %v6353, 0
    %6427 = vmatprep.subr.bf16.mxu0 0
    %6428 = vmatpush1.bf16.msra.mxu0 %v6360
    %6429 = vmatprep.subr.bf16.mxu0 0
    %6430 = vmatpush1.bf16.msra.mxu0 %v6361
    %6431 = vmatprep.subr.bf16.mxu0 0
    %6432 = vmatpush1.bf16.msra.mxu0 0
    %6433 = vmatprep.subr.bf16.mxu0 0
    %6434 = vmatpush1.bf16.msra.mxu0 0
    %6435 = vmatprep.subr.bf16.mxu0 0
    %6436 = vmatpush1.bf16.msra.mxu0 0
    %6437 = vmatprep.subr.bf16.mxu0 0
    %6438 = vmatpush1.bf16.msra.mxu0 0
    %6439 = vmatprep.subr.bf16.mxu0 0
    %6440 = vmatpush1.bf16.msra.mxu0 0
    %6441 = vmatprep.subr.bf16.mxu0 0
    %6442 = vmatpush1.bf16.msra.mxu0 0
    %6443 = vmatprep.subr.bf16.mxu0 0
    %6444 = vmatpush1.bf16.msra.mxu0 0
    %6445 = vmatprep.subr.bf16.mxu0 0
    %6446 = vmatpush1.bf16.msra.mxu0 0
    %6447 = vmatprep.subr.bf16.mxu0 0
    %6448 = vmatpush1.bf16.msra.mxu0 0
    %6449 = vmatprep.subr.bf16.mxu0 0
    %6450 = vmatpush1.bf16.msra.mxu0 0
    %6451 = vmatprep.subr.bf16.mxu0 0
    %6452 = vmatpush1.bf16.msra.mxu0 0
    %6453 = vmatprep.subr.bf16.mxu0 0
    %6454 = vmatpush1.bf16.msra.mxu0 0
    %6455 = vmatprep.subr.bf16.mxu0 0
    %6456 = vmatpush1.bf16.msra.mxu0 0
    %6457 = vmatprep.subr.bf16.mxu0 0
    %6458 = vmatpush1.bf16.msra.mxu0 0
    %6459 = vmatprep.mubr.bf16.mxu0 0
    %6460 = vmatmul.mubr.bf16.gmra.mrb[0].mxu0 %v6422
    %v6461 = vpop.f32.mrb[0].mxu0
    %v6462 = vadd.f32 0.0, %v6461
    %v6463 = vpop.f32.mrb[0].mxu0
    %v6464 = vpop.f32.mrb[0].mxu0
    %v6465 = vadd.f32 0.0, %v6464
    %v6466 = vpop.f32.mrb[0].mxu0
    %6467 = vmatprep.mubr.bf16.mxu0 0
    %6468 = vmatmul.mubr.bf16.gmra.mrb[0].mxu0 %v6425
    %v6469 = vpop.f32.mrb[0].mxu0
    %v6470 = vadd.f32 0.0, %v6469
    %v6471 = vpop.f32.mrb[0].mxu0
    %v6472 = vpop.f32.mrb[0].mxu0
    %v6473 = vadd.f32 0.0, %v6472
    %v6474 = vpop.f32.mrb[0].mxu0
    %6475 = vdwg.mxu0
    %v6477 = vsel %vm2665, %v6354, 0
    %v6480 = vsel %vm2665, %v6355, 0
    %6482 = vmatprep.subr.bf16.mxu0 0
    %6483 = vmatpush1.bf16.msra.mxu0 %v6362
    %6484 = vmatprep.subr.bf16.mxu0 0
    %6485 = vmatpush1.bf16.msra.mxu0 %v6363
    %6486 = vmatprep.subr.bf16.mxu0 0
    %6487 = vmatpush1.bf16.msra.mxu0 0
    %6488 = vmatprep.subr.bf16.mxu0 0
    %6489 = vmatpush1.bf16.msra.mxu0 0
    %6490 = vmatprep.subr.bf16.mxu0 0
    %6491 = vmatpush1.bf16.msra.mxu0 0
    %6492 = vmatprep.subr.bf16.mxu0 0
    %6493 = vmatpush1.bf16.msra.mxu0 0
    %6494 = vmatprep.subr.bf16.mxu0 0
    %6495 = vmatpush1.bf16.msra.mxu0 0
    %6496 = vmatprep.subr.bf16.mxu0 0
    %6497 = vmatpush1.bf16.msra.mxu0 0
    %6498 = vmatprep.subr.bf16.mxu0 0
    %6499 = vmatpush1.bf16.msra.mxu0 0
    %6500 = vmatprep.subr.bf16.mxu0 0
    %6501 = vmatpush1.bf16.msra.mxu0 0
    %6502 = vmatprep.subr.bf16.mxu0 0
    %6503 = vmatpush1.bf16.msra.mxu0 0
    %6504 = vmatprep.subr.bf16.mxu0 0
    %6505 = vmatpush1.bf16.msra.mxu0 0
    %6506 = vmatprep.subr.bf16.mxu0 0
    %6507 = vmatpush1.bf16.msra.mxu0 0
    %6508 = vmatprep.subr.bf16.mxu0 0
    %6509 = vmatpush1.bf16.msra.mxu0 0
    %6510 = vmatprep.subr.bf16.mxu0 0
    %6511 = vmatpush1.bf16.msra.mxu0 0
    %6512 = vmatprep.subr.bf16.mxu0 0
    %6513 = vmatpush1.bf16.msra.mxu0 0
    %6514 = vmatprep.mubr.bf16.mxu0 0
    %6515 = vmatmul.mubr.bf16.gmra.mrb[0].mxu0 %v6477
    %v6516 = vpop.f32.mrb[0].mxu0
    %v6517 = vadd.f32 0.0, %v6516
    %v6518 = vpop.f32.mrb[0].mxu0
    %v6519 = vpop.f32.mrb[0].mxu0
    %v6520 = vadd.f32 0.0, %v6519
    %v6521 = vpop.f32.mrb[0].mxu0
    %6522 = vmatprep.mubr.bf16.mxu0 0
    %6523 = vmatmul.mubr.bf16.gmra.mrb[0].mxu0 %v6480
    %v6524 = vpop.f32.mrb[0].mxu0
    %v6525 = vadd.f32 0.0, %v6524
    %v6526 = vpop.f32.mrb[0].mxu0
    %v6527 = vpop.f32.mrb[0].mxu0
    %v6528 = vadd.f32 0.0, %v6527
    %v6529 = vpop.f32.mrb[0].mxu0
    %6530 = vdwg.mxu0
    %v6532 = vsel %vm2665, %v6356, 0
    %v6535 = vsel %vm2665, %v6357, 0
    %6537 = vmatprep.subr.bf16.mxu0 0
    %6538 = vmatpush1.bf16.msra.mxu0 %v6364
    %6539 = vmatprep.subr.bf16.mxu0 0
    %6540 = vmatpush1.bf16.msra.mxu0 %v6365
    %6541 = vmatprep.subr.bf16.mxu0 0
    %6542 = vmatpush1.bf16.msra.mxu0 0
    %6543 = vmatprep.subr.bf16.mxu0 0
    %6544 = vmatpush1.bf16.msra.mxu0 0
    %6545 = vmatprep.subr.bf16.mxu0 0
    %6546 = vmatpush1.bf16.msra.mxu0 0
    %6547 = vmatprep.subr.bf16.mxu0 0
    %6548 = vmatpush1.bf16.msra.mxu0 0
    %6549 = vmatprep.subr.bf16.mxu0 0
    %6550 = vmatpush1.bf16.msra.mxu0 0
    %6551 = vmatprep.subr.bf16.mxu0 0
    %6552 = vmatpush1.bf16.msra.mxu0 0
    %6553 = vmatprep.subr.bf16.mxu0 0
    %6554 = vmatpush1.bf16.msra.mxu0 0
    %6555 = vmatprep.subr.bf16.mxu0 0
    %6556 = vmatpush1.bf16.msra.mxu0 0
    %6557 = vmatprep.subr.bf16.mxu0 0
    %6558 = vmatpush1.bf16.msra.mxu0 0
    %6559 = vmatprep.subr.bf16.mxu0 0
    %6560 = vmatpush1.bf16.msra.mxu0 0
    %6561 = vmatprep.subr.bf16.mxu0 0
    %6562 = vmatpush1.bf16.msra.mxu0 0
    %6563 = vmatprep.subr.bf16.mxu0 0
    %6564 = vmatpush1.bf16.msra.mxu0 0
    %6565 = vmatprep.subr.bf16.mxu0 0
    %6566 = vmatpush1.bf16.msra.mxu0 0
    %6567 = vmatprep.subr.bf16.mxu0 0
    %6568 = vmatpush1.bf16.msra.mxu0 0
    %6569 = vmatprep.mubr.bf16.mxu0 0
    %6570 = vmatmul.mubr.bf16.gmra.mrb[0].mxu0 %v6532
    %v6571 = vpop.f32.mrb[0].mxu0
    %v6572 = vadd.f32 0.0, %v6571
    %v6573 = vpop.f32.mrb[0].mxu0
    %v6574 = vpop.f32.mrb[0].mxu0
    %v6575 = vadd.f32 0.0, %v6574
    %v6576 = vpop.f32.mrb[0].mxu0
    %6577 = vmatprep.mubr.bf16.mxu0 0
    %6578 = vmatmul.mubr.bf16.gmra.mrb[0].mxu0 %v6535
    %v6579 = vpop.f32.mrb[0].mxu0
    %v6580 = vadd.f32 0.0, %v6579
    %v6581 = vpop.f32.mrb[0].mxu0
    %v6582 = vpop.f32.mrb[0].mxu0
    %v6583 = vadd.f32 0.0, %v6582
    %v6584 = vpop.f32.mrb[0].mxu0
    %6585 = vdwg.mxu0
    %v6586 = vpack.c.bf16 %v6410, %v6407
    %v6587 = vpack.c.bf16 %v6418, %v6415
    %v6588 = vpack.c.bf16 %v6465, %v6462
    %v6589 = vpack.c.bf16 %v6473, %v6470
    %v6590 = vpack.c.bf16 %v6520, %v6517
    %v6591 = vpack.c.bf16 %v6528, %v6525
    %v6592 = vpack.c.bf16 %v6575, %v6572
    %v6593 = vpack.c.bf16 %v6583, %v6580
    %s6594 = scalar_lea.vmem %s9, 32
    %v6595 = vld [vmem:[%s6594] sm:$0xf]
    %v6596 = vld [vmem:[%s6594 + $0x4] sm:$0xf]
    %v6597 = vld [vmem:[%s6594 + $0x8] sm:$0xf]
    %v6598 = vld [vmem:[%s6594 + $0xc] sm:$0xf]
    %v6599 = vld [vmem:[%s6594 + $0x10] sm:$0xf]
    %v6600 = vld [vmem:[%s6594 + $0x14] sm:$0xf]
    %v6601 = vld [vmem:[%s6594 + $0x18] sm:$0xf]
    %v6602 = vld [vmem:[%s6594 + $0x1c] sm:$0xf]
    %v6605 = vunpack.c.l.b16 %v6595
    %v6606 = vunpack.c.l.b16 %v6596
    %v6607 = vpack.c.b16 %v6606, %v6605
    %v6610 = vsel %vm2420, %v6586, 0
    %v6613 = vsel %vm2420, %v6587, 0
    %6615 = vmatprep.subr.bf16.mxu0 0
    %6616 = vmatpush1.bf16.msra.mxu0 %v6607
    %6617 = vmatprep.subr.bf16.mxu0 0
    %6618 = vmatpush1.bf16.msra.mxu0 0
    %6619 = vmatprep.subr.bf16.mxu0 0
    %6620 = vmatpush1.bf16.msra.mxu0 0
    %6621 = vmatprep.subr.bf16.mxu0 0
    %6622 = vmatpush1.bf16.msra.mxu0 0
    %6623 = vmatprep.subr.bf16.mxu0 0
    %6624 = vmatpush1.bf16.msra.mxu0 0
    %6625 = vmatprep.subr.bf16.mxu0 0
    %6626 = vmatpush1.bf16.msra.mxu0 0
    %6627 = vmatprep.subr.bf16.mxu0 0
    %6628 = vmatpush1.bf16.msra.mxu0 0
    %6629 = vmatprep.subr.bf16.mxu0 0
    %6630 = vmatpush1.bf16.msra.mxu0 0
    %6631 = vmatprep.subr.bf16.mxu0 0
    %6632 = vmatpush1.bf16.msra.mxu0 0
    %6633 = vmatprep.subr.bf16.mxu0 0
    %6634 = vmatpush1.bf16.msra.mxu0 0
    %6635 = vmatprep.subr.bf16.mxu0 0
    %6636 = vmatpush1.bf16.msra.mxu0 0
    %6637 = vmatprep.subr.bf16.mxu0 0
    %6638 = vmatpush1.bf16.msra.mxu0 0
    %6639 = vmatprep.subr.bf16.mxu0 0
    %6640 = vmatpush1.bf16.msra.mxu0 0
    %6641 = vmatprep.subr.bf16.mxu0 0
    %6642 = vmatpush1.bf16.msra.mxu0 0
    %6643 = vmatprep.subr.bf16.mxu0 0
    %6644 = vmatpush1.bf16.msra.mxu0 0
    %6645 = vmatprep.subr.bf16.mxu0 0
    %6646 = vmatpush1.bf16.msra.mxu0 0
    %6647 = vmatprep.mubr.bf16.mxu0 0
    %6648 = vmatmul.mubr.bf16.gmra.mrb[0].mxu0 %v6610
    %v6649 = vpop.f32.mrb[0].mxu0
    %v6650 = vadd.f32 0.0, %v6649
    %v6651 = vpop.f32.mrb[0].mxu0
    %v6652 = vpop.f32.mrb[0].mxu0
    %v6653 = vadd.f32 0.0, %v6652
    %v6654 = vpop.f32.mrb[0].mxu0
    %6655 = vmatprep.mubr.bf16.mxu0 0
    %6656 = vmatmul.mubr.bf16.gmra.mrb[0].mxu0 %v6613
    %v6657 = vpop.f32.mrb[0].mxu0
    %v6658 = vadd.f32 0.0, %v6657
    %v6659 = vpop.f32.mrb[0].mxu0
    %v6660 = vpop.f32.mrb[0].mxu0
    %v6661 = vadd.f32 0.0, %v6660
    %v6662 = vpop.f32.mrb[0].mxu0
    %6663 = vdwg.mxu0
    %v6666 = vunpack.c.l.b16 %v6597
    %v6667 = vunpack.c.l.b16 %v6598
    %v6668 = vpack.c.b16 %v6667, %v6666
    %v6671 = vsel %vm2420, %v6588, 0
    %v6674 = vsel %vm2420, %v6589, 0
    %6676 = vmatprep.subr.bf16.mxu0 0
    %6677 = vmatpush1.bf16.msra.mxu0 %v6668
    %6678 = vmatprep.subr.bf16.mxu0 0
    %6679 = vmatpush1.bf16.msra.mxu0 0
    %6680 = vmatprep.subr.bf16.mxu0 0
    %6681 = vmatpush1.bf16.msra.mxu0 0
    %6682 = vmatprep.subr.bf16.mxu0 0
    %6683 = vmatpush1.bf16.msra.mxu0 0
    %6684 = vmatprep.subr.bf16.mxu0 0
    %6685 = vmatpush1.bf16.msra.mxu0 0
    %6686 = vmatprep.subr.bf16.mxu0 0
    %6687 = vmatpush1.bf16.msra.mxu0 0
    %6688 = vmatprep.subr.bf16.mxu0 0
    %6689 = vmatpush1.bf16.msra.mxu0 0
    %6690 = vmatprep.subr.bf16.mxu0 0
    %6691 = vmatpush1.bf16.msra.mxu0 0
    %6692 = vmatprep.subr.bf16.mxu0 0
    %6693 = vmatpush1.bf16.msra.mxu0 0
    %6694 = vmatprep.subr.bf16.mxu0 0
    %6695 = vmatpush1.bf16.msra.mxu0 0
    %6696 = vmatprep.subr.bf16.mxu0 0
    %6697 = vmatpush1.bf16.msra.mxu0 0
    %6698 = vmatprep.subr.bf16.mxu0 0
    %6699 = vmatpush1.bf16.msra.mxu0 0
    %6700 = vmatprep.subr.bf16.mxu0 0
    %6701 = vmatpush1.bf16.msra.mxu0 0
    %6702 = vmatprep.subr.bf16.mxu0 0
    %6703 = vmatpush1.bf16.msra.mxu0 0
    %6704 = vmatprep.subr.bf16.mxu0 0
    %6705 = vmatpush1.bf16.msra.mxu0 0
    %6706 = vmatprep.subr.bf16.mxu0 0
    %6707 = vmatpush1.bf16.msra.mxu0 0
    %6708 = vmatprep.mubr.bf16.mxu0 0
    %6709 = vmatmul.mubr.bf16.gmra.mrb[0].mxu0 %v6671
    %v6710 = vpop.f32.mrb[0].mxu0
    %v6711 = vadd.f32 0.0, %v6710
    %v6712 = vpop.f32.mrb[0].mxu0
    %v6713 = vpop.f32.mrb[0].mxu0
    %v6714 = vadd.f32 0.0, %v6713
    %v6715 = vpop.f32.mrb[0].mxu0
    %6716 = vmatprep.mubr.bf16.mxu0 0
    %6717 = vmatmul.mubr.bf16.gmra.mrb[0].mxu0 %v6674
    %v6718 = vpop.f32.mrb[0].mxu0
    %v6719 = vadd.f32 0.0, %v6718
    %v6720 = vpop.f32.mrb[0].mxu0
    %v6721 = vpop.f32.mrb[0].mxu0
    %v6722 = vadd.f32 0.0, %v6721
    %v6723 = vpop.f32.mrb[0].mxu0
    %6724 = vdwg.mxu0
    %v6727 = vunpack.c.l.b16 %v6599
    %v6728 = vunpack.c.l.b16 %v6600
    %v6729 = vpack.c.b16 %v6728, %v6727
    %v6732 = vsel %vm2420, %v6590, 0
    %v6735 = vsel %vm2420, %v6591, 0
    %6737 = vmatprep.subr.bf16.mxu0 0
    %6738 = vmatpush1.bf16.msra.mxu0 %v6729
    %6739 = vmatprep.subr.bf16.mxu0 0
    %6740 = vmatpush1.bf16.msra.mxu0 0
    %6741 = vmatprep.subr.bf16.mxu0 0
    %6742 = vmatpush1.bf16.msra.mxu0 0
    %6743 = vmatprep.subr.bf16.mxu0 0
    %6744 = vmatpush1.bf16.msra.mxu0 0
    %6745 = vmatprep.subr.bf16.mxu0 0
    %6746 = vmatpush1.bf16.msra.mxu0 0
    %6747 = vmatprep.subr.bf16.mxu0 0
    %6748 = vmatpush1.bf16.msra.mxu0 0
    %6749 = vmatprep.subr.bf16.mxu0 0
    %6750 = vmatpush1.bf16.msra.mxu0 0
    %6751 = vmatprep.subr.bf16.mxu0 0
    %6752 = vmatpush1.bf16.msra.mxu0 0
    %6753 = vmatprep.subr.bf16.mxu0 0
    %6754 = vmatpush1.bf16.msra.mxu0 0
    %6755 = vmatprep.subr.bf16.mxu0 0
    %6756 = vmatpush1.bf16.msra.mxu0 0
    %6757 = vmatprep.subr.bf16.mxu0 0
    %6758 = vmatpush1.bf16.msra.mxu0 0
    %6759 = vmatprep.subr.bf16.mxu0 0
    %6760 = vmatpush1.bf16.msra.mxu0 0
    %6761 = vmatprep.subr.bf16.mxu0 0
    %6762 = vmatpush1.bf16.msra.mxu0 0
    %6763 = vmatprep.subr.bf16.mxu0 0
    %6764 = vmatpush1.bf16.msra.mxu0 0
    %6765 = vmatprep.subr.bf16.mxu0 0
    %6766 = vmatpush1.bf16.msra.mxu0 0
    %6767 = vmatprep.subr.bf16.mxu0 0
    %6768 = vmatpush1.bf16.msra.mxu0 0
    %6769 = vmatprep.mubr.bf16.mxu0 0
    %6770 = vmatmul.mubr.bf16.gmra.mrb[0].mxu0 %v6732
    %v6771 = vpop.f32.mrb[0].mxu0
    %v6772 = vadd.f32 0.0, %v6771
    %v6773 = vpop.f32.mrb[0].mxu0
    %v6774 = vpop.f32.mrb[0].mxu0
    %v6775 = vadd.f32 0.0, %v6774
    %v6776 = vpop.f32.mrb[0].mxu0
    %6777 = vmatprep.mubr.bf16.mxu0 0
    %6778 = vmatmul.mubr.bf16.gmra.mrb[0].mxu0 %v6735
    %v6779 = vpop.f32.mrb[0].mxu0
    %v6780 = vadd.f32 0.0, %v6779
    %v6781 = vpop.f32.mrb[0].mxu0
    %v6782 = vpop.f32.mrb[0].mxu0
    %v6783 = vadd.f32 0.0, %v6782
    %v6784 = vpop.f32.mrb[0].mxu0
    %6785 = vdwg.mxu0
    %v6788 = vunpack.c.l.b16 %v6601
    %v6789 = vunpack.c.l.b16 %v6602
    %v6790 = vpack.c.b16 %v6789, %v6788
    %v6793 = vsel %vm2420, %v6592, 0
    %v6796 = vsel %vm2420, %v6593, 0
    %6798 = vmatprep.subr.bf16.mxu0 0
    %6799 = vmatpush1.bf16.msra.mxu0 %v6790
    %6800 = vmatprep.subr.bf16.mxu0 0
    %6801 = vmatpush1.bf16.msra.mxu0 0
    %6802 = vmatprep.subr.bf16.mxu0 0
    %6803 = vmatpush1.bf16.msra.mxu0 0
    %6804 = vmatprep.subr.bf16.mxu0 0
    %6805 = vmatpush1.bf16.msra.mxu0 0
    %6806 = vmatprep.subr.bf16.mxu0 0
    %6807 = vmatpush1.bf16.msra.mxu0 0
    %6808 = vmatprep.subr.bf16.mxu0 0
    %6809 = vmatpush1.bf16.msra.mxu0 0
    %6810 = vmatprep.subr.bf16.mxu0 0
    %6811 = vmatpush1.bf16.msra.mxu0 0
    %6812 = vmatprep.subr.bf16.mxu0 0
    %6813 = vmatpush1.bf16.msra.mxu0 0
    %6814 = vmatprep.subr.bf16.mxu0 0
    %6815 = vmatpush1.bf16.msra.mxu0 0
    %6816 = vmatprep.subr.bf16.mxu0 0
    %6817 = vmatpush1.bf16.msra.mxu0 0
    %6818 = vmatprep.subr.bf16.mxu0 0
    %6819 = vmatpush1.bf16.msra.mxu0 0
    %6820 = vmatprep.subr.bf16.mxu0 0
    %6821 = vmatpush1.bf16.msra.mxu0 0
    %6822 = vmatprep.subr.bf16.mxu0 0
    %6823 = vmatpush1.bf16.msra.mxu0 0
    %6824 = vmatprep.subr.bf16.mxu0 0
    %6825 = vmatpush1.bf16.msra.mxu0 0
    %6826 = vmatprep.subr.bf16.mxu0 0
    %6827 = vmatpush1.bf16.msra.mxu0 0
    %6828 = vmatprep.subr.bf16.mxu0 0
    %6829 = vmatpush1.bf16.msra.mxu0 0
    %6830 = vmatprep.mubr.bf16.mxu0 0
    %6831 = vmatmul.mubr.bf16.gmra.mrb[0].mxu0 %v6793
    %v6832 = vpop.f32.mrb[0].mxu0
    %v6833 = vadd.f32 0.0, %v6832
    %v6834 = vpop.f32.mrb[0].mxu0
    %v6835 = vpop.f32.mrb[0].mxu0
    %v6836 = vadd.f32 0.0, %v6835
    %v6837 = vpop.f32.mrb[0].mxu0
    %6838 = vmatprep.mubr.bf16.mxu0 0
    %6839 = vmatmul.mubr.bf16.gmra.mrb[0].mxu0 %v6796
    %v6840 = vpop.f32.mrb[0].mxu0
    %v6841 = vadd.f32 0.0, %v6840
    %v6842 = vpop.f32.mrb[0].mxu0
    %v6843 = vpop.f32.mrb[0].mxu0
    %v6844 = vadd.f32 0.0, %v6843
    %v6845 = vpop.f32.mrb[0].mxu0
    %6846 = vdwg.mxu0
    %v6847 = vsel %vm273, %v6650, 0.0
    %v6848 = vsel %vm273, %v6711, 0.0
    %v6849 = vadd.f32 %v6847, %v6848
    %v6850 = vsel %vm273, %v6772, 0.0
    %v6851 = vadd.f32 %v6849, %v6850
    %v6852 = vsel %vm273, %v6833, 0.0
    %v6853 = vadd.f32 %v6851, %v6852
    %v6854 = vsel %vm273, %v6653, 0.0
    %v6855 = vsel %vm273, %v6714, 0.0
    %v6856 = vadd.f32 %v6854, %v6855
    %v6857 = vsel %vm273, %v6775, 0.0
    %v6858 = vadd.f32 %v6856, %v6857
    %v6859 = vsel %vm273, %v6836, 0.0
    %v6860 = vadd.f32 %v6858, %v6859
    %v6861 = vsel %vm273, %v6658, 0.0
    %v6862 = vsel %vm273, %v6719, 0.0
    %v6863 = vadd.f32 %v6861, %v6862
    %v6864 = vsel %vm273, %v6780, 0.0
    %v6865 = vadd.f32 %v6863, %v6864
    %v6866 = vsel %vm273, %v6841, 0.0
    %v6867 = vadd.f32 %v6865, %v6866
    %v6868 = vsel %vm273, %v6661, 0.0
    %v6869 = vsel %vm273, %v6722, 0.0
    %v6870 = vadd.f32 %v6868, %v6869
    %v6871 = vsel %vm273, %v6783, 0.0
    %v6872 = vadd.f32 %v6870, %v6871
    %v6873 = vsel %vm273, %v6844, 0.0
    %v6874 = vadd.f32 %v6872, %v6873
    %v6875 = vadd.f32 %v3808, %v6853
    %v6876 = vadd.f32 %v3809, %v6860
    %v6877 = vadd.f32 %v3810, %v6867
    %v6878 = vadd.f32 %v3811, %v6874
    %s6879 = scalar_lea.vmem %s10, 1
    %v6880 = vld [vmem:[%s6879] sm:$0x1]
    %v6882 = vlaneseq
    %v6883 = vshrl.u32 %v6882, 7
    %v6884 = vsub.s32 0, %v6883
    %v6885 = vrot.slane %v6880, %v6884
    %v6887 = vadd.f32 %v6875, %v6885
    %v6888 = vadd.f32 %v6876, %v6885
    %v6889 = vadd.f32 %v6877, %v6885
    %v6890 = vadd.f32 %v6878, %v6885
    %s6891 = scalar_lea.vmem %s11, 1
    %v6892 = vld [vmem:[%s6891] sm:$0x1]
    %s6893 = scalar_lea.vmem %s12, 1
    %v6894 = vld [vmem:[%s6893] sm:$0x1]
    %v6895 = vsel %vm273, %v6887, 0.0
    %6896 = vadd.xlane.f32.xlu0 %v6895
    %v6897 = vpop.xlane.xlu0 %6896
    %v6898 = vsel %vm273, %v6888, 0.0
    %6899 = vadd.xlane.f32.xlu0 %v6898
    %v6900 = vpop.xlane.xlu0 %6899
    %v6901 = vsel %vm273, %v6889, 0.0
    %6902 = vadd.xlane.f32.xlu0 %v6901
    %v6903 = vpop.xlane.xlu0 %6902
    %v6904 = vsel %vm273, %v6890, 0.0
    %6905 = vadd.xlane.f32.xlu0 %v6904
    %v6906 = vpop.xlane.xlu0 %6905
    %v6907 = vmul.f32 %v6897, %v319
    %v6908 = vmul.f32 %v6900, %v319
    %v6909 = vmul.f32 %v6903, %v319
    %v6910 = vmul.f32 %v6906, %v319
    %v6911 = vsub.f32 %v6887, %v6907
    %v6912 = vsub.f32 %v6888, %v6908
    %v6913 = vsub.f32 %v6889, %v6909
    %v6914 = vsub.f32 %v6890, %v6910
    %v6915 = vmul.f32 %v6911, %v6911
    %v6916 = vmul.f32 %v6912, %v6912
    %v6917 = vmul.f32 %v6913, %v6913
    %v6918 = vmul.f32 %v6914, %v6914
    %v6919 = vsel %vm273, %v6915, 0.0
    %6920 = vadd.xlane.f32.xlu0 %v6919
    %v6921 = vpop.xlane.xlu0 %6920
    %v6922 = vsel %vm273, %v6916, 0.0
    %6923 = vadd.xlane.f32.xlu0 %v6922
    %v6924 = vpop.xlane.xlu0 %6923
    %v6925 = vsel %vm273, %v6917, 0.0
    %6926 = vadd.xlane.f32.xlu0 %v6925
    %v6927 = vpop.xlane.xlu0 %6926
    %v6928 = vsel %vm273, %v6918, 0.0
    %6929 = vadd.xlane.f32.xlu0 %v6928
    %v6930 = vpop.xlane.xlu0 %6929
    %v6931 = vmul.f32 %v6921, %v319
    %v6932 = vmul.f32 %v6924, %v319
    %v6933 = vmul.f32 %v6927, %v319
    %v6934 = vmul.f32 %v6930, %v319
    %v6935 = vadd.f32 %v6931, 1e-06
    %v6936 = vadd.f32 %v6932, 1e-06
    %v6937 = vadd.f32 %v6933, 1e-06
    %v6938 = vadd.f32 %v6934, 1e-06
    %v6939 = vrsqrt.pop %v6935
    %v6940 = vrsqrt.pop %v6936
    %v6941 = vrsqrt.pop %v6937
    %v6942 = vrsqrt.pop %v6938
    %v6943 = vmul.f32 %v6911, %v6939
    %v6944 = vmul.f32 %v6912, %v6940
    %v6945 = vmul.f32 %v6913, %v6941
    %v6946 = vmul.f32 %v6914, %v6942
    %v6948 = vlaneseq
    %v6949 = vshrl.u32 %v6948, 7
    %v6950 = vsub.s32 0, %v6949
    %v6951 = vrot.slane %v6892, %v6950
    %v6953 = vmul.f32 %v6943, %v6951
    %v6954 = vmul.f32 %v6944, %v6951
    %v6955 = vmul.f32 %v6945, %v6951
    %v6956 = vmul.f32 %v6946, %v6951
    %v6958 = vlaneseq
    %v6959 = vshrl.u32 %v6958, 7
    %v6960 = vsub.s32 0, %v6959
    %v6961 = vrot.slane %v6894, %v6960
    %v6963 = vadd.f32 %v6953, %v6961
    %v6964 = vadd.f32 %v6954, %v6961
    %v6965 = vadd.f32 %v6955, %v6961
    %v6966 = vadd.f32 %v6956, %v6961
    %v6967 = vpack.c.bf16 %v6964, %v6963
    %v6968 = vpack.c.bf16 %v6966, %v6965
    %s6969 = scalar_lea.vmem %s13, 64
    %v6970 = vld [vmem:[%s6969] sm:$0xff]
    %v6971 = vld [vmem:[%s6969 + $0x8] sm:$0xff]
    %v6972 = vld [vmem:[%s6969 + $0x10] sm:$0xff]
    %v6973 = vld [vmem:[%s6969 + $0x18] sm:$0xff]
    %v6974 = vld [vmem:[%s6969 + $0x20] sm:$0xff]
    %v6975 = vld [vmem:[%s6969 + $0x28] sm:$0xff]
    %v6976 = vld [vmem:[%s6969 + $0x30] sm:$0xff]
    %v6977 = vld [vmem:[%s6969 + $0x38] sm:$0xff]
    %s6978 = scalar_lea.vmem %s14, 2
    %v6979 = vld [vmem:[%s6978] sm:$0x3]
    %v6981 = vlaneseq
    %v6982 = vshrl.u32 %v6981, 7
    %v6983 = vsub.s32 0, %v6982
    %v6984 = vrot.slane %v6979, %v6983
    %v6985 = vlaneseq
    %v6986 = vshrl.u32 %v6985, 7
    %v6987 = vsub.s32 1, %v6986
    %v6988 = vrot.slane %v6979, %v6987
    %v6999 = vunpack.c.l.b16 %v6970
    %v7000 = vunpack.c.h.b16 %v6970
    %v7001 = vunpack.c.l.b16 %v6971
    %v7002 = vunpack.c.h.b16 %v6971
    %v7003 = vunpack.c.l.b16 %v6972
    %v7004 = vunpack.c.h.b16 %v6972
    %v7005 = vunpack.c.l.b16 %v6973
    %v7006 = vunpack.c.h.b16 %v6973
    %v7007 = vunpack.c.l.b16 %v6974
    %v7008 = vunpack.c.h.b16 %v6974
    %v7009 = vunpack.c.l.b16 %v6975
    %v7010 = vunpack.c.h.b16 %v6975
    %v7011 = vunpack.c.l.b16 %v6976
    %v7012 = vunpack.c.h.b16 %v6976
    %v7013 = vunpack.c.l.b16 %v6977
    %v7014 = vunpack.c.h.b16 %v6977
    %v7015 = vpack.c.b16 %v7001, %v6999
    %v7016 = vpack.c.b16 %v7002, %v7000
    %v7017 = vpack.c.b16 %v7005, %v7003
    %v7018 = vpack.c.b16 %v7006, %v7004
    %v7019 = vpack.c.b16 %v7009, %v7007
    %v7020 = vpack.c.b16 %v7010, %v7008
    %v7021 = vpack.c.b16 %v7013, %v7011
    %v7022 = vpack.c.b16 %v7014, %v7012
    %v7032 = vsel %vm273, %v6967, 0
    %v7035 = vsel %vm273, %v6968, 0
    %7037 = vmatprep.subr.bf16.mxu0 %v7016
    %7038 = vmatpush1.bf16.msra.mxu0 %v7015
    %7039 = vmatprep.subr.bf16.mxu0 %v7018
    %7040 = vmatpush1.bf16.msra.mxu0 %v7017
    %7041 = vmatprep.subr.bf16.mxu0 %v7020
    %7042 = vmatpush1.bf16.msra.mxu0 %v7019
    %7043 = vmatprep.subr.bf16.mxu0 %v7022
    %7044 = vmatpush1.bf16.msra.mxu0 %v7021
    %7045 = vmatprep.subr.bf16.mxu0 0
    %7046 = vmatpush1.bf16.msra.mxu0 0
    %7047 = vmatprep.subr.bf16.mxu0 0
    %7048 = vmatpush1.bf16.msra.mxu0 0
    %7049 = vmatprep.subr.bf16.mxu0 0
    %7050 = vmatpush1.bf16.msra.mxu0 0
    %7051 = vmatprep.subr.bf16.mxu0 0
    %7052 = vmatpush1.bf16.msra.mxu0 0
    %7053 = vmatprep.subr.bf16.mxu0 0
    %7054 = vmatpush1.bf16.msra.mxu0 0
    %7055 = vmatprep.subr.bf16.mxu0 0
    %7056 = vmatpush1.bf16.msra.mxu0 0
    %7057 = vmatprep.subr.bf16.mxu0 0
    %7058 = vmatpush1.bf16.msra.mxu0 0
    %7059 = vmatprep.subr.bf16.mxu0 0
    %7060 = vmatpush1.bf16.msra.mxu0 0
    %7061 = vmatprep.subr.bf16.mxu0 0
    %7062 = vmatpush1.bf16.msra.mxu0 0
    %7063 = vmatprep.subr.bf16.mxu0 0
    %7064 = vmatpush1.bf16.msra.mxu0 0
    %7065 = vmatprep.subr.bf16.mxu0 0
    %7066 = vmatpush1.bf16.msra.mxu0 0
    %7067 = vmatprep.subr.bf16.mxu0 0
    %7068 = vmatpush1.bf16.msra.mxu0 0
    %7069 = vmatprep.mubr.bf16.mxu0 0
    %7070 = vmatmul.mubr.bf16.gmra.mrb[0].mxu0 %v7032
    %v7071 = vpop.f32.mrb[0].mxu0
    %v7072 = vadd.f32 %v6984, %v7071
    %v7073 = vpop.f32.mrb[0].mxu0
    %v7074 = vadd.f32 %v6988, %v7073
    %v7075 = vpop.f32.mrb[0].mxu0
    %v7076 = vadd.f32 %v6984, %v7075
    %v7077 = vpop.f32.mrb[0].mxu0
    %v7078 = vadd.f32 %v6988, %v7077
    %7079 = vmatprep.mubr.bf16.mxu0 0
    %7080 = vmatmul.mubr.bf16.gmra.mrb[0].mxu0 %v7035
    %v7081 = vpop.f32.mrb[0].mxu0
    %v7082 = vadd.f32 %v6984, %v7081
    %v7083 = vpop.f32.mrb[0].mxu0
    %v7084 = vadd.f32 %v6988, %v7083
    %v7085 = vpop.f32.mrb[0].mxu0
    %v7086 = vadd.f32 %v6984, %v7085
    %v7087 = vpop.f32.mrb[0].mxu0
    %v7088 = vadd.f32 %v6988, %v7087
    %7089 = vdwg.mxu0
    %v7090 = vmul.f32 %v7072, 0.5
    %v7091 = vmul.f32 %v7074, 0.5
    %v7092 = vmul.f32 %v7076, 0.5
    %v7093 = vmul.f32 %v7078, 0.5
    %v7094 = vmul.f32 %v7082, 0.5
    %v7095 = vmul.f32 %v7084, 0.5
    %v7096 = vmul.f32 %v7086, 0.5
    %v7097 = vmul.f32 %v7088, 0.5
    %v7098 = vmul.f32 %v7072, 0.70710677
    %v7099 = vmul.f32 %v7074, 0.70710677
    %v7100 = vmul.f32 %v7076, 0.70710677
    %v7101 = vmul.f32 %v7078, 0.70710677
    %v7102 = vmul.f32 %v7082, 0.70710677
    %v7103 = vmul.f32 %v7084, 0.70710677
    %v7104 = vmul.f32 %v7086, 0.70710677
    %v7105 = vmul.f32 %v7088, 0.70710677
    %v7106 = verf.f32.pop %v7098
    %v7107 = verf.f32.pop %v7099
    %v7108 = verf.f32.pop %v7100
    %v7109 = verf.f32.pop %v7101
    %v7110 = verf.f32.pop %v7102
    %v7111 = verf.f32.pop %v7103
    %v7112 = verf.f32.pop %v7104
    %v7113 = verf.f32.pop %v7105
    %v7114 = vadd.f32 %v7106, 1.0
    %v7115 = vadd.f32 %v7107, 1.0
    %v7116 = vadd.f32 %v7108, 1.0
    %v7117 = vadd.f32 %v7109, 1.0
    %v7118 = vadd.f32 %v7110, 1.0
    %v7119 = vadd.f32 %v7111, 1.0
    %v7120 = vadd.f32 %v7112, 1.0
    %v7121 = vadd.f32 %v7113, 1.0
    %v7122 = vmul.f32 %v7090, %v7114
    %v7123 = vmul.f32 %v7091, %v7115
    %v7124 = vmul.f32 %v7092, %v7116
    %v7125 = vmul.f32 %v7093, %v7117
    %v7126 = vmul.f32 %v7094, %v7118
    %v7127 = vmul.f32 %v7095, %v7119
    %v7128 = vmul.f32 %v7096, %v7120
    %v7129 = vmul.f32 %v7097, %v7121
    %v7130 = vpack.c.bf16 %v7124, %v7122
    %v7131 = vpack.c.bf16 %v7125, %v7123
    %v7132 = vpack.c.bf16 %v7128, %v7126
    %v7133 = vpack.c.bf16 %v7129, %v7127
    %s7134 = scalar_lea.vmem %s15, 128
    %v7135 = vld [vmem:[%s7134] sm:$0xf]
    %v7136 = vld [vmem:[%s7134 + $0x4] sm:$0xf]
    %v7137 = vld [vmem:[%s7134 + $0x8] sm:$0xf]
    %v7138 = vld [vmem:[%s7134 + $0xc] sm:$0xf]
    %v7139 = vld [vmem:[%s7134 + $0x10] sm:$0xf]
    %v7140 = vld [vmem:[%s7134 + $0x14] sm:$0xf]
    %v7141 = vld [vmem:[%s7134 + $0x18] sm:$0xf]
    %v7142 = vld [vmem:[%s7134 + $0x1c] sm:$0xf]
    %v7143 = vld [vmem:[%s7134 + $0x20] sm:$0xf]
    %v7144 = vld [vmem:[%s7134 + $0x24] sm:$0xf]
    %v7145 = vld [vmem:[%s7134 + $0x28] sm:$0xf]
    %v7146 = vld [vmem:[%s7134 + $0x2c] sm:$0xf]
    %v7147 = vld [vmem:[%s7134 + $0x30] sm:$0xf]
    %v7148 = vld [vmem:[%s7134 + $0x34] sm:$0xf]
    %v7149 = vld [vmem:[%s7134 + $0x38] sm:$0xf]
    %v7150 = vld [vmem:[%s7134 + $0x3c] sm:$0xf]
    %v7151 = vld [vmem:[%s7134 + $0x40] sm:$0xf]
    %v7152 = vld [vmem:[%s7134 + $0x44] sm:$0xf]
    %v7153 = vld [vmem:[%s7134 + $0x48] sm:$0xf]
    %v7154 = vld [vmem:[%s7134 + $0x4c] sm:$0xf]
    %v7155 = vld [vmem:[%s7134 + $0x50] sm:$0xf]
    %v7156 = vld [vmem:[%s7134 + $0x54] sm:$0xf]
    %v7157 = vld [vmem:[%s7134 + $0x58] sm:$0xf]
    %v7158 = vld [vmem:[%s7134 + $0x5c] sm:$0xf]
    %v7159 = vld [vmem:[%s7134 + $0x60] sm:$0xf]
    %v7160 = vld [vmem:[%s7134 + $0x64] sm:$0xf]
    %v7161 = vld [vmem:[%s7134 + $0x68] sm:$0xf]
    %v7162 = vld [vmem:[%s7134 + $0x6c] sm:$0xf]
    %v7163 = vld [vmem:[%s7134 + $0x70] sm:$0xf]
    %v7164 = vld [vmem:[%s7134 + $0x74] sm:$0xf]
    %v7165 = vld [vmem:[%s7134 + $0x78] sm:$0xf]
    %v7166 = vld [vmem:[%s7134 + $0x7c] sm:$0xf]
    %v7199 = vunpack.c.l.b16 %v7135
    %v7200 = vunpack.c.l.b16 %v7136
    %v7201 = vunpack.c.l.b16 %v7137
    %v7202 = vunpack.c.l.b16 %v7138
    %v7203 = vunpack.c.l.b16 %v7139
    %v7204 = vunpack.c.l.b16 %v7140
    %v7205 = vunpack.c.l.b16 %v7141
    %v7206 = vunpack.c.l.b16 %v7142
    %v7207 = vunpack.c.l.b16 %v7143
    %v7208 = vunpack.c.l.b16 %v7144
    %v7209 = vunpack.c.l.b16 %v7145
    %v7210 = vunpack.c.l.b16 %v7146
    %v7211 = vunpack.c.l.b16 %v7147
    %v7212 = vunpack.c.l.b16 %v7148
    %v7213 = vunpack.c.l.b16 %v7149
    %v7214 = vunpack.c.l.b16 %v7150
    %v7215 = vunpack.c.l.b16 %v7151
    %v7216 = vunpack.c.l.b16 %v7152
    %v7217 = vunpack.c.l.b16 %v7153
    %v7218 = vunpack.c.l.b16 %v7154
    %v7219 = vunpack.c.l.b16 %v7155
    %v7220 = vunpack.c.l.b16 %v7156
    %v7221 = vunpack.c.l.b16 %v7157
    %v7222 = vunpack.c.l.b16 %v7158
    %v7223 = vunpack.c.l.b16 %v7159
    %v7224 = vunpack.c.l.b16 %v7160
    %v7225 = vunpack.c.l.b16 %v7161
    %v7226 = vunpack.c.l.b16 %v7162
    %v7227 = vunpack.c.l.b16 %v7163
    %v7228 = vunpack.c.l.b16 %v7164
    %v7229 = vunpack.c.l.b16 %v7165
    %v7230 = vunpack.c.l.b16 %v7166
    %v7231 = vpack.c.b16 %v7200, %v7199
    %v7232 = vpack.c.b16 %v7202, %v7201
    %v7233 = vpack.c.b16 %v7204, %v7203
    %v7234 = vpack.c.b16 %v7206, %v7205
    %v7235 = vpack.c.b16 %v7208, %v7207
    %v7236 = vpack.c.b16 %v7210, %v7209
    %v7237 = vpack.c.b16 %v7212, %v7211
    %v7238 = vpack.c.b16 %v7214, %v7213
    %v7239 = vpack.c.b16 %v7216, %v7215
    %v7240 = vpack.c.b16 %v7218, %v7217
    %v7241 = vpack.c.b16 %v7220, %v7219
    %v7242 = vpack.c.b16 %v7222, %v7221
    %v7243 = vpack.c.b16 %v7224, %v7223
    %v7244 = vpack.c.b16 %v7226, %v7225
    %v7245 = vpack.c.b16 %v7228, %v7227
    %v7246 = vpack.c.b16 %v7230, %v7229
    %7263 = vmatprep.subr.bf16.mxu0 0
    %7264 = vmatpush1.bf16.msra.mxu0 %v7231
    %7265 = vmatprep.subr.bf16.mxu0 0
    %7266 = vmatpush1.bf16.msra.mxu0 %v7232
    %7267 = vmatprep.subr.bf16.mxu0 0
    %7268 = vmatpush1.bf16.msra.mxu0 %v7233
    %7269 = vmatprep.subr.bf16.mxu0 0
    %7270 = vmatpush1.bf16.msra.mxu0 %v7234
    %7271 = vmatprep.subr.bf16.mxu0 0
    %7272 = vmatpush1.bf16.msra.mxu0 %v7235
    %7273 = vmatprep.subr.bf16.mxu0 0
    %7274 = vmatpush1.bf16.msra.mxu0 %v7236
    %7275 = vmatprep.subr.bf16.mxu0 0
    %7276 = vmatpush1.bf16.msra.mxu0 %v7237
    %7277 = vmatprep.subr.bf16.mxu0 0
    %7278 = vmatpush1.bf16.msra.mxu0 %v7238
    %7279 = vmatprep.subr.bf16.mxu0 0
    %7280 = vmatpush1.bf16.msra.mxu0 %v7239
    %7281 = vmatprep.subr.bf16.mxu0 0
    %7282 = vmatpush1.bf16.msra.mxu0 %v7240
    %7283 = vmatprep.subr.bf16.mxu0 0
    %7284 = vmatpush1.bf16.msra.mxu0 %v7241
    %7285 = vmatprep.subr.bf16.mxu0 0
    %7286 = vmatpush1.bf16.msra.mxu0 %v7242
    %7287 = vmatprep.subr.bf16.mxu0 0
    %7288 = vmatpush1.bf16.msra.mxu0 %v7243
    %7289 = vmatprep.subr.bf16.mxu0 0
    %7290 = vmatpush1.bf16.msra.mxu0 %v7244
    %7291 = vmatprep.subr.bf16.mxu0 0
    %7292 = vmatpush1.bf16.msra.mxu0 %v7245
    %7293 = vmatprep.subr.bf16.mxu0 0
    %7294 = vmatpush1.bf16.msra.mxu0 %v7246
    %7295 = vmatprep.mubr.bf16.mxu0 %v7131
    %7296 = vmatmul.mubr.bf16.gmra.mrb[0].mxu0 %v7130
    %v7297 = vpop.f32.mrb[0].mxu0
    %v7298 = vadd.f32 0.0, %v7297
    %v7299 = vpop.f32.mrb[0].mxu0
    %v7300 = vpop.f32.mrb[0].mxu0
    %v7301 = vpop.f32.mrb[0].mxu0
    %7302 = vmatprep.mubr.bf16.mxu0 %v7133
    %7303 = vmatmul.mubr.bf16.gmra.mrb[0].mxu0 %v7132
    %v7304 = vpop.f32.mrb[0].mxu0
    %v7305 = vadd.f32 0.0, %v7304
    %v7306 = vpop.f32.mrb[0].mxu0
    %v7307 = vpop.f32.mrb[0].mxu0
    %v7308 = vpop.f32.mrb[0].mxu0
    %7309 = vdwg.mxu0
    %v7310 = vadd.f32 %v6887, %v7298
    %v7311 = vadd.f32 %v6889, %v7305
    %s7312 = scalar_lea.vmem %s16, 1
    %v7313 = vld [vmem:[%s7312] sm:$0x1]
    %v7315 = vlaneseq
    %v7316 = vshrl.u32 %v7315, 7
    %v7317 = vsub.s32 0, %v7316
    %v7318 = vrot.slane %v7313, %v7317
    %v7320 = vadd.f32 %v7310, %v7318
    %v7321 = vadd.f32 %v7311, %v7318
    %v7323 = vrot.slane %v7320, 1
    %v7325 = vadd.f32 %v7320, %v7323
    %v7326 = vmul.f32 %v7325, 0.5
    %v7328 = vrot.slane %v7321, 1
    %v7330 = vadd.f32 %v7321, %v7328
    %v7331 = vmul.f32 %v7330, 0.5
    %v7333 = vrot.slane %v7331, 7
    %v7335 = vsel %vm285, %v7326, %v7333
    %v7336 = vld [vmem:[%s17] sm:$0x1]
    %v7337 = vld [vmem:[%s18] sm:$0x1]
    %v7338 = vsel %vm267, %v7335, 0.0
    %7339 = vadd.xlane.f32.xlu0 %v7338
    %v7340 = vpop.xlane.xlu0 %7339
    %v7341 = vmul.f32 %v7340, %v319
    %v7342 = vsub.f32 %v7335, %v7341
    %v7343 = vmul.f32 %v7342, %v7342
    %v7344 = vsel %vm267, %v7343, 0.0
    %7345 = vadd.xlane.f32.xlu0 %v7344
    %v7346 = vpop.xlane.xlu0 %7345
    %v7347 = vmul.f32 %v7346, %v319
    %v7348 = vadd.f32 %v7347, 1e-05
    %v7349 = vrsqrt.pop %v7348
    %v7350 = vmul.f32 %v7342, %v7349
    %v7352 = vlaneseq
    %v7353 = vshrl.u32 %v7352, 7
    %v7354 = vsub.s32 0, %v7353
    %v7355 = vrot.slane %v7336, %v7354
    %v7357 = vmul.f32 %v7350, %v7355
    %v7359 = vlaneseq
    %v7360 = vshrl.u32 %v7359, 7
    %v7361 = vsub.s32 0, %v7360
    %v7362 = vrot.slane %v7337, %v7361
    %v7364 = vadd.f32 %v7357, %v7362
    %v7365 = vpack.c.bf16 %v7364, %v7364
    %v7366 = vld [vmem:[%s19] sm:$0xf]
    %v7367 = vld [vmem:[%s19 + $0x4] sm:$0xf]
    %v7368 = vld [vmem:[%s19 + $0x8] sm:$0xf]
    %v7369 = vld [vmem:[%s19 + $0xc] sm:$0xf]
    %v7370 = vld [vmem:[%s19 + $0x10] sm:$0xf]
    %v7371 = vld [vmem:[%s19 + $0x14] sm:$0xf]
    %v7372 = vld [vmem:[%s19 + $0x18] sm:$0xf]
    %v7373 = vld [vmem:[%s19 + $0x1c] sm:$0xf]
    %v7374 = vld [vmem:[%s20] sm:$0x1]
    %v7376 = vlaneseq
    %v7377 = vshrl.u32 %v7376, 7
    %v7378 = vsub.s32 0, %v7377
    %v7379 = vrot.slane %v7374, %v7378
    %v7389 = vunpack.c.l.b16 %v7366
    %v7390 = vunpack.c.l.b16 %v7367
    %v7391 = vunpack.c.l.b16 %v7368
    %v7392 = vunpack.c.l.b16 %v7369
    %v7393 = vunpack.c.l.b16 %v7370
    %v7394 = vunpack.c.l.b16 %v7371
    %v7395 = vunpack.c.l.b16 %v7372
    %v7396 = vunpack.c.l.b16 %v7373
    %v7397 = vpack.c.b16 %v7390, %v7389
    %v7398 = vpack.c.b16 %v7392, %v7391
    %v7399 = vpack.c.b16 %v7394, %v7393
    %v7400 = vpack.c.b16 %v7396, %v7395
    %v7406 = vsel %vm273, %v7365, 0
    %7408 = vmatprep.subr.bf16.mxu0 0
    %7409 = vmatpush1.bf16.msra.mxu0 %v7397
    %7410 = vmatprep.subr.bf16.mxu0 0
    %7411 = vmatpush1.bf16.msra.mxu0 %v7398
    %7412 = vmatprep.subr.bf16.mxu0 0
    %7413 = vmatpush1.bf16.msra.mxu0 %v7399
    %7414 = vmatprep.subr.bf16.mxu0 0
    %7415 = vmatpush1.bf16.msra.mxu0 %v7400
    %7416 = vmatprep.subr.bf16.mxu0 0
    %7417 = vmatpush1.bf16.msra.mxu0 0
    %7418 = vmatprep.subr.bf16.mxu0 0
    %7419 = vmatpush1.bf16.msra.mxu0 0
    %7420 = vmatprep.subr.bf16.mxu0 0
    %7421 = vmatpush1.bf16.msra.mxu0 0
    %7422 = vmatprep.subr.bf16.mxu0 0
    %7423 = vmatpush1.bf16.msra.mxu0 0
    %7424 = vmatprep.subr.bf16.mxu0 0
    %7425 = vmatpush1.bf16.msra.mxu0 0
    %7426 = vmatprep.subr.bf16.mxu0 0
    %7427 = vmatpush1.bf16.msra.mxu0 0
    %7428 = vmatprep.subr.bf16.mxu0 0
    %7429 = vmatpush1.bf16.msra.mxu0 0
    %7430 = vmatprep.subr.bf16.mxu0 0
    %7431 = vmatpush1.bf16.msra.mxu0 0
    %7432 = vmatprep.subr.bf16.mxu0 0
    %7433 = vmatpush1.bf16.msra.mxu0 0
    %7434 = vmatprep.subr.bf16.mxu0 0
    %7435 = vmatpush1.bf16.msra.mxu0 0
    %7436 = vmatprep.subr.bf16.mxu0 0
    %7437 = vmatpush1.bf16.msra.mxu0 0
    %7438 = vmatprep.subr.bf16.mxu0 0
    %7439 = vmatpush1.bf16.msra.mxu0 0
    %7440 = vmatprep.mubr.bf16.mxu0 0
    %7441 = vmatmul.mubr.bf16.gmra.mrb[0].mxu0 %v7406
    %v7442 = vpop.f32.mrb[0].mxu0
    %v7443 = vadd.f32 %v7379, %v7442
    %v7444 = vpop.f32.mrb[0].mxu0
    %v7445 = vpop.f32.mrb[0].mxu0
    %v7446 = vpop.f32.mrb[0].mxu0
    %7447 = vdwg.mxu0
    %7448 = vst [vmem:[#allocation3] sm:$0x3] %v7443
    // Predicated region
    $region86: #{ast_bias_forward.1} parent=1 // pred_check
      _
    $region87: #{ast_bias_forward.1} parent=1 // pred_check_branch
      %7450 = sbr.rel (0) target = $region89
    $region88: #{ast_bias_forward.1} parent=1 // pred_region
      %s7452 = ssub.s32 32, 32
      %7453 = vsyncadd [#allocation4], %s7452
      %s7455 = sshll.u32 [#allocation3], 4
      %s7456 = int_to_ptr.vmem [resolvable:$true] %s7455
      %7458 = dma.vmem_to_hbm [thread:$0]  %s7456, 32, %s21, [#allocation4]
    $region89: #{ast_bias_forward.1} parent=1 // pred_fallthru
      _
    // Predicated region
    $region90: #{ast_bias_forward.1} parent=1 // pred_check
      _
    $region91: #{ast_bias_forward.1} parent=1 // pred_check_branch
      %7460 = sbr.rel (0) target = $region93
    $region92: #{ast_bias_forward.1} parent=1 // pred_region
      %7461 = dma.done [#allocation4], 32
    $region93: #{ast_bias_forward.1} parent=1 // pred_fallthru
      _
    %7462 = vsyncpa [#allocation4], 1

</llo_original>
